<compile_context>
chip_gen: v6e
topology: v6e:2x2x1
jax: 0.10.0
libtpu: 0.0.40
codegen_flags: <defaults>
</compile_context>

<pallas_src>
import jax
import jax.numpy as jnp
import numpy as np
from jax.experimental import pallas as pl
from jax.experimental.pallas import tpu as pltpu

L = 500        # self.L
D = 128        # self.D
K = 1          # self.K
F_IN = 1000    # resnet18 output features

L_PAD = 512    # L padded to a lane multiple (for the weight matrices only)
TILE_N = 512   # instance rows per grid step

NEG_INF = -1e30   # Python float (NOT a jnp scalar -> no captured constant in the kernel)


def mil_attention_kernel(n_ref,                                   # SMEM scalar prefetch: [n]
                         x_ref, w1_ref, b1_ref, wa1_ref, ba1_ref, wa2_ref, ba2_ref,
                         logits_ref, m_out_ref, l_out_ref, acc_out_ref,
                         m_sc, l_sc, acc_sc):
    o = pl.program_id(0)             # bag half (sharded across TensorCores on v7x)
    i = pl.program_id(1)             # instance tile within the half (sequential reduction)
    n_inner = pl.num_programs(1)

    @pl.when(i == 0)
    def _init():
        m_sc[...] = jnp.full_like(m_sc, NEG_INF)
        l_sc[...] = jnp.zeros_like(l_sc)
        acc_sc[...] = jnp.zeros_like(acc_sc)

    # global row ids of this tile (column orientation)
    row = (jax.lax.broadcasted_iota(jnp.int32, (TILE_N, 1), 0)
           + (o * n_inner + i) * TILE_N)
    row_valid = row < n_ref[0]

    # ---- feature_extractor_part2: Linear(1000 -> L) + ReLU  (bf16 MXU inputs, f32 accum) ----
    x_bf = x_ref[...].astype(jnp.bfloat16)                         # cast in-kernel, no wrapper pass
    h = jnp.dot(x_bf, w1_ref[...], preferred_element_type=jnp.float32)
    h = jnp.maximum(h + b1_ref[...], 0.0)                          # (TILE_N, L_PAD) f32
    h = jnp.where(row_valid, h, 0.0)                               # zero rows past the bag / OOB rows

    # ---- attention MLP: tanh(Linear(L -> D)); Linear(D -> 1) as a VPU mul + lane reduce ----
    a_hid = jnp.tanh(
        jnp.dot(h.astype(jnp.bfloat16), wa1_ref[...],
                preferred_element_type=jnp.float32) + ba1_ref[...])   # (TILE_N, D) f32
    logits = jnp.sum(a_hid * wa2_ref[...], axis=1, keepdims=True) + ba2_ref[...]  # (TILE_N, 1)
    logits = jnp.where(row_valid, logits, NEG_INF)

    # stream the raw masked logits out per tile (softmax finalized exactly in the wrapper)
    logits_ref[...] = logits

    # ---- online softmax accumulation over this half's tiles ----
    m_prev = m_sc[...]                                             # (1, 1)
    m_new = jnp.maximum(m_prev, jnp.max(logits, axis=0, keepdims=True))
    alpha = jnp.exp(m_prev - m_new)
    p = jnp.exp(logits - m_new)                                    # (TILE_N, 1); masked rows -> 0
    l_sc[...] = alpha * l_sc[...] + jnp.sum(p, axis=0, keepdims=True)
    # A @ H tile update on the VPU (broadcast-multiply + row reduce) -- keeps the MXU free
    acc_sc[...] = alpha * acc_sc[...] + jnp.sum(p * h, axis=0, keepdims=True)
    m_sc[...] = m_new

    # ---- emit this half's partial online-softmax state on its last tile ----
    @pl.when(i == n_inner - 1)
    def _finalize():
        m_out_ref[...] = m_sc[...]
        l_out_ref[...] = l_sc[...]
        acc_out_ref[...] = acc_sc[...]


def prepare_params(params):
    """Pad / cast the PyTorch-layout params into the kernel layout (lane-aligned, bf16 MXU)."""
    w1, b1, wa1, ba1, wa2, ba2, wc, bc = params
    w1p = jnp.zeros((F_IN, L_PAD), jnp.bfloat16).at[:, :L].set(w1.astype(jnp.bfloat16))
    b1p = jnp.zeros((1, L_PAD), jnp.float32).at[:, :L].set(b1)
    wa1p = jnp.zeros((L_PAD, D), jnp.bfloat16).at[:L, :].set(wa1.astype(jnp.bfloat16))
    ba1p = ba1.astype(jnp.float32)                   # (1, D)
    wa2p = wa2.T.astype(jnp.float32)                 # (1, D) row form
    ba2p = ba2.astype(jnp.float32)                   # (1, 1)
    # classifier stays in the (exact f32) wrapper epilogue
    return (w1p, b1p, wa1p, ba1p, wa2p, ba2p, wc.astype(jnp.float32), bc.astype(jnp.float32))


@jax.jit
def mil_attention_forward(h_feats, kparams):
    """h_feats: (N, 1000) float32 per-instance features (resnet18(x).view(-1, 1000))."""
    w1p, b1p, wa1p, ba1p, wa2p, ba2p, wc, bc = kparams
    h_feats = h_feats.astype(jnp.float32)
    n = h_feats.shape[0]
    n_tiles = pl.cdiv(n, TILE_N)
    # use both v7x TensorCores when the tile count splits evenly; harmless (serial) on v5e/v6e
    n_split = 2 if (n_tiles % 2 == 0) else 1
    n_inner = n_tiles // n_split

    n_arr = jnp.full((1,), n, dtype=jnp.int32)

    grid_spec = pltpu.PrefetchScalarGridSpec(
        num_scalar_prefetch=1,
        grid=(n_split, n_inner),
        in_specs=[
            pl.BlockSpec((TILE_N, F_IN), lambda o, i, n_s: (o * n_inner + i, 0)),  # streamed tile
            pl.BlockSpec((F_IN, L_PAD), lambda o, i, n_s: (0, 0)),                 # resident weights
            pl.BlockSpec((1, L_PAD), lambda o, i, n_s: (0, 0)),
            pl.BlockSpec((L_PAD, D), lambda o, i, n_s: (0, 0)),
            pl.BlockSpec((1, D), lambda o, i, n_s: (0, 0)),
            pl.BlockSpec((1, D), lambda o, i, n_s: (0, 0)),
            pl.BlockSpec((1, 1), lambda o, i, n_s: (0, 0)),
        ],
        out_specs=(
            pl.BlockSpec((TILE_N, 1), lambda o, i, n_s: (o * n_inner + i, 0)),     # raw logits
            pl.BlockSpec((None, 1, 1), lambda o, i, n_s: (o, 0, 0)),               # partial m
            pl.BlockSpec((None, 1, 1), lambda o, i, n_s: (o, 0, 0)),               # partial l
            pl.BlockSpec((None, 1, L_PAD), lambda o, i, n_s: (o, 0, 0)),           # partial acc
        ),
        scratch_shapes=[
            pltpu.VMEM((1, 1), jnp.float32),          # running max
            pltpu.VMEM((1, 1), jnp.float32),          # running softmax denominator
            pltpu.VMEM((1, L_PAD), jnp.float32),      # running (unnormalized) A @ H
        ],
    )

    logits, m_p, l_p, acc_p = pl.pallas_call(
        mil_attention_kernel,
        out_shape=(
            jax.ShapeDtypeStruct((n, 1), jnp.float32),
            jax.ShapeDtypeStruct((n_split, 1, 1), jnp.float32),
            jax.ShapeDtypeStruct((n_split, 1, 1), jnp.float32),
            jax.ShapeDtypeStruct((n_split, 1, L_PAD), jnp.float32),
        ),
        grid_spec=grid_spec,
        compiler_params=pltpu.CompilerParams(
            dimension_semantics=("parallel", "arbitrary"),
            vmem_limit_bytes=32 * 1024 * 1024,
        ),
    )(n_arr, h_feats, w1p, b1p, wa1p, ba1p, wa2p, ba2p)

    # ---- tiny exact-f32 epilogue (O(L) + O(N)): merge halves, classifier, attention softmax ----
    # TODO(synk): n == 0 (empty bag) is not handled (division by zero), same as the PyTorch module.
    m_h = m_p[:, 0, 0]                                       # (n_split,)
    l_h = l_p[:, 0, 0]
    acc_h = acc_p[:, 0, :]                                    # (n_split, L_PAD)
    m_tot = jnp.max(m_h)
    coef = jnp.exp(m_h - m_tot)
    l_tot = jnp.sum(coef * l_h)
    m_bag = jnp.sum(coef[:, None] * acc_h, axis=0, keepdims=True) / l_tot   # (1, L_PAD) == M
    y_prob = jax.nn.sigmoid(m_bag[:, :L] @ wc + bc)                         # (1, 1)
    y_hat = (y_prob >= 0.5).astype(jnp.float32)
    attention = jax.nn.softmax(logits[:, 0])[None, :]                       # (K, N), exact softmax
    return y_prob, y_hat, attention


def init_params(key):
    """Deterministic PyTorch nn.Linear-style init: U(+-1/sqrt(fan_in)) for W and b."""
    ks = jax.random.split(key, 8)

    def lin(kw, kb, fan_in, fan_out):
        bound = 1.0 / np.sqrt(fan_in)
        w = jax.random.uniform(kw, (fan_in, fan_out), jnp.float32, -bound, bound)
        b = jax.random.uniform(kb, (1, fan_out), jnp.float32, -bound, bound)
        return w, b

    w1, b1 = lin(ks[0], ks[1], F_IN, L)      # feature_extractor_part2[0]
    wa1, ba1 = lin(ks[2], ks[3], L, D)       # attention[0]
    wa2, ba2 = lin(ks[4], ks[5], D, K)       # attention[2]
    wc, bc = lin(ks[6], ks[7], L * K, 1)     # classifier[0]
    return (w1, b1, wa1, ba1, wa2, ba2, wc, bc)


def reference_forward(h_feats, params):
    w1, b1, wa1, ba1, wa2, ba2, wc, bc = params
    H = jax.nn.relu(h_feats @ w1 + b1)                 # (N, L)
    A = jnp.tanh(H @ wa1 + ba1) @ wa2 + ba2            # (N, K)
    A = jax.nn.softmax(jnp.transpose(A), axis=1)       # (K, N)
    M = A @ H                                          # (K, L)
    Y_prob = jax.nn.sigmoid(M @ wc + bc)               # (1, 1)
    Y_hat = (Y_prob >= 0.5).astype(jnp.float32)
    return Y_prob, Y_hat, A


if __name__ == "__main__":
    key = jax.random.PRNGKey(0)
    k_param, k_data = jax.random.split(key)

    N = 600   # spans 2 instance tiles (both TensorCores on v7x), last tile partially masked
    params = init_params(k_param)
    kparams = prepare_params(params)
    # stand-in for resnet18(x).view(-1, 1000) output features
    h_feats = jax.random.normal(k_data, (N, F_IN), dtype=jnp.float32)

    y_prob, y_hat, A = mil_attention_forward(h_feats, kparams)
    jax.block_until_ready((y_prob, y_hat, A))

    ref_y_prob, ref_y_hat, ref_A = reference_forward(h_feats, params)
    # bf16 MXU inputs -> loosened tolerances vs the f32 reference
    np.testing.assert_allclose(np.asarray(y_prob), np.asarray(ref_y_prob), rtol=3e-2, atol=4e-3)
    np.testing.assert_allclose(np.asarray(A), np.asarray(ref_A), rtol=7.5e-2, atol=3e-5)
    # Y_hat = (Y_prob >= 0.5): check self-consistency against the kernel's own Y_prob
    # (direct comparison with ref_y_hat would be flaky whenever Y_prob sits near 0.5).
    np.testing.assert_array_equal(
        np.asarray(y_hat), (np.asarray(y_prob) >= 0.5).astype(np.float32))

    assert y_prob.shape == (1, 1) and y_hat.shape == (1, 1) and A.shape == (K, N)
    print("KERNEL_OK")
</pallas_src>

<mosaic_0001>
module attributes {stable_mosaic.version = 11 : i64} {
  func.func @mil_attention_kernel(%arg0: i32, %arg1: i32, %arg2: memref<1xi32, #tpu.memory_space<smem>>, %arg3: memref<512x1000xf32, #tpu.memory_space<vmem>>, %arg4: memref<1000x512xbf16, #tpu.memory_space<vmem>>, %arg5: memref<1x512xf32, #tpu.memory_space<vmem>>, %arg6: memref<512x128xbf16, #tpu.memory_space<vmem>>, %arg7: memref<1x128xf32, #tpu.memory_space<vmem>>, %arg8: memref<1x128xf32, #tpu.memory_space<vmem>>, %arg9: memref<1x1xf32, #tpu.memory_space<vmem>>, %arg10: memref<512x1xf32, #tpu.memory_space<vmem>>, %arg11: memref<1x1x1xf32, #tpu.memory_space<vmem>>, %arg12: memref<1x1x1xf32, #tpu.memory_space<vmem>>, %arg13: memref<1x1x512xf32, #tpu.memory_space<vmem>>, %arg14: memref<1x1xf32, #tpu.memory_space<vmem>>, %arg15: memref<1x1xf32, #tpu.memory_space<vmem>>, %arg16: memref<1x512xf32, #tpu.memory_space<vmem>>) attributes {dimension_semantics = [#tpu.dimension_semantics<parallel>, #tpu.dimension_semantics<arbitrary>], iteration_bounds = array<i64: 2, 1>, scalar_prefetch = 1 : i64, scratch_operands = 3 : i64, tpu.core_type = #tpu.core_type<tc>, window_params = [{transform_indices = @transform_0, window_bounds = array<i64: 512, 1000>}, {pipeline_mode = #tpu.pipeline_mode<synchronous>, transform_indices = @transform_1, window_bounds = array<i64: 1000, 512>}, {pipeline_mode = #tpu.pipeline_mode<synchronous>, transform_indices = @transform_2, window_bounds = array<i64: 1, 512>}, {pipeline_mode = #tpu.pipeline_mode<synchronous>, transform_indices = @transform_3, window_bounds = array<i64: 512, 128>}, {pipeline_mode = #tpu.pipeline_mode<synchronous>, transform_indices = @transform_4, window_bounds = array<i64: 1, 128>}, {pipeline_mode = #tpu.pipeline_mode<synchronous>, transform_indices = @transform_5, window_bounds = array<i64: 1, 128>}, {pipeline_mode = #tpu.pipeline_mode<synchronous>, transform_indices = @transform_6, window_bounds = array<i64: 1, 1>}, {transform_indices = @transform_7, window_bounds = array<i64: 512, 1>}, {transform_indices = @transform_8, window_bounds = array<i64: 1, 1, 1>}, {transform_indices = @transform_9, window_bounds = array<i64: 1, 1, 1>}, {transform_indices = @transform_10, window_bounds = array<i64: 1, 1, 512>}]} {
    %c0_i32 = arith.constant 0 : i32
    %0 = arith.cmpi eq, %arg1, %c0_i32 : i32
    %1 = arith.extui %0 : i1 to i32
    %c0_i32_0 = arith.constant 0 : i32
    %2 = arith.cmpi ne, %1, %c0_i32_0 : i32
    scf.if %2 {
      %cst_39 = arith.constant -1.000000e+30 : f32
      %71 = vector.broadcast %cst_39 : f32 to vector<1x1xf32>
      %c0_40 = arith.constant 0 : index
      %c0_41 = arith.constant 0 : index
      %72 = vector.load %arg14[%c0_40, %c0_41] : memref<1x1xf32, #tpu.memory_space<vmem>>, vector<1x1xf32>
      tpu.vector_store %arg14[%c0_40, %c0_41], %71 {strides = array<i32>} : memref<1x1xf32, #tpu.memory_space<vmem>>, vector<1x1xf32>,
      %cst_42 = arith.constant 0.000000e+00 : f32
      %73 = vector.broadcast %cst_42 : f32 to vector<1x1xf32>
      %c0_43 = arith.constant 0 : index
      %c0_44 = arith.constant 0 : index
      %74 = vector.load %arg15[%c0_43, %c0_44] : memref<1x1xf32, #tpu.memory_space<vmem>>, vector<1x1xf32>
      tpu.vector_store %arg15[%c0_43, %c0_44], %73 {strides = array<i32>} : memref<1x1xf32, #tpu.memory_space<vmem>>, vector<1x1xf32>,
      %cst_45 = arith.constant 0.000000e+00 : f32
      %75 = vector.broadcast %cst_45 : f32 to vector<1x512xf32>
      %c0_46 = arith.constant 0 : index
      %c0_47 = arith.constant 0 : index
      %76 = vector.load %arg16[%c0_46, %c0_47] : memref<1x512xf32, #tpu.memory_space<vmem>>, vector<1x512xf32>
      tpu.vector_store %arg16[%c0_46, %c0_47], %75 {strides = array<i32>} : memref<1x512xf32, #tpu.memory_space<vmem>>, vector<1x512xf32>,
    } else {
    }
    %3 = tpu.iota {dimensions = array<i32: 0>} : vector<512x1xi32>
    %c1_i32 = arith.constant 1 : i32
    %4 = arith.muli %arg0, %c1_i32 : i32
    %5 = arith.addi %4, %arg1 : i32
    %c512_i32 = arith.constant 512 : i32
    %6 = arith.muli %5, %c512_i32 : i32
    %7 = vector.broadcast %6 : i32 to vector<512x1xi32>
    %8 = arith.addi %3, %7 : vector<512x1xi32>
    %c0 = arith.constant 0 : index
    %9 = memref.load %arg2[%c0] : memref<1xi32, #tpu.memory_space<smem>>
    %10 = vector.broadcast %9 : i32 to vector<512x1xi32>
    %11 = arith.cmpi slt, %8, %10 : vector<512x1xi32>
    %c0_1 = arith.constant 0 : index
    %c0_2 = arith.constant 0 : index
    %12 = vector.load %arg3[%c0_1, %c0_2] : memref<512x1000xf32, #tpu.memory_space<vmem>>, vector<512x1000xf32>
    %13 = arith.truncf %12 : vector<512x1000xf32> to vector<512x1000xbf16>
    %c0_3 = arith.constant 0 : index
    %c0_4 = arith.constant 0 : index
    %14 = vector.load %arg4[%c0_3, %c0_4] : memref<1000x512xbf16, #tpu.memory_space<vmem>>, vector<1000x512xbf16>
    %cst = arith.constant dense<0.000000e+00> : vector<512x512xf32>
    %15 = tpu.matmul %13, %14, %cst {dimension_numbers = #tpu.dot_dimension_numbers<[1], [0], [0], [1], [0, 0, 1, 1], [], []>} : vector<512x1000xbf16>, vector<1000x512xbf16>, vector<512x512xf32> -> vector<512x512xf32>
    %c0_5 = arith.constant 0 : index
    %c0_6 = arith.constant 0 : index
    %16 = vector.load %arg5[%c0_5, %c0_6] : memref<1x512xf32, #tpu.memory_space<vmem>>, vector<1x512xf32>
    %17 = vector.broadcast %16 : vector<1x512xf32> to vector<512x512xf32>
    %18 = arith.addf %15, %17 : vector<512x512xf32>
    %cst_7 = arith.constant 0.000000e+00 : f32
    %19 = vector.broadcast %cst_7 : f32 to vector<512x512xf32>
    %20 = arith.maximumf %18, %19 : vector<512x512xf32>
    %cst_8 = arith.constant 0.000000e+00 : f32
    %21 = vector.shape_cast %11 : vector<512x1xi1> to vector<512x1xi1>
    %22 = vector.broadcast %21 : vector<512x1xi1> to vector<512x512xi1>
    %23 = vector.broadcast %cst_8 : f32 to vector<512x512xf32>
    %24 = arith.select %22, %20, %23 : vector<512x512xi1>, vector<512x512xf32>
    %25 = arith.truncf %24 : vector<512x512xf32> to vector<512x512xbf16>
    %c0_9 = arith.constant 0 : index
    %c0_10 = arith.constant 0 : index
    %26 = vector.load %arg6[%c0_9, %c0_10] : memref<512x128xbf16, #tpu.memory_space<vmem>>, vector<512x128xbf16>
    %cst_11 = arith.constant dense<0.000000e+00> : vector<512x128xf32>
    %27 = tpu.matmul %25, %26, %cst_11 {dimension_numbers = #tpu.dot_dimension_numbers<[1], [0], [0], [1], [0, 0, 1, 1], [], []>} : vector<512x512xbf16>, vector<512x128xbf16>, vector<512x128xf32> -> vector<512x128xf32>
    %c0_12 = arith.constant 0 : index
    %c0_13 = arith.constant 0 : index
    %28 = vector.load %arg7[%c0_12, %c0_13] : memref<1x128xf32, #tpu.memory_space<vmem>>, vector<1x128xf32>
    %29 = vector.broadcast %28 : vector<1x128xf32> to vector<512x128xf32>
    %30 = arith.addf %27, %29 : vector<512x128xf32>
    %31 = math.tanh %30 : vector<512x128xf32>
    %c0_14 = arith.constant 0 : index
    %c0_15 = arith.constant 0 : index
    %32 = vector.load %arg8[%c0_14, %c0_15] : memref<1x128xf32, #tpu.memory_space<vmem>>, vector<1x128xf32>
    %33 = vector.broadcast %32 : vector<1x128xf32> to vector<512x128xf32>
    %34 = arith.mulf %31, %33 : vector<512x128xf32>
    %cst_16 = arith.constant dense<0.000000e+00> : vector<512xf32>
    %35 = vector.multi_reduction <add>, %34, %cst_16 [1] : vector<512x128xf32> to vector<512xf32>
    %36 = vector.shape_cast %35 : vector<512xf32> to vector<512x1xf32>
    %c0_17 = arith.constant 0 : index
    %c0_18 = arith.constant 0 : index
    %37 = vector.load %arg9[%c0_17, %c0_18] : memref<1x1xf32, #tpu.memory_space<vmem>>, vector<1x1xf32>
    %38 = vector.broadcast %37 : vector<1x1xf32> to vector<512x1xf32>
    %39 = arith.addf %36, %38 : vector<512x1xf32>
    %cst_19 = arith.constant -1.000000e+30 : f32
    %40 = vector.broadcast %cst_19 : f32 to vector<512x1xf32>
    %41 = arith.select %11, %39, %40 : vector<512x1xi1>, vector<512x1xf32>
    %c0_20 = arith.constant 0 : index
    %c0_21 = arith.constant 0 : index
    %42 = vector.load %arg10[%c0_20, %c0_21] : memref<512x1xf32, #tpu.memory_space<vmem>>, vector<512x1xf32>
    tpu.vector_store %arg10[%c0_20, %c0_21], %41 {strides = array<i32>} : memref<512x1xf32, #tpu.memory_space<vmem>>, vector<512x1xf32>,
    %c0_22 = arith.constant 0 : index
    %c0_23 = arith.constant 0 : index
    %43 = vector.load %arg14[%c0_22, %c0_23] : memref<1x1xf32, #tpu.memory_space<vmem>>, vector<1x1xf32>
    %cst_24 = arith.constant dense<0xFF800000> : vector<1xf32>
    %44 = vector.multi_reduction <maximumf>, %41, %cst_24 [0] : vector<512x1xf32> to vector<1xf32>
    %45 = vector.shape_cast %44 : vector<1xf32> to vector<1x1xf32>
    %46 = arith.maximumf %43, %45 : vector<1x1xf32>
    %47 = arith.subf %43, %46 : vector<1x1xf32>
    %48 = math.exp %47 : vector<1x1xf32>
    %49 = vector.broadcast %46 : vector<1x1xf32> to vector<512x1xf32>
    %50 = arith.subf %41, %49 : vector<512x1xf32>
    %51 = math.exp %50 : vector<512x1xf32>
    %c0_25 = arith.constant 0 : index
    %c0_26 = arith.constant 0 : index
    %52 = vector.load %arg15[%c0_25, %c0_26] : memref<1x1xf32, #tpu.memory_space<vmem>>, vector<1x1xf32>
    %53 = arith.mulf %48, %52 : vector<1x1xf32>
    %cst_27 = arith.constant dense<0.000000e+00> : vector<1xf32>
    %54 = vector.multi_reduction <add>, %51, %cst_27 [0] : vector<512x1xf32> to vector<1xf32>
    %55 = vector.shape_cast %54 : vector<1xf32> to vector<1x1xf32>
    %56 = arith.addf %53, %55 : vector<1x1xf32>
    %c0_28 = arith.constant 0 : index
    %c0_29 = arith.constant 0 : index
    %57 = vector.load %arg15[%c0_28, %c0_29] : memref<1x1xf32, #tpu.memory_space<vmem>>, vector<1x1xf32>
    tpu.vector_store %arg15[%c0_28, %c0_29], %56 {strides = array<i32>} : memref<1x1xf32, #tpu.memory_space<vmem>>, vector<1x1xf32>,
    %c0_30 = arith.constant 0 : index
    %c0_31 = arith.constant 0 : index
    %58 = vector.load %arg16[%c0_30, %c0_31] : memref<1x512xf32, #tpu.memory_space<vmem>>, vector<1x512xf32>
    %59 = vector.broadcast %48 : vector<1x1xf32> to vector<1x512xf32>
    %60 = arith.mulf %59, %58 : vector<1x512xf32>
    %61 = vector.broadcast %51 : vector<512x1xf32> to vector<512x512xf32>
    %62 = arith.mulf %61, %24 : vector<512x512xf32>
    %cst_32 = arith.constant dense<0.000000e+00> : vector<512xf32>
    %63 = vector.multi_reduction <add>, %62, %cst_32 [0] : vector<512x512xf32> to vector<512xf32>
    %64 = vector.shape_cast %63 : vector<512xf32> to vector<1x512xf32>
    %65 = arith.addf %60, %64 : vector<1x512xf32>
    %c0_33 = arith.constant 0 : index
    %c0_34 = arith.constant 0 : index
    %66 = vector.load %arg16[%c0_33, %c0_34] : memref<1x512xf32, #tpu.memory_space<vmem>>, vector<1x512xf32>
    tpu.vector_store %arg16[%c0_33, %c0_34], %65 {strides = array<i32>} : memref<1x512xf32, #tpu.memory_space<vmem>>, vector<1x512xf32>,
    %c0_35 = arith.constant 0 : index
    %c0_36 = arith.constant 0 : index
    %67 = vector.load %arg14[%c0_35, %c0_36] : memref<1x1xf32, #tpu.memory_space<vmem>>, vector<1x1xf32>
    tpu.vector_store %arg14[%c0_35, %c0_36], %46 {strides = array<i32>} : memref<1x1xf32, #tpu.memory_space<vmem>>, vector<1x1xf32>,
    %c0_i32_37 = arith.constant 0 : i32
    %68 = arith.cmpi eq, %arg1, %c0_i32_37 : i32
    %69 = arith.extui %68 : i1 to i32
    %c0_i32_38 = arith.constant 0 : i32
    %70 = arith.cmpi ne, %69, %c0_i32_38 : i32
    scf.if %70 {
      %c0_39 = arith.constant 0 : index
      %c0_40 = arith.constant 0 : index
      %71 = vector.load %arg14[%c0_39, %c0_40] : memref<1x1xf32, #tpu.memory_space<vmem>>, vector<1x1xf32>
      %c0_41 = arith.constant 0 : index
      %c0_42 = arith.constant 0 : index
      %c0_43 = arith.constant 0 : index
      %72 = vector.load %arg11[%c0_41, %c0_42, %c0_43] : memref<1x1x1xf32, #tpu.memory_space<vmem>>, vector<1x1x1xf32>
      %73 = vector.shape_cast %72 : vector<1x1x1xf32> to vector<1x1xf32>
      %74 = vector.shape_cast %71 : vector<1x1xf32> to vector<1x1x1xf32>
      tpu.vector_store %arg11[%c0_41, %c0_42, %c0_43], %74 {strides = array<i32>} : memref<1x1x1xf32, #tpu.memory_space<vmem>>, vector<1x1x1xf32>,
      %c0_44 = arith.constant 0 : index
      %c0_45 = arith.constant 0 : index
      %75 = vector.load %arg15[%c0_44, %c0_45] : memref<1x1xf32, #tpu.memory_space<vmem>>, vector<1x1xf32>
      %c0_46 = arith.constant 0 : index
      %c0_47 = arith.constant 0 : index
      %c0_48 = arith.constant 0 : index
      %76 = vector.load %arg12[%c0_46, %c0_47, %c0_48] : memref<1x1x1xf32, #tpu.memory_space<vmem>>, vector<1x1x1xf32>
      %77 = vector.shape_cast %76 : vector<1x1x1xf32> to vector<1x1xf32>
      %78 = vector.shape_cast %75 : vector<1x1xf32> to vector<1x1x1xf32>
      tpu.vector_store %arg12[%c0_46, %c0_47, %c0_48], %78 {strides = array<i32>} : memref<1x1x1xf32, #tpu.memory_space<vmem>>, vector<1x1x1xf32>,
      %c0_49 = arith.constant 0 : index
      %c0_50 = arith.constant 0 : index
      %79 = vector.load %arg16[%c0_49, %c0_50] : memref<1x512xf32, #tpu.memory_space<vmem>>, vector<1x512xf32>
      %c0_51 = arith.constant 0 : index
      %c0_52 = arith.constant 0 : index
      %c0_53 = arith.constant 0 : index
      %80 = vector.load %arg13[%c0_51, %c0_52, %c0_53] : memref<1x1x512xf32, #tpu.memory_space<vmem>>, vector<1x1x512xf32>
      %81 = vector.shape_cast %80 : vector<1x1x512xf32> to vector<1x512xf32>
      %82 = vector.shape_cast %79 : vector<1x512xf32> to vector<1x1x512xf32>
      tpu.vector_store %arg13[%c0_51, %c0_52, %c0_53], %82 {strides = array<i32>} : memref<1x1x512xf32, #tpu.memory_space<vmem>>, vector<1x1x512xf32>,
    } else {
    }
    return
  }
  func.func @transform_0(%arg0: i32, %arg1: i32, %arg2: memref<1xi32, #tpu.memory_space<smem>>) -> (i32, i32) {
    %c1_i32 = arith.constant 1 : i32
    %0 = arith.muli %arg0, %c1_i32 : i32
    %1 = arith.addi %0, %arg1 : i32
    %c0_i32 = arith.constant 0 : i32
    %c0_i32_0 = arith.constant 0 : i32
    return %1, %c0_i32 : i32, i32
  }
  func.func @transform_1(%arg0: i32, %arg1: i32, %arg2: memref<1xi32, #tpu.memory_space<smem>>) -> (i32, i32) {
    %c0_i32 = arith.constant 0 : i32
    %c0_i32_0 = arith.constant 0 : i32
    %c0_i32_1 = arith.constant 0 : i32
    return %c0_i32, %c0_i32_0 : i32, i32
  }
  func.func @transform_2(%arg0: i32, %arg1: i32, %arg2: memref<1xi32, #tpu.memory_space<smem>>) -> (i32, i32) {
    %c0_i32 = arith.constant 0 : i32
    %c0_i32_0 = arith.constant 0 : i32
    %c0_i32_1 = arith.constant 0 : i32
    return %c0_i32, %c0_i32_0 : i32, i32
  }
  func.func @transform_3(%arg0: i32, %arg1: i32, %arg2: memref<1xi32, #tpu.memory_space<smem>>) -> (i32, i32) {
    %c0_i32 = arith.constant 0 : i32
    %c0_i32_0 = arith.constant 0 : i32
    %c0_i32_1 = arith.constant 0 : i32
    return %c0_i32, %c0_i32_0 : i32, i32
  }
  func.func @transform_4(%arg0: i32, %arg1: i32, %arg2: memref<1xi32, #tpu.memory_space<smem>>) -> (i32, i32) {
    %c0_i32 = arith.constant 0 : i32
    %c0_i32_0 = arith.constant 0 : i32
    %c0_i32_1 = arith.constant 0 : i32
    return %c0_i32, %c0_i32_0 : i32, i32
  }
  func.func @transform_5(%arg0: i32, %arg1: i32, %arg2: memref<1xi32, #tpu.memory_space<smem>>) -> (i32, i32) {
    %c0_i32 = arith.constant 0 : i32
    %c0_i32_0 = arith.constant 0 : i32
    %c0_i32_1 = arith.constant 0 : i32
    return %c0_i32, %c0_i32_0 : i32, i32
  }
  func.func @transform_6(%arg0: i32, %arg1: i32, %arg2: memref<1xi32, #tpu.memory_space<smem>>) -> (i32, i32) {
    %c0_i32 = arith.constant 0 : i32
    %c0_i32_0 = arith.constant 0 : i32
    %c0_i32_1 = arith.constant 0 : i32
    return %c0_i32, %c0_i32_0 : i32, i32
  }
  func.func @transform_7(%arg0: i32, %arg1: i32, %arg2: memref<1xi32, #tpu.memory_space<smem>>) -> (i32, i32) {
    %c1_i32 = arith.constant 1 : i32
    %0 = arith.muli %arg0, %c1_i32 : i32
    %1 = arith.addi %0, %arg1 : i32
    %c0_i32 = arith.constant 0 : i32
    %c0_i32_0 = arith.constant 0 : i32
    return %1, %c0_i32 : i32, i32
  }
  func.func @transform_8(%arg0: i32, %arg1: i32, %arg2: memref<1xi32, #tpu.memory_space<smem>>) -> (i32, i32, i32) {
    %c0_i32 = arith.constant 0 : i32
    %c0_i32_0 = arith.constant 0 : i32
    %c0_i32_1 = arith.constant 0 : i32
    return %arg0, %c0_i32, %c0_i32_0 : i32, i32, i32
  }
  func.func @transform_9(%arg0: i32, %arg1: i32, %arg2: memref<1xi32, #tpu.memory_space<smem>>) -> (i32, i32, i32) {
    %c0_i32 = arith.constant 0 : i32
    %c0_i32_0 = arith.constant 0 : i32
    %c0_i32_1 = arith.constant 0 : i32
    return %arg0, %c0_i32, %c0_i32_0 : i32, i32, i32
  }
  func.func @transform_10(%arg0: i32, %arg1: i32, %arg2: memref<1xi32, #tpu.memory_space<smem>>) -> (i32, i32, i32) {
    %c0_i32 = arith.constant 0 : i32
    %c0_i32_0 = arith.constant 0 : i32
    %c0_i32_1 = arith.constant 0 : i32
    return %arg0, %c0_i32, %c0_i32_0 : i32, i32, i32
  }
}

</mosaic_0001>

<llo_original>
// kernel: mil_attention_forward.1
$region0: #{mil_attention_forward.1}
  #allocation0 [shape = 'u32[]', space=smem, size = 0x4, offset = 0x4, fixed_abs, tag = 'smem constant byte address 0x4 - core index']
  #allocation1 [shape = 'u32[144,128]{1,0:T(1,128)}', space=vmem, size = 0x12000, scoped, tag = 'internal scratch']
  #allocation2 [shape = 'f32[1,1]{1,0:T(1,128)}', space=vmem, size = 0x200, scoped, tag = 'scratch operand']
  #allocation3 [shape = 'f32[1,1]{1,0:T(1,128)}', space=vmem, size = 0x200, scoped, tag = 'scratch operand']
  #allocation4 [shape = 'f32[1,512]{1,0:T(1,128)}', space=vmem, size = 0x800, scoped, tag = 'scratch operand']
  #allocation5 [shape = 's32[1]{0}', space=sflag, size = 0x4, scoped, tag = 'scoped memory for mil_attention_forward.1']
  #allocation6 [shape = 's32[1]{0:T(128)S(6)}', space=smem, size = 0x200, scoped, tag = 'prefetched SMEM operand 0']
  #allocation7 [shape = 'f32[1,1]{1,0:T(1,128)S(1)}', space=vmem, size = 0x200, scoped, tag = 'scoped memory for mil_attention_forward.1']
  %s0 = inlined_call_operand.<no memory space> [shape: s32[1], index: 0, kind: input, shape index: {}]
  %s1 = inlined_call_operand.hbm [shape: f32[600,1000], index: 1, kind: input, shape index: {}]
  %s2 = inlined_call_operand.hbm [shape: bf16[1000,512], index: 2, kind: input, shape index: {}]
  %s3 = inlined_call_operand.hbm [shape: f32[1,512], index: 3, kind: input, shape index: {}]
  %s4 = inlined_call_operand.hbm [shape: bf16[512,128], index: 4, kind: input, shape index: {}]
  %s5 = inlined_call_operand.hbm [shape: f32[1,128], index: 5, kind: input, shape index: {}]
  %s6 = inlined_call_operand.hbm [shape: f32[1,128], index: 6, kind: input, shape index: {}]
  %s7 = inlined_call_operand.<no memory space> [shape: f32[1,1], index: 7, kind: input, shape index: {}]
  %s8 = inlined_call_operand.vmem [shape: f32[600,1], index: 8, kind: output, shape index: {0}]
  %s9 = inlined_call_operand.vmem [shape: f32[2,1,1], index: 9, kind: output, shape index: {1}]
  %s10 = inlined_call_operand.vmem [shape: f32[2,1,1], index: 10, kind: output, shape index: {2}]
  %s11 = inlined_call_operand.vmem [shape: f32[2,1,512], index: 11, kind: output, shape index: {3}]
  %12 = xla_tuple %s8, %s9, %s10, %s11
  %s13 = sld [smem:[#allocation0]]
  $region165: #{mil_attention_forward.1} parent=0
    _
  %s15 = ssub.s32 1, %s13
  %s16 = scalar_select 0, %s15, %s13
  %17 = sst [smem:[#allocation6]] %s0
  %v18 = vstv %s7
  %19 = vst [vmem:[#allocation7] sm:$0x1] %v18
  $region1: #{mil_attention_forward.1} parent=0
    #allocation8 [shape = 'u8[4194304]{0}', space=vmem, size = 0x400000, scoped, tag = 'input window, operand 1']
    #allocation9 [shape = 's32[2]{0}', space=sflag, size = 0x8, scoped, tag = 'scoped memory for mil_attention_forward.1']
    #allocation10 [shape = 'u8[1024000]{0}', space=vmem, size = 0xfa000, scoped, tag = 'input window, operand 2, single buffered']
    #allocation11 [shape = 's32[1]{0}', space=sflag, size = 0x4, scoped, tag = 'scoped memory for mil_attention_forward.1']
    #allocation12 [shape = 'u8[2048]{0}', space=vmem, size = 0x800, scoped, tag = 'input window, operand 3, single buffered']
    #allocation13 [shape = 'u8[131072]{0}', space=vmem, size = 0x20000, scoped, tag = 'input window, operand 4, single buffered']
    #allocation14 [shape = 's32[1]{0}', space=sflag, size = 0x4, scoped, tag = 'scoped memory for mil_attention_forward.1']
    #allocation15 [shape = 'u8[512]{0}', space=vmem, size = 0x400, scoped, tag = 'input window, operand 5, single buffered']
    #allocation16 [shape = 'u8[512]{0}', space=vmem, size = 0x400, scoped, tag = 'input window, operand 6, single buffered']
    #allocation17 [shape = 's32[1]{0}', space=sflag, size = 0x4, scoped, tag = 'scoped memory for mil_attention_forward.1']
    #allocation18 [shape = 'u8[524288]{0}', space=vmem, size = 0x80000, scoped, tag = 'output window, operand 0']
    %20 = vsyncpa [#allocation9], 0
    %s21 = scalar_lea.sflag [#allocation9], 1
    %22 = vsyncpa %s21, 0
    %23 = vsyncpa [#allocation11], 0
    %24 = vsyncpa [#allocation14], 0
    %25 = vsyncpa [#allocation17], 0
    loop: start=0, step=1, limit=4
    $region2: #{mil_attention_forward.1} parent=1 // loop_pre_header
      _
    $region3: #{mil_attention_forward.1} parent=1 // loop_header
      %s27 = sphi 0, %s31
      %p28 = scmp.ge.s32.totalorder %s27, 4
      %s34 = sphi 0, %s46
      %s35 = sphi 0, %s42
      %s36 = sphi 0, %s34
      %s37 = sphi 0, %s35
      %s38 = sphi 0, %s36
      %s39 = sphi 0, %s37
      %s51 = sphi 0, %s53
      %s54 = sphi 0, %s51
      %s55 = sphi 0, %s54
      %s71 = sphi 0, %s55
      %s75 = sphi 0, %s75
      %s77 = sphi 0, %s75
      %s78 = sphi 0, %s77
      %s92 = sphi 0, %s78
      %s96 = sphi 0, %s96
      %s98 = sphi 0, %s96
      %s99 = sphi 0, %s98
      %s113 = sphi 0, %s99
      %s117 = sphi 0, %s117
      %s119 = sphi 0, %s117
      %s120 = sphi 0, %s119
      %s134 = sphi 0, %s120
      %s138 = sphi 0, %s138
      %s140 = sphi 0, %s138
      %s141 = sphi 0, %s140
      %s155 = sphi 0, %s141
      %s159 = sphi 0, %s159
      %s161 = sphi 0, %s159
      %s162 = sphi 0, %s161
      %s176 = sphi 0, %s162
      %s180 = sphi 0, %s180
      %s182 = sphi 0, %s180
      %s183 = sphi 0, %s182
      %s197 = sphi 0, %s183
      %s205 = sphi 0, %s207
      %s208 = sphi 0, %s205
      %s209 = sphi 0, %s208
      %s225 = sphi 0, %s209
      %s231 = sphi 0, %s233
      %s234 = sphi 0, %s231
      %s235 = sphi 0, %s234
      %s251 = sphi 0, %s235
      %s257 = sphi 0, %s259
      %s260 = sphi 0, %s257
      %s261 = sphi 0, %s260
      %s277 = sphi 0, %s261
      %s283 = sphi 0, %s285
      %s286 = sphi 0, %s283
      %s287 = sphi 0, %s286
      %s303 = sphi 0, %s287
    $region4: #{mil_attention_forward.1} parent=1 // loop_header_branch
      %30 = sbr.rel (%p28) target = $region8
    $region5: #{mil_attention_forward.1} parent=1 // loop_body
      %s32 = ssub.s32 %s27, 1
      %s33 = ssub.s32 %s27, 2
      %s40 = sadd.s32 1, %s35
      %p41 = scmp.ge.s32.totalorder %s40, 1
      %s42 = scalar_select %p41, 0, %s40
      %s43 = sadd.s32 1, %s34
      %s44 = scalar_select %p41, %s43, %s34
      %p45 = scmp.ge.s32.totalorder %s44, 2
      %s46 = scalar_select %p45, 0, %s44
      %s47 = sadd.s32 %s34, %s35
      %s48 = sadd.s32 %s46, %s42
      %s49 = ssub.s32 %s47, %s48
      %p50 = scmp.eq.s32.totalorder %s49, 0
      %s52 = sadd.s32 %s51, 1
      %s53 = scalar_select %p50, %s51, %s52
      %p56 = pneg %p50
      %p57 = scmp.eq.s32.totalorder %s27, 1
      %p58 = por %p56, %p57
      %p59 = scmp.ne.s32.totalorder %s51, %s54
      %p60 = scmp.eq.s32.totalorder %s27, 0
      %p61 = por %p59, %p60
      %p62 = scmp.ne.s32.totalorder %s51, %s54
      %p63 = scmp.eq.s32.totalorder %s32, 1
      %p64 = por %p62, %p63
      %p65 = scmp.ne.s32.totalorder %s54, %s55
      %p66 = scmp.eq.s32.totalorder %s32, 0
      %p67 = por %p65, %p66
      %p68 = scmp.ne.s32.totalorder %s54, %s55
      %p69 = scmp.eq.s32.totalorder %s33, 1
      %p70 = por %p68, %p69
      %p72 = scmp.ne.s32.totalorder %s55, %s71
      %p73 = scmp.eq.s32.totalorder %s33, 0
      %p74 = por %p72, %p73
      %s76 = sadd.s32 %s75, 1
      %p79 = scmp.eq.s32.totalorder %s27, 1
      %p80 = scmp.ne.s32.totalorder %s75, %s77
      %p81 = scmp.eq.s32.totalorder %s27, 0
      %p82 = por %p80, %p81
      %p83 = scmp.ne.s32.totalorder %s75, %s77
      %p84 = scmp.eq.s32.totalorder %s32, 1
      %p85 = por %p83, %p84
      %p86 = scmp.ne.s32.totalorder %s77, %s78
      %p87 = scmp.eq.s32.totalorder %s32, 0
      %p88 = por %p86, %p87
      %p89 = scmp.ne.s32.totalorder %s77, %s78
      %p90 = scmp.eq.s32.totalorder %s33, 1
      %p91 = por %p89, %p90
      %p93 = scmp.ne.s32.totalorder %s78, %s92
      %p94 = scmp.eq.s32.totalorder %s33, 0
      %p95 = por %p93, %p94
      %s97 = sadd.s32 %s96, 1
      %p100 = scmp.eq.s32.totalorder %s27, 1
      %p101 = scmp.ne.s32.totalorder %s96, %s98
      %p102 = scmp.eq.s32.totalorder %s27, 0
      %p103 = por %p101, %p102
      %p104 = scmp.ne.s32.totalorder %s96, %s98
      %p105 = scmp.eq.s32.totalorder %s32, 1
      %p106 = por %p104, %p105
      %p107 = scmp.ne.s32.totalorder %s98, %s99
      %p108 = scmp.eq.s32.totalorder %s32, 0
      %p109 = por %p107, %p108
      %p110 = scmp.ne.s32.totalorder %s98, %s99
      %p111 = scmp.eq.s32.totalorder %s33, 1
      %p112 = por %p110, %p111
      %p114 = scmp.ne.s32.totalorder %s99, %s113
      %p115 = scmp.eq.s32.totalorder %s33, 0
      %p116 = por %p114, %p115
      %s118 = sadd.s32 %s117, 1
      %p121 = scmp.eq.s32.totalorder %s27, 1
      %p122 = scmp.ne.s32.totalorder %s117, %s119
      %p123 = scmp.eq.s32.totalorder %s27, 0
      %p124 = por %p122, %p123
      %p125 = scmp.ne.s32.totalorder %s117, %s119
      %p126 = scmp.eq.s32.totalorder %s32, 1
      %p127 = por %p125, %p126
      %p128 = scmp.ne.s32.totalorder %s119, %s120
      %p129 = scmp.eq.s32.totalorder %s32, 0
      %p130 = por %p128, %p129
      %p131 = scmp.ne.s32.totalorder %s119, %s120
      %p132 = scmp.eq.s32.totalorder %s33, 1
      %p133 = por %p131, %p132
      %p135 = scmp.ne.s32.totalorder %s120, %s134
      %p136 = scmp.eq.s32.totalorder %s33, 0
      %p137 = por %p135, %p136
      %s139 = sadd.s32 %s138, 1
      %p142 = scmp.eq.s32.totalorder %s27, 1
      %p143 = scmp.ne.s32.totalorder %s138, %s140
      %p144 = scmp.eq.s32.totalorder %s27, 0
      %p145 = por %p143, %p144
      %p146 = scmp.ne.s32.totalorder %s138, %s140
      %p147 = scmp.eq.s32.totalorder %s32, 1
      %p148 = por %p146, %p147
      %p149 = scmp.ne.s32.totalorder %s140, %s141
      %p150 = scmp.eq.s32.totalorder %s32, 0
      %p151 = por %p149, %p150
      %p152 = scmp.ne.s32.totalorder %s140, %s141
      %p153 = scmp.eq.s32.totalorder %s33, 1
      %p154 = por %p152, %p153
      %p156 = scmp.ne.s32.totalorder %s141, %s155
      %p157 = scmp.eq.s32.totalorder %s33, 0
      %p158 = por %p156, %p157
      %s160 = sadd.s32 %s159, 1
      %p163 = scmp.eq.s32.totalorder %s27, 1
      %p164 = scmp.ne.s32.totalorder %s159, %s161
      %p165 = scmp.eq.s32.totalorder %s27, 0
      %p166 = por %p164, %p165
      %p167 = scmp.ne.s32.totalorder %s159, %s161
      %p168 = scmp.eq.s32.totalorder %s32, 1
      %p169 = por %p167, %p168
      %p170 = scmp.ne.s32.totalorder %s161, %s162
      %p171 = scmp.eq.s32.totalorder %s32, 0
      %p172 = por %p170, %p171
      %p173 = scmp.ne.s32.totalorder %s161, %s162
      %p174 = scmp.eq.s32.totalorder %s33, 1
      %p175 = por %p173, %p174
      %p177 = scmp.ne.s32.totalorder %s162, %s176
      %p178 = scmp.eq.s32.totalorder %s33, 0
      %p179 = por %p177, %p178
      %s181 = sadd.s32 %s180, 1
      %p184 = scmp.eq.s32.totalorder %s27, 1
      %p185 = scmp.ne.s32.totalorder %s180, %s182
      %p186 = scmp.eq.s32.totalorder %s27, 0
      %p187 = por %p185, %p186
      %p188 = scmp.ne.s32.totalorder %s180, %s182
      %p189 = scmp.eq.s32.totalorder %s32, 1
      %p190 = por %p188, %p189
      %p191 = scmp.ne.s32.totalorder %s182, %s183
      %p192 = scmp.eq.s32.totalorder %s32, 0
      %p193 = por %p191, %p192
      %p194 = scmp.ne.s32.totalorder %s182, %s183
      %p195 = scmp.eq.s32.totalorder %s33, 1
      %p196 = por %p194, %p195
      %p198 = scmp.ne.s32.totalorder %s183, %s197
      %p199 = scmp.eq.s32.totalorder %s33, 0
      %p200 = por %p198, %p199
      %s201 = sadd.s32 %s34, %s35
      %s202 = sadd.s32 %s46, %s42
      %s203 = ssub.s32 %s201, %s202
      %p204 = scmp.eq.s32.totalorder %s203, 0
      %s206 = sadd.s32 %s205, 1
      %s207 = scalar_select %p204, %s205, %s206
      %p210 = pneg %p204
      %p211 = scmp.eq.s32.totalorder %s27, 1
      %p212 = por %p210, %p211
      %p213 = scmp.ne.s32.totalorder %s205, %s208
      %p214 = scmp.eq.s32.totalorder %s27, 0
      %p215 = por %p213, %p214
      %p216 = scmp.ne.s32.totalorder %s205, %s208
      %p217 = scmp.eq.s32.totalorder %s32, 1
      %p218 = por %p216, %p217
      %p219 = scmp.ne.s32.totalorder %s208, %s209
      %p220 = scmp.eq.s32.totalorder %s32, 0
      %p221 = por %p219, %p220
      %p222 = scmp.ne.s32.totalorder %s208, %s209
      %p223 = scmp.eq.s32.totalorder %s33, 1
      %p224 = por %p222, %p223
      %p226 = scmp.ne.s32.totalorder %s209, %s225
      %p227 = scmp.eq.s32.totalorder %s33, 0
      %p228 = por %p226, %p227
      %s229 = ssub.s32 %s34, %s46
      %p230 = scmp.eq.s32.totalorder %s229, 0
      %s232 = sadd.s32 %s231, 1
      %s233 = scalar_select %p230, %s231, %s232
      %p236 = pneg %p230
      %p237 = scmp.eq.s32.totalorder %s27, 1
      %p238 = por %p236, %p237
      %p239 = scmp.ne.s32.totalorder %s231, %s234
      %p240 = scmp.eq.s32.totalorder %s27, 0
      %p241 = por %p239, %p240
      %p242 = scmp.ne.s32.totalorder %s231, %s234
      %p243 = scmp.eq.s32.totalorder %s32, 1
      %p244 = por %p242, %p243
      %p245 = scmp.ne.s32.totalorder %s234, %s235
      %p246 = scmp.eq.s32.totalorder %s32, 0
      %p247 = por %p245, %p246
      %p248 = scmp.ne.s32.totalorder %s234, %s235
      %p249 = scmp.eq.s32.totalorder %s33, 1
      %p250 = por %p248, %p249
      %p252 = scmp.ne.s32.totalorder %s235, %s251
      %p253 = scmp.eq.s32.totalorder %s33, 0
      %p254 = por %p252, %p253
      %s255 = ssub.s32 %s34, %s46
      %p256 = scmp.eq.s32.totalorder %s255, 0
      %s258 = sadd.s32 %s257, 1
      %s259 = scalar_select %p256, %s257, %s258
      %p262 = pneg %p256
      %p263 = scmp.eq.s32.totalorder %s27, 1
      %p264 = por %p262, %p263
      %p265 = scmp.ne.s32.totalorder %s257, %s260
      %p266 = scmp.eq.s32.totalorder %s27, 0
      %p267 = por %p265, %p266
      %p268 = scmp.ne.s32.totalorder %s257, %s260
      %p269 = scmp.eq.s32.totalorder %s32, 1
      %p270 = por %p268, %p269
      %p271 = scmp.ne.s32.totalorder %s260, %s261
      %p272 = scmp.eq.s32.totalorder %s32, 0
      %p273 = por %p271, %p272
      %p274 = scmp.ne.s32.totalorder %s260, %s261
      %p275 = scmp.eq.s32.totalorder %s33, 1
      %p276 = por %p274, %p275
      %p278 = scmp.ne.s32.totalorder %s261, %s277
      %p279 = scmp.eq.s32.totalorder %s33, 0
      %p280 = por %p278, %p279
      %s281 = ssub.s32 %s34, %s46
      %p282 = scmp.eq.s32.totalorder %s281, 0
      %s284 = sadd.s32 %s283, 1
      %s285 = scalar_select %p282, %s283, %s284
      %p288 = pneg %p282
      %p289 = scmp.eq.s32.totalorder %s27, 1
      %p290 = por %p288, %p289
      %p291 = scmp.ne.s32.totalorder %s283, %s286
      %p292 = scmp.eq.s32.totalorder %s27, 0
      %p293 = por %p291, %p292
      %p294 = scmp.ne.s32.totalorder %s283, %s286
      %p295 = scmp.eq.s32.totalorder %s32, 1
      %p296 = por %p294, %p295
      %p297 = scmp.ne.s32.totalorder %s286, %s287
      %p298 = scmp.eq.s32.totalorder %s32, 0
      %p299 = por %p297, %p298
      %p300 = scmp.ne.s32.totalorder %s286, %s287
      %p301 = scmp.eq.s32.totalorder %s33, 1
      %p302 = por %p300, %p301
      %p304 = scmp.ne.s32.totalorder %s287, %s303
      %p305 = scmp.eq.s32.totalorder %s33, 0
      %p306 = por %p304, %p305
      %p307 = scmp.le.s32.totalorder 1, %s27
      %p308 = scmp.lt.s32.totalorder %s27, 3
      %p309 = pnand %p307, %p308
      %p310 = pneg %p309
      // Predicated region
      $region9: #{mil_attention_forward.1} parent=5 // pred_check
        _
      $region10: #{mil_attention_forward.1} parent=5 // pred_check_branch
        %312 = sbr.rel (%p309) target = $region12
      $region11: #{mil_attention_forward.1} parent=5 // pred_region
        %s313 = ssub.s32 %s27, 1
        // Predicated region
        $region13: #{mil_attention_forward.1} parent=11 // pred_check
          %p314 = pneg %p88
        $region14: #{mil_attention_forward.1} parent=11 // pred_check_branch
          %316 = sbr.rel (%p314) target = $region16
        $region15: #{mil_attention_forward.1} parent=11 // pred_region
          %s318 = ssub.s32 32000, 32000
          %319 = vsyncadd [#allocation11], %s318
          %s320 = sshll.u32 [#allocation10], 4
          %s321 = int_to_ptr.vmem [resolvable:$true] %s320
          %326 = dma.hbm_to_vmem [thread:$0]  %s2, 32000, %s321, [#allocation11], 256, 256, 16
        $region16: #{mil_attention_forward.1} parent=11 // pred_fallthru
          _
        // Predicated region
        $region17: #{mil_attention_forward.1} parent=11 // pred_check
          %p327 = pneg %p109
        $region18: #{mil_attention_forward.1} parent=11 // pred_check_branch
          %329 = sbr.rel (%p327) target = $region20
        $region19: #{mil_attention_forward.1} parent=11 // pred_region
          %s331 = ssub.s32 64, 64
          %332 = vsyncadd [#allocation11], %s331
          %s334 = sshll.u32 [#allocation12], 4
          %s335 = int_to_ptr.vmem [resolvable:$true] %s334
          %337 = dma.hbm_to_vmem [thread:$0]  %s3, 64, %s335, [#allocation11]
        $region20: #{mil_attention_forward.1} parent=11 // pred_fallthru
          _
        // Predicated region
        $region21: #{mil_attention_forward.1} parent=11 // pred_check
          %p338 = pneg %p130
        $region22: #{mil_attention_forward.1} parent=11 // pred_check_branch
          %340 = sbr.rel (%p338) target = $region24
        $region23: #{mil_attention_forward.1} parent=11 // pred_region
          %s342 = ssub.s32 4096, 4096
          %343 = vsyncadd [#allocation14], %s342
          %s344 = sshll.u32 [#allocation13], 4
          %s345 = int_to_ptr.vmem [resolvable:$true] %s344
          %350 = dma.hbm_to_vmem [thread:$0]  %s4, 4096, %s345, [#allocation14], 64, 64, 4
        $region24: #{mil_attention_forward.1} parent=11 // pred_fallthru
          _
        // Predicated region
        $region25: #{mil_attention_forward.1} parent=11 // pred_check
          %p351 = pneg %p151
        $region26: #{mil_attention_forward.1} parent=11 // pred_check_branch
          %353 = sbr.rel (%p351) target = $region28
        $region27: #{mil_attention_forward.1} parent=11 // pred_region
          %s355 = ssub.s32 16, 16
          %356 = vsyncadd [#allocation14], %s355
          %s358 = sshll.u32 [#allocation15], 4
          %s359 = int_to_ptr.vmem [resolvable:$true] %s358
          %361 = dma.hbm_to_vmem [thread:$0]  %s5, 16, %s359, [#allocation14]
        $region28: #{mil_attention_forward.1} parent=11 // pred_fallthru
          _
        // Predicated region
        $region29: #{mil_attention_forward.1} parent=11 // pred_check
          %p362 = pneg %p172
        $region30: #{mil_attention_forward.1} parent=11 // pred_check_branch
          %364 = sbr.rel (%p362) target = $region32
        $region31: #{mil_attention_forward.1} parent=11 // pred_region
          %s366 = ssub.s32 16, 16
          %367 = vsyncadd [#allocation17], %s366
          %s369 = sshll.u32 [#allocation16], 4
          %s370 = int_to_ptr.vmem [resolvable:$true] %s369
          %372 = dma.hbm_to_vmem [thread:$0]  %s6, 16, %s370, [#allocation17]
        $region32: #{mil_attention_forward.1} parent=11 // pred_fallthru
          _
        // Predicated region
        $region33: #{mil_attention_forward.1} parent=11 // pred_check
          %p373 = pneg %p193
        $region34: #{mil_attention_forward.1} parent=11 // pred_check_branch
          %375 = sbr.rel (%p373) target = $region36
        $region35: #{mil_attention_forward.1} parent=11 // pred_region
          _
        $region36: #{mil_attention_forward.1} parent=11 // pred_fallthru
          _
      $region12: #{mil_attention_forward.1} parent=5 // pred_fallthru
        _
      %p376 = scmp.lt.s32.totalorder %s27, 2
      // Predicated region
      $region37: #{mil_attention_forward.1} parent=5 // pred_check
        %p377 = pneg %p376
      $region38: #{mil_attention_forward.1} parent=5 // pred_check_branch
        %379 = sbr.rel (%p377) target = $region40
      $region39: #{mil_attention_forward.1} parent=5 // pred_region
        // Predicated region
        $region41: #{mil_attention_forward.1} parent=39 // pred_check
          %p380 = pneg %p61
        $region42: #{mil_attention_forward.1} parent=39 // pred_check_branch
          %382 = sbr.rel (%p380) target = $region44
        $region43: #{mil_attention_forward.1} parent=39 // pred_region
          %s383 = sand.u32 %s51, 1
          %s384 = scalar_lea.sflag [#allocation9], %s383
          %s385 = sand.u32 %s51, 1
          %s386 = smul.addr %s385, 4096
          %s387 = scalar_lea.vmem [#allocation8], %s386
          %s388 = sadd.s32 %s34, %s35
          %s389 = smul.u32 64, %s388
          %s390 = ssub.s32 75, %s389
          %p391 = scmp.lt.s32.totalorder %s390, 64
          %s392 = scalar_select %p391, %s390, 64
          %s393 = smul.u32 128, %s392
          %s394 = smul.u32 %s393, 8
          %s396 = ssub.s32 65536, %s394
          %397 = vsyncadd %s384, %s396
          %p398 = scmp.ne.s32.totalorder 0, %s394
          %s399 = smul.addr %s389, 8
          %s400 = smul.addr %s399, 128
          %s401 = scalar_lea.hbm %s1, %s400
          %s402 = smul.u32 64, %s392
          %s403 = sshll.u32 %s387, 4
          %s404 = int_to_ptr.vmem [resolvable:$true] %s403
          %s405 = sshll.u32 %s402, 4
          %409 = dma.hbm_to_vmem [thread:$0]  (%p398), %s401, %s405, %s404, %s384, 1024, 1024, 64
        $region44: #{mil_attention_forward.1} parent=39 // pred_fallthru
          _
      $region40: #{mil_attention_forward.1} parent=5 // pred_fallthru
        _
      %p410 = scmp.le.s32.totalorder 1, %s27
      %p411 = scmp.lt.s32.totalorder %s27, 3
      %p412 = pnand %p410, %p411
      %p413 = pneg %p412
      // Predicated region
      $region45: #{mil_attention_forward.1} parent=5 // pred_check
        _
      $region46: #{mil_attention_forward.1} parent=5 // pred_check_branch
        %415 = sbr.rel (%p412) target = $region48
      $region47: #{mil_attention_forward.1} parent=5 // pred_region
        %s416 = ssub.s32 %s27, 1
        %s417 = sand.u32 %s54, 1
        %s418 = scalar_lea.sflag [#allocation9], %s417
        %s419 = sand.u32 %s54, 1
        %s420 = smul.addr %s419, 4096
        %s421 = scalar_lea.vmem [#allocation8], %s420
        // Predicated region
        $region49: #{mil_attention_forward.1} parent=47 // pred_check
          %p422 = pneg %p67
        $region50: #{mil_attention_forward.1} parent=47 // pred_check_branch
          %424 = sbr.rel (%p422) target = $region52
        $region51: #{mil_attention_forward.1} parent=47 // pred_region
          %425 = dma.done %s418, 65536
        $region52: #{mil_attention_forward.1} parent=47 // pred_fallthru
          _
        // Predicated region
        $region53: #{mil_attention_forward.1} parent=47 // pred_check
          %p426 = pneg %p88
        $region54: #{mil_attention_forward.1} parent=47 // pred_check_branch
          %428 = sbr.rel (%p426) target = $region56
        $region55: #{mil_attention_forward.1} parent=47 // pred_region
          %429 = dma.done [#allocation11], 32000
        $region56: #{mil_attention_forward.1} parent=47 // pred_fallthru
          _
        // Predicated region
        $region57: #{mil_attention_forward.1} parent=47 // pred_check
          %p430 = pneg %p109
        $region58: #{mil_attention_forward.1} parent=47 // pred_check_branch
          %432 = sbr.rel (%p430) target = $region60
        $region59: #{mil_attention_forward.1} parent=47 // pred_region
          %433 = dma.done [#allocation11], 64
        $region60: #{mil_attention_forward.1} parent=47 // pred_fallthru
          _
        // Predicated region
        $region61: #{mil_attention_forward.1} parent=47 // pred_check
          %p434 = pneg %p130
        $region62: #{mil_attention_forward.1} parent=47 // pred_check_branch
          %436 = sbr.rel (%p434) target = $region64
        $region63: #{mil_attention_forward.1} parent=47 // pred_region
          %437 = dma.done [#allocation14], 4096
        $region64: #{mil_attention_forward.1} parent=47 // pred_fallthru
          _
        // Predicated region
        $region65: #{mil_attention_forward.1} parent=47 // pred_check
          %p438 = pneg %p151
        $region66: #{mil_attention_forward.1} parent=47 // pred_check_branch
          %440 = sbr.rel (%p438) target = $region68
        $region67: #{mil_attention_forward.1} parent=47 // pred_region
          %441 = dma.done [#allocation14], 16
        $region68: #{mil_attention_forward.1} parent=47 // pred_fallthru
          _
        // Predicated region
        $region69: #{mil_attention_forward.1} parent=47 // pred_check
          %p442 = pneg %p172
        $region70: #{mil_attention_forward.1} parent=47 // pred_check_branch
          %444 = sbr.rel (%p442) target = $region72
        $region71: #{mil_attention_forward.1} parent=47 // pred_region
          %445 = dma.done [#allocation17], 16
        $region72: #{mil_attention_forward.1} parent=47 // pred_fallthru
          _
        %s446 = sand.u32 %s54, 1
        %s447 = scalar_lea.sflag [#allocation9], %s446
        %s448 = sand.u32 %s54, 1
        %s449 = smul.addr %s448, 4096
        %s450 = scalar_lea.vmem [#allocation8], %s449
        %p451 = pneg %p67
        %p452 = pneg %p64
        %p453 = pneg %p88
        %p454 = pneg %p85
        %p455 = pneg %p109
        %p456 = pneg %p106
        %p457 = pneg %p130
        %p458 = pneg %p127
        %p459 = pneg %p151
        %p460 = pneg %p148
        %p461 = pneg %p172
        %p462 = pneg %p169
        %p463 = pneg %p193
        %p464 = pneg %p190
        %p465 = pneg %p221
        %p466 = pneg %p218
        %s467 = sand.u32 %s208, 1
        %s468 = sand.u32 %s208, 1
        %s469 = smul.addr %s468, 512
        %s470 = scalar_lea.vmem [#allocation18], %s469
        %p471 = pneg %p247
        %p472 = pneg %p244
        %p473 = scmp.lt.s32.totalorder %s36, 1
        %s474 = scalar_select %p473, %s36, 1
        %s475 = scalar_lea.vmem %s9, %s474
        %p476 = pneg %p273
        %p477 = pneg %p270
        %p478 = scmp.lt.s32.totalorder %s36, 1
        %s479 = scalar_select %p478, %s36, 1
        %s480 = scalar_lea.vmem %s10, %s479
        %p481 = pneg %p299
        %p482 = pneg %p296
        %p483 = scmp.lt.s32.totalorder %s36, 1
        %s484 = scalar_select %p483, %s36, 1
        %s485 = smul.addr %s484, 4
        %s486 = scalar_lea.vmem %s11, %s485
        %s487 = sadd.s32 %s36, %s37
        %s488 = smul.u32 64, %s487
        %s489 = ssub.s32 75, %s488
        %p490 = scmp.lt.s32.totalorder %s489, 64
        %s491 = scalar_select %p490, %s489, 64
        %s492 = smul.u32 128, %s491
        %s493 = smul.u32 %s492, 8
        %s494 = sadd.s32 %s36, %s37
        %s495 = smul.u32 64, %s494
        %s496 = ssub.s32 75, %s495
        %p497 = scmp.lt.s32.totalorder %s496, 64
        %s498 = scalar_select %p497, %s496, 64
        %s499 = smul.u32 128, %s498
        %p500 = scmp.lt.s32.totalorder %s36, 1
        %s501 = scalar_select %p500, %s36, 1
        %s502 = scalar_lea.vmem %s9, %s501
        %p503 = scmp.lt.s32.totalorder %s36, 1
        %s504 = scalar_select %p503, %s36, 1
        %s505 = scalar_lea.vmem %s10, %s504
        %p506 = scmp.lt.s32.totalorder %s36, 1
        %s507 = scalar_select %p506, %s36, 1
        %s508 = smul.addr %s507, 4
        %s509 = scalar_lea.vmem %s11, %s508
        %p511 = scmp.eq.s32.totalorder %s37, 0
        // Predicated region
        $region73: #{mil_attention_forward.1} parent=47 // pred_check
          %p512 = pneg %p511
        $region74: #{mil_attention_forward.1} parent=47 // pred_check_branch
          %514 = sbr.rel (%p512) target = $region76
        $region75: #{mil_attention_forward.1} parent=47 // pred_region
          %vm515 = vcmask 0
          %516 = vst.msk [vmem:[#allocation2] sm:$0x1] %vm515, -1e+30
          %517 = vst.msk [vmem:[#allocation3] sm:$0x1] %vm515, 0.0
          %v518 = vlaneseq
          %vm519 = vcmp.ge.s32.totalorder %v518, 0
          %vm520 = vcmp.lt.s32.totalorder %v518, 512
          %vm521 = vmand %vm519, %vm520
          %522 = vst.msk [vmem:[#allocation4] sm:$0xf] %vm521, 0.0
        $region76: #{mil_attention_forward.1} parent=47 // pred_fallthru
          _
        %v523 = vlaneseq
        %v524 = vshrl.u32 %v523, 7
        %v525 = vadd.s32 %v524, 8
        %v526 = vadd.s32 %v524, 16
        %v527 = vadd.s32 %v524, 24
        %v528 = vadd.s32 %v524, 32
        %v529 = vadd.s32 %v524, 40
        %v530 = vadd.s32 %v524, 48
        %v531 = vadd.s32 %v524, 56
        %v532 = vadd.s32 %v524, 64
        %v533 = vadd.s32 %v524, 72
        %v534 = vadd.s32 %v524, 80
        %v535 = vadd.s32 %v524, 88
        %v536 = vadd.s32 %v524, 96
        %v537 = vadd.s32 %v524, 104
        %v538 = vadd.s32 %v524, 112
        %v539 = vadd.s32 %v524, 120
        %v540 = vadd.s32 %v524, 128
        %v541 = vadd.s32 %v524, 136
        %v542 = vadd.s32 %v524, 144
        %v543 = vadd.s32 %v524, 152
        %v544 = vadd.s32 %v524, 160
        %v545 = vadd.s32 %v524, 168
        %v546 = vadd.s32 %v524, 176
        %v547 = vadd.s32 %v524, 184
        %v548 = vadd.s32 %v524, 192
        %v549 = vadd.s32 %v524, 200
        %v550 = vadd.s32 %v524, 208
        %v551 = vadd.s32 %v524, 216
        %v552 = vadd.s32 %v524, 224
        %v553 = vadd.s32 %v524, 232
        %v554 = vadd.s32 %v524, 240
        %v555 = vadd.s32 %v524, 248
        %v556 = vadd.s32 %v524, 256
        %v557 = vadd.s32 %v524, 264
        %v558 = vadd.s32 %v524, 272
        %v559 = vadd.s32 %v524, 280
        %v560 = vadd.s32 %v524, 288
        %v561 = vadd.s32 %v524, 296
        %v562 = vadd.s32 %v524, 304
        %v563 = vadd.s32 %v524, 312
        %v564 = vadd.s32 %v524, 320
        %v565 = vadd.s32 %v524, 328
        %v566 = vadd.s32 %v524, 336
        %v567 = vadd.s32 %v524, 344
        %v568 = vadd.s32 %v524, 352
        %v569 = vadd.s32 %v524, 360
        %v570 = vadd.s32 %v524, 368
        %v571 = vadd.s32 %v524, 376
        %v572 = vadd.s32 %v524, 384
        %v573 = vadd.s32 %v524, 392
        %v574 = vadd.s32 %v524, 400
        %v575 = vadd.s32 %v524, 408
        %v576 = vadd.s32 %v524, 416
        %v577 = vadd.s32 %v524, 424
        %v578 = vadd.s32 %v524, 432
        %v579 = vadd.s32 %v524, 440
        %v580 = vadd.s32 %v524, 448
        %v581 = vadd.s32 %v524, 456
        %v582 = vadd.s32 %v524, 464
        %v583 = vadd.s32 %v524, 472
        %v584 = vadd.s32 %v524, 480
        %v585 = vadd.s32 %v524, 488
        %v586 = vadd.s32 %v524, 496
        %v587 = vadd.s32 %v524, 504
        %s588 = sadd.s32 %s36, %s37
        %s589 = smul.u32 %s588, 512
        %v590 = vstv %s589
        %v591 = vadd.s32 %v524, %v590
        %v592 = vadd.s32 %v525, %v590
        %v593 = vadd.s32 %v526, %v590
        %v594 = vadd.s32 %v527, %v590
        %v595 = vadd.s32 %v528, %v590
        %v596 = vadd.s32 %v529, %v590
        %v597 = vadd.s32 %v530, %v590
        %v598 = vadd.s32 %v531, %v590
        %v599 = vadd.s32 %v532, %v590
        %v600 = vadd.s32 %v533, %v590
        %v601 = vadd.s32 %v534, %v590
        %v602 = vadd.s32 %v535, %v590
        %v603 = vadd.s32 %v536, %v590
        %v604 = vadd.s32 %v537, %v590
        %v605 = vadd.s32 %v538, %v590
        %v606 = vadd.s32 %v539, %v590
        %v607 = vadd.s32 %v540, %v590
        %v608 = vadd.s32 %v541, %v590
        %v609 = vadd.s32 %v542, %v590
        %v610 = vadd.s32 %v543, %v590
        %v611 = vadd.s32 %v544, %v590
        %v612 = vadd.s32 %v545, %v590
        %v613 = vadd.s32 %v546, %v590
        %v614 = vadd.s32 %v547, %v590
        %v615 = vadd.s32 %v548, %v590
        %v616 = vadd.s32 %v549, %v590
        %v617 = vadd.s32 %v550, %v590
        %v618 = vadd.s32 %v551, %v590
        %v619 = vadd.s32 %v552, %v590
        %v620 = vadd.s32 %v553, %v590
        %v621 = vadd.s32 %v554, %v590
        %v622 = vadd.s32 %v555, %v590
        %v623 = vadd.s32 %v556, %v590
        %v624 = vadd.s32 %v557, %v590
        %v625 = vadd.s32 %v558, %v590
        %v626 = vadd.s32 %v559, %v590
        %v627 = vadd.s32 %v560, %v590
        %v628 = vadd.s32 %v561, %v590
        %v629 = vadd.s32 %v562, %v590
        %v630 = vadd.s32 %v563, %v590
        %v631 = vadd.s32 %v564, %v590
        %v632 = vadd.s32 %v565, %v590
        %v633 = vadd.s32 %v566, %v590
        %v634 = vadd.s32 %v567, %v590
        %v635 = vadd.s32 %v568, %v590
        %v636 = vadd.s32 %v569, %v590
        %v637 = vadd.s32 %v570, %v590
        %v638 = vadd.s32 %v571, %v590
        %v639 = vadd.s32 %v572, %v590
        %v640 = vadd.s32 %v573, %v590
        %v641 = vadd.s32 %v574, %v590
        %v642 = vadd.s32 %v575, %v590
        %v643 = vadd.s32 %v576, %v590
        %v644 = vadd.s32 %v577, %v590
        %v645 = vadd.s32 %v578, %v590
        %v646 = vadd.s32 %v579, %v590
        %v647 = vadd.s32 %v580, %v590
        %v648 = vadd.s32 %v581, %v590
        %v649 = vadd.s32 %v582, %v590
        %v650 = vadd.s32 %v583, %v590
        %v651 = vadd.s32 %v584, %v590
        %v652 = vadd.s32 %v585, %v590
        %v653 = vadd.s32 %v586, %v590
        %v654 = vadd.s32 %v587, %v590
        %s655 = sld [smem:[#allocation6]]
        %v656 = vstv %s655
        %vm657 = vcmp.lt.s32.totalorder %v591, %v656
        %vm658 = vcmp.lt.s32.totalorder %v592, %v656
        %vm659 = vcmp.lt.s32.totalorder %v593, %v656
        %vm660 = vcmp.lt.s32.totalorder %v594, %v656
        %vm661 = vcmp.lt.s32.totalorder %v595, %v656
        %vm662 = vcmp.lt.s32.totalorder %v596, %v656
        %vm663 = vcmp.lt.s32.totalorder %v597, %v656
        %vm664 = vcmp.lt.s32.totalorder %v598, %v656
        %vm665 = vcmp.lt.s32.totalorder %v599, %v656
        %vm666 = vcmp.lt.s32.totalorder %v600, %v656
        %vm667 = vcmp.lt.s32.totalorder %v601, %v656
        %vm668 = vcmp.lt.s32.totalorder %v602, %v656
        %vm669 = vcmp.lt.s32.totalorder %v603, %v656
        %vm670 = vcmp.lt.s32.totalorder %v604, %v656
        %vm671 = vcmp.lt.s32.totalorder %v605, %v656
        %vm672 = vcmp.lt.s32.totalorder %v606, %v656
        %vm673 = vcmp.lt.s32.totalorder %v607, %v656
        %vm674 = vcmp.lt.s32.totalorder %v608, %v656
        %vm675 = vcmp.lt.s32.totalorder %v609, %v656
        %vm676 = vcmp.lt.s32.totalorder %v610, %v656
        %vm677 = vcmp.lt.s32.totalorder %v611, %v656
        %vm678 = vcmp.lt.s32.totalorder %v612, %v656
        %vm679 = vcmp.lt.s32.totalorder %v613, %v656
        %vm680 = vcmp.lt.s32.totalorder %v614, %v656
        %vm681 = vcmp.lt.s32.totalorder %v615, %v656
        %vm682 = vcmp.lt.s32.totalorder %v616, %v656
        %vm683 = vcmp.lt.s32.totalorder %v617, %v656
        %vm684 = vcmp.lt.s32.totalorder %v618, %v656
        %vm685 = vcmp.lt.s32.totalorder %v619, %v656
        %vm686 = vcmp.lt.s32.totalorder %v620, %v656
        %vm687 = vcmp.lt.s32.totalorder %v621, %v656
        %vm688 = vcmp.lt.s32.totalorder %v622, %v656
        %vm689 = vcmp.lt.s32.totalorder %v623, %v656
        %vm690 = vcmp.lt.s32.totalorder %v624, %v656
        %vm691 = vcmp.lt.s32.totalorder %v625, %v656
        %vm692 = vcmp.lt.s32.totalorder %v626, %v656
        %vm693 = vcmp.lt.s32.totalorder %v627, %v656
        %vm694 = vcmp.lt.s32.totalorder %v628, %v656
        %vm695 = vcmp.lt.s32.totalorder %v629, %v656
        %vm696 = vcmp.lt.s32.totalorder %v630, %v656
        %vm697 = vcmp.lt.s32.totalorder %v631, %v656
        %vm698 = vcmp.lt.s32.totalorder %v632, %v656
        %vm699 = vcmp.lt.s32.totalorder %v633, %v656
        %vm700 = vcmp.lt.s32.totalorder %v634, %v656
        %vm701 = vcmp.lt.s32.totalorder %v635, %v656
        %vm702 = vcmp.lt.s32.totalorder %v636, %v656
        %vm703 = vcmp.lt.s32.totalorder %v637, %v656
        %vm704 = vcmp.lt.s32.totalorder %v638, %v656
        %vm705 = vcmp.lt.s32.totalorder %v639, %v656
        %vm706 = vcmp.lt.s32.totalorder %v640, %v656
        %vm707 = vcmp.lt.s32.totalorder %v641, %v656
        %vm708 = vcmp.lt.s32.totalorder %v642, %v656
        %vm709 = vcmp.lt.s32.totalorder %v643, %v656
        %vm710 = vcmp.lt.s32.totalorder %v644, %v656
        %vm711 = vcmp.lt.s32.totalorder %v645, %v656
        %vm712 = vcmp.lt.s32.totalorder %v646, %v656
        %vm713 = vcmp.lt.s32.totalorder %v647, %v656
        %vm714 = vcmp.lt.s32.totalorder %v648, %v656
        %vm715 = vcmp.lt.s32.totalorder %v649, %v656
        %vm716 = vcmp.lt.s32.totalorder %v650, %v656
        %vm717 = vcmp.lt.s32.totalorder %v651, %v656
        %vm718 = vcmp.lt.s32.totalorder %v652, %v656
        %vm719 = vcmp.lt.s32.totalorder %v653, %v656
        %vm720 = vcmp.lt.s32.totalorder %v654, %v656
        %v721 = vld [vmem:[%s421] sm:$0xff]
        %v722 = vld [vmem:[%s421 + $0x8] sm:$0xff]
        %v723 = vld [vmem:[%s421 + $0x10] sm:$0xff]
        %v724 = vld [vmem:[%s421 + $0x18] sm:$0xff]
        %v725 = vld [vmem:[%s421 + $0x20] sm:$0xff]
        %v726 = vld [vmem:[%s421 + $0x28] sm:$0xff]
        %v727 = vld [vmem:[%s421 + $0x30] sm:$0xff]
        %v728 = vld [vmem:[%s421 + $0x38] sm:$0xff]
        %v729 = vld [vmem:[%s421 + $0x40] sm:$0xff]
        %v730 = vld [vmem:[%s421 + $0x48] sm:$0xff]
        %v731 = vld [vmem:[%s421 + $0x50] sm:$0xff]
        %v732 = vld [vmem:[%s421 + $0x58] sm:$0xff]
        %v733 = vld [vmem:[%s421 + $0x60] sm:$0xff]
        %v734 = vld [vmem:[%s421 + $0x68] sm:$0xff]
        %v735 = vld [vmem:[%s421 + $0x70] sm:$0xff]
        %v736 = vld [vmem:[%s421 + $0x78] sm:$0xff]
        %v737 = vld [vmem:[%s421 + $0x80] sm:$0xff]
        %v738 = vld [vmem:[%s421 + $0x88] sm:$0xff]
        %v739 = vld [vmem:[%s421 + $0x90] sm:$0xff]
        %v740 = vld [vmem:[%s421 + $0x98] sm:$0xff]
        %v741 = vld [vmem:[%s421 + $0xa0] sm:$0xff]
        %v742 = vld [vmem:[%s421 + $0xa8] sm:$0xff]
        %v743 = vld [vmem:[%s421 + $0xb0] sm:$0xff]
        %v744 = vld [vmem:[%s421 + $0xb8] sm:$0xff]
        %v745 = vld [vmem:[%s421 + $0xc0] sm:$0xff]
        %v746 = vld [vmem:[%s421 + $0xc8] sm:$0xff]
        %v747 = vld [vmem:[%s421 + $0xd0] sm:$0xff]
        %v748 = vld [vmem:[%s421 + $0xd8] sm:$0xff]
        %v749 = vld [vmem:[%s421 + $0xe0] sm:$0xff]
        %v750 = vld [vmem:[%s421 + $0xe8] sm:$0xff]
        %v751 = vld [vmem:[%s421 + $0xf0] sm:$0xff]
        %v752 = vld [vmem:[%s421 + $0xf8] sm:$0xff]
        %v753 = vld [vmem:[%s421 + $0x100] sm:$0xff]
        %v754 = vld [vmem:[%s421 + $0x108] sm:$0xff]
        %v755 = vld [vmem:[%s421 + $0x110] sm:$0xff]
        %v756 = vld [vmem:[%s421 + $0x118] sm:$0xff]
        %v757 = vld [vmem:[%s421 + $0x120] sm:$0xff]
        %v758 = vld [vmem:[%s421 + $0x128] sm:$0xff]
        %v759 = vld [vmem:[%s421 + $0x130] sm:$0xff]
        %v760 = vld [vmem:[%s421 + $0x138] sm:$0xff]
        %v761 = vld [vmem:[%s421 + $0x140] sm:$0xff]
        %v762 = vld [vmem:[%s421 + $0x148] sm:$0xff]
        %v763 = vld [vmem:[%s421 + $0x150] sm:$0xff]
        %v764 = vld [vmem:[%s421 + $0x158] sm:$0xff]
        %v765 = vld [vmem:[%s421 + $0x160] sm:$0xff]
        %v766 = vld [vmem:[%s421 + $0x168] sm:$0xff]
        %v767 = vld [vmem:[%s421 + $0x170] sm:$0xff]
        %v768 = vld [vmem:[%s421 + $0x178] sm:$0xff]
        %v769 = vld [vmem:[%s421 + $0x180] sm:$0xff]
        %v770 = vld [vmem:[%s421 + $0x188] sm:$0xff]
        %v771 = vld [vmem:[%s421 + $0x190] sm:$0xff]
        %v772 = vld [vmem:[%s421 + $0x198] sm:$0xff]
        %v773 = vld [vmem:[%s421 + $0x1a0] sm:$0xff]
        %v774 = vld [vmem:[%s421 + $0x1a8] sm:$0xff]
        %v775 = vld [vmem:[%s421 + $0x1b0] sm:$0xff]
        %v776 = vld [vmem:[%s421 + $0x1b8] sm:$0xff]
        %v777 = vld [vmem:[%s421 + $0x1c0] sm:$0xff]
        %v778 = vld [vmem:[%s421 + $0x1c8] sm:$0xff]
        %v779 = vld [vmem:[%s421 + $0x1d0] sm:$0xff]
        %v780 = vld [vmem:[%s421 + $0x1d8] sm:$0xff]
        %v781 = vld [vmem:[%s421 + $0x1e0] sm:$0xff]
        %v782 = vld [vmem:[%s421 + $0x1e8] sm:$0xff]
        %v783 = vld [vmem:[%s421 + $0x1f0] sm:$0xff]
        %v784 = vld [vmem:[%s421 + $0x1f8] sm:$0xff]
        %v785 = vld [vmem:[%s421 + $0x200] sm:$0xff]
        %v786 = vld [vmem:[%s421 + $0x208] sm:$0xff]
        %v787 = vld [vmem:[%s421 + $0x210] sm:$0xff]
        %v788 = vld [vmem:[%s421 + $0x218] sm:$0xff]
        %v789 = vld [vmem:[%s421 + $0x220] sm:$0xff]
        %v790 = vld [vmem:[%s421 + $0x228] sm:$0xff]
        %v791 = vld [vmem:[%s421 + $0x230] sm:$0xff]
        %v792 = vld [vmem:[%s421 + $0x238] sm:$0xff]
        %v793 = vld [vmem:[%s421 + $0x240] sm:$0xff]
        %v794 = vld [vmem:[%s421 + $0x248] sm:$0xff]
        %v795 = vld [vmem:[%s421 + $0x250] sm:$0xff]
        %v796 = vld [vmem:[%s421 + $0x258] sm:$0xff]
        %v797 = vld [vmem:[%s421 + $0x260] sm:$0xff]
        %v798 = vld [vmem:[%s421 + $0x268] sm:$0xff]
        %v799 = vld [vmem:[%s421 + $0x270] sm:$0xff]
        %v800 = vld [vmem:[%s421 + $0x278] sm:$0xff]
        %v801 = vld [vmem:[%s421 + $0x280] sm:$0xff]
        %v802 = vld [vmem:[%s421 + $0x288] sm:$0xff]
        %v803 = vld [vmem:[%s421 + $0x290] sm:$0xff]
        %v804 = vld [vmem:[%s421 + $0x298] sm:$0xff]
        %v805 = vld [vmem:[%s421 + $0x2a0] sm:$0xff]
        %v806 = vld [vmem:[%s421 + $0x2a8] sm:$0xff]
        %v807 = vld [vmem:[%s421 + $0x2b0] sm:$0xff]
        %v808 = vld [vmem:[%s421 + $0x2b8] sm:$0xff]
        %v809 = vld [vmem:[%s421 + $0x2c0] sm:$0xff]
        %v810 = vld [vmem:[%s421 + $0x2c8] sm:$0xff]
        %v811 = vld [vmem:[%s421 + $0x2d0] sm:$0xff]
        %v812 = vld [vmem:[%s421 + $0x2d8] sm:$0xff]
        %v813 = vld [vmem:[%s421 + $0x2e0] sm:$0xff]
        %v814 = vld [vmem:[%s421 + $0x2e8] sm:$0xff]
        %v815 = vld [vmem:[%s421 + $0x2f0] sm:$0xff]
        %v816 = vld [vmem:[%s421 + $0x2f8] sm:$0xff]
        %v817 = vld [vmem:[%s421 + $0x300] sm:$0xff]
        %v818 = vld [vmem:[%s421 + $0x308] sm:$0xff]
        %v819 = vld [vmem:[%s421 + $0x310] sm:$0xff]
        %v820 = vld [vmem:[%s421 + $0x318] sm:$0xff]
        %v821 = vld [vmem:[%s421 + $0x320] sm:$0xff]
        %v822 = vld [vmem:[%s421 + $0x328] sm:$0xff]
        %v823 = vld [vmem:[%s421 + $0x330] sm:$0xff]
        %v824 = vld [vmem:[%s421 + $0x338] sm:$0xff]
        %v825 = vld [vmem:[%s421 + $0x340] sm:$0xff]
        %v826 = vld [vmem:[%s421 + $0x348] sm:$0xff]
        %v827 = vld [vmem:[%s421 + $0x350] sm:$0xff]
        %v828 = vld [vmem:[%s421 + $0x358] sm:$0xff]
        %v829 = vld [vmem:[%s421 + $0x360] sm:$0xff]
        %v830 = vld [vmem:[%s421 + $0x368] sm:$0xff]
        %v831 = vld [vmem:[%s421 + $0x370] sm:$0xff]
        %v832 = vld [vmem:[%s421 + $0x378] sm:$0xff]
        %v833 = vld [vmem:[%s421 + $0x380] sm:$0xff]
        %v834 = vld [vmem:[%s421 + $0x388] sm:$0xff]
        %v835 = vld [vmem:[%s421 + $0x390] sm:$0xff]
        %v836 = vld [vmem:[%s421 + $0x398] sm:$0xff]
        %v837 = vld [vmem:[%s421 + $0x3a0] sm:$0xff]
        %v838 = vld [vmem:[%s421 + $0x3a8] sm:$0xff]
        %v839 = vld [vmem:[%s421 + $0x3b0] sm:$0xff]
        %v840 = vld [vmem:[%s421 + $0x3b8] sm:$0xff]
        %v841 = vld [vmem:[%s421 + $0x3c0] sm:$0xff]
        %v842 = vld [vmem:[%s421 + $0x3c8] sm:$0xff]
        %v843 = vld [vmem:[%s421 + $0x3d0] sm:$0xff]
        %v844 = vld [vmem:[%s421 + $0x3d8] sm:$0xff]
        %v845 = vld [vmem:[%s421 + $0x3e0] sm:$0xff]
        %v846 = vld [vmem:[%s421 + $0x3e8] sm:$0xff]
        %v847 = vld [vmem:[%s421 + $0x3f0] sm:$0xff]
        %v848 = vld [vmem:[%s421 + $0x3f8] sm:$0xff]
        %v849 = vld [vmem:[%s421 + $0x400] sm:$0xff]
        %v850 = vld [vmem:[%s421 + $0x408] sm:$0xff]
        %v851 = vld [vmem:[%s421 + $0x410] sm:$0xff]
        %v852 = vld [vmem:[%s421 + $0x418] sm:$0xff]
        %v853 = vld [vmem:[%s421 + $0x420] sm:$0xff]
        %v854 = vld [vmem:[%s421 + $0x428] sm:$0xff]
        %v855 = vld [vmem:[%s421 + $0x430] sm:$0xff]
        %v856 = vld [vmem:[%s421 + $0x438] sm:$0xff]
        %v857 = vld [vmem:[%s421 + $0x440] sm:$0xff]
        %v858 = vld [vmem:[%s421 + $0x448] sm:$0xff]
        %v859 = vld [vmem:[%s421 + $0x450] sm:$0xff]
        %v860 = vld [vmem:[%s421 + $0x458] sm:$0xff]
        %v861 = vld [vmem:[%s421 + $0x460] sm:$0xff]
        %v862 = vld [vmem:[%s421 + $0x468] sm:$0xff]
        %v863 = vld [vmem:[%s421 + $0x470] sm:$0xff]
        %v864 = vld [vmem:[%s421 + $0x478] sm:$0xff]
        %v865 = vld [vmem:[%s421 + $0x480] sm:$0xff]
        %v866 = vld [vmem:[%s421 + $0x488] sm:$0xff]
        %v867 = vld [vmem:[%s421 + $0x490] sm:$0xff]
        %v868 = vld [vmem:[%s421 + $0x498] sm:$0xff]
        %v869 = vld [vmem:[%s421 + $0x4a0] sm:$0xff]
        %v870 = vld [vmem:[%s421 + $0x4a8] sm:$0xff]
        %v871 = vld [vmem:[%s421 + $0x4b0] sm:$0xff]
        %v872 = vld [vmem:[%s421 + $0x4b8] sm:$0xff]
        %v873 = vld [vmem:[%s421 + $0x4c0] sm:$0xff]
        %v874 = vld [vmem:[%s421 + $0x4c8] sm:$0xff]
        %v875 = vld [vmem:[%s421 + $0x4d0] sm:$0xff]
        %v876 = vld [vmem:[%s421 + $0x4d8] sm:$0xff]
        %v877 = vld [vmem:[%s421 + $0x4e0] sm:$0xff]
        %v878 = vld [vmem:[%s421 + $0x4e8] sm:$0xff]
        %v879 = vld [vmem:[%s421 + $0x4f0] sm:$0xff]
        %v880 = vld [vmem:[%s421 + $0x4f8] sm:$0xff]
        %v881 = vld [vmem:[%s421 + $0x500] sm:$0xff]
        %v882 = vld [vmem:[%s421 + $0x508] sm:$0xff]
        %v883 = vld [vmem:[%s421 + $0x510] sm:$0xff]
        %v884 = vld [vmem:[%s421 + $0x518] sm:$0xff]
        %v885 = vld [vmem:[%s421 + $0x520] sm:$0xff]
        %v886 = vld [vmem:[%s421 + $0x528] sm:$0xff]
        %v887 = vld [vmem:[%s421 + $0x530] sm:$0xff]
        %v888 = vld [vmem:[%s421 + $0x538] sm:$0xff]
        %v889 = vld [vmem:[%s421 + $0x540] sm:$0xff]
        %v890 = vld [vmem:[%s421 + $0x548] sm:$0xff]
        %v891 = vld [vmem:[%s421 + $0x550] sm:$0xff]
        %v892 = vld [vmem:[%s421 + $0x558] sm:$0xff]
        %v893 = vld [vmem:[%s421 + $0x560] sm:$0xff]
        %v894 = vld [vmem:[%s421 + $0x568] sm:$0xff]
        %v895 = vld [vmem:[%s421 + $0x570] sm:$0xff]
        %v896 = vld [vmem:[%s421 + $0x578] sm:$0xff]
        %v897 = vld [vmem:[%s421 + $0x580] sm:$0xff]
        %v898 = vld [vmem:[%s421 + $0x588] sm:$0xff]
        %v899 = vld [vmem:[%s421 + $0x590] sm:$0xff]
        %v900 = vld [vmem:[%s421 + $0x598] sm:$0xff]
        %v901 = vld [vmem:[%s421 + $0x5a0] sm:$0xff]
        %v902 = vld [vmem:[%s421 + $0x5a8] sm:$0xff]
        %v903 = vld [vmem:[%s421 + $0x5b0] sm:$0xff]
        %v904 = vld [vmem:[%s421 + $0x5b8] sm:$0xff]
        %v905 = vld [vmem:[%s421 + $0x5c0] sm:$0xff]
        %v906 = vld [vmem:[%s421 + $0x5c8] sm:$0xff]
        %v907 = vld [vmem:[%s421 + $0x5d0] sm:$0xff]
        %v908 = vld [vmem:[%s421 + $0x5d8] sm:$0xff]
        %v909 = vld [vmem:[%s421 + $0x5e0] sm:$0xff]
        %v910 = vld [vmem:[%s421 + $0x5e8] sm:$0xff]
        %v911 = vld [vmem:[%s421 + $0x5f0] sm:$0xff]
        %v912 = vld [vmem:[%s421 + $0x5f8] sm:$0xff]
        %v913 = vld [vmem:[%s421 + $0x600] sm:$0xff]
        %v914 = vld [vmem:[%s421 + $0x608] sm:$0xff]
        %v915 = vld [vmem:[%s421 + $0x610] sm:$0xff]
        %v916 = vld [vmem:[%s421 + $0x618] sm:$0xff]
        %v917 = vld [vmem:[%s421 + $0x620] sm:$0xff]
        %v918 = vld [vmem:[%s421 + $0x628] sm:$0xff]
        %v919 = vld [vmem:[%s421 + $0x630] sm:$0xff]
        %v920 = vld [vmem:[%s421 + $0x638] sm:$0xff]
        %v921 = vld [vmem:[%s421 + $0x640] sm:$0xff]
        %v922 = vld [vmem:[%s421 + $0x648] sm:$0xff]
        %v923 = vld [vmem:[%s421 + $0x650] sm:$0xff]
        %v924 = vld [vmem:[%s421 + $0x658] sm:$0xff]
        %v925 = vld [vmem:[%s421 + $0x660] sm:$0xff]
        %v926 = vld [vmem:[%s421 + $0x668] sm:$0xff]
        %v927 = vld [vmem:[%s421 + $0x670] sm:$0xff]
        %v928 = vld [vmem:[%s421 + $0x678] sm:$0xff]
        %v929 = vld [vmem:[%s421 + $0x680] sm:$0xff]
        %v930 = vld [vmem:[%s421 + $0x688] sm:$0xff]
        %v931 = vld [vmem:[%s421 + $0x690] sm:$0xff]
        %v932 = vld [vmem:[%s421 + $0x698] sm:$0xff]
        %v933 = vld [vmem:[%s421 + $0x6a0] sm:$0xff]
        %v934 = vld [vmem:[%s421 + $0x6a8] sm:$0xff]
        %v935 = vld [vmem:[%s421 + $0x6b0] sm:$0xff]
        %v936 = vld [vmem:[%s421 + $0x6b8] sm:$0xff]
        %v937 = vld [vmem:[%s421 + $0x6c0] sm:$0xff]
        %v938 = vld [vmem:[%s421 + $0x6c8] sm:$0xff]
        %v939 = vld [vmem:[%s421 + $0x6d0] sm:$0xff]
        %v940 = vld [vmem:[%s421 + $0x6d8] sm:$0xff]
        %v941 = vld [vmem:[%s421 + $0x6e0] sm:$0xff]
        %v942 = vld [vmem:[%s421 + $0x6e8] sm:$0xff]
        %v943 = vld [vmem:[%s421 + $0x6f0] sm:$0xff]
        %v944 = vld [vmem:[%s421 + $0x6f8] sm:$0xff]
        %v945 = vld [vmem:[%s421 + $0x700] sm:$0xff]
        %v946 = vld [vmem:[%s421 + $0x708] sm:$0xff]
        %v947 = vld [vmem:[%s421 + $0x710] sm:$0xff]
        %v948 = vld [vmem:[%s421 + $0x718] sm:$0xff]
        %v949 = vld [vmem:[%s421 + $0x720] sm:$0xff]
        %v950 = vld [vmem:[%s421 + $0x728] sm:$0xff]
        %v951 = vld [vmem:[%s421 + $0x730] sm:$0xff]
        %v952 = vld [vmem:[%s421 + $0x738] sm:$0xff]
        %v953 = vld [vmem:[%s421 + $0x740] sm:$0xff]
        %v954 = vld [vmem:[%s421 + $0x748] sm:$0xff]
        %v955 = vld [vmem:[%s421 + $0x750] sm:$0xff]
        %v956 = vld [vmem:[%s421 + $0x758] sm:$0xff]
        %v957 = vld [vmem:[%s421 + $0x760] sm:$0xff]
        %v958 = vld [vmem:[%s421 + $0x768] sm:$0xff]
        %v959 = vld [vmem:[%s421 + $0x770] sm:$0xff]
        %v960 = vld [vmem:[%s421 + $0x778] sm:$0xff]
        %v961 = vld [vmem:[%s421 + $0x780] sm:$0xff]
        %v962 = vld [vmem:[%s421 + $0x788] sm:$0xff]
        %v963 = vld [vmem:[%s421 + $0x790] sm:$0xff]
        %v964 = vld [vmem:[%s421 + $0x798] sm:$0xff]
        %v965 = vld [vmem:[%s421 + $0x7a0] sm:$0xff]
        %v966 = vld [vmem:[%s421 + $0x7a8] sm:$0xff]
        %v967 = vld [vmem:[%s421 + $0x7b0] sm:$0xff]
        %v968 = vld [vmem:[%s421 + $0x7b8] sm:$0xff]
        %v969 = vld [vmem:[%s421 + $0x7c0] sm:$0xff]
        %v970 = vld [vmem:[%s421 + $0x7c8] sm:$0xff]
        %v971 = vld [vmem:[%s421 + $0x7d0] sm:$0xff]
        %v972 = vld [vmem:[%s421 + $0x7d8] sm:$0xff]
        %v973 = vld [vmem:[%s421 + $0x7e0] sm:$0xff]
        %v974 = vld [vmem:[%s421 + $0x7e8] sm:$0xff]
        %v975 = vld [vmem:[%s421 + $0x7f0] sm:$0xff]
        %v976 = vld [vmem:[%s421 + $0x7f8] sm:$0xff]
        %v977 = vld [vmem:[%s421 + $0x800] sm:$0xff]
        %v978 = vld [vmem:[%s421 + $0x808] sm:$0xff]
        %v979 = vld [vmem:[%s421 + $0x810] sm:$0xff]
        %v980 = vld [vmem:[%s421 + $0x818] sm:$0xff]
        %v981 = vld [vmem:[%s421 + $0x820] sm:$0xff]
        %v982 = vld [vmem:[%s421 + $0x828] sm:$0xff]
        %v983 = vld [vmem:[%s421 + $0x830] sm:$0xff]
        %v984 = vld [vmem:[%s421 + $0x838] sm:$0xff]
        %v985 = vld [vmem:[%s421 + $0x840] sm:$0xff]
        %v986 = vld [vmem:[%s421 + $0x848] sm:$0xff]
        %v987 = vld [vmem:[%s421 + $0x850] sm:$0xff]
        %v988 = vld [vmem:[%s421 + $0x858] sm:$0xff]
        %v989 = vld [vmem:[%s421 + $0x860] sm:$0xff]
        %v990 = vld [vmem:[%s421 + $0x868] sm:$0xff]
        %v991 = vld [vmem:[%s421 + $0x870] sm:$0xff]
        %v992 = vld [vmem:[%s421 + $0x878] sm:$0xff]
        %v993 = vld [vmem:[%s421 + $0x880] sm:$0xff]
        %v994 = vld [vmem:[%s421 + $0x888] sm:$0xff]
        %v995 = vld [vmem:[%s421 + $0x890] sm:$0xff]
        %v996 = vld [vmem:[%s421 + $0x898] sm:$0xff]
        %v997 = vld [vmem:[%s421 + $0x8a0] sm:$0xff]
        %v998 = vld [vmem:[%s421 + $0x8a8] sm:$0xff]
        %v999 = vld [vmem:[%s421 + $0x8b0] sm:$0xff]
        %v1000 = vld [vmem:[%s421 + $0x8b8] sm:$0xff]
        %v1001 = vld [vmem:[%s421 + $0x8c0] sm:$0xff]
        %v1002 = vld [vmem:[%s421 + $0x8c8] sm:$0xff]
        %v1003 = vld [vmem:[%s421 + $0x8d0] sm:$0xff]
        %v1004 = vld [vmem:[%s421 + $0x8d8] sm:$0xff]
        %v1005 = vld [vmem:[%s421 + $0x8e0] sm:$0xff]
        %v1006 = vld [vmem:[%s421 + $0x8e8] sm:$0xff]
        %v1007 = vld [vmem:[%s421 + $0x8f0] sm:$0xff]
        %v1008 = vld [vmem:[%s421 + $0x8f8] sm:$0xff]
        %v1009 = vld [vmem:[%s421 + $0x900] sm:$0xff]
        %v1010 = vld [vmem:[%s421 + $0x908] sm:$0xff]
        %v1011 = vld [vmem:[%s421 + $0x910] sm:$0xff]
        %v1012 = vld [vmem:[%s421 + $0x918] sm:$0xff]
        %v1013 = vld [vmem:[%s421 + $0x920] sm:$0xff]
        %v1014 = vld [vmem:[%s421 + $0x928] sm:$0xff]
        %v1015 = vld [vmem:[%s421 + $0x930] sm:$0xff]
        %v1016 = vld [vmem:[%s421 + $0x938] sm:$0xff]
        %v1017 = vld [vmem:[%s421 + $0x940] sm:$0xff]
        %v1018 = vld [vmem:[%s421 + $0x948] sm:$0xff]
        %v1019 = vld [vmem:[%s421 + $0x950] sm:$0xff]
        %v1020 = vld [vmem:[%s421 + $0x958] sm:$0xff]
        %v1021 = vld [vmem:[%s421 + $0x960] sm:$0xff]
        %v1022 = vld [vmem:[%s421 + $0x968] sm:$0xff]
        %v1023 = vld [vmem:[%s421 + $0x970] sm:$0xff]
        %v1024 = vld [vmem:[%s421 + $0x978] sm:$0xff]
        %v1025 = vld [vmem:[%s421 + $0x980] sm:$0xff]
        %v1026 = vld [vmem:[%s421 + $0x988] sm:$0xff]
        %v1027 = vld [vmem:[%s421 + $0x990] sm:$0xff]
        %v1028 = vld [vmem:[%s421 + $0x998] sm:$0xff]
        %v1029 = vld [vmem:[%s421 + $0x9a0] sm:$0xff]
        %v1030 = vld [vmem:[%s421 + $0x9a8] sm:$0xff]
        %v1031 = vld [vmem:[%s421 + $0x9b0] sm:$0xff]
        %v1032 = vld [vmem:[%s421 + $0x9b8] sm:$0xff]
        %v1033 = vld [vmem:[%s421 + $0x9c0] sm:$0xff]
        %v1034 = vld [vmem:[%s421 + $0x9c8] sm:$0xff]
        %v1035 = vld [vmem:[%s421 + $0x9d0] sm:$0xff]
        %v1036 = vld [vmem:[%s421 + $0x9d8] sm:$0xff]
        %v1037 = vld [vmem:[%s421 + $0x9e0] sm:$0xff]
        %v1038 = vld [vmem:[%s421 + $0x9e8] sm:$0xff]
        %v1039 = vld [vmem:[%s421 + $0x9f0] sm:$0xff]
        %v1040 = vld [vmem:[%s421 + $0x9f8] sm:$0xff]
        %v1041 = vld [vmem:[%s421 + $0xa00] sm:$0xff]
        %v1042 = vld [vmem:[%s421 + $0xa08] sm:$0xff]
        %v1043 = vld [vmem:[%s421 + $0xa10] sm:$0xff]
        %v1044 = vld [vmem:[%s421 + $0xa18] sm:$0xff]
        %v1045 = vld [vmem:[%s421 + $0xa20] sm:$0xff]
        %v1046 = vld [vmem:[%s421 + $0xa28] sm:$0xff]
        %v1047 = vld [vmem:[%s421 + $0xa30] sm:$0xff]
        %v1048 = vld [vmem:[%s421 + $0xa38] sm:$0xff]
        %v1049 = vld [vmem:[%s421 + $0xa40] sm:$0xff]
        %v1050 = vld [vmem:[%s421 + $0xa48] sm:$0xff]
        %v1051 = vld [vmem:[%s421 + $0xa50] sm:$0xff]
        %v1052 = vld [vmem:[%s421 + $0xa58] sm:$0xff]
        %v1053 = vld [vmem:[%s421 + $0xa60] sm:$0xff]
        %v1054 = vld [vmem:[%s421 + $0xa68] sm:$0xff]
        %v1055 = vld [vmem:[%s421 + $0xa70] sm:$0xff]
        %v1056 = vld [vmem:[%s421 + $0xa78] sm:$0xff]
        %v1057 = vld [vmem:[%s421 + $0xa80] sm:$0xff]
        %v1058 = vld [vmem:[%s421 + $0xa88] sm:$0xff]
        %v1059 = vld [vmem:[%s421 + $0xa90] sm:$0xff]
        %v1060 = vld [vmem:[%s421 + $0xa98] sm:$0xff]
        %v1061 = vld [vmem:[%s421 + $0xaa0] sm:$0xff]
        %v1062 = vld [vmem:[%s421 + $0xaa8] sm:$0xff]
        %v1063 = vld [vmem:[%s421 + $0xab0] sm:$0xff]
        %v1064 = vld [vmem:[%s421 + $0xab8] sm:$0xff]
        %v1065 = vld [vmem:[%s421 + $0xac0] sm:$0xff]
        %v1066 = vld [vmem:[%s421 + $0xac8] sm:$0xff]
        %v1067 = vld [vmem:[%s421 + $0xad0] sm:$0xff]
        %v1068 = vld [vmem:[%s421 + $0xad8] sm:$0xff]
        %v1069 = vld [vmem:[%s421 + $0xae0] sm:$0xff]
        %v1070 = vld [vmem:[%s421 + $0xae8] sm:$0xff]
        %v1071 = vld [vmem:[%s421 + $0xaf0] sm:$0xff]
        %v1072 = vld [vmem:[%s421 + $0xaf8] sm:$0xff]
        %v1073 = vld [vmem:[%s421 + $0xb00] sm:$0xff]
        %v1074 = vld [vmem:[%s421 + $0xb08] sm:$0xff]
        %v1075 = vld [vmem:[%s421 + $0xb10] sm:$0xff]
        %v1076 = vld [vmem:[%s421 + $0xb18] sm:$0xff]
        %v1077 = vld [vmem:[%s421 + $0xb20] sm:$0xff]
        %v1078 = vld [vmem:[%s421 + $0xb28] sm:$0xff]
        %v1079 = vld [vmem:[%s421 + $0xb30] sm:$0xff]
        %v1080 = vld [vmem:[%s421 + $0xb38] sm:$0xff]
        %v1081 = vld [vmem:[%s421 + $0xb40] sm:$0xff]
        %v1082 = vld [vmem:[%s421 + $0xb48] sm:$0xff]
        %v1083 = vld [vmem:[%s421 + $0xb50] sm:$0xff]
        %v1084 = vld [vmem:[%s421 + $0xb58] sm:$0xff]
        %v1085 = vld [vmem:[%s421 + $0xb60] sm:$0xff]
        %v1086 = vld [vmem:[%s421 + $0xb68] sm:$0xff]
        %v1087 = vld [vmem:[%s421 + $0xb70] sm:$0xff]
        %v1088 = vld [vmem:[%s421 + $0xb78] sm:$0xff]
        %v1089 = vld [vmem:[%s421 + $0xb80] sm:$0xff]
        %v1090 = vld [vmem:[%s421 + $0xb88] sm:$0xff]
        %v1091 = vld [vmem:[%s421 + $0xb90] sm:$0xff]
        %v1092 = vld [vmem:[%s421 + $0xb98] sm:$0xff]
        %v1093 = vld [vmem:[%s421 + $0xba0] sm:$0xff]
        %v1094 = vld [vmem:[%s421 + $0xba8] sm:$0xff]
        %v1095 = vld [vmem:[%s421 + $0xbb0] sm:$0xff]
        %v1096 = vld [vmem:[%s421 + $0xbb8] sm:$0xff]
        %v1097 = vld [vmem:[%s421 + $0xbc0] sm:$0xff]
        %v1098 = vld [vmem:[%s421 + $0xbc8] sm:$0xff]
        %v1099 = vld [vmem:[%s421 + $0xbd0] sm:$0xff]
        %v1100 = vld [vmem:[%s421 + $0xbd8] sm:$0xff]
        %v1101 = vld [vmem:[%s421 + $0xbe0] sm:$0xff]
        %v1102 = vld [vmem:[%s421 + $0xbe8] sm:$0xff]
        %v1103 = vld [vmem:[%s421 + $0xbf0] sm:$0xff]
        %v1104 = vld [vmem:[%s421 + $0xbf8] sm:$0xff]
        %v1105 = vld [vmem:[%s421 + $0xc00] sm:$0xff]
        %v1106 = vld [vmem:[%s421 + $0xc08] sm:$0xff]
        %v1107 = vld [vmem:[%s421 + $0xc10] sm:$0xff]
        %v1108 = vld [vmem:[%s421 + $0xc18] sm:$0xff]
        %v1109 = vld [vmem:[%s421 + $0xc20] sm:$0xff]
        %v1110 = vld [vmem:[%s421 + $0xc28] sm:$0xff]
        %v1111 = vld [vmem:[%s421 + $0xc30] sm:$0xff]
        %v1112 = vld [vmem:[%s421 + $0xc38] sm:$0xff]
        %v1113 = vld [vmem:[%s421 + $0xc40] sm:$0xff]
        %v1114 = vld [vmem:[%s421 + $0xc48] sm:$0xff]
        %v1115 = vld [vmem:[%s421 + $0xc50] sm:$0xff]
        %v1116 = vld [vmem:[%s421 + $0xc58] sm:$0xff]
        %v1117 = vld [vmem:[%s421 + $0xc60] sm:$0xff]
        %v1118 = vld [vmem:[%s421 + $0xc68] sm:$0xff]
        %v1119 = vld [vmem:[%s421 + $0xc70] sm:$0xff]
        %v1120 = vld [vmem:[%s421 + $0xc78] sm:$0xff]
        %v1121 = vld [vmem:[%s421 + $0xc80] sm:$0xff]
        %v1122 = vld [vmem:[%s421 + $0xc88] sm:$0xff]
        %v1123 = vld [vmem:[%s421 + $0xc90] sm:$0xff]
        %v1124 = vld [vmem:[%s421 + $0xc98] sm:$0xff]
        %v1125 = vld [vmem:[%s421 + $0xca0] sm:$0xff]
        %v1126 = vld [vmem:[%s421 + $0xca8] sm:$0xff]
        %v1127 = vld [vmem:[%s421 + $0xcb0] sm:$0xff]
        %v1128 = vld [vmem:[%s421 + $0xcb8] sm:$0xff]
        %v1129 = vld [vmem:[%s421 + $0xcc0] sm:$0xff]
        %v1130 = vld [vmem:[%s421 + $0xcc8] sm:$0xff]
        %v1131 = vld [vmem:[%s421 + $0xcd0] sm:$0xff]
        %v1132 = vld [vmem:[%s421 + $0xcd8] sm:$0xff]
        %v1133 = vld [vmem:[%s421 + $0xce0] sm:$0xff]
        %v1134 = vld [vmem:[%s421 + $0xce8] sm:$0xff]
        %v1135 = vld [vmem:[%s421 + $0xcf0] sm:$0xff]
        %v1136 = vld [vmem:[%s421 + $0xcf8] sm:$0xff]
        %v1137 = vld [vmem:[%s421 + $0xd00] sm:$0xff]
        %v1138 = vld [vmem:[%s421 + $0xd08] sm:$0xff]
        %v1139 = vld [vmem:[%s421 + $0xd10] sm:$0xff]
        %v1140 = vld [vmem:[%s421 + $0xd18] sm:$0xff]
        %v1141 = vld [vmem:[%s421 + $0xd20] sm:$0xff]
        %v1142 = vld [vmem:[%s421 + $0xd28] sm:$0xff]
        %v1143 = vld [vmem:[%s421 + $0xd30] sm:$0xff]
        %v1144 = vld [vmem:[%s421 + $0xd38] sm:$0xff]
        %v1145 = vld [vmem:[%s421 + $0xd40] sm:$0xff]
        %v1146 = vld [vmem:[%s421 + $0xd48] sm:$0xff]
        %v1147 = vld [vmem:[%s421 + $0xd50] sm:$0xff]
        %v1148 = vld [vmem:[%s421 + $0xd58] sm:$0xff]
        %v1149 = vld [vmem:[%s421 + $0xd60] sm:$0xff]
        %v1150 = vld [vmem:[%s421 + $0xd68] sm:$0xff]
        %v1151 = vld [vmem:[%s421 + $0xd70] sm:$0xff]
        %v1152 = vld [vmem:[%s421 + $0xd78] sm:$0xff]
        %v1153 = vld [vmem:[%s421 + $0xd80] sm:$0xff]
        %v1154 = vld [vmem:[%s421 + $0xd88] sm:$0xff]
        %v1155 = vld [vmem:[%s421 + $0xd90] sm:$0xff]
        %v1156 = vld [vmem:[%s421 + $0xd98] sm:$0xff]
        %v1157 = vld [vmem:[%s421 + $0xda0] sm:$0xff]
        %v1158 = vld [vmem:[%s421 + $0xda8] sm:$0xff]
        %v1159 = vld [vmem:[%s421 + $0xdb0] sm:$0xff]
        %v1160 = vld [vmem:[%s421 + $0xdb8] sm:$0xff]
        %v1161 = vld [vmem:[%s421 + $0xdc0] sm:$0xff]
        %v1162 = vld [vmem:[%s421 + $0xdc8] sm:$0xff]
        %v1163 = vld [vmem:[%s421 + $0xdd0] sm:$0xff]
        %v1164 = vld [vmem:[%s421 + $0xdd8] sm:$0xff]
        %v1165 = vld [vmem:[%s421 + $0xde0] sm:$0xff]
        %v1166 = vld [vmem:[%s421 + $0xde8] sm:$0xff]
        %v1167 = vld [vmem:[%s421 + $0xdf0] sm:$0xff]
        %v1168 = vld [vmem:[%s421 + $0xdf8] sm:$0xff]
        %v1169 = vld [vmem:[%s421 + $0xe00] sm:$0xff]
        %v1170 = vld [vmem:[%s421 + $0xe08] sm:$0xff]
        %v1171 = vld [vmem:[%s421 + $0xe10] sm:$0xff]
        %v1172 = vld [vmem:[%s421 + $0xe18] sm:$0xff]
        %v1173 = vld [vmem:[%s421 + $0xe20] sm:$0xff]
        %v1174 = vld [vmem:[%s421 + $0xe28] sm:$0xff]
        %v1175 = vld [vmem:[%s421 + $0xe30] sm:$0xff]
        %v1176 = vld [vmem:[%s421 + $0xe38] sm:$0xff]
        %v1177 = vld [vmem:[%s421 + $0xe40] sm:$0xff]
        %v1178 = vld [vmem:[%s421 + $0xe48] sm:$0xff]
        %v1179 = vld [vmem:[%s421 + $0xe50] sm:$0xff]
        %v1180 = vld [vmem:[%s421 + $0xe58] sm:$0xff]
        %v1181 = vld [vmem:[%s421 + $0xe60] sm:$0xff]
        %v1182 = vld [vmem:[%s421 + $0xe68] sm:$0xff]
        %v1183 = vld [vmem:[%s421 + $0xe70] sm:$0xff]
        %v1184 = vld [vmem:[%s421 + $0xe78] sm:$0xff]
        %v1185 = vld [vmem:[%s421 + $0xe80] sm:$0xff]
        %v1186 = vld [vmem:[%s421 + $0xe88] sm:$0xff]
        %v1187 = vld [vmem:[%s421 + $0xe90] sm:$0xff]
        %v1188 = vld [vmem:[%s421 + $0xe98] sm:$0xff]
        %v1189 = vld [vmem:[%s421 + $0xea0] sm:$0xff]
        %v1190 = vld [vmem:[%s421 + $0xea8] sm:$0xff]
        %v1191 = vld [vmem:[%s421 + $0xeb0] sm:$0xff]
        %v1192 = vld [vmem:[%s421 + $0xeb8] sm:$0xff]
        %v1193 = vld [vmem:[%s421 + $0xec0] sm:$0xff]
        %v1194 = vld [vmem:[%s421 + $0xec8] sm:$0xff]
        %v1195 = vld [vmem:[%s421 + $0xed0] sm:$0xff]
        %v1196 = vld [vmem:[%s421 + $0xed8] sm:$0xff]
        %v1197 = vld [vmem:[%s421 + $0xee0] sm:$0xff]
        %v1198 = vld [vmem:[%s421 + $0xee8] sm:$0xff]
        %v1199 = vld [vmem:[%s421 + $0xef0] sm:$0xff]
        %v1200 = vld [vmem:[%s421 + $0xef8] sm:$0xff]
        %v1201 = vld [vmem:[%s421 + $0xf00] sm:$0xff]
        %v1202 = vld [vmem:[%s421 + $0xf08] sm:$0xff]
        %v1203 = vld [vmem:[%s421 + $0xf10] sm:$0xff]
        %v1204 = vld [vmem:[%s421 + $0xf18] sm:$0xff]
        %v1205 = vld [vmem:[%s421 + $0xf20] sm:$0xff]
        %v1206 = vld [vmem:[%s421 + $0xf28] sm:$0xff]
        %v1207 = vld [vmem:[%s421 + $0xf30] sm:$0xff]
        %v1208 = vld [vmem:[%s421 + $0xf38] sm:$0xff]
        %v1209 = vld [vmem:[%s421 + $0xf40] sm:$0xff]
        %v1210 = vld [vmem:[%s421 + $0xf48] sm:$0xff]
        %v1211 = vld [vmem:[%s421 + $0xf50] sm:$0xff]
        %v1212 = vld [vmem:[%s421 + $0xf58] sm:$0xff]
        %v1213 = vld [vmem:[%s421 + $0xf60] sm:$0xff]
        %v1214 = vld [vmem:[%s421 + $0xf68] sm:$0xff]
        %v1215 = vld [vmem:[%s421 + $0xf70] sm:$0xff]
        %v1216 = vld [vmem:[%s421 + $0xf78] sm:$0xff]
        %v1217 = vld [vmem:[%s421 + $0xf80] sm:$0xff]
        %v1218 = vld [vmem:[%s421 + $0xf88] sm:$0xff]
        %v1219 = vld [vmem:[%s421 + $0xf90] sm:$0xff]
        %v1220 = vld [vmem:[%s421 + $0xf98] sm:$0xff]
        %v1221 = vld [vmem:[%s421 + $0xfa0] sm:$0xff]
        %v1222 = vld [vmem:[%s421 + $0xfa8] sm:$0xff]
        %v1223 = vld [vmem:[%s421 + $0xfb0] sm:$0xff]
        %v1224 = vld [vmem:[%s421 + $0xfb8] sm:$0xff]
        %v1225 = vld [vmem:[%s421 + $0xfc0] sm:$0xff]
        %v1226 = vld [vmem:[%s421 + $0xfc8] sm:$0xff]
        %v1227 = vld [vmem:[%s421 + $0xfd0] sm:$0xff]
        %v1228 = vld [vmem:[%s421 + $0xfd8] sm:$0xff]
        %v1229 = vld [vmem:[%s421 + $0xfe0] sm:$0xff]
        %v1230 = vld [vmem:[%s421 + $0xfe8] sm:$0xff]
        %v1231 = vld [vmem:[%s421 + $0xff0] sm:$0xff]
        %v1232 = vld [vmem:[%s421 + $0xff8] sm:$0xff]
        %v1233 = vpack.c.bf16 %v729, %v721
        %v1234 = vpack.c.bf16 %v730, %v722
        %v1235 = vpack.c.bf16 %v731, %v723
        %v1236 = vpack.c.bf16 %v732, %v724
        %v1237 = vpack.c.bf16 %v733, %v725
        %v1238 = vpack.c.bf16 %v734, %v726
        %v1239 = vpack.c.bf16 %v735, %v727
        %v1240 = vpack.c.bf16 %v736, %v728
        %v1241 = vpack.c.bf16 %v745, %v737
        %v1242 = vpack.c.bf16 %v746, %v738
        %v1243 = vpack.c.bf16 %v747, %v739
        %v1244 = vpack.c.bf16 %v748, %v740
        %v1245 = vpack.c.bf16 %v749, %v741
        %v1246 = vpack.c.bf16 %v750, %v742
        %v1247 = vpack.c.bf16 %v751, %v743
        %v1248 = vpack.c.bf16 %v752, %v744
        %v1249 = vpack.c.bf16 %v761, %v753
        %v1250 = vpack.c.bf16 %v762, %v754
        %v1251 = vpack.c.bf16 %v763, %v755
        %v1252 = vpack.c.bf16 %v764, %v756
        %v1253 = vpack.c.bf16 %v765, %v757
        %v1254 = vpack.c.bf16 %v766, %v758
        %v1255 = vpack.c.bf16 %v767, %v759
        %v1256 = vpack.c.bf16 %v768, %v760
        %v1257 = vpack.c.bf16 %v777, %v769
        %v1258 = vpack.c.bf16 %v778, %v770
        %v1259 = vpack.c.bf16 %v779, %v771
        %v1260 = vpack.c.bf16 %v780, %v772
        %v1261 = vpack.c.bf16 %v781, %v773
        %v1262 = vpack.c.bf16 %v782, %v774
        %v1263 = vpack.c.bf16 %v783, %v775
        %v1264 = vpack.c.bf16 %v784, %v776
        %v1265 = vpack.c.bf16 %v793, %v785
        %v1266 = vpack.c.bf16 %v794, %v786
        %v1267 = vpack.c.bf16 %v795, %v787
        %v1268 = vpack.c.bf16 %v796, %v788
        %v1269 = vpack.c.bf16 %v797, %v789
        %v1270 = vpack.c.bf16 %v798, %v790
        %v1271 = vpack.c.bf16 %v799, %v791
        %v1272 = vpack.c.bf16 %v800, %v792
        %v1273 = vpack.c.bf16 %v809, %v801
        %v1274 = vpack.c.bf16 %v810, %v802
        %v1275 = vpack.c.bf16 %v811, %v803
        %v1276 = vpack.c.bf16 %v812, %v804
        %v1277 = vpack.c.bf16 %v813, %v805
        %v1278 = vpack.c.bf16 %v814, %v806
        %v1279 = vpack.c.bf16 %v815, %v807
        %v1280 = vpack.c.bf16 %v816, %v808
        %v1281 = vpack.c.bf16 %v825, %v817
        %v1282 = vpack.c.bf16 %v826, %v818
        %v1283 = vpack.c.bf16 %v827, %v819
        %v1284 = vpack.c.bf16 %v828, %v820
        %v1285 = vpack.c.bf16 %v829, %v821
        %v1286 = vpack.c.bf16 %v830, %v822
        %v1287 = vpack.c.bf16 %v831, %v823
        %v1288 = vpack.c.bf16 %v832, %v824
        %v1289 = vpack.c.bf16 %v841, %v833
        %v1290 = vpack.c.bf16 %v842, %v834
        %v1291 = vpack.c.bf16 %v843, %v835
        %v1292 = vpack.c.bf16 %v844, %v836
        %v1293 = vpack.c.bf16 %v845, %v837
        %v1294 = vpack.c.bf16 %v846, %v838
        %v1295 = vpack.c.bf16 %v847, %v839
        %v1296 = vpack.c.bf16 %v848, %v840
        %v1297 = vpack.c.bf16 %v857, %v849
        %v1298 = vpack.c.bf16 %v858, %v850
        %v1299 = vpack.c.bf16 %v859, %v851
        %v1300 = vpack.c.bf16 %v860, %v852
        %v1301 = vpack.c.bf16 %v861, %v853
        %v1302 = vpack.c.bf16 %v862, %v854
        %v1303 = vpack.c.bf16 %v863, %v855
        %v1304 = vpack.c.bf16 %v864, %v856
        %v1305 = vpack.c.bf16 %v873, %v865
        %v1306 = vpack.c.bf16 %v874, %v866
        %v1307 = vpack.c.bf16 %v875, %v867
        %v1308 = vpack.c.bf16 %v876, %v868
        %v1309 = vpack.c.bf16 %v877, %v869
        %v1310 = vpack.c.bf16 %v878, %v870
        %v1311 = vpack.c.bf16 %v879, %v871
        %v1312 = vpack.c.bf16 %v880, %v872
        %v1313 = vpack.c.bf16 %v889, %v881
        %v1314 = vpack.c.bf16 %v890, %v882
        %v1315 = vpack.c.bf16 %v891, %v883
        %v1316 = vpack.c.bf16 %v892, %v884
        %v1317 = vpack.c.bf16 %v893, %v885
        %v1318 = vpack.c.bf16 %v894, %v886
        %v1319 = vpack.c.bf16 %v895, %v887
        %v1320 = vpack.c.bf16 %v896, %v888
        %v1321 = vpack.c.bf16 %v905, %v897
        %v1322 = vpack.c.bf16 %v906, %v898
        %v1323 = vpack.c.bf16 %v907, %v899
        %v1324 = vpack.c.bf16 %v908, %v900
        %v1325 = vpack.c.bf16 %v909, %v901
        %v1326 = vpack.c.bf16 %v910, %v902
        %v1327 = vpack.c.bf16 %v911, %v903
        %v1328 = vpack.c.bf16 %v912, %v904
        %v1329 = vpack.c.bf16 %v921, %v913
        %v1330 = vpack.c.bf16 %v922, %v914
        %v1331 = vpack.c.bf16 %v923, %v915
        %v1332 = vpack.c.bf16 %v924, %v916
        %v1333 = vpack.c.bf16 %v925, %v917
        %v1334 = vpack.c.bf16 %v926, %v918
        %v1335 = vpack.c.bf16 %v927, %v919
        %v1336 = vpack.c.bf16 %v928, %v920
        %v1337 = vpack.c.bf16 %v937, %v929
        %v1338 = vpack.c.bf16 %v938, %v930
        %v1339 = vpack.c.bf16 %v939, %v931
        %v1340 = vpack.c.bf16 %v940, %v932
        %v1341 = vpack.c.bf16 %v941, %v933
        %v1342 = vpack.c.bf16 %v942, %v934
        %v1343 = vpack.c.bf16 %v943, %v935
        %v1344 = vpack.c.bf16 %v944, %v936
        %v1345 = vpack.c.bf16 %v953, %v945
        %v1346 = vpack.c.bf16 %v954, %v946
        %v1347 = vpack.c.bf16 %v955, %v947
        %v1348 = vpack.c.bf16 %v956, %v948
        %v1349 = vpack.c.bf16 %v957, %v949
        %v1350 = vpack.c.bf16 %v958, %v950
        %v1351 = vpack.c.bf16 %v959, %v951
        %v1352 = vpack.c.bf16 %v960, %v952
        %v1353 = vpack.c.bf16 %v969, %v961
        %v1354 = vpack.c.bf16 %v970, %v962
        %v1355 = vpack.c.bf16 %v971, %v963
        %v1356 = vpack.c.bf16 %v972, %v964
        %v1357 = vpack.c.bf16 %v973, %v965
        %v1358 = vpack.c.bf16 %v974, %v966
        %v1359 = vpack.c.bf16 %v975, %v967
        %v1360 = vpack.c.bf16 %v976, %v968
        %v1361 = vpack.c.bf16 %v985, %v977
        %v1362 = vpack.c.bf16 %v986, %v978
        %v1363 = vpack.c.bf16 %v987, %v979
        %v1364 = vpack.c.bf16 %v988, %v980
        %v1365 = vpack.c.bf16 %v989, %v981
        %v1366 = vpack.c.bf16 %v990, %v982
        %v1367 = vpack.c.bf16 %v991, %v983
        %v1368 = vpack.c.bf16 %v992, %v984
        %v1369 = vpack.c.bf16 %v1001, %v993
        %v1370 = vpack.c.bf16 %v1002, %v994
        %v1371 = vpack.c.bf16 %v1003, %v995
        %v1372 = vpack.c.bf16 %v1004, %v996
        %v1373 = vpack.c.bf16 %v1005, %v997
        %v1374 = vpack.c.bf16 %v1006, %v998
        %v1375 = vpack.c.bf16 %v1007, %v999
        %v1376 = vpack.c.bf16 %v1008, %v1000
        %v1377 = vpack.c.bf16 %v1017, %v1009
        %v1378 = vpack.c.bf16 %v1018, %v1010
        %v1379 = vpack.c.bf16 %v1019, %v1011
        %v1380 = vpack.c.bf16 %v1020, %v1012
        %v1381 = vpack.c.bf16 %v1021, %v1013
        %v1382 = vpack.c.bf16 %v1022, %v1014
        %v1383 = vpack.c.bf16 %v1023, %v1015
        %v1384 = vpack.c.bf16 %v1024, %v1016
        %v1385 = vpack.c.bf16 %v1033, %v1025
        %v1386 = vpack.c.bf16 %v1034, %v1026
        %v1387 = vpack.c.bf16 %v1035, %v1027
        %v1388 = vpack.c.bf16 %v1036, %v1028
        %v1389 = vpack.c.bf16 %v1037, %v1029
        %v1390 = vpack.c.bf16 %v1038, %v1030
        %v1391 = vpack.c.bf16 %v1039, %v1031
        %v1392 = vpack.c.bf16 %v1040, %v1032
        %v1393 = vpack.c.bf16 %v1049, %v1041
        %v1394 = vpack.c.bf16 %v1050, %v1042
        %v1395 = vpack.c.bf16 %v1051, %v1043
        %v1396 = vpack.c.bf16 %v1052, %v1044
        %v1397 = vpack.c.bf16 %v1053, %v1045
        %v1398 = vpack.c.bf16 %v1054, %v1046
        %v1399 = vpack.c.bf16 %v1055, %v1047
        %v1400 = vpack.c.bf16 %v1056, %v1048
        %v1401 = vpack.c.bf16 %v1065, %v1057
        %v1402 = vpack.c.bf16 %v1066, %v1058
        %v1403 = vpack.c.bf16 %v1067, %v1059
        %v1404 = vpack.c.bf16 %v1068, %v1060
        %v1405 = vpack.c.bf16 %v1069, %v1061
        %v1406 = vpack.c.bf16 %v1070, %v1062
        %v1407 = vpack.c.bf16 %v1071, %v1063
        %v1408 = vpack.c.bf16 %v1072, %v1064
        %v1409 = vpack.c.bf16 %v1081, %v1073
        %v1410 = vpack.c.bf16 %v1082, %v1074
        %v1411 = vpack.c.bf16 %v1083, %v1075
        %v1412 = vpack.c.bf16 %v1084, %v1076
        %v1413 = vpack.c.bf16 %v1085, %v1077
        %v1414 = vpack.c.bf16 %v1086, %v1078
        %v1415 = vpack.c.bf16 %v1087, %v1079
        %v1416 = vpack.c.bf16 %v1088, %v1080
        %v1417 = vpack.c.bf16 %v1097, %v1089
        %v1418 = vpack.c.bf16 %v1098, %v1090
        %v1419 = vpack.c.bf16 %v1099, %v1091
        %v1420 = vpack.c.bf16 %v1100, %v1092
        %v1421 = vpack.c.bf16 %v1101, %v1093
        %v1422 = vpack.c.bf16 %v1102, %v1094
        %v1423 = vpack.c.bf16 %v1103, %v1095
        %v1424 = vpack.c.bf16 %v1104, %v1096
        %v1425 = vpack.c.bf16 %v1113, %v1105
        %v1426 = vpack.c.bf16 %v1114, %v1106
        %v1427 = vpack.c.bf16 %v1115, %v1107
        %v1428 = vpack.c.bf16 %v1116, %v1108
        %v1429 = vpack.c.bf16 %v1117, %v1109
        %v1430 = vpack.c.bf16 %v1118, %v1110
        %v1431 = vpack.c.bf16 %v1119, %v1111
        %v1432 = vpack.c.bf16 %v1120, %v1112
        %v1433 = vpack.c.bf16 %v1129, %v1121
        %v1434 = vpack.c.bf16 %v1130, %v1122
        %v1435 = vpack.c.bf16 %v1131, %v1123
        %v1436 = vpack.c.bf16 %v1132, %v1124
        %v1437 = vpack.c.bf16 %v1133, %v1125
        %v1438 = vpack.c.bf16 %v1134, %v1126
        %v1439 = vpack.c.bf16 %v1135, %v1127
        %v1440 = vpack.c.bf16 %v1136, %v1128
        %v1441 = vpack.c.bf16 %v1145, %v1137
        %v1442 = vpack.c.bf16 %v1146, %v1138
        %v1443 = vpack.c.bf16 %v1147, %v1139
        %v1444 = vpack.c.bf16 %v1148, %v1140
        %v1445 = vpack.c.bf16 %v1149, %v1141
        %v1446 = vpack.c.bf16 %v1150, %v1142
        %v1447 = vpack.c.bf16 %v1151, %v1143
        %v1448 = vpack.c.bf16 %v1152, %v1144
        %v1449 = vpack.c.bf16 %v1161, %v1153
        %v1450 = vpack.c.bf16 %v1162, %v1154
        %v1451 = vpack.c.bf16 %v1163, %v1155
        %v1452 = vpack.c.bf16 %v1164, %v1156
        %v1453 = vpack.c.bf16 %v1165, %v1157
        %v1454 = vpack.c.bf16 %v1166, %v1158
        %v1455 = vpack.c.bf16 %v1167, %v1159
        %v1456 = vpack.c.bf16 %v1168, %v1160
        %v1457 = vpack.c.bf16 %v1177, %v1169
        %v1458 = vpack.c.bf16 %v1178, %v1170
        %v1459 = vpack.c.bf16 %v1179, %v1171
        %v1460 = vpack.c.bf16 %v1180, %v1172
        %v1461 = vpack.c.bf16 %v1181, %v1173
        %v1462 = vpack.c.bf16 %v1182, %v1174
        %v1463 = vpack.c.bf16 %v1183, %v1175
        %v1464 = vpack.c.bf16 %v1184, %v1176
        %v1465 = vpack.c.bf16 %v1193, %v1185
        %v1466 = vpack.c.bf16 %v1194, %v1186
        %v1467 = vpack.c.bf16 %v1195, %v1187
        %v1468 = vpack.c.bf16 %v1196, %v1188
        %v1469 = vpack.c.bf16 %v1197, %v1189
        %v1470 = vpack.c.bf16 %v1198, %v1190
        %v1471 = vpack.c.bf16 %v1199, %v1191
        %v1472 = vpack.c.bf16 %v1200, %v1192
        %v1473 = vpack.c.bf16 %v1209, %v1201
        %v1474 = vpack.c.bf16 %v1210, %v1202
        %v1475 = vpack.c.bf16 %v1211, %v1203
        %v1476 = vpack.c.bf16 %v1212, %v1204
        %v1477 = vpack.c.bf16 %v1213, %v1205
        %v1478 = vpack.c.bf16 %v1214, %v1206
        %v1479 = vpack.c.bf16 %v1215, %v1207
        %v1480 = vpack.c.bf16 %v1216, %v1208
        %v1481 = vpack.c.bf16 %v1225, %v1217
        %v1482 = vpack.c.bf16 %v1226, %v1218
        %v1483 = vpack.c.bf16 %v1227, %v1219
        %v1484 = vpack.c.bf16 %v1228, %v1220
        %v1485 = vpack.c.bf16 %v1229, %v1221
        %v1486 = vpack.c.bf16 %v1230, %v1222
        %v1487 = vpack.c.bf16 %v1231, %v1223
        %v1488 = vpack.c.bf16 %v1232, %v1224
        %v1489 = vld [vmem:[#allocation10] sm:$0xff]
        %v1490 = vld [vmem:[#allocation10 + $0x8] sm:$0xff]
        %v1491 = vld [vmem:[#allocation10 + $0x10] sm:$0xff]
        %v1492 = vld [vmem:[#allocation10 + $0x18] sm:$0xff]
        %v1493 = vld [vmem:[#allocation10 + $0x20] sm:$0xff]
        %v1494 = vld [vmem:[#allocation10 + $0x28] sm:$0xff]
        %v1495 = vld [vmem:[#allocation10 + $0x30] sm:$0xff]
        %v1496 = vld [vmem:[#allocation10 + $0x38] sm:$0xff]
        %v1497 = vld [vmem:[#allocation10 + $0x40] sm:$0xff]
        %v1498 = vld [vmem:[#allocation10 + $0x48] sm:$0xff]
        %v1499 = vld [vmem:[#allocation10 + $0x50] sm:$0xff]
        %v1500 = vld [vmem:[#allocation10 + $0x58] sm:$0xff]
        %v1501 = vld [vmem:[#allocation10 + $0x60] sm:$0xff]
        %v1502 = vld [vmem:[#allocation10 + $0x68] sm:$0xff]
        %v1503 = vld [vmem:[#allocation10 + $0x70] sm:$0xff]
        %v1504 = vld [vmem:[#allocation10 + $0x78] sm:$0xff]
        %v1505 = vld [vmem:[#allocation10 + $0x80] sm:$0xff]
        %v1506 = vld [vmem:[#allocation10 + $0x88] sm:$0xff]
        %v1507 = vld [vmem:[#allocation10 + $0x90] sm:$0xff]
        %v1508 = vld [vmem:[#allocation10 + $0x98] sm:$0xff]
        %v1509 = vld [vmem:[#allocation10 + $0xa0] sm:$0xff]
        %v1510 = vld [vmem:[#allocation10 + $0xa8] sm:$0xff]
        %v1511 = vld [vmem:[#allocation10 + $0xb0] sm:$0xff]
        %v1512 = vld [vmem:[#allocation10 + $0xb8] sm:$0xff]
        %v1513 = vld [vmem:[#allocation10 + $0xc0] sm:$0xff]
        %v1514 = vld [vmem:[#allocation10 + $0xc8] sm:$0xff]
        %v1515 = vld [vmem:[#allocation10 + $0xd0] sm:$0xff]
        %v1516 = vld [vmem:[#allocation10 + $0xd8] sm:$0xff]
        %v1517 = vld [vmem:[#allocation10 + $0xe0] sm:$0xff]
        %v1518 = vld [vmem:[#allocation10 + $0xe8] sm:$0xff]
        %v1519 = vld [vmem:[#allocation10 + $0xf0] sm:$0xff]
        %v1520 = vld [vmem:[#allocation10 + $0xf8] sm:$0xff]
        %v1521 = vld [vmem:[#allocation10 + $0x100] sm:$0xff]
        %v1522 = vld [vmem:[#allocation10 + $0x108] sm:$0xff]
        %v1523 = vld [vmem:[#allocation10 + $0x110] sm:$0xff]
        %v1524 = vld [vmem:[#allocation10 + $0x118] sm:$0xff]
        %v1525 = vld [vmem:[#allocation10 + $0x120] sm:$0xff]
        %v1526 = vld [vmem:[#allocation10 + $0x128] sm:$0xff]
        %v1527 = vld [vmem:[#allocation10 + $0x130] sm:$0xff]
        %v1528 = vld [vmem:[#allocation10 + $0x138] sm:$0xff]
        %v1529 = vld [vmem:[#allocation10 + $0x140] sm:$0xff]
        %v1530 = vld [vmem:[#allocation10 + $0x148] sm:$0xff]
        %v1531 = vld [vmem:[#allocation10 + $0x150] sm:$0xff]
        %v1532 = vld [vmem:[#allocation10 + $0x158] sm:$0xff]
        %v1533 = vld [vmem:[#allocation10 + $0x160] sm:$0xff]
        %v1534 = vld [vmem:[#allocation10 + $0x168] sm:$0xff]
        %v1535 = vld [vmem:[#allocation10 + $0x170] sm:$0xff]
        %v1536 = vld [vmem:[#allocation10 + $0x178] sm:$0xff]
        %v1537 = vld [vmem:[#allocation10 + $0x180] sm:$0xff]
        %v1538 = vld [vmem:[#allocation10 + $0x188] sm:$0xff]
        %v1539 = vld [vmem:[#allocation10 + $0x190] sm:$0xff]
        %v1540 = vld [vmem:[#allocation10 + $0x198] sm:$0xff]
        %v1541 = vld [vmem:[#allocation10 + $0x1a0] sm:$0xff]
        %v1542 = vld [vmem:[#allocation10 + $0x1a8] sm:$0xff]
        %v1543 = vld [vmem:[#allocation10 + $0x1b0] sm:$0xff]
        %v1544 = vld [vmem:[#allocation10 + $0x1b8] sm:$0xff]
        %v1545 = vld [vmem:[#allocation10 + $0x1c0] sm:$0xff]
        %v1546 = vld [vmem:[#allocation10 + $0x1c8] sm:$0xff]
        %v1547 = vld [vmem:[#allocation10 + $0x1d0] sm:$0xff]
        %v1548 = vld [vmem:[#allocation10 + $0x1d8] sm:$0xff]
        %v1549 = vld [vmem:[#allocation10 + $0x1e0] sm:$0xff]
        %v1550 = vld [vmem:[#allocation10 + $0x1e8] sm:$0xff]
        %v1551 = vld [vmem:[#allocation10 + $0x1f0] sm:$0xff]
        %v1552 = vld [vmem:[#allocation10 + $0x1f8] sm:$0xff]
        %v1553 = vld [vmem:[#allocation10 + $0x200] sm:$0xff]
        %v1554 = vld [vmem:[#allocation10 + $0x208] sm:$0xff]
        %v1555 = vld [vmem:[#allocation10 + $0x210] sm:$0xff]
        %v1556 = vld [vmem:[#allocation10 + $0x218] sm:$0xff]
        %v1557 = vld [vmem:[#allocation10 + $0x220] sm:$0xff]
        %v1558 = vld [vmem:[#allocation10 + $0x228] sm:$0xff]
        %v1559 = vld [vmem:[#allocation10 + $0x230] sm:$0xff]
        %v1560 = vld [vmem:[#allocation10 + $0x238] sm:$0xff]
        %v1561 = vld [vmem:[#allocation10 + $0x240] sm:$0xff]
        %v1562 = vld [vmem:[#allocation10 + $0x248] sm:$0xff]
        %v1563 = vld [vmem:[#allocation10 + $0x250] sm:$0xff]
        %v1564 = vld [vmem:[#allocation10 + $0x258] sm:$0xff]
        %v1565 = vld [vmem:[#allocation10 + $0x260] sm:$0xff]
        %v1566 = vld [vmem:[#allocation10 + $0x268] sm:$0xff]
        %v1567 = vld [vmem:[#allocation10 + $0x270] sm:$0xff]
        %v1568 = vld [vmem:[#allocation10 + $0x278] sm:$0xff]
        %v1569 = vld [vmem:[#allocation10 + $0x280] sm:$0xff]
        %v1570 = vld [vmem:[#allocation10 + $0x288] sm:$0xff]
        %v1571 = vld [vmem:[#allocation10 + $0x290] sm:$0xff]
        %v1572 = vld [vmem:[#allocation10 + $0x298] sm:$0xff]
        %v1573 = vld [vmem:[#allocation10 + $0x2a0] sm:$0xff]
        %v1574 = vld [vmem:[#allocation10 + $0x2a8] sm:$0xff]
        %v1575 = vld [vmem:[#allocation10 + $0x2b0] sm:$0xff]
        %v1576 = vld [vmem:[#allocation10 + $0x2b8] sm:$0xff]
        %v1577 = vld [vmem:[#allocation10 + $0x2c0] sm:$0xff]
        %v1578 = vld [vmem:[#allocation10 + $0x2c8] sm:$0xff]
        %v1579 = vld [vmem:[#allocation10 + $0x2d0] sm:$0xff]
        %v1580 = vld [vmem:[#allocation10 + $0x2d8] sm:$0xff]
        %v1581 = vld [vmem:[#allocation10 + $0x2e0] sm:$0xff]
        %v1582 = vld [vmem:[#allocation10 + $0x2e8] sm:$0xff]
        %v1583 = vld [vmem:[#allocation10 + $0x2f0] sm:$0xff]
        %v1584 = vld [vmem:[#allocation10 + $0x2f8] sm:$0xff]
        %v1585 = vld [vmem:[#allocation10 + $0x300] sm:$0xff]
        %v1586 = vld [vmem:[#allocation10 + $0x308] sm:$0xff]
        %v1587 = vld [vmem:[#allocation10 + $0x310] sm:$0xff]
        %v1588 = vld [vmem:[#allocation10 + $0x318] sm:$0xff]
        %v1589 = vld [vmem:[#allocation10 + $0x320] sm:$0xff]
        %v1590 = vld [vmem:[#allocation10 + $0x328] sm:$0xff]
        %v1591 = vld [vmem:[#allocation10 + $0x330] sm:$0xff]
        %v1592 = vld [vmem:[#allocation10 + $0x338] sm:$0xff]
        %v1593 = vld [vmem:[#allocation10 + $0x340] sm:$0xff]
        %v1594 = vld [vmem:[#allocation10 + $0x348] sm:$0xff]
        %v1595 = vld [vmem:[#allocation10 + $0x350] sm:$0xff]
        %v1596 = vld [vmem:[#allocation10 + $0x358] sm:$0xff]
        %v1597 = vld [vmem:[#allocation10 + $0x360] sm:$0xff]
        %v1598 = vld [vmem:[#allocation10 + $0x368] sm:$0xff]
        %v1599 = vld [vmem:[#allocation10 + $0x370] sm:$0xff]
        %v1600 = vld [vmem:[#allocation10 + $0x378] sm:$0xff]
        %v1601 = vld [vmem:[#allocation10 + $0x380] sm:$0xff]
        %v1602 = vld [vmem:[#allocation10 + $0x388] sm:$0xff]
        %v1603 = vld [vmem:[#allocation10 + $0x390] sm:$0xff]
        %v1604 = vld [vmem:[#allocation10 + $0x398] sm:$0xff]
        %v1605 = vld [vmem:[#allocation10 + $0x3a0] sm:$0xff]
        %v1606 = vld [vmem:[#allocation10 + $0x3a8] sm:$0xff]
        %v1607 = vld [vmem:[#allocation10 + $0x3b0] sm:$0xff]
        %v1608 = vld [vmem:[#allocation10 + $0x3b8] sm:$0xff]
        %v1609 = vld [vmem:[#allocation10 + $0x3c0] sm:$0xff]
        %v1610 = vld [vmem:[#allocation10 + $0x3c8] sm:$0xff]
        %v1611 = vld [vmem:[#allocation10 + $0x3d0] sm:$0xff]
        %v1612 = vld [vmem:[#allocation10 + $0x3d8] sm:$0xff]
        %v1613 = vld [vmem:[#allocation10 + $0x3e0] sm:$0xff]
        %v1614 = vld [vmem:[#allocation10 + $0x3e8] sm:$0xff]
        %v1615 = vld [vmem:[#allocation10 + $0x3f0] sm:$0xff]
        %v1616 = vld [vmem:[#allocation10 + $0x3f8] sm:$0xff]
        %v1617 = vld [vmem:[#allocation10 + $0x400] sm:$0xff]
        %v1618 = vld [vmem:[#allocation10 + $0x408] sm:$0xff]
        %v1619 = vld [vmem:[#allocation10 + $0x410] sm:$0xff]
        %v1620 = vld [vmem:[#allocation10 + $0x418] sm:$0xff]
        %v1621 = vld [vmem:[#allocation10 + $0x420] sm:$0xff]
        %v1622 = vld [vmem:[#allocation10 + $0x428] sm:$0xff]
        %v1623 = vld [vmem:[#allocation10 + $0x430] sm:$0xff]
        %v1624 = vld [vmem:[#allocation10 + $0x438] sm:$0xff]
        %v1625 = vld [vmem:[#allocation10 + $0x440] sm:$0xff]
        %v1626 = vld [vmem:[#allocation10 + $0x448] sm:$0xff]
        %v1627 = vld [vmem:[#allocation10 + $0x450] sm:$0xff]
        %v1628 = vld [vmem:[#allocation10 + $0x458] sm:$0xff]
        %v1629 = vld [vmem:[#allocation10 + $0x460] sm:$0xff]
        %v1630 = vld [vmem:[#allocation10 + $0x468] sm:$0xff]
        %v1631 = vld [vmem:[#allocation10 + $0x470] sm:$0xff]
        %v1632 = vld [vmem:[#allocation10 + $0x478] sm:$0xff]
        %v1633 = vld [vmem:[#allocation10 + $0x480] sm:$0xff]
        %v1634 = vld [vmem:[#allocation10 + $0x488] sm:$0xff]
        %v1635 = vld [vmem:[#allocation10 + $0x490] sm:$0xff]
        %v1636 = vld [vmem:[#allocation10 + $0x498] sm:$0xff]
        %v1637 = vld [vmem:[#allocation10 + $0x4a0] sm:$0xff]
        %v1638 = vld [vmem:[#allocation10 + $0x4a8] sm:$0xff]
        %v1639 = vld [vmem:[#allocation10 + $0x4b0] sm:$0xff]
        %v1640 = vld [vmem:[#allocation10 + $0x4b8] sm:$0xff]
        %v1641 = vld [vmem:[#allocation10 + $0x4c0] sm:$0xff]
        %v1642 = vld [vmem:[#allocation10 + $0x4c8] sm:$0xff]
        %v1643 = vld [vmem:[#allocation10 + $0x4d0] sm:$0xff]
        %v1644 = vld [vmem:[#allocation10 + $0x4d8] sm:$0xff]
        %v1645 = vld [vmem:[#allocation10 + $0x4e0] sm:$0xff]
        %v1646 = vld [vmem:[#allocation10 + $0x4e8] sm:$0xff]
        %v1647 = vld [vmem:[#allocation10 + $0x4f0] sm:$0xff]
        %v1648 = vld [vmem:[#allocation10 + $0x4f8] sm:$0xff]
        %v1649 = vld [vmem:[#allocation10 + $0x500] sm:$0xff]
        %v1650 = vld [vmem:[#allocation10 + $0x508] sm:$0xff]
        %v1651 = vld [vmem:[#allocation10 + $0x510] sm:$0xff]
        %v1652 = vld [vmem:[#allocation10 + $0x518] sm:$0xff]
        %v1653 = vld [vmem:[#allocation10 + $0x520] sm:$0xff]
        %v1654 = vld [vmem:[#allocation10 + $0x528] sm:$0xff]
        %v1655 = vld [vmem:[#allocation10 + $0x530] sm:$0xff]
        %v1656 = vld [vmem:[#allocation10 + $0x538] sm:$0xff]
        %v1657 = vld [vmem:[#allocation10 + $0x540] sm:$0xff]
        %v1658 = vld [vmem:[#allocation10 + $0x548] sm:$0xff]
        %v1659 = vld [vmem:[#allocation10 + $0x550] sm:$0xff]
        %v1660 = vld [vmem:[#allocation10 + $0x558] sm:$0xff]
        %v1661 = vld [vmem:[#allocation10 + $0x560] sm:$0xff]
        %v1662 = vld [vmem:[#allocation10 + $0x568] sm:$0xff]
        %v1663 = vld [vmem:[#allocation10 + $0x570] sm:$0xff]
        %v1664 = vld [vmem:[#allocation10 + $0x578] sm:$0xff]
        %v1665 = vld [vmem:[#allocation10 + $0x580] sm:$0xff]
        %v1666 = vld [vmem:[#allocation10 + $0x588] sm:$0xff]
        %v1667 = vld [vmem:[#allocation10 + $0x590] sm:$0xff]
        %v1668 = vld [vmem:[#allocation10 + $0x598] sm:$0xff]
        %v1669 = vld [vmem:[#allocation10 + $0x5a0] sm:$0xff]
        %v1670 = vld [vmem:[#allocation10 + $0x5a8] sm:$0xff]
        %v1671 = vld [vmem:[#allocation10 + $0x5b0] sm:$0xff]
        %v1672 = vld [vmem:[#allocation10 + $0x5b8] sm:$0xff]
        %v1673 = vld [vmem:[#allocation10 + $0x5c0] sm:$0xff]
        %v1674 = vld [vmem:[#allocation10 + $0x5c8] sm:$0xff]
        %v1675 = vld [vmem:[#allocation10 + $0x5d0] sm:$0xff]
        %v1676 = vld [vmem:[#allocation10 + $0x5d8] sm:$0xff]
        %v1677 = vld [vmem:[#allocation10 + $0x5e0] sm:$0xff]
        %v1678 = vld [vmem:[#allocation10 + $0x5e8] sm:$0xff]
        %v1679 = vld [vmem:[#allocation10 + $0x5f0] sm:$0xff]
        %v1680 = vld [vmem:[#allocation10 + $0x5f8] sm:$0xff]
        %v1681 = vld [vmem:[#allocation10 + $0x600] sm:$0xff]
        %v1682 = vld [vmem:[#allocation10 + $0x608] sm:$0xff]
        %v1683 = vld [vmem:[#allocation10 + $0x610] sm:$0xff]
        %v1684 = vld [vmem:[#allocation10 + $0x618] sm:$0xff]
        %v1685 = vld [vmem:[#allocation10 + $0x620] sm:$0xff]
        %v1686 = vld [vmem:[#allocation10 + $0x628] sm:$0xff]
        %v1687 = vld [vmem:[#allocation10 + $0x630] sm:$0xff]
        %v1688 = vld [vmem:[#allocation10 + $0x638] sm:$0xff]
        %v1689 = vld [vmem:[#allocation10 + $0x640] sm:$0xff]
        %v1690 = vld [vmem:[#allocation10 + $0x648] sm:$0xff]
        %v1691 = vld [vmem:[#allocation10 + $0x650] sm:$0xff]
        %v1692 = vld [vmem:[#allocation10 + $0x658] sm:$0xff]
        %v1693 = vld [vmem:[#allocation10 + $0x660] sm:$0xff]
        %v1694 = vld [vmem:[#allocation10 + $0x668] sm:$0xff]
        %v1695 = vld [vmem:[#allocation10 + $0x670] sm:$0xff]
        %v1696 = vld [vmem:[#allocation10 + $0x678] sm:$0xff]
        %v1697 = vld [vmem:[#allocation10 + $0x680] sm:$0xff]
        %v1698 = vld [vmem:[#allocation10 + $0x688] sm:$0xff]
        %v1699 = vld [vmem:[#allocation10 + $0x690] sm:$0xff]
        %v1700 = vld [vmem:[#allocation10 + $0x698] sm:$0xff]
        %v1701 = vld [vmem:[#allocation10 + $0x6a0] sm:$0xff]
        %v1702 = vld [vmem:[#allocation10 + $0x6a8] sm:$0xff]
        %v1703 = vld [vmem:[#allocation10 + $0x6b0] sm:$0xff]
        %v1704 = vld [vmem:[#allocation10 + $0x6b8] sm:$0xff]
        %v1705 = vld [vmem:[#allocation10 + $0x6c0] sm:$0xff]
        %v1706 = vld [vmem:[#allocation10 + $0x6c8] sm:$0xff]
        %v1707 = vld [vmem:[#allocation10 + $0x6d0] sm:$0xff]
        %v1708 = vld [vmem:[#allocation10 + $0x6d8] sm:$0xff]
        %v1709 = vld [vmem:[#allocation10 + $0x6e0] sm:$0xff]
        %v1710 = vld [vmem:[#allocation10 + $0x6e8] sm:$0xff]
        %v1711 = vld [vmem:[#allocation10 + $0x6f0] sm:$0xff]
        %v1712 = vld [vmem:[#allocation10 + $0x6f8] sm:$0xff]
        %v1713 = vld [vmem:[#allocation10 + $0x700] sm:$0xff]
        %v1714 = vld [vmem:[#allocation10 + $0x708] sm:$0xff]
        %v1715 = vld [vmem:[#allocation10 + $0x710] sm:$0xff]
        %v1716 = vld [vmem:[#allocation10 + $0x718] sm:$0xff]
        %v1717 = vld [vmem:[#allocation10 + $0x720] sm:$0xff]
        %v1718 = vld [vmem:[#allocation10 + $0x728] sm:$0xff]
        %v1719 = vld [vmem:[#allocation10 + $0x730] sm:$0xff]
        %v1720 = vld [vmem:[#allocation10 + $0x738] sm:$0xff]
        %v1721 = vld [vmem:[#allocation10 + $0x740] sm:$0xff]
        %v1722 = vld [vmem:[#allocation10 + $0x748] sm:$0xff]
        %v1723 = vld [vmem:[#allocation10 + $0x750] sm:$0xff]
        %v1724 = vld [vmem:[#allocation10 + $0x758] sm:$0xff]
        %v1725 = vld [vmem:[#allocation10 + $0x760] sm:$0xff]
        %v1726 = vld [vmem:[#allocation10 + $0x768] sm:$0xff]
        %v1727 = vld [vmem:[#allocation10 + $0x770] sm:$0xff]
        %v1728 = vld [vmem:[#allocation10 + $0x778] sm:$0xff]
        %v1729 = vld [vmem:[#allocation10 + $0x780] sm:$0xff]
        %v1730 = vld [vmem:[#allocation10 + $0x788] sm:$0xff]
        %v1731 = vld [vmem:[#allocation10 + $0x790] sm:$0xff]
        %v1732 = vld [vmem:[#allocation10 + $0x798] sm:$0xff]
        %v1733 = vld [vmem:[#allocation10 + $0x7a0] sm:$0xff]
        %v1734 = vld [vmem:[#allocation10 + $0x7a8] sm:$0xff]
        %v1735 = vld [vmem:[#allocation10 + $0x7b0] sm:$0xff]
        %v1736 = vld [vmem:[#allocation10 + $0x7b8] sm:$0xff]
        %v1737 = vld [vmem:[#allocation10 + $0x7c0] sm:$0xff]
        %v1738 = vld [vmem:[#allocation10 + $0x7c8] sm:$0xff]
        %v1739 = vld [vmem:[#allocation12] sm:$0xf]
        %v1741 = vlaneseq
        %v1742 = vshrl.u32 %v1741, 7
        %v1743 = vsub.s32 0, %v1742
        %v1744 = vrot.slane %v1739, %v1743
        %v1745 = vlaneseq
        %v1746 = vshrl.u32 %v1745, 7
        %v1747 = vsub.s32 1, %v1746
        %v1748 = vrot.slane %v1739, %v1747
        %v1749 = vlaneseq
        %v1750 = vshrl.u32 %v1749, 7
        %v1751 = vsub.s32 2, %v1750
        %v1752 = vrot.slane %v1739, %v1751
        %v1753 = vlaneseq
        %v1754 = vshrl.u32 %v1753, 7
        %v1755 = vsub.s32 3, %v1754
        %v1756 = vrot.slane %v1739, %v1755
        %v2011 = vunpack.c.l.b16 %v1489
        %v2012 = vunpack.c.h.b16 %v1489
        %v2013 = vunpack.c.l.b16 %v1490
        %v2014 = vunpack.c.h.b16 %v1490
        %v2015 = vunpack.c.l.b16 %v1491
        %v2016 = vunpack.c.h.b16 %v1491
        %v2017 = vunpack.c.l.b16 %v1492
        %v2018 = vunpack.c.h.b16 %v1492
        %v2019 = vunpack.c.l.b16 %v1493
        %v2020 = vunpack.c.h.b16 %v1493
        %v2021 = vunpack.c.l.b16 %v1494
        %v2022 = vunpack.c.h.b16 %v1494
        %v2023 = vunpack.c.l.b16 %v1495
        %v2024 = vunpack.c.h.b16 %v1495
        %v2025 = vunpack.c.l.b16 %v1496
        %v2026 = vunpack.c.h.b16 %v1496
        %v2027 = vunpack.c.l.b16 %v1497
        %v2028 = vunpack.c.h.b16 %v1497
        %v2029 = vunpack.c.l.b16 %v1498
        %v2030 = vunpack.c.h.b16 %v1498
        %v2031 = vunpack.c.l.b16 %v1499
        %v2032 = vunpack.c.h.b16 %v1499
        %v2033 = vunpack.c.l.b16 %v1500
        %v2034 = vunpack.c.h.b16 %v1500
        %v2035 = vunpack.c.l.b16 %v1501
        %v2036 = vunpack.c.h.b16 %v1501
        %v2037 = vunpack.c.l.b16 %v1502
        %v2038 = vunpack.c.h.b16 %v1502
        %v2039 = vunpack.c.l.b16 %v1503
        %v2040 = vunpack.c.h.b16 %v1503
        %v2041 = vunpack.c.l.b16 %v1504
        %v2042 = vunpack.c.h.b16 %v1504
        %v2043 = vunpack.c.l.b16 %v1505
        %v2044 = vunpack.c.h.b16 %v1505
        %v2045 = vunpack.c.l.b16 %v1506
        %v2046 = vunpack.c.h.b16 %v1506
        %v2047 = vunpack.c.l.b16 %v1507
        %v2048 = vunpack.c.h.b16 %v1507
        %v2049 = vunpack.c.l.b16 %v1508
        %v2050 = vunpack.c.h.b16 %v1508
        %v2051 = vunpack.c.l.b16 %v1509
        %v2052 = vunpack.c.h.b16 %v1509
        %v2053 = vunpack.c.l.b16 %v1510
        %v2054 = vunpack.c.h.b16 %v1510
        %v2055 = vunpack.c.l.b16 %v1511
        %v2056 = vunpack.c.h.b16 %v1511
        %v2057 = vunpack.c.l.b16 %v1512
        %v2058 = vunpack.c.h.b16 %v1512
        %v2059 = vunpack.c.l.b16 %v1513
        %v2060 = vunpack.c.h.b16 %v1513
        %v2061 = vunpack.c.l.b16 %v1514
        %v2062 = vunpack.c.h.b16 %v1514
        %v2063 = vunpack.c.l.b16 %v1515
        %v2064 = vunpack.c.h.b16 %v1515
        %v2065 = vunpack.c.l.b16 %v1516
        %v2066 = vunpack.c.h.b16 %v1516
        %v2067 = vunpack.c.l.b16 %v1517
        %v2068 = vunpack.c.h.b16 %v1517
        %v2069 = vunpack.c.l.b16 %v1518
        %v2070 = vunpack.c.h.b16 %v1518
        %v2071 = vunpack.c.l.b16 %v1519
        %v2072 = vunpack.c.h.b16 %v1519
        %v2073 = vunpack.c.l.b16 %v1520
        %v2074 = vunpack.c.h.b16 %v1520
        %v2075 = vunpack.c.l.b16 %v1521
        %v2076 = vunpack.c.h.b16 %v1521
        %v2077 = vunpack.c.l.b16 %v1522
        %v2078 = vunpack.c.h.b16 %v1522
        %v2079 = vunpack.c.l.b16 %v1523
        %v2080 = vunpack.c.h.b16 %v1523
        %v2081 = vunpack.c.l.b16 %v1524
        %v2082 = vunpack.c.h.b16 %v1524
        %v2083 = vunpack.c.l.b16 %v1525
        %v2084 = vunpack.c.h.b16 %v1525
        %v2085 = vunpack.c.l.b16 %v1526
        %v2086 = vunpack.c.h.b16 %v1526
        %v2087 = vunpack.c.l.b16 %v1527
        %v2088 = vunpack.c.h.b16 %v1527
        %v2089 = vunpack.c.l.b16 %v1528
        %v2090 = vunpack.c.h.b16 %v1528
        %v2091 = vunpack.c.l.b16 %v1529
        %v2092 = vunpack.c.h.b16 %v1529
        %v2093 = vunpack.c.l.b16 %v1530
        %v2094 = vunpack.c.h.b16 %v1530
        %v2095 = vunpack.c.l.b16 %v1531
        %v2096 = vunpack.c.h.b16 %v1531
        %v2097 = vunpack.c.l.b16 %v1532
        %v2098 = vunpack.c.h.b16 %v1532
        %v2099 = vunpack.c.l.b16 %v1533
        %v2100 = vunpack.c.h.b16 %v1533
        %v2101 = vunpack.c.l.b16 %v1534
        %v2102 = vunpack.c.h.b16 %v1534
        %v2103 = vunpack.c.l.b16 %v1535
        %v2104 = vunpack.c.h.b16 %v1535
        %v2105 = vunpack.c.l.b16 %v1536
        %v2106 = vunpack.c.h.b16 %v1536
        %v2107 = vunpack.c.l.b16 %v1537
        %v2108 = vunpack.c.h.b16 %v1537
        %v2109 = vunpack.c.l.b16 %v1538
        %v2110 = vunpack.c.h.b16 %v1538
        %v2111 = vunpack.c.l.b16 %v1539
        %v2112 = vunpack.c.h.b16 %v1539
        %v2113 = vunpack.c.l.b16 %v1540
        %v2114 = vunpack.c.h.b16 %v1540
        %v2115 = vunpack.c.l.b16 %v1541
        %v2116 = vunpack.c.h.b16 %v1541
        %v2117 = vunpack.c.l.b16 %v1542
        %v2118 = vunpack.c.h.b16 %v1542
        %v2119 = vunpack.c.l.b16 %v1543
        %v2120 = vunpack.c.h.b16 %v1543
        %v2121 = vunpack.c.l.b16 %v1544
        %v2122 = vunpack.c.h.b16 %v1544
        %v2123 = vunpack.c.l.b16 %v1545
        %v2124 = vunpack.c.h.b16 %v1545
        %v2125 = vunpack.c.l.b16 %v1546
        %v2126 = vunpack.c.h.b16 %v1546
        %v2127 = vunpack.c.l.b16 %v1547
        %v2128 = vunpack.c.h.b16 %v1547
        %v2129 = vunpack.c.l.b16 %v1548
        %v2130 = vunpack.c.h.b16 %v1548
        %v2131 = vunpack.c.l.b16 %v1549
        %v2132 = vunpack.c.h.b16 %v1549
        %v2133 = vunpack.c.l.b16 %v1550
        %v2134 = vunpack.c.h.b16 %v1550
        %v2135 = vunpack.c.l.b16 %v1551
        %v2136 = vunpack.c.h.b16 %v1551
        %v2137 = vunpack.c.l.b16 %v1552
        %v2138 = vunpack.c.h.b16 %v1552
        %v2139 = vunpack.c.l.b16 %v1553
        %v2140 = vunpack.c.h.b16 %v1553
        %v2141 = vunpack.c.l.b16 %v1554
        %v2142 = vunpack.c.h.b16 %v1554
        %v2143 = vunpack.c.l.b16 %v1555
        %v2144 = vunpack.c.h.b16 %v1555
        %v2145 = vunpack.c.l.b16 %v1556
        %v2146 = vunpack.c.h.b16 %v1556
        %v2147 = vunpack.c.l.b16 %v1557
        %v2148 = vunpack.c.h.b16 %v1557
        %v2149 = vunpack.c.l.b16 %v1558
        %v2150 = vunpack.c.h.b16 %v1558
        %v2151 = vunpack.c.l.b16 %v1559
        %v2152 = vunpack.c.h.b16 %v1559
        %v2153 = vunpack.c.l.b16 %v1560
        %v2154 = vunpack.c.h.b16 %v1560
        %v2155 = vunpack.c.l.b16 %v1561
        %v2156 = vunpack.c.h.b16 %v1561
        %v2157 = vunpack.c.l.b16 %v1562
        %v2158 = vunpack.c.h.b16 %v1562
        %v2159 = vunpack.c.l.b16 %v1563
        %v2160 = vunpack.c.h.b16 %v1563
        %v2161 = vunpack.c.l.b16 %v1564
        %v2162 = vunpack.c.h.b16 %v1564
        %v2163 = vunpack.c.l.b16 %v1565
        %v2164 = vunpack.c.h.b16 %v1565
        %v2165 = vunpack.c.l.b16 %v1566
        %v2166 = vunpack.c.h.b16 %v1566
        %v2167 = vunpack.c.l.b16 %v1567
        %v2168 = vunpack.c.h.b16 %v1567
        %v2169 = vunpack.c.l.b16 %v1568
        %v2170 = vunpack.c.h.b16 %v1568
        %v2171 = vunpack.c.l.b16 %v1569
        %v2172 = vunpack.c.h.b16 %v1569
        %v2173 = vunpack.c.l.b16 %v1570
        %v2174 = vunpack.c.h.b16 %v1570
        %v2175 = vunpack.c.l.b16 %v1571
        %v2176 = vunpack.c.h.b16 %v1571
        %v2177 = vunpack.c.l.b16 %v1572
        %v2178 = vunpack.c.h.b16 %v1572
        %v2179 = vunpack.c.l.b16 %v1573
        %v2180 = vunpack.c.h.b16 %v1573
        %v2181 = vunpack.c.l.b16 %v1574
        %v2182 = vunpack.c.h.b16 %v1574
        %v2183 = vunpack.c.l.b16 %v1575
        %v2184 = vunpack.c.h.b16 %v1575
        %v2185 = vunpack.c.l.b16 %v1576
        %v2186 = vunpack.c.h.b16 %v1576
        %v2187 = vunpack.c.l.b16 %v1577
        %v2188 = vunpack.c.h.b16 %v1577
        %v2189 = vunpack.c.l.b16 %v1578
        %v2190 = vunpack.c.h.b16 %v1578
        %v2191 = vunpack.c.l.b16 %v1579
        %v2192 = vunpack.c.h.b16 %v1579
        %v2193 = vunpack.c.l.b16 %v1580
        %v2194 = vunpack.c.h.b16 %v1580
        %v2195 = vunpack.c.l.b16 %v1581
        %v2196 = vunpack.c.h.b16 %v1581
        %v2197 = vunpack.c.l.b16 %v1582
        %v2198 = vunpack.c.h.b16 %v1582
        %v2199 = vunpack.c.l.b16 %v1583
        %v2200 = vunpack.c.h.b16 %v1583
        %v2201 = vunpack.c.l.b16 %v1584
        %v2202 = vunpack.c.h.b16 %v1584
        %v2203 = vunpack.c.l.b16 %v1585
        %v2204 = vunpack.c.h.b16 %v1585
        %v2205 = vunpack.c.l.b16 %v1586
        %v2206 = vunpack.c.h.b16 %v1586
        %v2207 = vunpack.c.l.b16 %v1587
        %v2208 = vunpack.c.h.b16 %v1587
        %v2209 = vunpack.c.l.b16 %v1588
        %v2210 = vunpack.c.h.b16 %v1588
        %v2211 = vunpack.c.l.b16 %v1589
        %v2212 = vunpack.c.h.b16 %v1589
        %v2213 = vunpack.c.l.b16 %v1590
        %v2214 = vunpack.c.h.b16 %v1590
        %v2215 = vunpack.c.l.b16 %v1591
        %v2216 = vunpack.c.h.b16 %v1591
        %v2217 = vunpack.c.l.b16 %v1592
        %v2218 = vunpack.c.h.b16 %v1592
        %v2219 = vunpack.c.l.b16 %v1593
        %v2220 = vunpack.c.h.b16 %v1593
        %v2221 = vunpack.c.l.b16 %v1594
        %v2222 = vunpack.c.h.b16 %v1594
        %v2223 = vunpack.c.l.b16 %v1595
        %v2224 = vunpack.c.h.b16 %v1595
        %v2225 = vunpack.c.l.b16 %v1596
        %v2226 = vunpack.c.h.b16 %v1596
        %v2227 = vunpack.c.l.b16 %v1597
        %v2228 = vunpack.c.h.b16 %v1597
        %v2229 = vunpack.c.l.b16 %v1598
        %v2230 = vunpack.c.h.b16 %v1598
        %v2231 = vunpack.c.l.b16 %v1599
        %v2232 = vunpack.c.h.b16 %v1599
        %v2233 = vunpack.c.l.b16 %v1600
        %v2234 = vunpack.c.h.b16 %v1600
        %v2235 = vunpack.c.l.b16 %v1601
        %v2236 = vunpack.c.h.b16 %v1601
        %v2237 = vunpack.c.l.b16 %v1602
        %v2238 = vunpack.c.h.b16 %v1602
        %v2239 = vunpack.c.l.b16 %v1603
        %v2240 = vunpack.c.h.b16 %v1603
        %v2241 = vunpack.c.l.b16 %v1604
        %v2242 = vunpack.c.h.b16 %v1604
        %v2243 = vunpack.c.l.b16 %v1605
        %v2244 = vunpack.c.h.b16 %v1605
        %v2245 = vunpack.c.l.b16 %v1606
        %v2246 = vunpack.c.h.b16 %v1606
        %v2247 = vunpack.c.l.b16 %v1607
        %v2248 = vunpack.c.h.b16 %v1607
        %v2249 = vunpack.c.l.b16 %v1608
        %v2250 = vunpack.c.h.b16 %v1608
        %v2251 = vunpack.c.l.b16 %v1609
        %v2252 = vunpack.c.h.b16 %v1609
        %v2253 = vunpack.c.l.b16 %v1610
        %v2254 = vunpack.c.h.b16 %v1610
        %v2255 = vunpack.c.l.b16 %v1611
        %v2256 = vunpack.c.h.b16 %v1611
        %v2257 = vunpack.c.l.b16 %v1612
        %v2258 = vunpack.c.h.b16 %v1612
        %v2259 = vunpack.c.l.b16 %v1613
        %v2260 = vunpack.c.h.b16 %v1613
        %v2261 = vunpack.c.l.b16 %v1614
        %v2262 = vunpack.c.h.b16 %v1614
        %v2263 = vunpack.c.l.b16 %v1615
        %v2264 = vunpack.c.h.b16 %v1615
        %v2265 = vunpack.c.l.b16 %v1616
        %v2266 = vunpack.c.h.b16 %v1616
        %v2267 = vunpack.c.l.b16 %v1617
        %v2268 = vunpack.c.h.b16 %v1617
        %v2269 = vunpack.c.l.b16 %v1618
        %v2270 = vunpack.c.h.b16 %v1618
        %v2271 = vunpack.c.l.b16 %v1619
        %v2272 = vunpack.c.h.b16 %v1619
        %v2273 = vunpack.c.l.b16 %v1620
        %v2274 = vunpack.c.h.b16 %v1620
        %v2275 = vunpack.c.l.b16 %v1621
        %v2276 = vunpack.c.h.b16 %v1621
        %v2277 = vunpack.c.l.b16 %v1622
        %v2278 = vunpack.c.h.b16 %v1622
        %v2279 = vunpack.c.l.b16 %v1623
        %v2280 = vunpack.c.h.b16 %v1623
        %v2281 = vunpack.c.l.b16 %v1624
        %v2282 = vunpack.c.h.b16 %v1624
        %v2283 = vunpack.c.l.b16 %v1625
        %v2284 = vunpack.c.h.b16 %v1625
        %v2285 = vunpack.c.l.b16 %v1626
        %v2286 = vunpack.c.h.b16 %v1626
        %v2287 = vunpack.c.l.b16 %v1627
        %v2288 = vunpack.c.h.b16 %v1627
        %v2289 = vunpack.c.l.b16 %v1628
        %v2290 = vunpack.c.h.b16 %v1628
        %v2291 = vunpack.c.l.b16 %v1629
        %v2292 = vunpack.c.h.b16 %v1629
        %v2293 = vunpack.c.l.b16 %v1630
        %v2294 = vunpack.c.h.b16 %v1630
        %v2295 = vunpack.c.l.b16 %v1631
        %v2296 = vunpack.c.h.b16 %v1631
        %v2297 = vunpack.c.l.b16 %v1632
        %v2298 = vunpack.c.h.b16 %v1632
        %v2299 = vunpack.c.l.b16 %v1633
        %v2300 = vunpack.c.h.b16 %v1633
        %v2301 = vunpack.c.l.b16 %v1634
        %v2302 = vunpack.c.h.b16 %v1634
        %v2303 = vunpack.c.l.b16 %v1635
        %v2304 = vunpack.c.h.b16 %v1635
        %v2305 = vunpack.c.l.b16 %v1636
        %v2306 = vunpack.c.h.b16 %v1636
        %v2307 = vunpack.c.l.b16 %v1637
        %v2308 = vunpack.c.h.b16 %v1637
        %v2309 = vunpack.c.l.b16 %v1638
        %v2310 = vunpack.c.h.b16 %v1638
        %v2311 = vunpack.c.l.b16 %v1639
        %v2312 = vunpack.c.h.b16 %v1639
        %v2313 = vunpack.c.l.b16 %v1640
        %v2314 = vunpack.c.h.b16 %v1640
        %v2315 = vunpack.c.l.b16 %v1641
        %v2316 = vunpack.c.h.b16 %v1641
        %v2317 = vunpack.c.l.b16 %v1642
        %v2318 = vunpack.c.h.b16 %v1642
        %v2319 = vunpack.c.l.b16 %v1643
        %v2320 = vunpack.c.h.b16 %v1643
        %v2321 = vunpack.c.l.b16 %v1644
        %v2322 = vunpack.c.h.b16 %v1644
        %v2323 = vunpack.c.l.b16 %v1645
        %v2324 = vunpack.c.h.b16 %v1645
        %v2325 = vunpack.c.l.b16 %v1646
        %v2326 = vunpack.c.h.b16 %v1646
        %v2327 = vunpack.c.l.b16 %v1647
        %v2328 = vunpack.c.h.b16 %v1647
        %v2329 = vunpack.c.l.b16 %v1648
        %v2330 = vunpack.c.h.b16 %v1648
        %v2331 = vunpack.c.l.b16 %v1649
        %v2332 = vunpack.c.h.b16 %v1649
        %v2333 = vunpack.c.l.b16 %v1650
        %v2334 = vunpack.c.h.b16 %v1650
        %v2335 = vunpack.c.l.b16 %v1651
        %v2336 = vunpack.c.h.b16 %v1651
        %v2337 = vunpack.c.l.b16 %v1652
        %v2338 = vunpack.c.h.b16 %v1652
        %v2339 = vunpack.c.l.b16 %v1653
        %v2340 = vunpack.c.h.b16 %v1653
        %v2341 = vunpack.c.l.b16 %v1654
        %v2342 = vunpack.c.h.b16 %v1654
        %v2343 = vunpack.c.l.b16 %v1655
        %v2344 = vunpack.c.h.b16 %v1655
        %v2345 = vunpack.c.l.b16 %v1656
        %v2346 = vunpack.c.h.b16 %v1656
        %v2347 = vunpack.c.l.b16 %v1657
        %v2348 = vunpack.c.h.b16 %v1657
        %v2349 = vunpack.c.l.b16 %v1658
        %v2350 = vunpack.c.h.b16 %v1658
        %v2351 = vunpack.c.l.b16 %v1659
        %v2352 = vunpack.c.h.b16 %v1659
        %v2353 = vunpack.c.l.b16 %v1660
        %v2354 = vunpack.c.h.b16 %v1660
        %v2355 = vunpack.c.l.b16 %v1661
        %v2356 = vunpack.c.h.b16 %v1661
        %v2357 = vunpack.c.l.b16 %v1662
        %v2358 = vunpack.c.h.b16 %v1662
        %v2359 = vunpack.c.l.b16 %v1663
        %v2360 = vunpack.c.h.b16 %v1663
        %v2361 = vunpack.c.l.b16 %v1664
        %v2362 = vunpack.c.h.b16 %v1664
        %v2363 = vunpack.c.l.b16 %v1665
        %v2364 = vunpack.c.h.b16 %v1665
        %v2365 = vunpack.c.l.b16 %v1666
        %v2366 = vunpack.c.h.b16 %v1666
        %v2367 = vunpack.c.l.b16 %v1667
        %v2368 = vunpack.c.h.b16 %v1667
        %v2369 = vunpack.c.l.b16 %v1668
        %v2370 = vunpack.c.h.b16 %v1668
        %v2371 = vunpack.c.l.b16 %v1669
        %v2372 = vunpack.c.h.b16 %v1669
        %v2373 = vunpack.c.l.b16 %v1670
        %v2374 = vunpack.c.h.b16 %v1670
        %v2375 = vunpack.c.l.b16 %v1671
        %v2376 = vunpack.c.h.b16 %v1671
        %v2377 = vunpack.c.l.b16 %v1672
        %v2378 = vunpack.c.h.b16 %v1672
        %v2379 = vunpack.c.l.b16 %v1673
        %v2380 = vunpack.c.h.b16 %v1673
        %v2381 = vunpack.c.l.b16 %v1674
        %v2382 = vunpack.c.h.b16 %v1674
        %v2383 = vunpack.c.l.b16 %v1675
        %v2384 = vunpack.c.h.b16 %v1675
        %v2385 = vunpack.c.l.b16 %v1676
        %v2386 = vunpack.c.h.b16 %v1676
        %v2387 = vunpack.c.l.b16 %v1677
        %v2388 = vunpack.c.h.b16 %v1677
        %v2389 = vunpack.c.l.b16 %v1678
        %v2390 = vunpack.c.h.b16 %v1678
        %v2391 = vunpack.c.l.b16 %v1679
        %v2392 = vunpack.c.h.b16 %v1679
        %v2393 = vunpack.c.l.b16 %v1680
        %v2394 = vunpack.c.h.b16 %v1680
        %v2395 = vunpack.c.l.b16 %v1681
        %v2396 = vunpack.c.h.b16 %v1681
        %v2397 = vunpack.c.l.b16 %v1682
        %v2398 = vunpack.c.h.b16 %v1682
        %v2399 = vunpack.c.l.b16 %v1683
        %v2400 = vunpack.c.h.b16 %v1683
        %v2401 = vunpack.c.l.b16 %v1684
        %v2402 = vunpack.c.h.b16 %v1684
        %v2403 = vunpack.c.l.b16 %v1685
        %v2404 = vunpack.c.h.b16 %v1685
        %v2405 = vunpack.c.l.b16 %v1686
        %v2406 = vunpack.c.h.b16 %v1686
        %v2407 = vunpack.c.l.b16 %v1687
        %v2408 = vunpack.c.h.b16 %v1687
        %v2409 = vunpack.c.l.b16 %v1688
        %v2410 = vunpack.c.h.b16 %v1688
        %v2411 = vunpack.c.l.b16 %v1689
        %v2412 = vunpack.c.h.b16 %v1689
        %v2413 = vunpack.c.l.b16 %v1690
        %v2414 = vunpack.c.h.b16 %v1690
        %v2415 = vunpack.c.l.b16 %v1691
        %v2416 = vunpack.c.h.b16 %v1691
        %v2417 = vunpack.c.l.b16 %v1692
        %v2418 = vunpack.c.h.b16 %v1692
        %v2419 = vunpack.c.l.b16 %v1693
        %v2420 = vunpack.c.h.b16 %v1693
        %v2421 = vunpack.c.l.b16 %v1694
        %v2422 = vunpack.c.h.b16 %v1694
        %v2423 = vunpack.c.l.b16 %v1695
        %v2424 = vunpack.c.h.b16 %v1695
        %v2425 = vunpack.c.l.b16 %v1696
        %v2426 = vunpack.c.h.b16 %v1696
        %v2427 = vunpack.c.l.b16 %v1697
        %v2428 = vunpack.c.h.b16 %v1697
        %v2429 = vunpack.c.l.b16 %v1698
        %v2430 = vunpack.c.h.b16 %v1698
        %v2431 = vunpack.c.l.b16 %v1699
        %v2432 = vunpack.c.h.b16 %v1699
        %v2433 = vunpack.c.l.b16 %v1700
        %v2434 = vunpack.c.h.b16 %v1700
        %v2435 = vunpack.c.l.b16 %v1701
        %v2436 = vunpack.c.h.b16 %v1701
        %v2437 = vunpack.c.l.b16 %v1702
        %v2438 = vunpack.c.h.b16 %v1702
        %v2439 = vunpack.c.l.b16 %v1703
        %v2440 = vunpack.c.h.b16 %v1703
        %v2441 = vunpack.c.l.b16 %v1704
        %v2442 = vunpack.c.h.b16 %v1704
        %v2443 = vunpack.c.l.b16 %v1705
        %v2444 = vunpack.c.h.b16 %v1705
        %v2445 = vunpack.c.l.b16 %v1706
        %v2446 = vunpack.c.h.b16 %v1706
        %v2447 = vunpack.c.l.b16 %v1707
        %v2448 = vunpack.c.h.b16 %v1707
        %v2449 = vunpack.c.l.b16 %v1708
        %v2450 = vunpack.c.h.b16 %v1708
        %v2451 = vunpack.c.l.b16 %v1709
        %v2452 = vunpack.c.h.b16 %v1709
        %v2453 = vunpack.c.l.b16 %v1710
        %v2454 = vunpack.c.h.b16 %v1710
        %v2455 = vunpack.c.l.b16 %v1711
        %v2456 = vunpack.c.h.b16 %v1711
        %v2457 = vunpack.c.l.b16 %v1712
        %v2458 = vunpack.c.h.b16 %v1712
        %v2459 = vunpack.c.l.b16 %v1713
        %v2460 = vunpack.c.h.b16 %v1713
        %v2461 = vunpack.c.l.b16 %v1714
        %v2462 = vunpack.c.h.b16 %v1714
        %v2463 = vunpack.c.l.b16 %v1715
        %v2464 = vunpack.c.h.b16 %v1715
        %v2465 = vunpack.c.l.b16 %v1716
        %v2466 = vunpack.c.h.b16 %v1716
        %v2467 = vunpack.c.l.b16 %v1717
        %v2468 = vunpack.c.h.b16 %v1717
        %v2469 = vunpack.c.l.b16 %v1718
        %v2470 = vunpack.c.h.b16 %v1718
        %v2471 = vunpack.c.l.b16 %v1719
        %v2472 = vunpack.c.h.b16 %v1719
        %v2473 = vunpack.c.l.b16 %v1720
        %v2474 = vunpack.c.h.b16 %v1720
        %v2475 = vunpack.c.l.b16 %v1721
        %v2476 = vunpack.c.h.b16 %v1721
        %v2477 = vunpack.c.l.b16 %v1722
        %v2478 = vunpack.c.h.b16 %v1722
        %v2479 = vunpack.c.l.b16 %v1723
        %v2480 = vunpack.c.h.b16 %v1723
        %v2481 = vunpack.c.l.b16 %v1724
        %v2482 = vunpack.c.h.b16 %v1724
        %v2483 = vunpack.c.l.b16 %v1725
        %v2484 = vunpack.c.h.b16 %v1725
        %v2485 = vunpack.c.l.b16 %v1726
        %v2486 = vunpack.c.h.b16 %v1726
        %v2487 = vunpack.c.l.b16 %v1727
        %v2488 = vunpack.c.h.b16 %v1727
        %v2489 = vunpack.c.l.b16 %v1728
        %v2490 = vunpack.c.h.b16 %v1728
        %v2491 = vunpack.c.l.b16 %v1729
        %v2492 = vunpack.c.h.b16 %v1729
        %v2493 = vunpack.c.l.b16 %v1730
        %v2494 = vunpack.c.h.b16 %v1730
        %v2495 = vunpack.c.l.b16 %v1731
        %v2496 = vunpack.c.h.b16 %v1731
        %v2497 = vunpack.c.l.b16 %v1732
        %v2498 = vunpack.c.h.b16 %v1732
        %v2499 = vunpack.c.l.b16 %v1733
        %v2500 = vunpack.c.h.b16 %v1733
        %v2501 = vunpack.c.l.b16 %v1734
        %v2502 = vunpack.c.h.b16 %v1734
        %v2503 = vunpack.c.l.b16 %v1735
        %v2504 = vunpack.c.h.b16 %v1735
        %v2505 = vunpack.c.l.b16 %v1736
        %v2506 = vunpack.c.h.b16 %v1736
        %v2507 = vunpack.c.l.b16 %v1737
        %v2508 = vunpack.c.h.b16 %v1737
        %v2509 = vunpack.c.l.b16 %v1738
        %v2510 = vunpack.c.h.b16 %v1738
        %v2511 = vpack.c.b16 %v2015, %v2011
        %v2512 = vpack.c.b16 %v2016, %v2012
        %v2513 = vpack.c.b16 %v2017, %v2013
        %v2514 = vpack.c.b16 %v2018, %v2014
        %v2515 = vpack.c.b16 %v2023, %v2019
        %v2516 = vpack.c.b16 %v2024, %v2020
        %v2517 = vpack.c.b16 %v2025, %v2021
        %v2518 = vpack.c.b16 %v2026, %v2022
        %v2519 = vpack.c.b16 %v2031, %v2027
        %v2520 = vpack.c.b16 %v2032, %v2028
        %v2521 = vpack.c.b16 %v2033, %v2029
        %v2522 = vpack.c.b16 %v2034, %v2030
        %v2523 = vpack.c.b16 %v2039, %v2035
        %v2524 = vpack.c.b16 %v2040, %v2036
        %v2525 = vpack.c.b16 %v2041, %v2037
        %v2526 = vpack.c.b16 %v2042, %v2038
        %v2527 = vpack.c.b16 %v2047, %v2043
        %v2528 = vpack.c.b16 %v2048, %v2044
        %v2529 = vpack.c.b16 %v2049, %v2045
        %v2530 = vpack.c.b16 %v2050, %v2046
        %v2531 = vpack.c.b16 %v2055, %v2051
        %v2532 = vpack.c.b16 %v2056, %v2052
        %v2533 = vpack.c.b16 %v2057, %v2053
        %v2534 = vpack.c.b16 %v2058, %v2054
        %v2535 = vpack.c.b16 %v2063, %v2059
        %v2536 = vpack.c.b16 %v2064, %v2060
        %v2537 = vpack.c.b16 %v2065, %v2061
        %v2538 = vpack.c.b16 %v2066, %v2062
        %v2539 = vpack.c.b16 %v2071, %v2067
        %v2540 = vpack.c.b16 %v2072, %v2068
        %v2541 = vpack.c.b16 %v2073, %v2069
        %v2542 = vpack.c.b16 %v2074, %v2070
        %v2543 = vpack.c.b16 %v2079, %v2075
        %v2544 = vpack.c.b16 %v2080, %v2076
        %v2545 = vpack.c.b16 %v2081, %v2077
        %v2546 = vpack.c.b16 %v2082, %v2078
        %v2547 = vpack.c.b16 %v2087, %v2083
        %v2548 = vpack.c.b16 %v2088, %v2084
        %v2549 = vpack.c.b16 %v2089, %v2085
        %v2550 = vpack.c.b16 %v2090, %v2086
        %v2551 = vpack.c.b16 %v2095, %v2091
        %v2552 = vpack.c.b16 %v2096, %v2092
        %v2553 = vpack.c.b16 %v2097, %v2093
        %v2554 = vpack.c.b16 %v2098, %v2094
        %v2555 = vpack.c.b16 %v2103, %v2099
        %v2556 = vpack.c.b16 %v2104, %v2100
        %v2557 = vpack.c.b16 %v2105, %v2101
        %v2558 = vpack.c.b16 %v2106, %v2102
        %v2559 = vpack.c.b16 %v2111, %v2107
        %v2560 = vpack.c.b16 %v2112, %v2108
        %v2561 = vpack.c.b16 %v2113, %v2109
        %v2562 = vpack.c.b16 %v2114, %v2110
        %v2563 = vpack.c.b16 %v2119, %v2115
        %v2564 = vpack.c.b16 %v2120, %v2116
        %v2565 = vpack.c.b16 %v2121, %v2117
        %v2566 = vpack.c.b16 %v2122, %v2118
        %v2567 = vpack.c.b16 %v2127, %v2123
        %v2568 = vpack.c.b16 %v2128, %v2124
        %v2569 = vpack.c.b16 %v2129, %v2125
        %v2570 = vpack.c.b16 %v2130, %v2126
        %v2571 = vpack.c.b16 %v2135, %v2131
        %v2572 = vpack.c.b16 %v2136, %v2132
        %v2573 = vpack.c.b16 %v2137, %v2133
        %v2574 = vpack.c.b16 %v2138, %v2134
        %v2575 = vpack.c.b16 %v2143, %v2139
        %v2576 = vpack.c.b16 %v2144, %v2140
        %v2577 = vpack.c.b16 %v2145, %v2141
        %v2578 = vpack.c.b16 %v2146, %v2142
        %v2579 = vpack.c.b16 %v2151, %v2147
        %v2580 = vpack.c.b16 %v2152, %v2148
        %v2581 = vpack.c.b16 %v2153, %v2149
        %v2582 = vpack.c.b16 %v2154, %v2150
        %v2583 = vpack.c.b16 %v2159, %v2155
        %v2584 = vpack.c.b16 %v2160, %v2156
        %v2585 = vpack.c.b16 %v2161, %v2157
        %v2586 = vpack.c.b16 %v2162, %v2158
        %v2587 = vpack.c.b16 %v2167, %v2163
        %v2588 = vpack.c.b16 %v2168, %v2164
        %v2589 = vpack.c.b16 %v2169, %v2165
        %v2590 = vpack.c.b16 %v2170, %v2166
        %v2591 = vpack.c.b16 %v2175, %v2171
        %v2592 = vpack.c.b16 %v2176, %v2172
        %v2593 = vpack.c.b16 %v2177, %v2173
        %v2594 = vpack.c.b16 %v2178, %v2174
        %v2595 = vpack.c.b16 %v2183, %v2179
        %v2596 = vpack.c.b16 %v2184, %v2180
        %v2597 = vpack.c.b16 %v2185, %v2181
        %v2598 = vpack.c.b16 %v2186, %v2182
        %v2599 = vpack.c.b16 %v2191, %v2187
        %v2600 = vpack.c.b16 %v2192, %v2188
        %v2601 = vpack.c.b16 %v2193, %v2189
        %v2602 = vpack.c.b16 %v2194, %v2190
        %v2603 = vpack.c.b16 %v2199, %v2195
        %v2604 = vpack.c.b16 %v2200, %v2196
        %v2605 = vpack.c.b16 %v2201, %v2197
        %v2606 = vpack.c.b16 %v2202, %v2198
        %v2607 = vpack.c.b16 %v2207, %v2203
        %v2608 = vpack.c.b16 %v2208, %v2204
        %v2609 = vpack.c.b16 %v2209, %v2205
        %v2610 = vpack.c.b16 %v2210, %v2206
        %v2611 = vpack.c.b16 %v2215, %v2211
        %v2612 = vpack.c.b16 %v2216, %v2212
        %v2613 = vpack.c.b16 %v2217, %v2213
        %v2614 = vpack.c.b16 %v2218, %v2214
        %v2615 = vpack.c.b16 %v2223, %v2219
        %v2616 = vpack.c.b16 %v2224, %v2220
        %v2617 = vpack.c.b16 %v2225, %v2221
        %v2618 = vpack.c.b16 %v2226, %v2222
        %v2619 = vpack.c.b16 %v2231, %v2227
        %v2620 = vpack.c.b16 %v2232, %v2228
        %v2621 = vpack.c.b16 %v2233, %v2229
        %v2622 = vpack.c.b16 %v2234, %v2230
        %v2623 = vpack.c.b16 %v2239, %v2235
        %v2624 = vpack.c.b16 %v2240, %v2236
        %v2625 = vpack.c.b16 %v2241, %v2237
        %v2626 = vpack.c.b16 %v2242, %v2238
        %v2627 = vpack.c.b16 %v2247, %v2243
        %v2628 = vpack.c.b16 %v2248, %v2244
        %v2629 = vpack.c.b16 %v2249, %v2245
        %v2630 = vpack.c.b16 %v2250, %v2246
        %v2631 = vpack.c.b16 %v2255, %v2251
        %v2632 = vpack.c.b16 %v2256, %v2252
        %v2633 = vpack.c.b16 %v2257, %v2253
        %v2634 = vpack.c.b16 %v2258, %v2254
        %v2635 = vpack.c.b16 %v2263, %v2259
        %v2636 = vpack.c.b16 %v2264, %v2260
        %v2637 = vpack.c.b16 %v2265, %v2261
        %v2638 = vpack.c.b16 %v2266, %v2262
        %v2639 = vpack.c.b16 %v2271, %v2267
        %v2640 = vpack.c.b16 %v2272, %v2268
        %v2641 = vpack.c.b16 %v2273, %v2269
        %v2642 = vpack.c.b16 %v2274, %v2270
        %v2643 = vpack.c.b16 %v2279, %v2275
        %v2644 = vpack.c.b16 %v2280, %v2276
        %v2645 = vpack.c.b16 %v2281, %v2277
        %v2646 = vpack.c.b16 %v2282, %v2278
        %v2647 = vpack.c.b16 %v2287, %v2283
        %v2648 = vpack.c.b16 %v2288, %v2284
        %v2649 = vpack.c.b16 %v2289, %v2285
        %v2650 = vpack.c.b16 %v2290, %v2286
        %v2651 = vpack.c.b16 %v2295, %v2291
        %v2652 = vpack.c.b16 %v2296, %v2292
        %v2653 = vpack.c.b16 %v2297, %v2293
        %v2654 = vpack.c.b16 %v2298, %v2294
        %v2655 = vpack.c.b16 %v2303, %v2299
        %v2656 = vpack.c.b16 %v2304, %v2300
        %v2657 = vpack.c.b16 %v2305, %v2301
        %v2658 = vpack.c.b16 %v2306, %v2302
        %v2659 = vpack.c.b16 %v2311, %v2307
        %v2660 = vpack.c.b16 %v2312, %v2308
        %v2661 = vpack.c.b16 %v2313, %v2309
        %v2662 = vpack.c.b16 %v2314, %v2310
        %v2663 = vpack.c.b16 %v2319, %v2315
        %v2664 = vpack.c.b16 %v2320, %v2316
        %v2665 = vpack.c.b16 %v2321, %v2317
        %v2666 = vpack.c.b16 %v2322, %v2318
        %v2667 = vpack.c.b16 %v2327, %v2323
        %v2668 = vpack.c.b16 %v2328, %v2324
        %v2669 = vpack.c.b16 %v2329, %v2325
        %v2670 = vpack.c.b16 %v2330, %v2326
        %v2671 = vpack.c.b16 %v2335, %v2331
        %v2672 = vpack.c.b16 %v2336, %v2332
        %v2673 = vpack.c.b16 %v2337, %v2333
        %v2674 = vpack.c.b16 %v2338, %v2334
        %v2675 = vpack.c.b16 %v2343, %v2339
        %v2676 = vpack.c.b16 %v2344, %v2340
        %v2677 = vpack.c.b16 %v2345, %v2341
        %v2678 = vpack.c.b16 %v2346, %v2342
        %v2679 = vpack.c.b16 %v2351, %v2347
        %v2680 = vpack.c.b16 %v2352, %v2348
        %v2681 = vpack.c.b16 %v2353, %v2349
        %v2682 = vpack.c.b16 %v2354, %v2350
        %v2683 = vpack.c.b16 %v2359, %v2355
        %v2684 = vpack.c.b16 %v2360, %v2356
        %v2685 = vpack.c.b16 %v2361, %v2357
        %v2686 = vpack.c.b16 %v2362, %v2358
        %v2687 = vpack.c.b16 %v2367, %v2363
        %v2688 = vpack.c.b16 %v2368, %v2364
        %v2689 = vpack.c.b16 %v2369, %v2365
        %v2690 = vpack.c.b16 %v2370, %v2366
        %v2691 = vpack.c.b16 %v2375, %v2371
        %v2692 = vpack.c.b16 %v2376, %v2372
        %v2693 = vpack.c.b16 %v2377, %v2373
        %v2694 = vpack.c.b16 %v2378, %v2374
        %v2695 = vpack.c.b16 %v2383, %v2379
        %v2696 = vpack.c.b16 %v2384, %v2380
        %v2697 = vpack.c.b16 %v2385, %v2381
        %v2698 = vpack.c.b16 %v2386, %v2382
        %v2699 = vpack.c.b16 %v2391, %v2387
        %v2700 = vpack.c.b16 %v2392, %v2388
        %v2701 = vpack.c.b16 %v2393, %v2389
        %v2702 = vpack.c.b16 %v2394, %v2390
        %v2703 = vpack.c.b16 %v2399, %v2395
        %v2704 = vpack.c.b16 %v2400, %v2396
        %v2705 = vpack.c.b16 %v2401, %v2397
        %v2706 = vpack.c.b16 %v2402, %v2398
        %v2707 = vpack.c.b16 %v2407, %v2403
        %v2708 = vpack.c.b16 %v2408, %v2404
        %v2709 = vpack.c.b16 %v2409, %v2405
        %v2710 = vpack.c.b16 %v2410, %v2406
        %v2711 = vpack.c.b16 %v2415, %v2411
        %v2712 = vpack.c.b16 %v2416, %v2412
        %v2713 = vpack.c.b16 %v2417, %v2413
        %v2714 = vpack.c.b16 %v2418, %v2414
        %v2715 = vpack.c.b16 %v2423, %v2419
        %v2716 = vpack.c.b16 %v2424, %v2420
        %v2717 = vpack.c.b16 %v2425, %v2421
        %v2718 = vpack.c.b16 %v2426, %v2422
        %v2719 = vpack.c.b16 %v2431, %v2427
        %v2720 = vpack.c.b16 %v2432, %v2428
        %v2721 = vpack.c.b16 %v2433, %v2429
        %v2722 = vpack.c.b16 %v2434, %v2430
        %v2723 = vpack.c.b16 %v2439, %v2435
        %v2724 = vpack.c.b16 %v2440, %v2436
        %v2725 = vpack.c.b16 %v2441, %v2437
        %v2726 = vpack.c.b16 %v2442, %v2438
        %v2727 = vpack.c.b16 %v2447, %v2443
        %v2728 = vpack.c.b16 %v2448, %v2444
        %v2729 = vpack.c.b16 %v2449, %v2445
        %v2730 = vpack.c.b16 %v2450, %v2446
        %v2731 = vpack.c.b16 %v2455, %v2451
        %v2732 = vpack.c.b16 %v2456, %v2452
        %v2733 = vpack.c.b16 %v2457, %v2453
        %v2734 = vpack.c.b16 %v2458, %v2454
        %v2735 = vpack.c.b16 %v2463, %v2459
        %v2736 = vpack.c.b16 %v2464, %v2460
        %v2737 = vpack.c.b16 %v2465, %v2461
        %v2738 = vpack.c.b16 %v2466, %v2462
        %v2739 = vpack.c.b16 %v2471, %v2467
        %v2740 = vpack.c.b16 %v2472, %v2468
        %v2741 = vpack.c.b16 %v2473, %v2469
        %v2742 = vpack.c.b16 %v2474, %v2470
        %v2743 = vpack.c.b16 %v2479, %v2475
        %v2744 = vpack.c.b16 %v2480, %v2476
        %v2745 = vpack.c.b16 %v2481, %v2477
        %v2746 = vpack.c.b16 %v2482, %v2478
        %v2747 = vpack.c.b16 %v2487, %v2483
        %v2748 = vpack.c.b16 %v2488, %v2484
        %v2749 = vpack.c.b16 %v2489, %v2485
        %v2750 = vpack.c.b16 %v2490, %v2486
        %v2751 = vpack.c.b16 %v2495, %v2491
        %v2752 = vpack.c.b16 %v2496, %v2492
        %v2753 = vpack.c.b16 %v2497, %v2493
        %v2754 = vpack.c.b16 %v2498, %v2494
        %v2755 = vpack.c.b16 %v2503, %v2499
        %v2756 = vpack.c.b16 %v2504, %v2500
        %v2757 = vpack.c.b16 %v2505, %v2501
        %v2758 = vpack.c.b16 %v2506, %v2502
        %v2759 = vpack.c.b16 %v2507, %v2507
        %v2760 = vpack.c.b16 %v2508, %v2508
        %v2761 = vpack.c.b16 %v2509, %v2509
        %v2762 = vpack.c.b16 %v2510, %v2510
        %vm3011 = vcmask 850944
        %v3013 = vsel %vm3011, %v1240, 0
        %v3016 = vsel %vm3011, %v1248, 0
        %v3019 = vsel %vm3011, %v1256, 0
        %v3022 = vsel %vm3011, %v1264, 0
        %v3025 = vsel %vm3011, %v1272, 0
        %v3028 = vsel %vm3011, %v1280, 0
        %v3031 = vsel %vm3011, %v1288, 0
        %v3034 = vsel %vm3011, %v1296, 0
        %v3037 = vsel %vm3011, %v1304, 0
        %v3040 = vsel %vm3011, %v1312, 0
        %v3043 = vsel %vm3011, %v1320, 0
        %v3046 = vsel %vm3011, %v1328, 0
        %v3049 = vsel %vm3011, %v1336, 0
        %v3052 = vsel %vm3011, %v1344, 0
        %v3055 = vsel %vm3011, %v1352, 0
        %v3058 = vsel %vm3011, %v1360, 0
        %v3061 = vsel %vm3011, %v1368, 0
        %v3064 = vsel %vm3011, %v1376, 0
        %v3067 = vsel %vm3011, %v1384, 0
        %v3070 = vsel %vm3011, %v1392, 0
        %v3073 = vsel %vm3011, %v1400, 0
        %v3076 = vsel %vm3011, %v1408, 0
        %v3079 = vsel %vm3011, %v1416, 0
        %v3082 = vsel %vm3011, %v1424, 0
        %v3085 = vsel %vm3011, %v1432, 0
        %v3088 = vsel %vm3011, %v1440, 0
        %v3091 = vsel %vm3011, %v1448, 0
        %v3094 = vsel %vm3011, %v1456, 0
        %v3097 = vsel %vm3011, %v1464, 0
        %v3100 = vsel %vm3011, %v1472, 0
        %v3103 = vsel %vm3011, %v1480, 0
        %v3106 = vsel %vm3011, %v1488, 0
        %vm3108 = vcmask 1043456
        %v3110 = vsel %vm3108, %v2759, 0
        %v3113 = vsel %vm3108, %v2760, 0
        %v3116 = vsel %vm3108, %v2761, 0
        %v3119 = vsel %vm3108, %v2762, 0
        %3121 = vmatprep.subr.bf16.mxu0 %v2540
        %3122 = vmatpush1.bf16.msra.mxu0 %v2539
        %3123 = vmatprep.subr.bf16.mxu0 %v2536
        %3124 = vmatpush1.bf16.msra.mxu0 %v2535
        %3125 = vmatprep.subr.bf16.mxu0 %v2532
        %3126 = vmatpush1.bf16.msra.mxu0 %v2531
        %3127 = vmatprep.subr.bf16.mxu0 %v2528
        %3128 = vmatpush1.bf16.msra.mxu0 %v2527
        %3129 = vmatprep.subr.bf16.mxu0 %v2524
        %3130 = vmatpush1.bf16.msra.mxu0 %v2523
        %3131 = vmatprep.subr.bf16.mxu0 %v2520
        %3132 = vmatpush1.bf16.msra.mxu0 %v2519
        %3133 = vmatprep.subr.bf16.mxu0 %v2516
        %3134 = vmatpush1.bf16.msra.mxu0 %v2515
        %3135 = vmatprep.subr.bf16.mxu0 %v2512
        %3136 = vmatpush1.bf16.msra.mxu0 %v2511
        %3137 = vmatprep.subr.bf16.mxu0 %v2572
        %3138 = vmatpush2.bf16.msra.mxu0 %v2571
        %3139 = vmatprep.subr.bf16.mxu0 %v2568
        %3140 = vmatpush2.bf16.msra.mxu0 %v2567
        %3141 = vmatprep.subr.bf16.mxu0 %v2564
        %3142 = vmatpush2.bf16.msra.mxu0 %v2563
        %3143 = vmatprep.subr.bf16.mxu0 %v2560
        %3144 = vmatpush2.bf16.msra.mxu0 %v2559
        %3145 = vmatprep.subr.bf16.mxu0 %v2556
        %3146 = vmatpush2.bf16.msra.mxu0 %v2555
        %3147 = vmatprep.subr.bf16.mxu0 %v2552
        %3148 = vmatpush2.bf16.msra.mxu0 %v2551
        %3149 = vmatprep.subr.bf16.mxu0 %v2548
        %3150 = vmatpush2.bf16.msra.mxu0 %v2547
        %3151 = vmatprep.subr.bf16.mxu0 %v2544
        %3152 = vmatpush2.bf16.msra.mxu0 %v2543
        %3153 = vmatprep.mubr.bf16.mxu0 %v1234
        %3154 = vmatmul.mubr.bf16.gmra.mxu0 %v1233
        %v3155 = vpop.f32.mrf.mxu0
        %v3156 = vadd.f32 %v1744, %v3155
        %v3157 = vpop.f32.mrf.mxu0
        %v3158 = vadd.f32 %v1748, %v3157
        %v3159 = vpop.f32.mrf.mxu0
        %v3160 = vadd.f32 %v1744, %v3159
        %v3161 = vpop.f32.mrf.mxu0
        %v3162 = vadd.f32 %v1748, %v3161
        %3163 = vmatprep.mubr.bf16.mxu0 %v1242
        %3164 = vmatmul.mubr.bf16.gmra.mxu0 %v1241
        %v3165 = vpop.f32.mrf.mxu0
        %v3166 = vadd.f32 %v1744, %v3165
        %v3167 = vpop.f32.mrf.mxu0
        %v3168 = vadd.f32 %v1748, %v3167
        %v3169 = vpop.f32.mrf.mxu0
        %v3170 = vadd.f32 %v1744, %v3169
        %v3171 = vpop.f32.mrf.mxu0
        %v3172 = vadd.f32 %v1748, %v3171
        %3173 = vmatprep.mubr.bf16.mxu0 %v1250
        %3174 = vmatmul.mubr.bf16.gmra.mxu0 %v1249
        %v3175 = vpop.f32.mrf.mxu0
        %v3176 = vadd.f32 %v1744, %v3175
        %v3177 = vpop.f32.mrf.mxu0
        %v3178 = vadd.f32 %v1748, %v3177
        %v3179 = vpop.f32.mrf.mxu0
        %v3180 = vadd.f32 %v1744, %v3179
        %v3181 = vpop.f32.mrf.mxu0
        %v3182 = vadd.f32 %v1748, %v3181
        %3183 = vmatprep.mubr.bf16.mxu0 %v1258
        %3184 = vmatmul.mubr.bf16.gmra.mxu0 %v1257
        %v3185 = vpop.f32.mrf.mxu0
        %v3186 = vadd.f32 %v1744, %v3185
        %v3187 = vpop.f32.mrf.mxu0
        %v3188 = vadd.f32 %v1748, %v3187
        %v3189 = vpop.f32.mrf.mxu0
        %v3190 = vadd.f32 %v1744, %v3189
        %v3191 = vpop.f32.mrf.mxu0
        %v3192 = vadd.f32 %v1748, %v3191
        %3193 = vmatprep.mubr.bf16.mxu0 %v1266
        %3194 = vmatmul.mubr.bf16.gmra.mxu0 %v1265
        %v3195 = vpop.f32.mrf.mxu0
        %v3196 = vadd.f32 %v1744, %v3195
        %v3197 = vpop.f32.mrf.mxu0
        %v3198 = vadd.f32 %v1748, %v3197
        %v3199 = vpop.f32.mrf.mxu0
        %v3200 = vadd.f32 %v1744, %v3199
        %v3201 = vpop.f32.mrf.mxu0
        %v3202 = vadd.f32 %v1748, %v3201
        %3203 = vmatprep.mubr.bf16.mxu0 %v1274
        %3204 = vmatmul.mubr.bf16.gmra.mxu0 %v1273
        %v3205 = vpop.f32.mrf.mxu0
        %v3206 = vadd.f32 %v1744, %v3205
        %v3207 = vpop.f32.mrf.mxu0
        %v3208 = vadd.f32 %v1748, %v3207
        %v3209 = vpop.f32.mrf.mxu0
        %v3210 = vadd.f32 %v1744, %v3209
        %v3211 = vpop.f32.mrf.mxu0
        %v3212 = vadd.f32 %v1748, %v3211
        %3213 = vmatprep.mubr.bf16.mxu0 %v1282
        %3214 = vmatmul.mubr.bf16.gmra.mxu0 %v1281
        %v3215 = vpop.f32.mrf.mxu0
        %v3216 = vadd.f32 %v1744, %v3215
        %v3217 = vpop.f32.mrf.mxu0
        %v3218 = vadd.f32 %v1748, %v3217
        %v3219 = vpop.f32.mrf.mxu0
        %v3220 = vadd.f32 %v1744, %v3219
        %v3221 = vpop.f32.mrf.mxu0
        %v3222 = vadd.f32 %v1748, %v3221
        %3223 = vmatprep.mubr.bf16.mxu0 %v1290
        %3224 = vmatmul.mubr.bf16.gmra.mxu0 %v1289
        %v3225 = vpop.f32.mrf.mxu0
        %v3226 = vadd.f32 %v1744, %v3225
        %v3227 = vpop.f32.mrf.mxu0
        %v3228 = vadd.f32 %v1748, %v3227
        %v3229 = vpop.f32.mrf.mxu0
        %v3230 = vadd.f32 %v1744, %v3229
        %v3231 = vpop.f32.mrf.mxu0
        %v3232 = vadd.f32 %v1748, %v3231
        %3233 = vmatprep.mubr.bf16.mxu0 %v1298
        %3234 = vmatmul.mubr.bf16.gmra.mxu0 %v1297
        %v3235 = vpop.f32.mrf.mxu0
        %v3236 = vadd.f32 %v1744, %v3235
        %v3237 = vpop.f32.mrf.mxu0
        %v3238 = vadd.f32 %v1748, %v3237
        %v3239 = vpop.f32.mrf.mxu0
        %v3240 = vadd.f32 %v1744, %v3239
        %v3241 = vpop.f32.mrf.mxu0
        %v3242 = vadd.f32 %v1748, %v3241
        %3243 = vmatprep.mubr.bf16.mxu0 %v1306
        %3244 = vmatmul.mubr.bf16.gmra.mxu0 %v1305
        %v3245 = vpop.f32.mrf.mxu0
        %v3246 = vadd.f32 %v1744, %v3245
        %v3247 = vpop.f32.mrf.mxu0
        %v3248 = vadd.f32 %v1748, %v3247
        %v3249 = vpop.f32.mrf.mxu0
        %v3250 = vadd.f32 %v1744, %v3249
        %v3251 = vpop.f32.mrf.mxu0
        %v3252 = vadd.f32 %v1748, %v3251
        %3253 = vmatprep.mubr.bf16.mxu0 %v1314
        %3254 = vmatmul.mubr.bf16.gmra.mxu0 %v1313
        %v3255 = vpop.f32.mrf.mxu0
        %v3256 = vadd.f32 %v1744, %v3255
        %v3257 = vpop.f32.mrf.mxu0
        %v3258 = vadd.f32 %v1748, %v3257
        %v3259 = vpop.f32.mrf.mxu0
        %v3260 = vadd.f32 %v1744, %v3259
        %v3261 = vpop.f32.mrf.mxu0
        %v3262 = vadd.f32 %v1748, %v3261
        %3263 = vmatprep.mubr.bf16.mxu0 %v1322
        %3264 = vmatmul.mubr.bf16.gmra.mxu0 %v1321
        %v3265 = vpop.f32.mrf.mxu0
        %v3266 = vadd.f32 %v1744, %v3265
        %v3267 = vpop.f32.mrf.mxu0
        %v3268 = vadd.f32 %v1748, %v3267
        %v3269 = vpop.f32.mrf.mxu0
        %v3270 = vadd.f32 %v1744, %v3269
        %v3271 = vpop.f32.mrf.mxu0
        %v3272 = vadd.f32 %v1748, %v3271
        %3273 = vmatprep.mubr.bf16.mxu0 %v1330
        %3274 = vmatmul.mubr.bf16.gmra.mxu0 %v1329
        %v3275 = vpop.f32.mrf.mxu0
        %v3276 = vadd.f32 %v1744, %v3275
        %v3277 = vpop.f32.mrf.mxu0
        %v3278 = vadd.f32 %v1748, %v3277
        %v3279 = vpop.f32.mrf.mxu0
        %v3280 = vadd.f32 %v1744, %v3279
        %v3281 = vpop.f32.mrf.mxu0
        %v3282 = vadd.f32 %v1748, %v3281
        %3283 = vmatprep.mubr.bf16.mxu0 %v1338
        %3284 = vmatmul.mubr.bf16.gmra.mxu0 %v1337
        %v3285 = vpop.f32.mrf.mxu0
        %v3286 = vadd.f32 %v1744, %v3285
        %v3287 = vpop.f32.mrf.mxu0
        %v3288 = vadd.f32 %v1748, %v3287
        %v3289 = vpop.f32.mrf.mxu0
        %v3290 = vadd.f32 %v1744, %v3289
        %v3291 = vpop.f32.mrf.mxu0
        %v3292 = vadd.f32 %v1748, %v3291
        %3293 = vmatprep.mubr.bf16.mxu0 %v1346
        %3294 = vmatmul.mubr.bf16.gmra.mxu0 %v1345
        %v3295 = vpop.f32.mrf.mxu0
        %v3296 = vadd.f32 %v1744, %v3295
        %v3297 = vpop.f32.mrf.mxu0
        %v3298 = vadd.f32 %v1748, %v3297
        %v3299 = vpop.f32.mrf.mxu0
        %v3300 = vadd.f32 %v1744, %v3299
        %v3301 = vpop.f32.mrf.mxu0
        %v3302 = vadd.f32 %v1748, %v3301
        %3303 = vmatprep.mubr.bf16.mxu0 %v1354
        %3304 = vmatmul.mubr.bf16.gmra.mxu0 %v1353
        %v3305 = vpop.f32.mrf.mxu0
        %v3306 = vadd.f32 %v1744, %v3305
        %v3307 = vpop.f32.mrf.mxu0
        %v3308 = vadd.f32 %v1748, %v3307
        %v3309 = vpop.f32.mrf.mxu0
        %v3310 = vadd.f32 %v1744, %v3309
        %v3311 = vpop.f32.mrf.mxu0
        %v3312 = vadd.f32 %v1748, %v3311
        %3313 = vmatprep.mubr.bf16.mxu0 %v1362
        %3314 = vmatmul.mubr.bf16.gmra.mxu0 %v1361
        %v3315 = vpop.f32.mrf.mxu0
        %v3316 = vadd.f32 %v1744, %v3315
        %v3317 = vpop.f32.mrf.mxu0
        %v3318 = vadd.f32 %v1748, %v3317
        %v3319 = vpop.f32.mrf.mxu0
        %v3320 = vadd.f32 %v1744, %v3319
        %v3321 = vpop.f32.mrf.mxu0
        %v3322 = vadd.f32 %v1748, %v3321
        %3323 = vmatprep.mubr.bf16.mxu0 %v1370
        %3324 = vmatmul.mubr.bf16.gmra.mxu0 %v1369
        %v3325 = vpop.f32.mrf.mxu0
        %v3326 = vadd.f32 %v1744, %v3325
        %v3327 = vpop.f32.mrf.mxu0
        %v3328 = vadd.f32 %v1748, %v3327
        %v3329 = vpop.f32.mrf.mxu0
        %v3330 = vadd.f32 %v1744, %v3329
        %v3331 = vpop.f32.mrf.mxu0
        %v3332 = vadd.f32 %v1748, %v3331
        %3333 = vmatprep.mubr.bf16.mxu0 %v1378
        %3334 = vmatmul.mubr.bf16.gmra.mxu0 %v1377
        %v3335 = vpop.f32.mrf.mxu0
        %v3336 = vadd.f32 %v1744, %v3335
        %v3337 = vpop.f32.mrf.mxu0
        %v3338 = vadd.f32 %v1748, %v3337
        %v3339 = vpop.f32.mrf.mxu0
        %v3340 = vadd.f32 %v1744, %v3339
        %v3341 = vpop.f32.mrf.mxu0
        %v3342 = vadd.f32 %v1748, %v3341
        %3343 = vmatprep.mubr.bf16.mxu0 %v1386
        %3344 = vmatmul.mubr.bf16.gmra.mxu0 %v1385
        %v3345 = vpop.f32.mrf.mxu0
        %v3346 = vadd.f32 %v1744, %v3345
        %v3347 = vpop.f32.mrf.mxu0
        %v3348 = vadd.f32 %v1748, %v3347
        %v3349 = vpop.f32.mrf.mxu0
        %v3350 = vadd.f32 %v1744, %v3349
        %v3351 = vpop.f32.mrf.mxu0
        %v3352 = vadd.f32 %v1748, %v3351
        %3353 = vmatprep.mubr.bf16.mxu0 %v1394
        %3354 = vmatmul.mubr.bf16.gmra.mxu0 %v1393
        %v3355 = vpop.f32.mrf.mxu0
        %v3356 = vadd.f32 %v1744, %v3355
        %v3357 = vpop.f32.mrf.mxu0
        %v3358 = vadd.f32 %v1748, %v3357
        %v3359 = vpop.f32.mrf.mxu0
        %v3360 = vadd.f32 %v1744, %v3359
        %v3361 = vpop.f32.mrf.mxu0
        %v3362 = vadd.f32 %v1748, %v3361
        %3363 = vmatprep.mubr.bf16.mxu0 %v1402
        %3364 = vmatmul.mubr.bf16.gmra.mxu0 %v1401
        %v3365 = vpop.f32.mrf.mxu0
        %v3366 = vadd.f32 %v1744, %v3365
        %v3367 = vpop.f32.mrf.mxu0
        %v3368 = vadd.f32 %v1748, %v3367
        %v3369 = vpop.f32.mrf.mxu0
        %v3370 = vadd.f32 %v1744, %v3369
        %v3371 = vpop.f32.mrf.mxu0
        %v3372 = vadd.f32 %v1748, %v3371
        %3373 = vmatprep.mubr.bf16.mxu0 %v1410
        %3374 = vmatmul.mubr.bf16.gmra.mxu0 %v1409
        %v3375 = vpop.f32.mrf.mxu0
        %v3376 = vadd.f32 %v1744, %v3375
        %v3377 = vpop.f32.mrf.mxu0
        %v3378 = vadd.f32 %v1748, %v3377
        %v3379 = vpop.f32.mrf.mxu0
        %v3380 = vadd.f32 %v1744, %v3379
        %v3381 = vpop.f32.mrf.mxu0
        %v3382 = vadd.f32 %v1748, %v3381
        %3383 = vmatprep.mubr.bf16.mxu0 %v1418
        %3384 = vmatmul.mubr.bf16.gmra.mxu0 %v1417
        %v3385 = vpop.f32.mrf.mxu0
        %v3386 = vadd.f32 %v1744, %v3385
        %v3387 = vpop.f32.mrf.mxu0
        %v3388 = vadd.f32 %v1748, %v3387
        %v3389 = vpop.f32.mrf.mxu0
        %v3390 = vadd.f32 %v1744, %v3389
        %v3391 = vpop.f32.mrf.mxu0
        %v3392 = vadd.f32 %v1748, %v3391
        %3393 = vmatprep.mubr.bf16.mxu0 %v1426
        %3394 = vmatmul.mubr.bf16.gmra.mxu0 %v1425
        %v3395 = vpop.f32.mrf.mxu0
        %v3396 = vadd.f32 %v1744, %v3395
        %v3397 = vpop.f32.mrf.mxu0
        %v3398 = vadd.f32 %v1748, %v3397
        %v3399 = vpop.f32.mrf.mxu0
        %v3400 = vadd.f32 %v1744, %v3399
        %v3401 = vpop.f32.mrf.mxu0
        %v3402 = vadd.f32 %v1748, %v3401
        %3403 = vmatprep.mubr.bf16.mxu0 %v1434
        %3404 = vmatmul.mubr.bf16.gmra.mxu0 %v1433
        %v3405 = vpop.f32.mrf.mxu0
        %v3406 = vadd.f32 %v1744, %v3405
        %v3407 = vpop.f32.mrf.mxu0
        %v3408 = vadd.f32 %v1748, %v3407
        %v3409 = vpop.f32.mrf.mxu0
        %v3410 = vadd.f32 %v1744, %v3409
        %v3411 = vpop.f32.mrf.mxu0
        %v3412 = vadd.f32 %v1748, %v3411
        %3413 = vmatprep.mubr.bf16.mxu0 %v1442
        %3414 = vmatmul.mubr.bf16.gmra.mxu0 %v1441
        %v3415 = vpop.f32.mrf.mxu0
        %v3416 = vadd.f32 %v1744, %v3415
        %v3417 = vpop.f32.mrf.mxu0
        %v3418 = vadd.f32 %v1748, %v3417
        %v3419 = vpop.f32.mrf.mxu0
        %v3420 = vadd.f32 %v1744, %v3419
        %v3421 = vpop.f32.mrf.mxu0
        %v3422 = vadd.f32 %v1748, %v3421
        %3423 = vmatprep.mubr.bf16.mxu0 %v1450
        %3424 = vmatmul.mubr.bf16.gmra.mxu0 %v1449
        %v3425 = vpop.f32.mrf.mxu0
        %v3426 = vadd.f32 %v1744, %v3425
        %v3427 = vpop.f32.mrf.mxu0
        %v3428 = vadd.f32 %v1748, %v3427
        %v3429 = vpop.f32.mrf.mxu0
        %v3430 = vadd.f32 %v1744, %v3429
        %v3431 = vpop.f32.mrf.mxu0
        %v3432 = vadd.f32 %v1748, %v3431
        %3433 = vmatprep.mubr.bf16.mxu0 %v1458
        %3434 = vmatmul.mubr.bf16.gmra.mxu0 %v1457
        %v3435 = vpop.f32.mrf.mxu0
        %v3436 = vadd.f32 %v1744, %v3435
        %v3437 = vpop.f32.mrf.mxu0
        %v3438 = vadd.f32 %v1748, %v3437
        %v3439 = vpop.f32.mrf.mxu0
        %v3440 = vadd.f32 %v1744, %v3439
        %v3441 = vpop.f32.mrf.mxu0
        %v3442 = vadd.f32 %v1748, %v3441
        %3443 = vmatprep.mubr.bf16.mxu0 %v1466
        %3444 = vmatmul.mubr.bf16.gmra.mxu0 %v1465
        %v3445 = vpop.f32.mrf.mxu0
        %v3446 = vadd.f32 %v1744, %v3445
        %v3447 = vpop.f32.mrf.mxu0
        %v3448 = vadd.f32 %v1748, %v3447
        %v3449 = vpop.f32.mrf.mxu0
        %v3450 = vadd.f32 %v1744, %v3449
        %v3451 = vpop.f32.mrf.mxu0
        %v3452 = vadd.f32 %v1748, %v3451
        %3453 = vmatprep.mubr.bf16.mxu0 %v1474
        %3454 = vmatmul.mubr.bf16.gmra.mxu0 %v1473
        %v3455 = vpop.f32.mrf.mxu0
        %v3456 = vadd.f32 %v1744, %v3455
        %v3457 = vpop.f32.mrf.mxu0
        %v3458 = vadd.f32 %v1748, %v3457
        %v3459 = vpop.f32.mrf.mxu0
        %v3460 = vadd.f32 %v1744, %v3459
        %v3461 = vpop.f32.mrf.mxu0
        %v3462 = vadd.f32 %v1748, %v3461
        %3463 = vmatprep.mubr.bf16.mxu0 %v1482
        %3464 = vmatmul.mubr.bf16.gmra.mxu0 %v1481
        %v3465 = vpop.f32.mrf.mxu0
        %v3466 = vadd.f32 %v1744, %v3465
        %v3467 = vpop.f32.mrf.mxu0
        %v3468 = vadd.f32 %v1748, %v3467
        %v3469 = vpop.f32.mrf.mxu0
        %v3470 = vadd.f32 %v1744, %v3469
        %v3471 = vpop.f32.mrf.mxu0
        %v3472 = vadd.f32 %v1748, %v3471
        %3473 = vdwg.mxu0
        %3474 = vmatprep.subr.bf16.mxu0 %v2604
        %3475 = vmatpush1.bf16.msra.mxu0 %v2603
        %3476 = vmatprep.subr.bf16.mxu0 %v2600
        %3477 = vmatpush1.bf16.msra.mxu0 %v2599
        %3478 = vmatprep.subr.bf16.mxu0 %v2596
        %3479 = vmatpush1.bf16.msra.mxu0 %v2595
        %3480 = vmatprep.subr.bf16.mxu0 %v2592
        %3481 = vmatpush1.bf16.msra.mxu0 %v2591
        %3482 = vmatprep.subr.bf16.mxu0 %v2588
        %3483 = vmatpush1.bf16.msra.mxu0 %v2587
        %3484 = vmatprep.subr.bf16.mxu0 %v2584
        %3485 = vmatpush1.bf16.msra.mxu0 %v2583
        %3486 = vmatprep.subr.bf16.mxu0 %v2580
        %3487 = vmatpush1.bf16.msra.mxu0 %v2579
        %3488 = vmatprep.subr.bf16.mxu0 %v2576
        %3489 = vmatpush1.bf16.msra.mxu0 %v2575
        %3490 = vmatprep.subr.bf16.mxu0 %v2636
        %3491 = vmatpush2.bf16.msra.mxu0 %v2635
        %3492 = vmatprep.subr.bf16.mxu0 %v2632
        %3493 = vmatpush2.bf16.msra.mxu0 %v2631
        %3494 = vmatprep.subr.bf16.mxu0 %v2628
        %3495 = vmatpush2.bf16.msra.mxu0 %v2627
        %3496 = vmatprep.subr.bf16.mxu0 %v2624
        %3497 = vmatpush2.bf16.msra.mxu0 %v2623
        %3498 = vmatprep.subr.bf16.mxu0 %v2620
        %3499 = vmatpush2.bf16.msra.mxu0 %v2619
        %3500 = vmatprep.subr.bf16.mxu0 %v2616
        %3501 = vmatpush2.bf16.msra.mxu0 %v2615
        %3502 = vmatprep.subr.bf16.mxu0 %v2612
        %3503 = vmatpush2.bf16.msra.mxu0 %v2611
        %3504 = vmatprep.subr.bf16.mxu0 %v2608
        %3505 = vmatpush2.bf16.msra.mxu0 %v2607
        %3506 = vmatprep.mubr.bf16.mxu0 %v1236
        %3507 = vmatmul.mubr.bf16.gmra.mxu0 %v1235
        %v3508 = vpop.f32.mrf.mxu0
        %v3509 = vadd.f32 %v3156, %v3508
        %v3510 = vpop.f32.mrf.mxu0
        %v3511 = vadd.f32 %v3158, %v3510
        %v3512 = vpop.f32.mrf.mxu0
        %v3513 = vadd.f32 %v3160, %v3512
        %v3514 = vpop.f32.mrf.mxu0
        %v3515 = vadd.f32 %v3162, %v3514
        %3516 = vmatprep.mubr.bf16.mxu0 %v1244
        %3517 = vmatmul.mubr.bf16.gmra.mxu0 %v1243
        %v3518 = vpop.f32.mrf.mxu0
        %v3519 = vadd.f32 %v3166, %v3518
        %v3520 = vpop.f32.mrf.mxu0
        %v3521 = vadd.f32 %v3168, %v3520
        %v3522 = vpop.f32.mrf.mxu0
        %v3523 = vadd.f32 %v3170, %v3522
        %v3524 = vpop.f32.mrf.mxu0
        %v3525 = vadd.f32 %v3172, %v3524
        %3526 = vmatprep.mubr.bf16.mxu0 %v1252
        %3527 = vmatmul.mubr.bf16.gmra.mxu0 %v1251
        %v3528 = vpop.f32.mrf.mxu0
        %v3529 = vadd.f32 %v3176, %v3528
        %v3530 = vpop.f32.mrf.mxu0
        %v3531 = vadd.f32 %v3178, %v3530
        %v3532 = vpop.f32.mrf.mxu0
        %v3533 = vadd.f32 %v3180, %v3532
        %v3534 = vpop.f32.mrf.mxu0
        %v3535 = vadd.f32 %v3182, %v3534
        %3536 = vmatprep.mubr.bf16.mxu0 %v1260
        %3537 = vmatmul.mubr.bf16.gmra.mxu0 %v1259
        %v3538 = vpop.f32.mrf.mxu0
        %v3539 = vadd.f32 %v3186, %v3538
        %v3540 = vpop.f32.mrf.mxu0
        %v3541 = vadd.f32 %v3188, %v3540
        %v3542 = vpop.f32.mrf.mxu0
        %v3543 = vadd.f32 %v3190, %v3542
        %v3544 = vpop.f32.mrf.mxu0
        %v3545 = vadd.f32 %v3192, %v3544
        %3546 = vmatprep.mubr.bf16.mxu0 %v1268
        %3547 = vmatmul.mubr.bf16.gmra.mxu0 %v1267
        %v3548 = vpop.f32.mrf.mxu0
        %v3549 = vadd.f32 %v3196, %v3548
        %v3550 = vpop.f32.mrf.mxu0
        %v3551 = vadd.f32 %v3198, %v3550
        %v3552 = vpop.f32.mrf.mxu0
        %v3553 = vadd.f32 %v3200, %v3552
        %v3554 = vpop.f32.mrf.mxu0
        %v3555 = vadd.f32 %v3202, %v3554
        %3556 = vmatprep.mubr.bf16.mxu0 %v1276
        %3557 = vmatmul.mubr.bf16.gmra.mxu0 %v1275
        %v3558 = vpop.f32.mrf.mxu0
        %v3559 = vadd.f32 %v3206, %v3558
        %v3560 = vpop.f32.mrf.mxu0
        %v3561 = vadd.f32 %v3208, %v3560
        %v3562 = vpop.f32.mrf.mxu0
        %v3563 = vadd.f32 %v3210, %v3562
        %v3564 = vpop.f32.mrf.mxu0
        %v3565 = vadd.f32 %v3212, %v3564
        %3566 = vmatprep.mubr.bf16.mxu0 %v1284
        %3567 = vmatmul.mubr.bf16.gmra.mxu0 %v1283
        %v3568 = vpop.f32.mrf.mxu0
        %v3569 = vadd.f32 %v3216, %v3568
        %v3570 = vpop.f32.mrf.mxu0
        %v3571 = vadd.f32 %v3218, %v3570
        %v3572 = vpop.f32.mrf.mxu0
        %v3573 = vadd.f32 %v3220, %v3572
        %v3574 = vpop.f32.mrf.mxu0
        %v3575 = vadd.f32 %v3222, %v3574
        %3576 = vmatprep.mubr.bf16.mxu0 %v1292
        %3577 = vmatmul.mubr.bf16.gmra.mxu0 %v1291
        %v3578 = vpop.f32.mrf.mxu0
        %v3579 = vadd.f32 %v3226, %v3578
        %v3580 = vpop.f32.mrf.mxu0
        %v3581 = vadd.f32 %v3228, %v3580
        %v3582 = vpop.f32.mrf.mxu0
        %v3583 = vadd.f32 %v3230, %v3582
        %v3584 = vpop.f32.mrf.mxu0
        %v3585 = vadd.f32 %v3232, %v3584
        %3586 = vmatprep.mubr.bf16.mxu0 %v1300
        %3587 = vmatmul.mubr.bf16.gmra.mxu0 %v1299
        %v3588 = vpop.f32.mrf.mxu0
        %v3589 = vadd.f32 %v3236, %v3588
        %v3590 = vpop.f32.mrf.mxu0
        %v3591 = vadd.f32 %v3238, %v3590
        %v3592 = vpop.f32.mrf.mxu0
        %v3593 = vadd.f32 %v3240, %v3592
        %v3594 = vpop.f32.mrf.mxu0
        %v3595 = vadd.f32 %v3242, %v3594
        %3596 = vmatprep.mubr.bf16.mxu0 %v1308
        %3597 = vmatmul.mubr.bf16.gmra.mxu0 %v1307
        %v3598 = vpop.f32.mrf.mxu0
        %v3599 = vadd.f32 %v3246, %v3598
        %v3600 = vpop.f32.mrf.mxu0
        %v3601 = vadd.f32 %v3248, %v3600
        %v3602 = vpop.f32.mrf.mxu0
        %v3603 = vadd.f32 %v3250, %v3602
        %v3604 = vpop.f32.mrf.mxu0
        %v3605 = vadd.f32 %v3252, %v3604
        %3606 = vmatprep.mubr.bf16.mxu0 %v1316
        %3607 = vmatmul.mubr.bf16.gmra.mxu0 %v1315
        %v3608 = vpop.f32.mrf.mxu0
        %v3609 = vadd.f32 %v3256, %v3608
        %v3610 = vpop.f32.mrf.mxu0
        %v3611 = vadd.f32 %v3258, %v3610
        %v3612 = vpop.f32.mrf.mxu0
        %v3613 = vadd.f32 %v3260, %v3612
        %v3614 = vpop.f32.mrf.mxu0
        %v3615 = vadd.f32 %v3262, %v3614
        %3616 = vmatprep.mubr.bf16.mxu0 %v1324
        %3617 = vmatmul.mubr.bf16.gmra.mxu0 %v1323
        %v3618 = vpop.f32.mrf.mxu0
        %v3619 = vadd.f32 %v3266, %v3618
        %v3620 = vpop.f32.mrf.mxu0
        %v3621 = vadd.f32 %v3268, %v3620
        %v3622 = vpop.f32.mrf.mxu0
        %v3623 = vadd.f32 %v3270, %v3622
        %v3624 = vpop.f32.mrf.mxu0
        %v3625 = vadd.f32 %v3272, %v3624
        %3626 = vmatprep.mubr.bf16.mxu0 %v1332
        %3627 = vmatmul.mubr.bf16.gmra.mxu0 %v1331
        %v3628 = vpop.f32.mrf.mxu0
        %v3629 = vadd.f32 %v3276, %v3628
        %v3630 = vpop.f32.mrf.mxu0
        %v3631 = vadd.f32 %v3278, %v3630
        %v3632 = vpop.f32.mrf.mxu0
        %v3633 = vadd.f32 %v3280, %v3632
        %v3634 = vpop.f32.mrf.mxu0
        %v3635 = vadd.f32 %v3282, %v3634
        %3636 = vmatprep.mubr.bf16.mxu0 %v1340
        %3637 = vmatmul.mubr.bf16.gmra.mxu0 %v1339
        %v3638 = vpop.f32.mrf.mxu0
        %v3639 = vadd.f32 %v3286, %v3638
        %v3640 = vpop.f32.mrf.mxu0
        %v3641 = vadd.f32 %v3288, %v3640
        %v3642 = vpop.f32.mrf.mxu0
        %v3643 = vadd.f32 %v3290, %v3642
        %v3644 = vpop.f32.mrf.mxu0
        %v3645 = vadd.f32 %v3292, %v3644
        %3646 = vmatprep.mubr.bf16.mxu0 %v1348
        %3647 = vmatmul.mubr.bf16.gmra.mxu0 %v1347
        %v3648 = vpop.f32.mrf.mxu0
        %v3649 = vadd.f32 %v3296, %v3648
        %v3650 = vpop.f32.mrf.mxu0
        %v3651 = vadd.f32 %v3298, %v3650
        %v3652 = vpop.f32.mrf.mxu0
        %v3653 = vadd.f32 %v3300, %v3652
        %v3654 = vpop.f32.mrf.mxu0
        %v3655 = vadd.f32 %v3302, %v3654
        %3656 = vmatprep.mubr.bf16.mxu0 %v1356
        %3657 = vmatmul.mubr.bf16.gmra.mxu0 %v1355
        %v3658 = vpop.f32.mrf.mxu0
        %v3659 = vadd.f32 %v3306, %v3658
        %v3660 = vpop.f32.mrf.mxu0
        %v3661 = vadd.f32 %v3308, %v3660
        %v3662 = vpop.f32.mrf.mxu0
        %v3663 = vadd.f32 %v3310, %v3662
        %v3664 = vpop.f32.mrf.mxu0
        %v3665 = vadd.f32 %v3312, %v3664
        %3666 = vmatprep.mubr.bf16.mxu0 %v1364
        %3667 = vmatmul.mubr.bf16.gmra.mxu0 %v1363
        %v3668 = vpop.f32.mrf.mxu0
        %v3669 = vadd.f32 %v3316, %v3668
        %v3670 = vpop.f32.mrf.mxu0
        %v3671 = vadd.f32 %v3318, %v3670
        %v3672 = vpop.f32.mrf.mxu0
        %v3673 = vadd.f32 %v3320, %v3672
        %v3674 = vpop.f32.mrf.mxu0
        %v3675 = vadd.f32 %v3322, %v3674
        %3676 = vmatprep.mubr.bf16.mxu0 %v1372
        %3677 = vmatmul.mubr.bf16.gmra.mxu0 %v1371
        %v3678 = vpop.f32.mrf.mxu0
        %v3679 = vadd.f32 %v3326, %v3678
        %v3680 = vpop.f32.mrf.mxu0
        %v3681 = vadd.f32 %v3328, %v3680
        %v3682 = vpop.f32.mrf.mxu0
        %v3683 = vadd.f32 %v3330, %v3682
        %v3684 = vpop.f32.mrf.mxu0
        %v3685 = vadd.f32 %v3332, %v3684
        %3686 = vmatprep.mubr.bf16.mxu0 %v1380
        %3687 = vmatmul.mubr.bf16.gmra.mxu0 %v1379
        %v3688 = vpop.f32.mrf.mxu0
        %v3689 = vadd.f32 %v3336, %v3688
        %v3690 = vpop.f32.mrf.mxu0
        %v3691 = vadd.f32 %v3338, %v3690
        %v3692 = vpop.f32.mrf.mxu0
        %v3693 = vadd.f32 %v3340, %v3692
        %v3694 = vpop.f32.mrf.mxu0
        %v3695 = vadd.f32 %v3342, %v3694
        %3696 = vmatprep.mubr.bf16.mxu0 %v1388
        %3697 = vmatmul.mubr.bf16.gmra.mxu0 %v1387
        %v3698 = vpop.f32.mrf.mxu0
        %v3699 = vadd.f32 %v3346, %v3698
        %v3700 = vpop.f32.mrf.mxu0
        %v3701 = vadd.f32 %v3348, %v3700
        %v3702 = vpop.f32.mrf.mxu0
        %v3703 = vadd.f32 %v3350, %v3702
        %v3704 = vpop.f32.mrf.mxu0
        %v3705 = vadd.f32 %v3352, %v3704
        %3706 = vmatprep.mubr.bf16.mxu0 %v1396
        %3707 = vmatmul.mubr.bf16.gmra.mxu0 %v1395
        %v3708 = vpop.f32.mrf.mxu0
        %v3709 = vadd.f32 %v3356, %v3708
        %v3710 = vpop.f32.mrf.mxu0
        %v3711 = vadd.f32 %v3358, %v3710
        %v3712 = vpop.f32.mrf.mxu0
        %v3713 = vadd.f32 %v3360, %v3712
        %v3714 = vpop.f32.mrf.mxu0
        %v3715 = vadd.f32 %v3362, %v3714
        %3716 = vmatprep.mubr.bf16.mxu0 %v1404
        %3717 = vmatmul.mubr.bf16.gmra.mxu0 %v1403
        %v3718 = vpop.f32.mrf.mxu0
        %v3719 = vadd.f32 %v3366, %v3718
        %v3720 = vpop.f32.mrf.mxu0
        %v3721 = vadd.f32 %v3368, %v3720
        %v3722 = vpop.f32.mrf.mxu0
        %v3723 = vadd.f32 %v3370, %v3722
        %v3724 = vpop.f32.mrf.mxu0
        %v3725 = vadd.f32 %v3372, %v3724
        %3726 = vmatprep.mubr.bf16.mxu0 %v1412
        %3727 = vmatmul.mubr.bf16.gmra.mxu0 %v1411
        %v3728 = vpop.f32.mrf.mxu0
        %v3729 = vadd.f32 %v3376, %v3728
        %v3730 = vpop.f32.mrf.mxu0
        %v3731 = vadd.f32 %v3378, %v3730
        %v3732 = vpop.f32.mrf.mxu0
        %v3733 = vadd.f32 %v3380, %v3732
        %v3734 = vpop.f32.mrf.mxu0
        %v3735 = vadd.f32 %v3382, %v3734
        %3736 = vmatprep.mubr.bf16.mxu0 %v1420
        %3737 = vmatmul.mubr.bf16.gmra.mxu0 %v1419
        %v3738 = vpop.f32.mrf.mxu0
        %v3739 = vadd.f32 %v3386, %v3738
        %v3740 = vpop.f32.mrf.mxu0
        %v3741 = vadd.f32 %v3388, %v3740
        %v3742 = vpop.f32.mrf.mxu0
        %v3743 = vadd.f32 %v3390, %v3742
        %v3744 = vpop.f32.mrf.mxu0
        %v3745 = vadd.f32 %v3392, %v3744
        %3746 = vmatprep.mubr.bf16.mxu0 %v1428
        %3747 = vmatmul.mubr.bf16.gmra.mxu0 %v1427
        %v3748 = vpop.f32.mrf.mxu0
        %v3749 = vadd.f32 %v3396, %v3748
        %v3750 = vpop.f32.mrf.mxu0
        %v3751 = vadd.f32 %v3398, %v3750
        %v3752 = vpop.f32.mrf.mxu0
        %v3753 = vadd.f32 %v3400, %v3752
        %v3754 = vpop.f32.mrf.mxu0
        %v3755 = vadd.f32 %v3402, %v3754
        %3756 = vmatprep.mubr.bf16.mxu0 %v1436
        %3757 = vmatmul.mubr.bf16.gmra.mxu0 %v1435
        %v3758 = vpop.f32.mrf.mxu0
        %v3759 = vadd.f32 %v3406, %v3758
        %v3760 = vpop.f32.mrf.mxu0
        %v3761 = vadd.f32 %v3408, %v3760
        %v3762 = vpop.f32.mrf.mxu0
        %v3763 = vadd.f32 %v3410, %v3762
        %v3764 = vpop.f32.mrf.mxu0
        %v3765 = vadd.f32 %v3412, %v3764
        %3766 = vmatprep.mubr.bf16.mxu0 %v1444
        %3767 = vmatmul.mubr.bf16.gmra.mxu0 %v1443
        %v3768 = vpop.f32.mrf.mxu0
        %v3769 = vadd.f32 %v3416, %v3768
        %v3770 = vpop.f32.mrf.mxu0
        %v3771 = vadd.f32 %v3418, %v3770
        %v3772 = vpop.f32.mrf.mxu0
        %v3773 = vadd.f32 %v3420, %v3772
        %v3774 = vpop.f32.mrf.mxu0
        %v3775 = vadd.f32 %v3422, %v3774
        %3776 = vmatprep.mubr.bf16.mxu0 %v1452
        %3777 = vmatmul.mubr.bf16.gmra.mxu0 %v1451
        %v3778 = vpop.f32.mrf.mxu0
        %v3779 = vadd.f32 %v3426, %v3778
        %v3780 = vpop.f32.mrf.mxu0
        %v3781 = vadd.f32 %v3428, %v3780
        %v3782 = vpop.f32.mrf.mxu0
        %v3783 = vadd.f32 %v3430, %v3782
        %v3784 = vpop.f32.mrf.mxu0
        %v3785 = vadd.f32 %v3432, %v3784
        %3786 = vmatprep.mubr.bf16.mxu0 %v1460
        %3787 = vmatmul.mubr.bf16.gmra.mxu0 %v1459
        %v3788 = vpop.f32.mrf.mxu0
        %v3789 = vadd.f32 %v3436, %v3788
        %v3790 = vpop.f32.mrf.mxu0
        %v3791 = vadd.f32 %v3438, %v3790
        %v3792 = vpop.f32.mrf.mxu0
        %v3793 = vadd.f32 %v3440, %v3792
        %v3794 = vpop.f32.mrf.mxu0
        %v3795 = vadd.f32 %v3442, %v3794
        %3796 = vmatprep.mubr.bf16.mxu0 %v1468
        %3797 = vmatmul.mubr.bf16.gmra.mxu0 %v1467
        %v3798 = vpop.f32.mrf.mxu0
        %v3799 = vadd.f32 %v3446, %v3798
        %v3800 = vpop.f32.mrf.mxu0
        %v3801 = vadd.f32 %v3448, %v3800
        %v3802 = vpop.f32.mrf.mxu0
        %v3803 = vadd.f32 %v3450, %v3802
        %v3804 = vpop.f32.mrf.mxu0
        %v3805 = vadd.f32 %v3452, %v3804
        %3806 = vmatprep.mubr.bf16.mxu0 %v1476
        %3807 = vmatmul.mubr.bf16.gmra.mxu0 %v1475
        %v3808 = vpop.f32.mrf.mxu0
        %v3809 = vadd.f32 %v3456, %v3808
        %v3810 = vpop.f32.mrf.mxu0
        %v3811 = vadd.f32 %v3458, %v3810
        %v3812 = vpop.f32.mrf.mxu0
        %v3813 = vadd.f32 %v3460, %v3812
        %v3814 = vpop.f32.mrf.mxu0
        %v3815 = vadd.f32 %v3462, %v3814
        %3816 = vmatprep.mubr.bf16.mxu0 %v1484
        %3817 = vmatmul.mubr.bf16.gmra.mxu0 %v1483
        %v3818 = vpop.f32.mrf.mxu0
        %v3819 = vadd.f32 %v3466, %v3818
        %v3820 = vpop.f32.mrf.mxu0
        %v3821 = vadd.f32 %v3468, %v3820
        %v3822 = vpop.f32.mrf.mxu0
        %v3823 = vadd.f32 %v3470, %v3822
        %v3824 = vpop.f32.mrf.mxu0
        %v3825 = vadd.f32 %v3472, %v3824
        %3826 = vdwg.mxu0
        %3827 = vmatprep.subr.bf16.mxu0 %v2668
        %3828 = vmatpush1.bf16.msra.mxu0 %v2667
        %3829 = vmatprep.subr.bf16.mxu0 %v2664
        %3830 = vmatpush1.bf16.msra.mxu0 %v2663
        %3831 = vmatprep.subr.bf16.mxu0 %v2660
        %3832 = vmatpush1.bf16.msra.mxu0 %v2659
        %3833 = vmatprep.subr.bf16.mxu0 %v2656
        %3834 = vmatpush1.bf16.msra.mxu0 %v2655
        %3835 = vmatprep.subr.bf16.mxu0 %v2652
        %3836 = vmatpush1.bf16.msra.mxu0 %v2651
        %3837 = vmatprep.subr.bf16.mxu0 %v2648
        %3838 = vmatpush1.bf16.msra.mxu0 %v2647
        %3839 = vmatprep.subr.bf16.mxu0 %v2644
        %3840 = vmatpush1.bf16.msra.mxu0 %v2643
        %3841 = vmatprep.subr.bf16.mxu0 %v2640
        %3842 = vmatpush1.bf16.msra.mxu0 %v2639
        %3843 = vmatprep.subr.bf16.mxu0 %v2700
        %3844 = vmatpush2.bf16.msra.mxu0 %v2699
        %3845 = vmatprep.subr.bf16.mxu0 %v2696
        %3846 = vmatpush2.bf16.msra.mxu0 %v2695
        %3847 = vmatprep.subr.bf16.mxu0 %v2692
        %3848 = vmatpush2.bf16.msra.mxu0 %v2691
        %3849 = vmatprep.subr.bf16.mxu0 %v2688
        %3850 = vmatpush2.bf16.msra.mxu0 %v2687
        %3851 = vmatprep.subr.bf16.mxu0 %v2684
        %3852 = vmatpush2.bf16.msra.mxu0 %v2683
        %3853 = vmatprep.subr.bf16.mxu0 %v2680
        %3854 = vmatpush2.bf16.msra.mxu0 %v2679
        %3855 = vmatprep.subr.bf16.mxu0 %v2676
        %3856 = vmatpush2.bf16.msra.mxu0 %v2675
        %3857 = vmatprep.subr.bf16.mxu0 %v2672
        %3858 = vmatpush2.bf16.msra.mxu0 %v2671
        %3859 = vmatprep.mubr.bf16.mxu0 %v1238
        %3860 = vmatmul.mubr.bf16.gmra.mxu0 %v1237
        %v3861 = vpop.f32.mrf.mxu0
        %v3862 = vadd.f32 %v3509, %v3861
        %v3863 = vpop.f32.mrf.mxu0
        %v3864 = vadd.f32 %v3511, %v3863
        %v3865 = vpop.f32.mrf.mxu0
        %v3866 = vadd.f32 %v3513, %v3865
        %v3867 = vpop.f32.mrf.mxu0
        %v3868 = vadd.f32 %v3515, %v3867
        %3869 = vmatprep.mubr.bf16.mxu0 %v1246
        %3870 = vmatmul.mubr.bf16.gmra.mxu0 %v1245
        %v3871 = vpop.f32.mrf.mxu0
        %v3872 = vadd.f32 %v3519, %v3871
        %v3873 = vpop.f32.mrf.mxu0
        %v3874 = vadd.f32 %v3521, %v3873
        %v3875 = vpop.f32.mrf.mxu0
        %v3876 = vadd.f32 %v3523, %v3875
        %v3877 = vpop.f32.mrf.mxu0
        %v3878 = vadd.f32 %v3525, %v3877
        %3879 = vmatprep.mubr.bf16.mxu0 %v1254
        %3880 = vmatmul.mubr.bf16.gmra.mxu0 %v1253
        %v3881 = vpop.f32.mrf.mxu0
        %v3882 = vadd.f32 %v3529, %v3881
        %v3883 = vpop.f32.mrf.mxu0
        %v3884 = vadd.f32 %v3531, %v3883
        %v3885 = vpop.f32.mrf.mxu0
        %v3886 = vadd.f32 %v3533, %v3885
        %v3887 = vpop.f32.mrf.mxu0
        %v3888 = vadd.f32 %v3535, %v3887
        %3889 = vmatprep.mubr.bf16.mxu0 %v1262
        %3890 = vmatmul.mubr.bf16.gmra.mxu0 %v1261
        %v3891 = vpop.f32.mrf.mxu0
        %v3892 = vadd.f32 %v3539, %v3891
        %v3893 = vpop.f32.mrf.mxu0
        %v3894 = vadd.f32 %v3541, %v3893
        %v3895 = vpop.f32.mrf.mxu0
        %v3896 = vadd.f32 %v3543, %v3895
        %v3897 = vpop.f32.mrf.mxu0
        %v3898 = vadd.f32 %v3545, %v3897
        %3899 = vmatprep.mubr.bf16.mxu0 %v1270
        %3900 = vmatmul.mubr.bf16.gmra.mxu0 %v1269
        %v3901 = vpop.f32.mrf.mxu0
        %v3902 = vadd.f32 %v3549, %v3901
        %v3903 = vpop.f32.mrf.mxu0
        %v3904 = vadd.f32 %v3551, %v3903
        %v3905 = vpop.f32.mrf.mxu0
        %v3906 = vadd.f32 %v3553, %v3905
        %v3907 = vpop.f32.mrf.mxu0
        %v3908 = vadd.f32 %v3555, %v3907
        %3909 = vmatprep.mubr.bf16.mxu0 %v1278
        %3910 = vmatmul.mubr.bf16.gmra.mxu0 %v1277
        %v3911 = vpop.f32.mrf.mxu0
        %v3912 = vadd.f32 %v3559, %v3911
        %v3913 = vpop.f32.mrf.mxu0
        %v3914 = vadd.f32 %v3561, %v3913
        %v3915 = vpop.f32.mrf.mxu0
        %v3916 = vadd.f32 %v3563, %v3915
        %v3917 = vpop.f32.mrf.mxu0
        %v3918 = vadd.f32 %v3565, %v3917
        %3919 = vmatprep.mubr.bf16.mxu0 %v1286
        %3920 = vmatmul.mubr.bf16.gmra.mxu0 %v1285
        %v3921 = vpop.f32.mrf.mxu0
        %v3922 = vadd.f32 %v3569, %v3921
        %v3923 = vpop.f32.mrf.mxu0
        %v3924 = vadd.f32 %v3571, %v3923
        %v3925 = vpop.f32.mrf.mxu0
        %v3926 = vadd.f32 %v3573, %v3925
        %v3927 = vpop.f32.mrf.mxu0
        %v3928 = vadd.f32 %v3575, %v3927
        %3929 = vmatprep.mubr.bf16.mxu0 %v1294
        %3930 = vmatmul.mubr.bf16.gmra.mxu0 %v1293
        %v3931 = vpop.f32.mrf.mxu0
        %v3932 = vadd.f32 %v3579, %v3931
        %v3933 = vpop.f32.mrf.mxu0
        %v3934 = vadd.f32 %v3581, %v3933
        %v3935 = vpop.f32.mrf.mxu0
        %v3936 = vadd.f32 %v3583, %v3935
        %v3937 = vpop.f32.mrf.mxu0
        %v3938 = vadd.f32 %v3585, %v3937
        %3939 = vmatprep.mubr.bf16.mxu0 %v1302
        %3940 = vmatmul.mubr.bf16.gmra.mxu0 %v1301
        %v3941 = vpop.f32.mrf.mxu0
        %v3942 = vadd.f32 %v3589, %v3941
        %v3943 = vpop.f32.mrf.mxu0
        %v3944 = vadd.f32 %v3591, %v3943
        %v3945 = vpop.f32.mrf.mxu0
        %v3946 = vadd.f32 %v3593, %v3945
        %v3947 = vpop.f32.mrf.mxu0
        %v3948 = vadd.f32 %v3595, %v3947
        %3949 = vmatprep.mubr.bf16.mxu0 %v1310
        %3950 = vmatmul.mubr.bf16.gmra.mxu0 %v1309
        %v3951 = vpop.f32.mrf.mxu0
        %v3952 = vadd.f32 %v3599, %v3951
        %v3953 = vpop.f32.mrf.mxu0
        %v3954 = vadd.f32 %v3601, %v3953
        %v3955 = vpop.f32.mrf.mxu0
        %v3956 = vadd.f32 %v3603, %v3955
        %v3957 = vpop.f32.mrf.mxu0
        %v3958 = vadd.f32 %v3605, %v3957
        %3959 = vmatprep.mubr.bf16.mxu0 %v1318
        %3960 = vmatmul.mubr.bf16.gmra.mxu0 %v1317
        %v3961 = vpop.f32.mrf.mxu0
        %v3962 = vadd.f32 %v3609, %v3961
        %v3963 = vpop.f32.mrf.mxu0
        %v3964 = vadd.f32 %v3611, %v3963
        %v3965 = vpop.f32.mrf.mxu0
        %v3966 = vadd.f32 %v3613, %v3965
        %v3967 = vpop.f32.mrf.mxu0
        %v3968 = vadd.f32 %v3615, %v3967
        %3969 = vmatprep.mubr.bf16.mxu0 %v1326
        %3970 = vmatmul.mubr.bf16.gmra.mxu0 %v1325
        %v3971 = vpop.f32.mrf.mxu0
        %v3972 = vadd.f32 %v3619, %v3971
        %v3973 = vpop.f32.mrf.mxu0
        %v3974 = vadd.f32 %v3621, %v3973
        %v3975 = vpop.f32.mrf.mxu0
        %v3976 = vadd.f32 %v3623, %v3975
        %v3977 = vpop.f32.mrf.mxu0
        %v3978 = vadd.f32 %v3625, %v3977
        %3979 = vmatprep.mubr.bf16.mxu0 %v1334
        %3980 = vmatmul.mubr.bf16.gmra.mxu0 %v1333
        %v3981 = vpop.f32.mrf.mxu0
        %v3982 = vadd.f32 %v3629, %v3981
        %v3983 = vpop.f32.mrf.mxu0
        %v3984 = vadd.f32 %v3631, %v3983
        %v3985 = vpop.f32.mrf.mxu0
        %v3986 = vadd.f32 %v3633, %v3985
        %v3987 = vpop.f32.mrf.mxu0
        %v3988 = vadd.f32 %v3635, %v3987
        %3989 = vmatprep.mubr.bf16.mxu0 %v1342
        %3990 = vmatmul.mubr.bf16.gmra.mxu0 %v1341
        %v3991 = vpop.f32.mrf.mxu0
        %v3992 = vadd.f32 %v3639, %v3991
        %v3993 = vpop.f32.mrf.mxu0
        %v3994 = vadd.f32 %v3641, %v3993
        %v3995 = vpop.f32.mrf.mxu0
        %v3996 = vadd.f32 %v3643, %v3995
        %v3997 = vpop.f32.mrf.mxu0
        %v3998 = vadd.f32 %v3645, %v3997
        %3999 = vmatprep.mubr.bf16.mxu0 %v1350
        %4000 = vmatmul.mubr.bf16.gmra.mxu0 %v1349
        %v4001 = vpop.f32.mrf.mxu0
        %v4002 = vadd.f32 %v3649, %v4001
        %v4003 = vpop.f32.mrf.mxu0
        %v4004 = vadd.f32 %v3651, %v4003
        %v4005 = vpop.f32.mrf.mxu0
        %v4006 = vadd.f32 %v3653, %v4005
        %v4007 = vpop.f32.mrf.mxu0
        %v4008 = vadd.f32 %v3655, %v4007
        %4009 = vmatprep.mubr.bf16.mxu0 %v1358
        %4010 = vmatmul.mubr.bf16.gmra.mxu0 %v1357
        %v4011 = vpop.f32.mrf.mxu0
        %v4012 = vadd.f32 %v3659, %v4011
        %v4013 = vpop.f32.mrf.mxu0
        %v4014 = vadd.f32 %v3661, %v4013
        %v4015 = vpop.f32.mrf.mxu0
        %v4016 = vadd.f32 %v3663, %v4015
        %v4017 = vpop.f32.mrf.mxu0
        %v4018 = vadd.f32 %v3665, %v4017
        %4019 = vmatprep.mubr.bf16.mxu0 %v1366
        %4020 = vmatmul.mubr.bf16.gmra.mxu0 %v1365
        %v4021 = vpop.f32.mrf.mxu0
        %v4022 = vadd.f32 %v3669, %v4021
        %v4023 = vpop.f32.mrf.mxu0
        %v4024 = vadd.f32 %v3671, %v4023
        %v4025 = vpop.f32.mrf.mxu0
        %v4026 = vadd.f32 %v3673, %v4025
        %v4027 = vpop.f32.mrf.mxu0
        %v4028 = vadd.f32 %v3675, %v4027
        %4029 = vmatprep.mubr.bf16.mxu0 %v1374
        %4030 = vmatmul.mubr.bf16.gmra.mxu0 %v1373
        %v4031 = vpop.f32.mrf.mxu0
        %v4032 = vadd.f32 %v3679, %v4031
        %v4033 = vpop.f32.mrf.mxu0
        %v4034 = vadd.f32 %v3681, %v4033
        %v4035 = vpop.f32.mrf.mxu0
        %v4036 = vadd.f32 %v3683, %v4035
        %v4037 = vpop.f32.mrf.mxu0
        %v4038 = vadd.f32 %v3685, %v4037
        %4039 = vmatprep.mubr.bf16.mxu0 %v1382
        %4040 = vmatmul.mubr.bf16.gmra.mxu0 %v1381
        %v4041 = vpop.f32.mrf.mxu0
        %v4042 = vadd.f32 %v3689, %v4041
        %v4043 = vpop.f32.mrf.mxu0
        %v4044 = vadd.f32 %v3691, %v4043
        %v4045 = vpop.f32.mrf.mxu0
        %v4046 = vadd.f32 %v3693, %v4045
        %v4047 = vpop.f32.mrf.mxu0
        %v4048 = vadd.f32 %v3695, %v4047
        %4049 = vmatprep.mubr.bf16.mxu0 %v1390
        %4050 = vmatmul.mubr.bf16.gmra.mxu0 %v1389
        %v4051 = vpop.f32.mrf.mxu0
        %v4052 = vadd.f32 %v3699, %v4051
        %v4053 = vpop.f32.mrf.mxu0
        %v4054 = vadd.f32 %v3701, %v4053
        %v4055 = vpop.f32.mrf.mxu0
        %v4056 = vadd.f32 %v3703, %v4055
        %v4057 = vpop.f32.mrf.mxu0
        %v4058 = vadd.f32 %v3705, %v4057
        %4059 = vmatprep.mubr.bf16.mxu0 %v1398
        %4060 = vmatmul.mubr.bf16.gmra.mxu0 %v1397
        %v4061 = vpop.f32.mrf.mxu0
        %v4062 = vadd.f32 %v3709, %v4061
        %v4063 = vpop.f32.mrf.mxu0
        %v4064 = vadd.f32 %v3711, %v4063
        %v4065 = vpop.f32.mrf.mxu0
        %v4066 = vadd.f32 %v3713, %v4065
        %v4067 = vpop.f32.mrf.mxu0
        %v4068 = vadd.f32 %v3715, %v4067
        %4069 = vmatprep.mubr.bf16.mxu0 %v1406
        %4070 = vmatmul.mubr.bf16.gmra.mxu0 %v1405
        %v4071 = vpop.f32.mrf.mxu0
        %v4072 = vadd.f32 %v3719, %v4071
        %v4073 = vpop.f32.mrf.mxu0
        %v4074 = vadd.f32 %v3721, %v4073
        %v4075 = vpop.f32.mrf.mxu0
        %v4076 = vadd.f32 %v3723, %v4075
        %v4077 = vpop.f32.mrf.mxu0
        %v4078 = vadd.f32 %v3725, %v4077
        %4079 = vmatprep.mubr.bf16.mxu0 %v1414
        %4080 = vmatmul.mubr.bf16.gmra.mxu0 %v1413
        %v4081 = vpop.f32.mrf.mxu0
        %v4082 = vadd.f32 %v3729, %v4081
        %v4083 = vpop.f32.mrf.mxu0
        %v4084 = vadd.f32 %v3731, %v4083
        %v4085 = vpop.f32.mrf.mxu0
        %v4086 = vadd.f32 %v3733, %v4085
        %v4087 = vpop.f32.mrf.mxu0
        %v4088 = vadd.f32 %v3735, %v4087
        %4089 = vmatprep.mubr.bf16.mxu0 %v1422
        %4090 = vmatmul.mubr.bf16.gmra.mxu0 %v1421
        %v4091 = vpop.f32.mrf.mxu0
        %v4092 = vadd.f32 %v3739, %v4091
        %v4093 = vpop.f32.mrf.mxu0
        %v4094 = vadd.f32 %v3741, %v4093
        %v4095 = vpop.f32.mrf.mxu0
        %v4096 = vadd.f32 %v3743, %v4095
        %v4097 = vpop.f32.mrf.mxu0
        %v4098 = vadd.f32 %v3745, %v4097
        %4099 = vmatprep.mubr.bf16.mxu0 %v1430
        %4100 = vmatmul.mubr.bf16.gmra.mxu0 %v1429
        %v4101 = vpop.f32.mrf.mxu0
        %v4102 = vadd.f32 %v3749, %v4101
        %v4103 = vpop.f32.mrf.mxu0
        %v4104 = vadd.f32 %v3751, %v4103
        %v4105 = vpop.f32.mrf.mxu0
        %v4106 = vadd.f32 %v3753, %v4105
        %v4107 = vpop.f32.mrf.mxu0
        %v4108 = vadd.f32 %v3755, %v4107
        %4109 = vmatprep.mubr.bf16.mxu0 %v1438
        %4110 = vmatmul.mubr.bf16.gmra.mxu0 %v1437
        %v4111 = vpop.f32.mrf.mxu0
        %v4112 = vadd.f32 %v3759, %v4111
        %v4113 = vpop.f32.mrf.mxu0
        %v4114 = vadd.f32 %v3761, %v4113
        %v4115 = vpop.f32.mrf.mxu0
        %v4116 = vadd.f32 %v3763, %v4115
        %v4117 = vpop.f32.mrf.mxu0
        %v4118 = vadd.f32 %v3765, %v4117
        %4119 = vmatprep.mubr.bf16.mxu0 %v1446
        %4120 = vmatmul.mubr.bf16.gmra.mxu0 %v1445
        %v4121 = vpop.f32.mrf.mxu0
        %v4122 = vadd.f32 %v3769, %v4121
        %v4123 = vpop.f32.mrf.mxu0
        %v4124 = vadd.f32 %v3771, %v4123
        %v4125 = vpop.f32.mrf.mxu0
        %v4126 = vadd.f32 %v3773, %v4125
        %v4127 = vpop.f32.mrf.mxu0
        %v4128 = vadd.f32 %v3775, %v4127
        %4129 = vmatprep.mubr.bf16.mxu0 %v1454
        %4130 = vmatmul.mubr.bf16.gmra.mxu0 %v1453
        %v4131 = vpop.f32.mrf.mxu0
        %v4132 = vadd.f32 %v3779, %v4131
        %v4133 = vpop.f32.mrf.mxu0
        %v4134 = vadd.f32 %v3781, %v4133
        %v4135 = vpop.f32.mrf.mxu0
        %v4136 = vadd.f32 %v3783, %v4135
        %v4137 = vpop.f32.mrf.mxu0
        %v4138 = vadd.f32 %v3785, %v4137
        %4139 = vmatprep.mubr.bf16.mxu0 %v1462
        %4140 = vmatmul.mubr.bf16.gmra.mxu0 %v1461
        %v4141 = vpop.f32.mrf.mxu0
        %v4142 = vadd.f32 %v3789, %v4141
        %v4143 = vpop.f32.mrf.mxu0
        %v4144 = vadd.f32 %v3791, %v4143
        %v4145 = vpop.f32.mrf.mxu0
        %v4146 = vadd.f32 %v3793, %v4145
        %v4147 = vpop.f32.mrf.mxu0
        %v4148 = vadd.f32 %v3795, %v4147
        %4149 = vmatprep.mubr.bf16.mxu0 %v1470
        %4150 = vmatmul.mubr.bf16.gmra.mxu0 %v1469
        %v4151 = vpop.f32.mrf.mxu0
        %v4152 = vadd.f32 %v3799, %v4151
        %v4153 = vpop.f32.mrf.mxu0
        %v4154 = vadd.f32 %v3801, %v4153
        %v4155 = vpop.f32.mrf.mxu0
        %v4156 = vadd.f32 %v3803, %v4155
        %v4157 = vpop.f32.mrf.mxu0
        %v4158 = vadd.f32 %v3805, %v4157
        %4159 = vmatprep.mubr.bf16.mxu0 %v1478
        %4160 = vmatmul.mubr.bf16.gmra.mxu0 %v1477
        %v4161 = vpop.f32.mrf.mxu0
        %v4162 = vadd.f32 %v3809, %v4161
        %v4163 = vpop.f32.mrf.mxu0
        %v4164 = vadd.f32 %v3811, %v4163
        %v4165 = vpop.f32.mrf.mxu0
        %v4166 = vadd.f32 %v3813, %v4165
        %v4167 = vpop.f32.mrf.mxu0
        %v4168 = vadd.f32 %v3815, %v4167
        %4169 = vmatprep.mubr.bf16.mxu0 %v1486
        %4170 = vmatmul.mubr.bf16.gmra.mxu0 %v1485
        %v4171 = vpop.f32.mrf.mxu0
        %v4172 = vadd.f32 %v3819, %v4171
        %v4173 = vpop.f32.mrf.mxu0
        %v4174 = vadd.f32 %v3821, %v4173
        %v4175 = vpop.f32.mrf.mxu0
        %v4176 = vadd.f32 %v3823, %v4175
        %v4177 = vpop.f32.mrf.mxu0
        %v4178 = vadd.f32 %v3825, %v4177
        %4179 = vdwg.mxu0
        %4180 = vmatprep.subr.bf16.mxu0 %v2732
        %4181 = vmatpush1.bf16.msra.mxu0 %v2731
        %4182 = vmatprep.subr.bf16.mxu0 %v2728
        %4183 = vmatpush1.bf16.msra.mxu0 %v2727
        %4184 = vmatprep.subr.bf16.mxu0 %v2724
        %4185 = vmatpush1.bf16.msra.mxu0 %v2723
        %4186 = vmatprep.subr.bf16.mxu0 %v2720
        %4187 = vmatpush1.bf16.msra.mxu0 %v2719
        %4188 = vmatprep.subr.bf16.mxu0 %v2716
        %4189 = vmatpush1.bf16.msra.mxu0 %v2715
        %4190 = vmatprep.subr.bf16.mxu0 %v2712
        %4191 = vmatpush1.bf16.msra.mxu0 %v2711
        %4192 = vmatprep.subr.bf16.mxu0 %v2708
        %4193 = vmatpush1.bf16.msra.mxu0 %v2707
        %4194 = vmatprep.subr.bf16.mxu0 %v2704
        %4195 = vmatpush1.bf16.msra.mxu0 %v2703
        %4196 = vmatprep.subr.bf16.mxu0 0
        %4197 = vmatpush2.bf16.msra.mxu0 0
        %4198 = vmatprep.subr.bf16.mxu0 %v3113
        %4199 = vmatpush2.bf16.msra.mxu0 %v3110
        %4200 = vmatprep.subr.bf16.mxu0 %v2756
        %4201 = vmatpush2.bf16.msra.mxu0 %v2755
        %4202 = vmatprep.subr.bf16.mxu0 %v2752
        %4203 = vmatpush2.bf16.msra.mxu0 %v2751
        %4204 = vmatprep.subr.bf16.mxu0 %v2748
        %4205 = vmatpush2.bf16.msra.mxu0 %v2747
        %4206 = vmatprep.subr.bf16.mxu0 %v2744
        %4207 = vmatpush2.bf16.msra.mxu0 %v2743
        %4208 = vmatprep.subr.bf16.mxu0 %v2740
        %4209 = vmatpush2.bf16.msra.mxu0 %v2739
        %4210 = vmatprep.subr.bf16.mxu0 %v2736
        %4211 = vmatpush2.bf16.msra.mxu0 %v2735
        %4212 = vmatprep.mubr.bf16.mxu0 %v3013
        %4213 = vmatmul.mubr.bf16.gmra.mxu0 %v1239
        %v4214 = vpop.f32.mrf.mxu0
        %v4215 = vadd.f32 %v3862, %v4214
        %v4216 = vpop.f32.mrf.mxu0
        %v4217 = vadd.f32 %v3864, %v4216
        %v4218 = vpop.f32.mrf.mxu0
        %v4219 = vadd.f32 %v3866, %v4218
        %v4220 = vpop.f32.mrf.mxu0
        %v4221 = vadd.f32 %v3868, %v4220
        %4222 = vmatprep.mubr.bf16.mxu0 %v3016
        %4223 = vmatmul.mubr.bf16.gmra.mxu0 %v1247
        %v4224 = vpop.f32.mrf.mxu0
        %v4225 = vadd.f32 %v3872, %v4224
        %v4226 = vpop.f32.mrf.mxu0
        %v4227 = vadd.f32 %v3874, %v4226
        %v4228 = vpop.f32.mrf.mxu0
        %v4229 = vadd.f32 %v3876, %v4228
        %v4230 = vpop.f32.mrf.mxu0
        %v4231 = vadd.f32 %v3878, %v4230
        %4232 = vmatprep.mubr.bf16.mxu0 %v3019
        %4233 = vmatmul.mubr.bf16.gmra.mxu0 %v1255
        %v4234 = vpop.f32.mrf.mxu0
        %v4235 = vadd.f32 %v3882, %v4234
        %v4236 = vpop.f32.mrf.mxu0
        %v4237 = vadd.f32 %v3884, %v4236
        %v4238 = vpop.f32.mrf.mxu0
        %v4239 = vadd.f32 %v3886, %v4238
        %v4240 = vpop.f32.mrf.mxu0
        %v4241 = vadd.f32 %v3888, %v4240
        %4242 = vmatprep.mubr.bf16.mxu0 %v3022
        %4243 = vmatmul.mubr.bf16.gmra.mxu0 %v1263
        %v4244 = vpop.f32.mrf.mxu0
        %v4245 = vadd.f32 %v3892, %v4244
        %v4246 = vpop.f32.mrf.mxu0
        %v4247 = vadd.f32 %v3894, %v4246
        %v4248 = vpop.f32.mrf.mxu0
        %v4249 = vadd.f32 %v3896, %v4248
        %v4250 = vpop.f32.mrf.mxu0
        %v4251 = vadd.f32 %v3898, %v4250
        %4252 = vmatprep.mubr.bf16.mxu0 %v3025
        %4253 = vmatmul.mubr.bf16.gmra.mxu0 %v1271
        %v4254 = vpop.f32.mrf.mxu0
        %v4255 = vadd.f32 %v3902, %v4254
        %v4256 = vpop.f32.mrf.mxu0
        %v4257 = vadd.f32 %v3904, %v4256
        %v4258 = vpop.f32.mrf.mxu0
        %v4259 = vadd.f32 %v3906, %v4258
        %v4260 = vpop.f32.mrf.mxu0
        %v4261 = vadd.f32 %v3908, %v4260
        %4262 = vmatprep.mubr.bf16.mxu0 %v3028
        %4263 = vmatmul.mubr.bf16.gmra.mxu0 %v1279
        %v4264 = vpop.f32.mrf.mxu0
        %v4265 = vadd.f32 %v3912, %v4264
        %v4266 = vpop.f32.mrf.mxu0
        %v4267 = vadd.f32 %v3914, %v4266
        %v4268 = vpop.f32.mrf.mxu0
        %v4269 = vadd.f32 %v3916, %v4268
        %v4270 = vpop.f32.mrf.mxu0
        %v4271 = vadd.f32 %v3918, %v4270
        %4272 = vmatprep.mubr.bf16.mxu0 %v3031
        %4273 = vmatmul.mubr.bf16.gmra.mxu0 %v1287
        %v4274 = vpop.f32.mrf.mxu0
        %v4275 = vadd.f32 %v3922, %v4274
        %v4276 = vpop.f32.mrf.mxu0
        %v4277 = vadd.f32 %v3924, %v4276
        %v4278 = vpop.f32.mrf.mxu0
        %v4279 = vadd.f32 %v3926, %v4278
        %v4280 = vpop.f32.mrf.mxu0
        %v4281 = vadd.f32 %v3928, %v4280
        %4282 = vmatprep.mubr.bf16.mxu0 %v3034
        %4283 = vmatmul.mubr.bf16.gmra.mxu0 %v1295
        %v4284 = vpop.f32.mrf.mxu0
        %v4285 = vadd.f32 %v3932, %v4284
        %v4286 = vpop.f32.mrf.mxu0
        %v4287 = vadd.f32 %v3934, %v4286
        %v4288 = vpop.f32.mrf.mxu0
        %v4289 = vadd.f32 %v3936, %v4288
        %v4290 = vpop.f32.mrf.mxu0
        %v4291 = vadd.f32 %v3938, %v4290
        %4292 = vmatprep.mubr.bf16.mxu0 %v3037
        %4293 = vmatmul.mubr.bf16.gmra.mxu0 %v1303
        %v4294 = vpop.f32.mrf.mxu0
        %v4295 = vadd.f32 %v3942, %v4294
        %v4296 = vpop.f32.mrf.mxu0
        %v4297 = vadd.f32 %v3944, %v4296
        %v4298 = vpop.f32.mrf.mxu0
        %v4299 = vadd.f32 %v3946, %v4298
        %v4300 = vpop.f32.mrf.mxu0
        %v4301 = vadd.f32 %v3948, %v4300
        %4302 = vmatprep.mubr.bf16.mxu0 %v3040
        %4303 = vmatmul.mubr.bf16.gmra.mxu0 %v1311
        %v4304 = vpop.f32.mrf.mxu0
        %v4305 = vadd.f32 %v3952, %v4304
        %v4306 = vpop.f32.mrf.mxu0
        %v4307 = vadd.f32 %v3954, %v4306
        %v4308 = vpop.f32.mrf.mxu0
        %v4309 = vadd.f32 %v3956, %v4308
        %v4310 = vpop.f32.mrf.mxu0
        %v4311 = vadd.f32 %v3958, %v4310
        %4312 = vmatprep.mubr.bf16.mxu0 %v3043
        %4313 = vmatmul.mubr.bf16.gmra.mxu0 %v1319
        %v4314 = vpop.f32.mrf.mxu0
        %v4315 = vadd.f32 %v3962, %v4314
        %v4316 = vpop.f32.mrf.mxu0
        %v4317 = vadd.f32 %v3964, %v4316
        %v4318 = vpop.f32.mrf.mxu0
        %v4319 = vadd.f32 %v3966, %v4318
        %v4320 = vpop.f32.mrf.mxu0
        %v4321 = vadd.f32 %v3968, %v4320
        %4322 = vmatprep.mubr.bf16.mxu0 %v3046
        %4323 = vmatmul.mubr.bf16.gmra.mxu0 %v1327
        %v4324 = vpop.f32.mrf.mxu0
        %v4325 = vadd.f32 %v3972, %v4324
        %v4326 = vpop.f32.mrf.mxu0
        %v4327 = vadd.f32 %v3974, %v4326
        %v4328 = vpop.f32.mrf.mxu0
        %v4329 = vadd.f32 %v3976, %v4328
        %v4330 = vpop.f32.mrf.mxu0
        %v4331 = vadd.f32 %v3978, %v4330
        %4332 = vmatprep.mubr.bf16.mxu0 %v3049
        %4333 = vmatmul.mubr.bf16.gmra.mxu0 %v1335
        %v4334 = vpop.f32.mrf.mxu0
        %v4335 = vadd.f32 %v3982, %v4334
        %v4336 = vpop.f32.mrf.mxu0
        %v4337 = vadd.f32 %v3984, %v4336
        %v4338 = vpop.f32.mrf.mxu0
        %v4339 = vadd.f32 %v3986, %v4338
        %v4340 = vpop.f32.mrf.mxu0
        %v4341 = vadd.f32 %v3988, %v4340
        %4342 = vmatprep.mubr.bf16.mxu0 %v3052
        %4343 = vmatmul.mubr.bf16.gmra.mxu0 %v1343
        %v4344 = vpop.f32.mrf.mxu0
        %v4345 = vadd.f32 %v3992, %v4344
        %v4346 = vpop.f32.mrf.mxu0
        %v4347 = vadd.f32 %v3994, %v4346
        %v4348 = vpop.f32.mrf.mxu0
        %v4349 = vadd.f32 %v3996, %v4348
        %v4350 = vpop.f32.mrf.mxu0
        %v4351 = vadd.f32 %v3998, %v4350
        %4352 = vmatprep.mubr.bf16.mxu0 %v3055
        %4353 = vmatmul.mubr.bf16.gmra.mxu0 %v1351
        %v4354 = vpop.f32.mrf.mxu0
        %v4355 = vadd.f32 %v4002, %v4354
        %v4356 = vpop.f32.mrf.mxu0
        %v4357 = vadd.f32 %v4004, %v4356
        %v4358 = vpop.f32.mrf.mxu0
        %v4359 = vadd.f32 %v4006, %v4358
        %v4360 = vpop.f32.mrf.mxu0
        %v4361 = vadd.f32 %v4008, %v4360
        %4362 = vmatprep.mubr.bf16.mxu0 %v3058
        %4363 = vmatmul.mubr.bf16.gmra.mxu0 %v1359
        %v4364 = vpop.f32.mrf.mxu0
        %v4365 = vadd.f32 %v4012, %v4364
        %v4366 = vpop.f32.mrf.mxu0
        %v4367 = vadd.f32 %v4014, %v4366
        %v4368 = vpop.f32.mrf.mxu0
        %v4369 = vadd.f32 %v4016, %v4368
        %v4370 = vpop.f32.mrf.mxu0
        %v4371 = vadd.f32 %v4018, %v4370
        %4372 = vmatprep.mubr.bf16.mxu0 %v3061
        %4373 = vmatmul.mubr.bf16.gmra.mxu0 %v1367
        %v4374 = vpop.f32.mrf.mxu0
        %v4375 = vadd.f32 %v4022, %v4374
        %v4376 = vpop.f32.mrf.mxu0
        %v4377 = vadd.f32 %v4024, %v4376
        %v4378 = vpop.f32.mrf.mxu0
        %v4379 = vadd.f32 %v4026, %v4378
        %v4380 = vpop.f32.mrf.mxu0
        %v4381 = vadd.f32 %v4028, %v4380
        %4382 = vmatprep.mubr.bf16.mxu0 %v3064
        %4383 = vmatmul.mubr.bf16.gmra.mxu0 %v1375
        %v4384 = vpop.f32.mrf.mxu0
        %v4385 = vadd.f32 %v4032, %v4384
        %v4386 = vpop.f32.mrf.mxu0
        %v4387 = vadd.f32 %v4034, %v4386
        %v4388 = vpop.f32.mrf.mxu0
        %v4389 = vadd.f32 %v4036, %v4388
        %v4390 = vpop.f32.mrf.mxu0
        %v4391 = vadd.f32 %v4038, %v4390
        %4392 = vmatprep.mubr.bf16.mxu0 %v3067
        %4393 = vmatmul.mubr.bf16.gmra.mxu0 %v1383
        %v4394 = vpop.f32.mrf.mxu0
        %v4395 = vadd.f32 %v4042, %v4394
        %v4396 = vpop.f32.mrf.mxu0
        %v4397 = vadd.f32 %v4044, %v4396
        %v4398 = vpop.f32.mrf.mxu0
        %v4399 = vadd.f32 %v4046, %v4398
        %v4400 = vpop.f32.mrf.mxu0
        %v4401 = vadd.f32 %v4048, %v4400
        %4402 = vmatprep.mubr.bf16.mxu0 %v3070
        %4403 = vmatmul.mubr.bf16.gmra.mxu0 %v1391
        %v4404 = vpop.f32.mrf.mxu0
        %v4405 = vadd.f32 %v4052, %v4404
        %v4406 = vpop.f32.mrf.mxu0
        %v4407 = vadd.f32 %v4054, %v4406
        %v4408 = vpop.f32.mrf.mxu0
        %v4409 = vadd.f32 %v4056, %v4408
        %v4410 = vpop.f32.mrf.mxu0
        %v4411 = vadd.f32 %v4058, %v4410
        %4412 = vmatprep.mubr.bf16.mxu0 %v3073
        %4413 = vmatmul.mubr.bf16.gmra.mxu0 %v1399
        %v4414 = vpop.f32.mrf.mxu0
        %v4415 = vadd.f32 %v4062, %v4414
        %v4416 = vpop.f32.mrf.mxu0
        %v4417 = vadd.f32 %v4064, %v4416
        %v4418 = vpop.f32.mrf.mxu0
        %v4419 = vadd.f32 %v4066, %v4418
        %v4420 = vpop.f32.mrf.mxu0
        %v4421 = vadd.f32 %v4068, %v4420
        %4422 = vmatprep.mubr.bf16.mxu0 %v3076
        %4423 = vmatmul.mubr.bf16.gmra.mxu0 %v1407
        %v4424 = vpop.f32.mrf.mxu0
        %v4425 = vadd.f32 %v4072, %v4424
        %v4426 = vpop.f32.mrf.mxu0
        %v4427 = vadd.f32 %v4074, %v4426
        %v4428 = vpop.f32.mrf.mxu0
        %v4429 = vadd.f32 %v4076, %v4428
        %v4430 = vpop.f32.mrf.mxu0
        %v4431 = vadd.f32 %v4078, %v4430
        %4432 = vmatprep.mubr.bf16.mxu0 %v3079
        %4433 = vmatmul.mubr.bf16.gmra.mxu0 %v1415
        %v4434 = vpop.f32.mrf.mxu0
        %v4435 = vadd.f32 %v4082, %v4434
        %v4436 = vpop.f32.mrf.mxu0
        %v4437 = vadd.f32 %v4084, %v4436
        %v4438 = vpop.f32.mrf.mxu0
        %v4439 = vadd.f32 %v4086, %v4438
        %v4440 = vpop.f32.mrf.mxu0
        %v4441 = vadd.f32 %v4088, %v4440
        %4442 = vmatprep.mubr.bf16.mxu0 %v3082
        %4443 = vmatmul.mubr.bf16.gmra.mxu0 %v1423
        %v4444 = vpop.f32.mrf.mxu0
        %v4445 = vadd.f32 %v4092, %v4444
        %v4446 = vpop.f32.mrf.mxu0
        %v4447 = vadd.f32 %v4094, %v4446
        %v4448 = vpop.f32.mrf.mxu0
        %v4449 = vadd.f32 %v4096, %v4448
        %v4450 = vpop.f32.mrf.mxu0
        %v4451 = vadd.f32 %v4098, %v4450
        %4452 = vmatprep.mubr.bf16.mxu0 %v3085
        %4453 = vmatmul.mubr.bf16.gmra.mxu0 %v1431
        %v4454 = vpop.f32.mrf.mxu0
        %v4455 = vadd.f32 %v4102, %v4454
        %v4456 = vpop.f32.mrf.mxu0
        %v4457 = vadd.f32 %v4104, %v4456
        %v4458 = vpop.f32.mrf.mxu0
        %v4459 = vadd.f32 %v4106, %v4458
        %v4460 = vpop.f32.mrf.mxu0
        %v4461 = vadd.f32 %v4108, %v4460
        %4462 = vmatprep.mubr.bf16.mxu0 %v3088
        %4463 = vmatmul.mubr.bf16.gmra.mxu0 %v1439
        %v4464 = vpop.f32.mrf.mxu0
        %v4465 = vadd.f32 %v4112, %v4464
        %v4466 = vpop.f32.mrf.mxu0
        %v4467 = vadd.f32 %v4114, %v4466
        %v4468 = vpop.f32.mrf.mxu0
        %v4469 = vadd.f32 %v4116, %v4468
        %v4470 = vpop.f32.mrf.mxu0
        %v4471 = vadd.f32 %v4118, %v4470
        %4472 = vmatprep.mubr.bf16.mxu0 %v3091
        %4473 = vmatmul.mubr.bf16.gmra.mxu0 %v1447
        %v4474 = vpop.f32.mrf.mxu0
        %v4475 = vadd.f32 %v4122, %v4474
        %v4476 = vpop.f32.mrf.mxu0
        %v4477 = vadd.f32 %v4124, %v4476
        %v4478 = vpop.f32.mrf.mxu0
        %v4479 = vadd.f32 %v4126, %v4478
        %v4480 = vpop.f32.mrf.mxu0
        %v4481 = vadd.f32 %v4128, %v4480
        %4482 = vmatprep.mubr.bf16.mxu0 %v3094
        %4483 = vmatmul.mubr.bf16.gmra.mxu0 %v1455
        %v4484 = vpop.f32.mrf.mxu0
        %v4485 = vadd.f32 %v4132, %v4484
        %v4486 = vpop.f32.mrf.mxu0
        %v4487 = vadd.f32 %v4134, %v4486
        %v4488 = vpop.f32.mrf.mxu0
        %v4489 = vadd.f32 %v4136, %v4488
        %v4490 = vpop.f32.mrf.mxu0
        %v4491 = vadd.f32 %v4138, %v4490
        %4492 = vmatprep.mubr.bf16.mxu0 %v3097
        %4493 = vmatmul.mubr.bf16.gmra.mxu0 %v1463
        %v4494 = vpop.f32.mrf.mxu0
        %v4495 = vadd.f32 %v4142, %v4494
        %v4496 = vpop.f32.mrf.mxu0
        %v4497 = vadd.f32 %v4144, %v4496
        %v4498 = vpop.f32.mrf.mxu0
        %v4499 = vadd.f32 %v4146, %v4498
        %v4500 = vpop.f32.mrf.mxu0
        %v4501 = vadd.f32 %v4148, %v4500
        %4502 = vmatprep.mubr.bf16.mxu0 %v3100
        %4503 = vmatmul.mubr.bf16.gmra.mxu0 %v1471
        %v4504 = vpop.f32.mrf.mxu0
        %v4505 = vadd.f32 %v4152, %v4504
        %v4506 = vpop.f32.mrf.mxu0
        %v4507 = vadd.f32 %v4154, %v4506
        %v4508 = vpop.f32.mrf.mxu0
        %v4509 = vadd.f32 %v4156, %v4508
        %v4510 = vpop.f32.mrf.mxu0
        %v4511 = vadd.f32 %v4158, %v4510
        %4512 = vmatprep.mubr.bf16.mxu0 %v3103
        %4513 = vmatmul.mubr.bf16.gmra.mxu0 %v1479
        %v4514 = vpop.f32.mrf.mxu0
        %v4515 = vadd.f32 %v4162, %v4514
        %v4516 = vpop.f32.mrf.mxu0
        %v4517 = vadd.f32 %v4164, %v4516
        %v4518 = vpop.f32.mrf.mxu0
        %v4519 = vadd.f32 %v4166, %v4518
        %v4520 = vpop.f32.mrf.mxu0
        %v4521 = vadd.f32 %v4168, %v4520
        %4522 = vmatprep.mubr.bf16.mxu0 %v3106
        %4523 = vmatmul.mubr.bf16.gmra.mxu0 %v1487
        %v4524 = vpop.f32.mrf.mxu0
        %v4525 = vadd.f32 %v4172, %v4524
        %v4526 = vpop.f32.mrf.mxu0
        %v4527 = vadd.f32 %v4174, %v4526
        %v4528 = vpop.f32.mrf.mxu0
        %v4529 = vadd.f32 %v4176, %v4528
        %v4530 = vpop.f32.mrf.mxu0
        %v4531 = vadd.f32 %v4178, %v4530
        %4532 = vdwg.mxu0
        %4533 = vmatprep.subr.bf16.mxu0 %v2542
        %4534 = vmatpush1.bf16.msra.mxu0 %v2541
        %4535 = vmatprep.subr.bf16.mxu0 %v2538
        %4536 = vmatpush1.bf16.msra.mxu0 %v2537
        %4537 = vmatprep.subr.bf16.mxu0 %v2534
        %4538 = vmatpush1.bf16.msra.mxu0 %v2533
        %4539 = vmatprep.subr.bf16.mxu0 %v2530
        %4540 = vmatpush1.bf16.msra.mxu0 %v2529
        %4541 = vmatprep.subr.bf16.mxu0 %v2526
        %4542 = vmatpush1.bf16.msra.mxu0 %v2525
        %4543 = vmatprep.subr.bf16.mxu0 %v2522
        %4544 = vmatpush1.bf16.msra.mxu0 %v2521
        %4545 = vmatprep.subr.bf16.mxu0 %v2518
        %4546 = vmatpush1.bf16.msra.mxu0 %v2517
        %4547 = vmatprep.subr.bf16.mxu0 %v2514
        %4548 = vmatpush1.bf16.msra.mxu0 %v2513
        %4549 = vmatprep.subr.bf16.mxu0 %v2574
        %4550 = vmatpush2.bf16.msra.mxu0 %v2573
        %4551 = vmatprep.subr.bf16.mxu0 %v2570
        %4552 = vmatpush2.bf16.msra.mxu0 %v2569
        %4553 = vmatprep.subr.bf16.mxu0 %v2566
        %4554 = vmatpush2.bf16.msra.mxu0 %v2565
        %4555 = vmatprep.subr.bf16.mxu0 %v2562
        %4556 = vmatpush2.bf16.msra.mxu0 %v2561
        %4557 = vmatprep.subr.bf16.mxu0 %v2558
        %4558 = vmatpush2.bf16.msra.mxu0 %v2557
        %4559 = vmatprep.subr.bf16.mxu0 %v2554
        %4560 = vmatpush2.bf16.msra.mxu0 %v2553
        %4561 = vmatprep.subr.bf16.mxu0 %v2550
        %4562 = vmatpush2.bf16.msra.mxu0 %v2549
        %4563 = vmatprep.subr.bf16.mxu0 %v2546
        %4564 = vmatpush2.bf16.msra.mxu0 %v2545
        %4565 = vmatprep.mubr.bf16.mxu0 %v1234
        %4566 = vmatmul.mubr.bf16.gmra.mxu0 %v1233
        %v4567 = vpop.f32.mrf.mxu0
        %v4568 = vadd.f32 %v1752, %v4567
        %v4569 = vpop.f32.mrf.mxu0
        %v4570 = vadd.f32 %v1756, %v4569
        %v4571 = vpop.f32.mrf.mxu0
        %v4572 = vadd.f32 %v1752, %v4571
        %v4573 = vpop.f32.mrf.mxu0
        %v4574 = vadd.f32 %v1756, %v4573
        %4575 = vmatprep.mubr.bf16.mxu0 %v1242
        %4576 = vmatmul.mubr.bf16.gmra.mxu0 %v1241
        %v4577 = vpop.f32.mrf.mxu0
        %v4578 = vadd.f32 %v1752, %v4577
        %v4579 = vpop.f32.mrf.mxu0
        %v4580 = vadd.f32 %v1756, %v4579
        %v4581 = vpop.f32.mrf.mxu0
        %v4582 = vadd.f32 %v1752, %v4581
        %v4583 = vpop.f32.mrf.mxu0
        %v4584 = vadd.f32 %v1756, %v4583
        %4585 = vmatprep.mubr.bf16.mxu0 %v1250
        %4586 = vmatmul.mubr.bf16.gmra.mxu0 %v1249
        %v4587 = vpop.f32.mrf.mxu0
        %v4588 = vadd.f32 %v1752, %v4587
        %v4589 = vpop.f32.mrf.mxu0
        %v4590 = vadd.f32 %v1756, %v4589
        %v4591 = vpop.f32.mrf.mxu0
        %v4592 = vadd.f32 %v1752, %v4591
        %v4593 = vpop.f32.mrf.mxu0
        %v4594 = vadd.f32 %v1756, %v4593
        %4595 = vmatprep.mubr.bf16.mxu0 %v1258
        %4596 = vmatmul.mubr.bf16.gmra.mxu0 %v1257
        %v4597 = vpop.f32.mrf.mxu0
        %v4598 = vadd.f32 %v1752, %v4597
        %v4599 = vpop.f32.mrf.mxu0
        %v4600 = vadd.f32 %v1756, %v4599
        %v4601 = vpop.f32.mrf.mxu0
        %v4602 = vadd.f32 %v1752, %v4601
        %v4603 = vpop.f32.mrf.mxu0
        %v4604 = vadd.f32 %v1756, %v4603
        %4605 = vmatprep.mubr.bf16.mxu0 %v1266
        %4606 = vmatmul.mubr.bf16.gmra.mxu0 %v1265
        %v4607 = vpop.f32.mrf.mxu0
        %v4608 = vadd.f32 %v1752, %v4607
        %v4609 = vpop.f32.mrf.mxu0
        %v4610 = vadd.f32 %v1756, %v4609
        %v4611 = vpop.f32.mrf.mxu0
        %v4612 = vadd.f32 %v1752, %v4611
        %v4613 = vpop.f32.mrf.mxu0
        %v4614 = vadd.f32 %v1756, %v4613
        %4615 = vmatprep.mubr.bf16.mxu0 %v1274
        %4616 = vmatmul.mubr.bf16.gmra.mxu0 %v1273
        %v4617 = vpop.f32.mrf.mxu0
        %v4618 = vadd.f32 %v1752, %v4617
        %v4619 = vpop.f32.mrf.mxu0
        %v4620 = vadd.f32 %v1756, %v4619
        %v4621 = vpop.f32.mrf.mxu0
        %v4622 = vadd.f32 %v1752, %v4621
        %v4623 = vpop.f32.mrf.mxu0
        %v4624 = vadd.f32 %v1756, %v4623
        %4625 = vmatprep.mubr.bf16.mxu0 %v1282
        %4626 = vmatmul.mubr.bf16.gmra.mxu0 %v1281
        %v4627 = vpop.f32.mrf.mxu0
        %v4628 = vadd.f32 %v1752, %v4627
        %v4629 = vpop.f32.mrf.mxu0
        %v4630 = vadd.f32 %v1756, %v4629
        %v4631 = vpop.f32.mrf.mxu0
        %v4632 = vadd.f32 %v1752, %v4631
        %v4633 = vpop.f32.mrf.mxu0
        %v4634 = vadd.f32 %v1756, %v4633
        %4635 = vmatprep.mubr.bf16.mxu0 %v1290
        %4636 = vmatmul.mubr.bf16.gmra.mxu0 %v1289
        %v4637 = vpop.f32.mrf.mxu0
        %v4638 = vadd.f32 %v1752, %v4637
        %v4639 = vpop.f32.mrf.mxu0
        %v4640 = vadd.f32 %v1756, %v4639
        %v4641 = vpop.f32.mrf.mxu0
        %v4642 = vadd.f32 %v1752, %v4641
        %v4643 = vpop.f32.mrf.mxu0
        %v4644 = vadd.f32 %v1756, %v4643
        %4645 = vmatprep.mubr.bf16.mxu0 %v1298
        %4646 = vmatmul.mubr.bf16.gmra.mxu0 %v1297
        %v4647 = vpop.f32.mrf.mxu0
        %v4648 = vadd.f32 %v1752, %v4647
        %v4649 = vpop.f32.mrf.mxu0
        %v4650 = vadd.f32 %v1756, %v4649
        %v4651 = vpop.f32.mrf.mxu0
        %v4652 = vadd.f32 %v1752, %v4651
        %v4653 = vpop.f32.mrf.mxu0
        %v4654 = vadd.f32 %v1756, %v4653
        %4655 = vmatprep.mubr.bf16.mxu0 %v1306
        %4656 = vmatmul.mubr.bf16.gmra.mxu0 %v1305
        %v4657 = vpop.f32.mrf.mxu0
        %v4658 = vadd.f32 %v1752, %v4657
        %v4659 = vpop.f32.mrf.mxu0
        %v4660 = vadd.f32 %v1756, %v4659
        %v4661 = vpop.f32.mrf.mxu0
        %v4662 = vadd.f32 %v1752, %v4661
        %v4663 = vpop.f32.mrf.mxu0
        %v4664 = vadd.f32 %v1756, %v4663
        %4665 = vmatprep.mubr.bf16.mxu0 %v1314
        %4666 = vmatmul.mubr.bf16.gmra.mxu0 %v1313
        %v4667 = vpop.f32.mrf.mxu0
        %v4668 = vadd.f32 %v1752, %v4667
        %v4669 = vpop.f32.mrf.mxu0
        %v4670 = vadd.f32 %v1756, %v4669
        %v4671 = vpop.f32.mrf.mxu0
        %v4672 = vadd.f32 %v1752, %v4671
        %v4673 = vpop.f32.mrf.mxu0
        %v4674 = vadd.f32 %v1756, %v4673
        %4675 = vmatprep.mubr.bf16.mxu0 %v1322
        %4676 = vmatmul.mubr.bf16.gmra.mxu0 %v1321
        %v4677 = vpop.f32.mrf.mxu0
        %v4678 = vadd.f32 %v1752, %v4677
        %v4679 = vpop.f32.mrf.mxu0
        %v4680 = vadd.f32 %v1756, %v4679
        %v4681 = vpop.f32.mrf.mxu0
        %v4682 = vadd.f32 %v1752, %v4681
        %v4683 = vpop.f32.mrf.mxu0
        %v4684 = vadd.f32 %v1756, %v4683
        %4685 = vmatprep.mubr.bf16.mxu0 %v1330
        %4686 = vmatmul.mubr.bf16.gmra.mxu0 %v1329
        %v4687 = vpop.f32.mrf.mxu0
        %v4688 = vadd.f32 %v1752, %v4687
        %v4689 = vpop.f32.mrf.mxu0
        %v4690 = vadd.f32 %v1756, %v4689
        %v4691 = vpop.f32.mrf.mxu0
        %v4692 = vadd.f32 %v1752, %v4691
        %v4693 = vpop.f32.mrf.mxu0
        %v4694 = vadd.f32 %v1756, %v4693
        %4695 = vmatprep.mubr.bf16.mxu0 %v1338
        %4696 = vmatmul.mubr.bf16.gmra.mxu0 %v1337
        %v4697 = vpop.f32.mrf.mxu0
        %v4698 = vadd.f32 %v1752, %v4697
        %v4699 = vpop.f32.mrf.mxu0
        %v4700 = vadd.f32 %v1756, %v4699
        %v4701 = vpop.f32.mrf.mxu0
        %v4702 = vadd.f32 %v1752, %v4701
        %v4703 = vpop.f32.mrf.mxu0
        %v4704 = vadd.f32 %v1756, %v4703
        %4705 = vmatprep.mubr.bf16.mxu0 %v1346
        %4706 = vmatmul.mubr.bf16.gmra.mxu0 %v1345
        %v4707 = vpop.f32.mrf.mxu0
        %v4708 = vadd.f32 %v1752, %v4707
        %v4709 = vpop.f32.mrf.mxu0
        %v4710 = vadd.f32 %v1756, %v4709
        %v4711 = vpop.f32.mrf.mxu0
        %v4712 = vadd.f32 %v1752, %v4711
        %v4713 = vpop.f32.mrf.mxu0
        %v4714 = vadd.f32 %v1756, %v4713
        %4715 = vmatprep.mubr.bf16.mxu0 %v1354
        %4716 = vmatmul.mubr.bf16.gmra.mxu0 %v1353
        %v4717 = vpop.f32.mrf.mxu0
        %v4718 = vadd.f32 %v1752, %v4717
        %v4719 = vpop.f32.mrf.mxu0
        %v4720 = vadd.f32 %v1756, %v4719
        %v4721 = vpop.f32.mrf.mxu0
        %v4722 = vadd.f32 %v1752, %v4721
        %v4723 = vpop.f32.mrf.mxu0
        %v4724 = vadd.f32 %v1756, %v4723
        %4725 = vmatprep.mubr.bf16.mxu0 %v1362
        %4726 = vmatmul.mubr.bf16.gmra.mxu0 %v1361
        %v4727 = vpop.f32.mrf.mxu0
        %v4728 = vadd.f32 %v1752, %v4727
        %v4729 = vpop.f32.mrf.mxu0
        %v4730 = vadd.f32 %v1756, %v4729
        %v4731 = vpop.f32.mrf.mxu0
        %v4732 = vadd.f32 %v1752, %v4731
        %v4733 = vpop.f32.mrf.mxu0
        %v4734 = vadd.f32 %v1756, %v4733
        %4735 = vmatprep.mubr.bf16.mxu0 %v1370
        %4736 = vmatmul.mubr.bf16.gmra.mxu0 %v1369
        %v4737 = vpop.f32.mrf.mxu0
        %v4738 = vadd.f32 %v1752, %v4737
        %v4739 = vpop.f32.mrf.mxu0
        %v4740 = vadd.f32 %v1756, %v4739
        %v4741 = vpop.f32.mrf.mxu0
        %v4742 = vadd.f32 %v1752, %v4741
        %v4743 = vpop.f32.mrf.mxu0
        %v4744 = vadd.f32 %v1756, %v4743
        %4745 = vmatprep.mubr.bf16.mxu0 %v1378
        %4746 = vmatmul.mubr.bf16.gmra.mxu0 %v1377
        %v4747 = vpop.f32.mrf.mxu0
        %v4748 = vadd.f32 %v1752, %v4747
        %v4749 = vpop.f32.mrf.mxu0
        %v4750 = vadd.f32 %v1756, %v4749
        %v4751 = vpop.f32.mrf.mxu0
        %v4752 = vadd.f32 %v1752, %v4751
        %v4753 = vpop.f32.mrf.mxu0
        %v4754 = vadd.f32 %v1756, %v4753
        %4755 = vmatprep.mubr.bf16.mxu0 %v1386
        %4756 = vmatmul.mubr.bf16.gmra.mxu0 %v1385
        %v4757 = vpop.f32.mrf.mxu0
        %v4758 = vadd.f32 %v1752, %v4757
        %v4759 = vpop.f32.mrf.mxu0
        %v4760 = vadd.f32 %v1756, %v4759
        %v4761 = vpop.f32.mrf.mxu0
        %v4762 = vadd.f32 %v1752, %v4761
        %v4763 = vpop.f32.mrf.mxu0
        %v4764 = vadd.f32 %v1756, %v4763
        %4765 = vmatprep.mubr.bf16.mxu0 %v1394
        %4766 = vmatmul.mubr.bf16.gmra.mxu0 %v1393
        %v4767 = vpop.f32.mrf.mxu0
        %v4768 = vadd.f32 %v1752, %v4767
        %v4769 = vpop.f32.mrf.mxu0
        %v4770 = vadd.f32 %v1756, %v4769
        %v4771 = vpop.f32.mrf.mxu0
        %v4772 = vadd.f32 %v1752, %v4771
        %v4773 = vpop.f32.mrf.mxu0
        %v4774 = vadd.f32 %v1756, %v4773
        %4775 = vmatprep.mubr.bf16.mxu0 %v1402
        %4776 = vmatmul.mubr.bf16.gmra.mxu0 %v1401
        %v4777 = vpop.f32.mrf.mxu0
        %v4778 = vadd.f32 %v1752, %v4777
        %v4779 = vpop.f32.mrf.mxu0
        %v4780 = vadd.f32 %v1756, %v4779
        %v4781 = vpop.f32.mrf.mxu0
        %v4782 = vadd.f32 %v1752, %v4781
        %v4783 = vpop.f32.mrf.mxu0
        %v4784 = vadd.f32 %v1756, %v4783
        %4785 = vmatprep.mubr.bf16.mxu0 %v1410
        %4786 = vmatmul.mubr.bf16.gmra.mxu0 %v1409
        %v4787 = vpop.f32.mrf.mxu0
        %v4788 = vadd.f32 %v1752, %v4787
        %v4789 = vpop.f32.mrf.mxu0
        %v4790 = vadd.f32 %v1756, %v4789
        %v4791 = vpop.f32.mrf.mxu0
        %v4792 = vadd.f32 %v1752, %v4791
        %v4793 = vpop.f32.mrf.mxu0
        %v4794 = vadd.f32 %v1756, %v4793
        %4795 = vmatprep.mubr.bf16.mxu0 %v1418
        %4796 = vmatmul.mubr.bf16.gmra.mxu0 %v1417
        %v4797 = vpop.f32.mrf.mxu0
        %v4798 = vadd.f32 %v1752, %v4797
        %v4799 = vpop.f32.mrf.mxu0
        %v4800 = vadd.f32 %v1756, %v4799
        %v4801 = vpop.f32.mrf.mxu0
        %v4802 = vadd.f32 %v1752, %v4801
        %v4803 = vpop.f32.mrf.mxu0
        %v4804 = vadd.f32 %v1756, %v4803
        %4805 = vmatprep.mubr.bf16.mxu0 %v1426
        %4806 = vmatmul.mubr.bf16.gmra.mxu0 %v1425
        %v4807 = vpop.f32.mrf.mxu0
        %v4808 = vadd.f32 %v1752, %v4807
        %v4809 = vpop.f32.mrf.mxu0
        %v4810 = vadd.f32 %v1756, %v4809
        %v4811 = vpop.f32.mrf.mxu0
        %v4812 = vadd.f32 %v1752, %v4811
        %v4813 = vpop.f32.mrf.mxu0
        %v4814 = vadd.f32 %v1756, %v4813
        %4815 = vmatprep.mubr.bf16.mxu0 %v1434
        %4816 = vmatmul.mubr.bf16.gmra.mxu0 %v1433
        %v4817 = vpop.f32.mrf.mxu0
        %v4818 = vadd.f32 %v1752, %v4817
        %v4819 = vpop.f32.mrf.mxu0
        %v4820 = vadd.f32 %v1756, %v4819
        %v4821 = vpop.f32.mrf.mxu0
        %v4822 = vadd.f32 %v1752, %v4821
        %v4823 = vpop.f32.mrf.mxu0
        %v4824 = vadd.f32 %v1756, %v4823
        %4825 = vmatprep.mubr.bf16.mxu0 %v1442
        %4826 = vmatmul.mubr.bf16.gmra.mxu0 %v1441
        %v4827 = vpop.f32.mrf.mxu0
        %v4828 = vadd.f32 %v1752, %v4827
        %v4829 = vpop.f32.mrf.mxu0
        %v4830 = vadd.f32 %v1756, %v4829
        %v4831 = vpop.f32.mrf.mxu0
        %v4832 = vadd.f32 %v1752, %v4831
        %v4833 = vpop.f32.mrf.mxu0
        %v4834 = vadd.f32 %v1756, %v4833
        %4835 = vmatprep.mubr.bf16.mxu0 %v1450
        %4836 = vmatmul.mubr.bf16.gmra.mxu0 %v1449
        %v4837 = vpop.f32.mrf.mxu0
        %v4838 = vadd.f32 %v1752, %v4837
        %v4839 = vpop.f32.mrf.mxu0
        %v4840 = vadd.f32 %v1756, %v4839
        %v4841 = vpop.f32.mrf.mxu0
        %v4842 = vadd.f32 %v1752, %v4841
        %v4843 = vpop.f32.mrf.mxu0
        %v4844 = vadd.f32 %v1756, %v4843
        %4845 = vmatprep.mubr.bf16.mxu0 %v1458
        %4846 = vmatmul.mubr.bf16.gmra.mxu0 %v1457
        %v4847 = vpop.f32.mrf.mxu0
        %v4848 = vadd.f32 %v1752, %v4847
        %v4849 = vpop.f32.mrf.mxu0
        %v4850 = vadd.f32 %v1756, %v4849
        %v4851 = vpop.f32.mrf.mxu0
        %v4852 = vadd.f32 %v1752, %v4851
        %v4853 = vpop.f32.mrf.mxu0
        %v4854 = vadd.f32 %v1756, %v4853
        %4855 = vmatprep.mubr.bf16.mxu0 %v1466
        %4856 = vmatmul.mubr.bf16.gmra.mxu0 %v1465
        %v4857 = vpop.f32.mrf.mxu0
        %v4858 = vadd.f32 %v1752, %v4857
        %v4859 = vpop.f32.mrf.mxu0
        %v4860 = vadd.f32 %v1756, %v4859
        %v4861 = vpop.f32.mrf.mxu0
        %v4862 = vadd.f32 %v1752, %v4861
        %v4863 = vpop.f32.mrf.mxu0
        %v4864 = vadd.f32 %v1756, %v4863
        %4865 = vmatprep.mubr.bf16.mxu0 %v1474
        %4866 = vmatmul.mubr.bf16.gmra.mxu0 %v1473
        %v4867 = vpop.f32.mrf.mxu0
        %v4868 = vadd.f32 %v1752, %v4867
        %v4869 = vpop.f32.mrf.mxu0
        %v4870 = vadd.f32 %v1756, %v4869
        %v4871 = vpop.f32.mrf.mxu0
        %v4872 = vadd.f32 %v1752, %v4871
        %v4873 = vpop.f32.mrf.mxu0
        %v4874 = vadd.f32 %v1756, %v4873
        %4875 = vmatprep.mubr.bf16.mxu0 %v1482
        %4876 = vmatmul.mubr.bf16.gmra.mxu0 %v1481
        %v4877 = vpop.f32.mrf.mxu0
        %v4878 = vadd.f32 %v1752, %v4877
        %v4879 = vpop.f32.mrf.mxu0
        %v4880 = vadd.f32 %v1756, %v4879
        %v4881 = vpop.f32.mrf.mxu0
        %v4882 = vadd.f32 %v1752, %v4881
        %v4883 = vpop.f32.mrf.mxu0
        %v4884 = vadd.f32 %v1756, %v4883
        %4885 = vdwg.mxu0
        %4886 = vmatprep.subr.bf16.mxu0 %v2606
        %4887 = vmatpush1.bf16.msra.mxu0 %v2605
        %4888 = vmatprep.subr.bf16.mxu0 %v2602
        %4889 = vmatpush1.bf16.msra.mxu0 %v2601
        %4890 = vmatprep.subr.bf16.mxu0 %v2598
        %4891 = vmatpush1.bf16.msra.mxu0 %v2597
        %4892 = vmatprep.subr.bf16.mxu0 %v2594
        %4893 = vmatpush1.bf16.msra.mxu0 %v2593
        %4894 = vmatprep.subr.bf16.mxu0 %v2590
        %4895 = vmatpush1.bf16.msra.mxu0 %v2589
        %4896 = vmatprep.subr.bf16.mxu0 %v2586
        %4897 = vmatpush1.bf16.msra.mxu0 %v2585
        %4898 = vmatprep.subr.bf16.mxu0 %v2582
        %4899 = vmatpush1.bf16.msra.mxu0 %v2581
        %4900 = vmatprep.subr.bf16.mxu0 %v2578
        %4901 = vmatpush1.bf16.msra.mxu0 %v2577
        %4902 = vmatprep.subr.bf16.mxu0 %v2638
        %4903 = vmatpush2.bf16.msra.mxu0 %v2637
        %4904 = vmatprep.subr.bf16.mxu0 %v2634
        %4905 = vmatpush2.bf16.msra.mxu0 %v2633
        %4906 = vmatprep.subr.bf16.mxu0 %v2630
        %4907 = vmatpush2.bf16.msra.mxu0 %v2629
        %4908 = vmatprep.subr.bf16.mxu0 %v2626
        %4909 = vmatpush2.bf16.msra.mxu0 %v2625
        %4910 = vmatprep.subr.bf16.mxu0 %v2622
        %4911 = vmatpush2.bf16.msra.mxu0 %v2621
        %4912 = vmatprep.subr.bf16.mxu0 %v2618
        %4913 = vmatpush2.bf16.msra.mxu0 %v2617
        %4914 = vmatprep.subr.bf16.mxu0 %v2614
        %4915 = vmatpush2.bf16.msra.mxu0 %v2613
        %4916 = vmatprep.subr.bf16.mxu0 %v2610
        %4917 = vmatpush2.bf16.msra.mxu0 %v2609
        %4918 = vmatprep.mubr.bf16.mxu0 %v1236
        %4919 = vmatmul.mubr.bf16.gmra.mxu0 %v1235
        %v4920 = vpop.f32.mrf.mxu0
        %v4921 = vadd.f32 %v4568, %v4920
        %v4922 = vpop.f32.mrf.mxu0
        %v4923 = vadd.f32 %v4570, %v4922
        %v4924 = vpop.f32.mrf.mxu0
        %v4925 = vadd.f32 %v4572, %v4924
        %v4926 = vpop.f32.mrf.mxu0
        %v4927 = vadd.f32 %v4574, %v4926
        %4928 = vmatprep.mubr.bf16.mxu0 %v1244
        %4929 = vmatmul.mubr.bf16.gmra.mxu0 %v1243
        %v4930 = vpop.f32.mrf.mxu0
        %v4931 = vadd.f32 %v4578, %v4930
        %v4932 = vpop.f32.mrf.mxu0
        %v4933 = vadd.f32 %v4580, %v4932
        %v4934 = vpop.f32.mrf.mxu0
        %v4935 = vadd.f32 %v4582, %v4934
        %v4936 = vpop.f32.mrf.mxu0
        %v4937 = vadd.f32 %v4584, %v4936
        %4938 = vmatprep.mubr.bf16.mxu0 %v1252
        %4939 = vmatmul.mubr.bf16.gmra.mxu0 %v1251
        %v4940 = vpop.f32.mrf.mxu0
        %v4941 = vadd.f32 %v4588, %v4940
        %v4942 = vpop.f32.mrf.mxu0
        %v4943 = vadd.f32 %v4590, %v4942
        %v4944 = vpop.f32.mrf.mxu0
        %v4945 = vadd.f32 %v4592, %v4944
        %v4946 = vpop.f32.mrf.mxu0
        %v4947 = vadd.f32 %v4594, %v4946
        %4948 = vmatprep.mubr.bf16.mxu0 %v1260
        %4949 = vmatmul.mubr.bf16.gmra.mxu0 %v1259
        %v4950 = vpop.f32.mrf.mxu0
        %v4951 = vadd.f32 %v4598, %v4950
        %v4952 = vpop.f32.mrf.mxu0
        %v4953 = vadd.f32 %v4600, %v4952
        %v4954 = vpop.f32.mrf.mxu0
        %v4955 = vadd.f32 %v4602, %v4954
        %v4956 = vpop.f32.mrf.mxu0
        %v4957 = vadd.f32 %v4604, %v4956
        %4958 = vmatprep.mubr.bf16.mxu0 %v1268
        %4959 = vmatmul.mubr.bf16.gmra.mxu0 %v1267
        %v4960 = vpop.f32.mrf.mxu0
        %v4961 = vadd.f32 %v4608, %v4960
        %v4962 = vpop.f32.mrf.mxu0
        %v4963 = vadd.f32 %v4610, %v4962
        %v4964 = vpop.f32.mrf.mxu0
        %v4965 = vadd.f32 %v4612, %v4964
        %v4966 = vpop.f32.mrf.mxu0
        %v4967 = vadd.f32 %v4614, %v4966
        %4968 = vmatprep.mubr.bf16.mxu0 %v1276
        %4969 = vmatmul.mubr.bf16.gmra.mxu0 %v1275
        %v4970 = vpop.f32.mrf.mxu0
        %v4971 = vadd.f32 %v4618, %v4970
        %v4972 = vpop.f32.mrf.mxu0
        %v4973 = vadd.f32 %v4620, %v4972
        %v4974 = vpop.f32.mrf.mxu0
        %v4975 = vadd.f32 %v4622, %v4974
        %v4976 = vpop.f32.mrf.mxu0
        %v4977 = vadd.f32 %v4624, %v4976
        %4978 = vmatprep.mubr.bf16.mxu0 %v1284
        %4979 = vmatmul.mubr.bf16.gmra.mxu0 %v1283
        %v4980 = vpop.f32.mrf.mxu0
        %v4981 = vadd.f32 %v4628, %v4980
        %v4982 = vpop.f32.mrf.mxu0
        %v4983 = vadd.f32 %v4630, %v4982
        %v4984 = vpop.f32.mrf.mxu0
        %v4985 = vadd.f32 %v4632, %v4984
        %v4986 = vpop.f32.mrf.mxu0
        %v4987 = vadd.f32 %v4634, %v4986
        %4988 = vmatprep.mubr.bf16.mxu0 %v1292
        %4989 = vmatmul.mubr.bf16.gmra.mxu0 %v1291
        %v4990 = vpop.f32.mrf.mxu0
        %v4991 = vadd.f32 %v4638, %v4990
        %v4992 = vpop.f32.mrf.mxu0
        %v4993 = vadd.f32 %v4640, %v4992
        %v4994 = vpop.f32.mrf.mxu0
        %v4995 = vadd.f32 %v4642, %v4994
        %v4996 = vpop.f32.mrf.mxu0
        %v4997 = vadd.f32 %v4644, %v4996
        %4998 = vmatprep.mubr.bf16.mxu0 %v1300
        %4999 = vmatmul.mubr.bf16.gmra.mxu0 %v1299
        %v5000 = vpop.f32.mrf.mxu0
        %v5001 = vadd.f32 %v4648, %v5000
        %v5002 = vpop.f32.mrf.mxu0
        %v5003 = vadd.f32 %v4650, %v5002
        %v5004 = vpop.f32.mrf.mxu0
        %v5005 = vadd.f32 %v4652, %v5004
        %v5006 = vpop.f32.mrf.mxu0
        %v5007 = vadd.f32 %v4654, %v5006
        %5008 = vmatprep.mubr.bf16.mxu0 %v1308
        %5009 = vmatmul.mubr.bf16.gmra.mxu0 %v1307
        %v5010 = vpop.f32.mrf.mxu0
        %v5011 = vadd.f32 %v4658, %v5010
        %v5012 = vpop.f32.mrf.mxu0
        %v5013 = vadd.f32 %v4660, %v5012
        %v5014 = vpop.f32.mrf.mxu0
        %v5015 = vadd.f32 %v4662, %v5014
        %v5016 = vpop.f32.mrf.mxu0
        %v5017 = vadd.f32 %v4664, %v5016
        %5018 = vmatprep.mubr.bf16.mxu0 %v1316
        %5019 = vmatmul.mubr.bf16.gmra.mxu0 %v1315
        %v5020 = vpop.f32.mrf.mxu0
        %v5021 = vadd.f32 %v4668, %v5020
        %v5022 = vpop.f32.mrf.mxu0
        %v5023 = vadd.f32 %v4670, %v5022
        %v5024 = vpop.f32.mrf.mxu0
        %v5025 = vadd.f32 %v4672, %v5024
        %v5026 = vpop.f32.mrf.mxu0
        %v5027 = vadd.f32 %v4674, %v5026
        %5028 = vmatprep.mubr.bf16.mxu0 %v1324
        %5029 = vmatmul.mubr.bf16.gmra.mxu0 %v1323
        %v5030 = vpop.f32.mrf.mxu0
        %v5031 = vadd.f32 %v4678, %v5030
        %v5032 = vpop.f32.mrf.mxu0
        %v5033 = vadd.f32 %v4680, %v5032
        %v5034 = vpop.f32.mrf.mxu0
        %v5035 = vadd.f32 %v4682, %v5034
        %v5036 = vpop.f32.mrf.mxu0
        %v5037 = vadd.f32 %v4684, %v5036
        %5038 = vmatprep.mubr.bf16.mxu0 %v1332
        %5039 = vmatmul.mubr.bf16.gmra.mxu0 %v1331
        %v5040 = vpop.f32.mrf.mxu0
        %v5041 = vadd.f32 %v4688, %v5040
        %v5042 = vpop.f32.mrf.mxu0
        %v5043 = vadd.f32 %v4690, %v5042
        %v5044 = vpop.f32.mrf.mxu0
        %v5045 = vadd.f32 %v4692, %v5044
        %v5046 = vpop.f32.mrf.mxu0
        %v5047 = vadd.f32 %v4694, %v5046
        %5048 = vmatprep.mubr.bf16.mxu0 %v1340
        %5049 = vmatmul.mubr.bf16.gmra.mxu0 %v1339
        %v5050 = vpop.f32.mrf.mxu0
        %v5051 = vadd.f32 %v4698, %v5050
        %v5052 = vpop.f32.mrf.mxu0
        %v5053 = vadd.f32 %v4700, %v5052
        %v5054 = vpop.f32.mrf.mxu0
        %v5055 = vadd.f32 %v4702, %v5054
        %v5056 = vpop.f32.mrf.mxu0
        %v5057 = vadd.f32 %v4704, %v5056
        %5058 = vmatprep.mubr.bf16.mxu0 %v1348
        %5059 = vmatmul.mubr.bf16.gmra.mxu0 %v1347
        %v5060 = vpop.f32.mrf.mxu0
        %v5061 = vadd.f32 %v4708, %v5060
        %v5062 = vpop.f32.mrf.mxu0
        %v5063 = vadd.f32 %v4710, %v5062
        %v5064 = vpop.f32.mrf.mxu0
        %v5065 = vadd.f32 %v4712, %v5064
        %v5066 = vpop.f32.mrf.mxu0
        %v5067 = vadd.f32 %v4714, %v5066
        %5068 = vmatprep.mubr.bf16.mxu0 %v1356
        %5069 = vmatmul.mubr.bf16.gmra.mxu0 %v1355
        %v5070 = vpop.f32.mrf.mxu0
        %v5071 = vadd.f32 %v4718, %v5070
        %v5072 = vpop.f32.mrf.mxu0
        %v5073 = vadd.f32 %v4720, %v5072
        %v5074 = vpop.f32.mrf.mxu0
        %v5075 = vadd.f32 %v4722, %v5074
        %v5076 = vpop.f32.mrf.mxu0
        %v5077 = vadd.f32 %v4724, %v5076
        %5078 = vmatprep.mubr.bf16.mxu0 %v1364
        %5079 = vmatmul.mubr.bf16.gmra.mxu0 %v1363
        %v5080 = vpop.f32.mrf.mxu0
        %v5081 = vadd.f32 %v4728, %v5080
        %v5082 = vpop.f32.mrf.mxu0
        %v5083 = vadd.f32 %v4730, %v5082
        %v5084 = vpop.f32.mrf.mxu0
        %v5085 = vadd.f32 %v4732, %v5084
        %v5086 = vpop.f32.mrf.mxu0
        %v5087 = vadd.f32 %v4734, %v5086
        %5088 = vmatprep.mubr.bf16.mxu0 %v1372
        %5089 = vmatmul.mubr.bf16.gmra.mxu0 %v1371
        %v5090 = vpop.f32.mrf.mxu0
        %v5091 = vadd.f32 %v4738, %v5090
        %v5092 = vpop.f32.mrf.mxu0
        %v5093 = vadd.f32 %v4740, %v5092
        %v5094 = vpop.f32.mrf.mxu0
        %v5095 = vadd.f32 %v4742, %v5094
        %v5096 = vpop.f32.mrf.mxu0
        %v5097 = vadd.f32 %v4744, %v5096
        %5098 = vmatprep.mubr.bf16.mxu0 %v1380
        %5099 = vmatmul.mubr.bf16.gmra.mxu0 %v1379
        %v5100 = vpop.f32.mrf.mxu0
        %v5101 = vadd.f32 %v4748, %v5100
        %v5102 = vpop.f32.mrf.mxu0
        %v5103 = vadd.f32 %v4750, %v5102
        %v5104 = vpop.f32.mrf.mxu0
        %v5105 = vadd.f32 %v4752, %v5104
        %v5106 = vpop.f32.mrf.mxu0
        %v5107 = vadd.f32 %v4754, %v5106
        %5108 = vmatprep.mubr.bf16.mxu0 %v1388
        %5109 = vmatmul.mubr.bf16.gmra.mxu0 %v1387
        %v5110 = vpop.f32.mrf.mxu0
        %v5111 = vadd.f32 %v4758, %v5110
        %v5112 = vpop.f32.mrf.mxu0
        %v5113 = vadd.f32 %v4760, %v5112
        %v5114 = vpop.f32.mrf.mxu0
        %v5115 = vadd.f32 %v4762, %v5114
        %v5116 = vpop.f32.mrf.mxu0
        %v5117 = vadd.f32 %v4764, %v5116
        %5118 = vmatprep.mubr.bf16.mxu0 %v1396
        %5119 = vmatmul.mubr.bf16.gmra.mxu0 %v1395
        %v5120 = vpop.f32.mrf.mxu0
        %v5121 = vadd.f32 %v4768, %v5120
        %v5122 = vpop.f32.mrf.mxu0
        %v5123 = vadd.f32 %v4770, %v5122
        %v5124 = vpop.f32.mrf.mxu0
        %v5125 = vadd.f32 %v4772, %v5124
        %v5126 = vpop.f32.mrf.mxu0
        %v5127 = vadd.f32 %v4774, %v5126
        %5128 = vmatprep.mubr.bf16.mxu0 %v1404
        %5129 = vmatmul.mubr.bf16.gmra.mxu0 %v1403
        %v5130 = vpop.f32.mrf.mxu0
        %v5131 = vadd.f32 %v4778, %v5130
        %v5132 = vpop.f32.mrf.mxu0
        %v5133 = vadd.f32 %v4780, %v5132
        %v5134 = vpop.f32.mrf.mxu0
        %v5135 = vadd.f32 %v4782, %v5134
        %v5136 = vpop.f32.mrf.mxu0
        %v5137 = vadd.f32 %v4784, %v5136
        %5138 = vmatprep.mubr.bf16.mxu0 %v1412
        %5139 = vmatmul.mubr.bf16.gmra.mxu0 %v1411
        %v5140 = vpop.f32.mrf.mxu0
        %v5141 = vadd.f32 %v4788, %v5140
        %v5142 = vpop.f32.mrf.mxu0
        %v5143 = vadd.f32 %v4790, %v5142
        %v5144 = vpop.f32.mrf.mxu0
        %v5145 = vadd.f32 %v4792, %v5144
        %v5146 = vpop.f32.mrf.mxu0
        %v5147 = vadd.f32 %v4794, %v5146
        %5148 = vmatprep.mubr.bf16.mxu0 %v1420
        %5149 = vmatmul.mubr.bf16.gmra.mxu0 %v1419
        %v5150 = vpop.f32.mrf.mxu0
        %v5151 = vadd.f32 %v4798, %v5150
        %v5152 = vpop.f32.mrf.mxu0
        %v5153 = vadd.f32 %v4800, %v5152
        %v5154 = vpop.f32.mrf.mxu0
        %v5155 = vadd.f32 %v4802, %v5154
        %v5156 = vpop.f32.mrf.mxu0
        %v5157 = vadd.f32 %v4804, %v5156
        %5158 = vmatprep.mubr.bf16.mxu0 %v1428
        %5159 = vmatmul.mubr.bf16.gmra.mxu0 %v1427
        %v5160 = vpop.f32.mrf.mxu0
        %v5161 = vadd.f32 %v4808, %v5160
        %v5162 = vpop.f32.mrf.mxu0
        %v5163 = vadd.f32 %v4810, %v5162
        %v5164 = vpop.f32.mrf.mxu0
        %v5165 = vadd.f32 %v4812, %v5164
        %v5166 = vpop.f32.mrf.mxu0
        %v5167 = vadd.f32 %v4814, %v5166
        %5168 = vmatprep.mubr.bf16.mxu0 %v1436
        %5169 = vmatmul.mubr.bf16.gmra.mxu0 %v1435
        %v5170 = vpop.f32.mrf.mxu0
        %v5171 = vadd.f32 %v4818, %v5170
        %v5172 = vpop.f32.mrf.mxu0
        %v5173 = vadd.f32 %v4820, %v5172
        %v5174 = vpop.f32.mrf.mxu0
        %v5175 = vadd.f32 %v4822, %v5174
        %v5176 = vpop.f32.mrf.mxu0
        %v5177 = vadd.f32 %v4824, %v5176
        %5178 = vmatprep.mubr.bf16.mxu0 %v1444
        %5179 = vmatmul.mubr.bf16.gmra.mxu0 %v1443
        %v5180 = vpop.f32.mrf.mxu0
        %v5181 = vadd.f32 %v4828, %v5180
        %v5182 = vpop.f32.mrf.mxu0
        %v5183 = vadd.f32 %v4830, %v5182
        %v5184 = vpop.f32.mrf.mxu0
        %v5185 = vadd.f32 %v4832, %v5184
        %v5186 = vpop.f32.mrf.mxu0
        %v5187 = vadd.f32 %v4834, %v5186
        %5188 = vmatprep.mubr.bf16.mxu0 %v1452
        %5189 = vmatmul.mubr.bf16.gmra.mxu0 %v1451
        %v5190 = vpop.f32.mrf.mxu0
        %v5191 = vadd.f32 %v4838, %v5190
        %v5192 = vpop.f32.mrf.mxu0
        %v5193 = vadd.f32 %v4840, %v5192
        %v5194 = vpop.f32.mrf.mxu0
        %v5195 = vadd.f32 %v4842, %v5194
        %v5196 = vpop.f32.mrf.mxu0
        %v5197 = vadd.f32 %v4844, %v5196
        %5198 = vmatprep.mubr.bf16.mxu0 %v1460
        %5199 = vmatmul.mubr.bf16.gmra.mxu0 %v1459
        %v5200 = vpop.f32.mrf.mxu0
        %v5201 = vadd.f32 %v4848, %v5200
        %v5202 = vpop.f32.mrf.mxu0
        %v5203 = vadd.f32 %v4850, %v5202
        %v5204 = vpop.f32.mrf.mxu0
        %v5205 = vadd.f32 %v4852, %v5204
        %v5206 = vpop.f32.mrf.mxu0
        %v5207 = vadd.f32 %v4854, %v5206
        %5208 = vmatprep.mubr.bf16.mxu0 %v1468
        %5209 = vmatmul.mubr.bf16.gmra.mxu0 %v1467
        %v5210 = vpop.f32.mrf.mxu0
        %v5211 = vadd.f32 %v4858, %v5210
        %v5212 = vpop.f32.mrf.mxu0
        %v5213 = vadd.f32 %v4860, %v5212
        %v5214 = vpop.f32.mrf.mxu0
        %v5215 = vadd.f32 %v4862, %v5214
        %v5216 = vpop.f32.mrf.mxu0
        %v5217 = vadd.f32 %v4864, %v5216
        %5218 = vmatprep.mubr.bf16.mxu0 %v1476
        %5219 = vmatmul.mubr.bf16.gmra.mxu0 %v1475
        %v5220 = vpop.f32.mrf.mxu0
        %v5221 = vadd.f32 %v4868, %v5220
        %v5222 = vpop.f32.mrf.mxu0
        %v5223 = vadd.f32 %v4870, %v5222
        %v5224 = vpop.f32.mrf.mxu0
        %v5225 = vadd.f32 %v4872, %v5224
        %v5226 = vpop.f32.mrf.mxu0
        %v5227 = vadd.f32 %v4874, %v5226
        %5228 = vmatprep.mubr.bf16.mxu0 %v1484
        %5229 = vmatmul.mubr.bf16.gmra.mxu0 %v1483
        %v5230 = vpop.f32.mrf.mxu0
        %v5231 = vadd.f32 %v4878, %v5230
        %v5232 = vpop.f32.mrf.mxu0
        %v5233 = vadd.f32 %v4880, %v5232
        %v5234 = vpop.f32.mrf.mxu0
        %v5235 = vadd.f32 %v4882, %v5234
        %v5236 = vpop.f32.mrf.mxu0
        %v5237 = vadd.f32 %v4884, %v5236
        %5238 = vdwg.mxu0
        %5239 = vmatprep.subr.bf16.mxu0 %v2670
        %5240 = vmatpush1.bf16.msra.mxu0 %v2669
        %5241 = vmatprep.subr.bf16.mxu0 %v2666
        %5242 = vmatpush1.bf16.msra.mxu0 %v2665
        %5243 = vmatprep.subr.bf16.mxu0 %v2662
        %5244 = vmatpush1.bf16.msra.mxu0 %v2661
        %5245 = vmatprep.subr.bf16.mxu0 %v2658
        %5246 = vmatpush1.bf16.msra.mxu0 %v2657
        %5247 = vmatprep.subr.bf16.mxu0 %v2654
        %5248 = vmatpush1.bf16.msra.mxu0 %v2653
        %5249 = vmatprep.subr.bf16.mxu0 %v2650
        %5250 = vmatpush1.bf16.msra.mxu0 %v2649
        %5251 = vmatprep.subr.bf16.mxu0 %v2646
        %5252 = vmatpush1.bf16.msra.mxu0 %v2645
        %5253 = vmatprep.subr.bf16.mxu0 %v2642
        %5254 = vmatpush1.bf16.msra.mxu0 %v2641
        %5255 = vmatprep.subr.bf16.mxu0 %v2702
        %5256 = vmatpush2.bf16.msra.mxu0 %v2701
        %5257 = vmatprep.subr.bf16.mxu0 %v2698
        %5258 = vmatpush2.bf16.msra.mxu0 %v2697
        %5259 = vmatprep.subr.bf16.mxu0 %v2694
        %5260 = vmatpush2.bf16.msra.mxu0 %v2693
        %5261 = vmatprep.subr.bf16.mxu0 %v2690
        %5262 = vmatpush2.bf16.msra.mxu0 %v2689
        %5263 = vmatprep.subr.bf16.mxu0 %v2686
        %5264 = vmatpush2.bf16.msra.mxu0 %v2685
        %5265 = vmatprep.subr.bf16.mxu0 %v2682
        %5266 = vmatpush2.bf16.msra.mxu0 %v2681
        %5267 = vmatprep.subr.bf16.mxu0 %v2678
        %5268 = vmatpush2.bf16.msra.mxu0 %v2677
        %5269 = vmatprep.subr.bf16.mxu0 %v2674
        %5270 = vmatpush2.bf16.msra.mxu0 %v2673
        %5271 = vmatprep.mubr.bf16.mxu0 %v1238
        %5272 = vmatmul.mubr.bf16.gmra.mxu0 %v1237
        %v5273 = vpop.f32.mrf.mxu0
        %v5274 = vadd.f32 %v4921, %v5273
        %v5275 = vpop.f32.mrf.mxu0
        %v5276 = vadd.f32 %v4923, %v5275
        %v5277 = vpop.f32.mrf.mxu0
        %v5278 = vadd.f32 %v4925, %v5277
        %v5279 = vpop.f32.mrf.mxu0
        %v5280 = vadd.f32 %v4927, %v5279
        %5281 = vmatprep.mubr.bf16.mxu0 %v1246
        %5282 = vmatmul.mubr.bf16.gmra.mxu0 %v1245
        %v5283 = vpop.f32.mrf.mxu0
        %v5284 = vadd.f32 %v4931, %v5283
        %v5285 = vpop.f32.mrf.mxu0
        %v5286 = vadd.f32 %v4933, %v5285
        %v5287 = vpop.f32.mrf.mxu0
        %v5288 = vadd.f32 %v4935, %v5287
        %v5289 = vpop.f32.mrf.mxu0
        %v5290 = vadd.f32 %v4937, %v5289
        %5291 = vmatprep.mubr.bf16.mxu0 %v1254
        %5292 = vmatmul.mubr.bf16.gmra.mxu0 %v1253
        %v5293 = vpop.f32.mrf.mxu0
        %v5294 = vadd.f32 %v4941, %v5293
        %v5295 = vpop.f32.mrf.mxu0
        %v5296 = vadd.f32 %v4943, %v5295
        %v5297 = vpop.f32.mrf.mxu0
        %v5298 = vadd.f32 %v4945, %v5297
        %v5299 = vpop.f32.mrf.mxu0
        %v5300 = vadd.f32 %v4947, %v5299
        %5301 = vmatprep.mubr.bf16.mxu0 %v1262
        %5302 = vmatmul.mubr.bf16.gmra.mxu0 %v1261
        %v5303 = vpop.f32.mrf.mxu0
        %v5304 = vadd.f32 %v4951, %v5303
        %v5305 = vpop.f32.mrf.mxu0
        %v5306 = vadd.f32 %v4953, %v5305
        %v5307 = vpop.f32.mrf.mxu0
        %v5308 = vadd.f32 %v4955, %v5307
        %v5309 = vpop.f32.mrf.mxu0
        %v5310 = vadd.f32 %v4957, %v5309
        %5311 = vmatprep.mubr.bf16.mxu0 %v1270
        %5312 = vmatmul.mubr.bf16.gmra.mxu0 %v1269
        %v5313 = vpop.f32.mrf.mxu0
        %v5314 = vadd.f32 %v4961, %v5313
        %v5315 = vpop.f32.mrf.mxu0
        %v5316 = vadd.f32 %v4963, %v5315
        %v5317 = vpop.f32.mrf.mxu0
        %v5318 = vadd.f32 %v4965, %v5317
        %v5319 = vpop.f32.mrf.mxu0
        %v5320 = vadd.f32 %v4967, %v5319
        %5321 = vmatprep.mubr.bf16.mxu0 %v1278
        %5322 = vmatmul.mubr.bf16.gmra.mxu0 %v1277
        %v5323 = vpop.f32.mrf.mxu0
        %v5324 = vadd.f32 %v4971, %v5323
        %v5325 = vpop.f32.mrf.mxu0
        %v5326 = vadd.f32 %v4973, %v5325
        %v5327 = vpop.f32.mrf.mxu0
        %v5328 = vadd.f32 %v4975, %v5327
        %v5329 = vpop.f32.mrf.mxu0
        %v5330 = vadd.f32 %v4977, %v5329
        %5331 = vmatprep.mubr.bf16.mxu0 %v1286
        %5332 = vmatmul.mubr.bf16.gmra.mxu0 %v1285
        %v5333 = vpop.f32.mrf.mxu0
        %v5334 = vadd.f32 %v4981, %v5333
        %v5335 = vpop.f32.mrf.mxu0
        %v5336 = vadd.f32 %v4983, %v5335
        %v5337 = vpop.f32.mrf.mxu0
        %v5338 = vadd.f32 %v4985, %v5337
        %v5339 = vpop.f32.mrf.mxu0
        %v5340 = vadd.f32 %v4987, %v5339
        %5341 = vmatprep.mubr.bf16.mxu0 %v1294
        %5342 = vmatmul.mubr.bf16.gmra.mxu0 %v1293
        %v5343 = vpop.f32.mrf.mxu0
        %v5344 = vadd.f32 %v4991, %v5343
        %v5345 = vpop.f32.mrf.mxu0
        %v5346 = vadd.f32 %v4993, %v5345
        %v5347 = vpop.f32.mrf.mxu0
        %v5348 = vadd.f32 %v4995, %v5347
        %v5349 = vpop.f32.mrf.mxu0
        %v5350 = vadd.f32 %v4997, %v5349
        %5351 = vmatprep.mubr.bf16.mxu0 %v1302
        %5352 = vmatmul.mubr.bf16.gmra.mxu0 %v1301
        %v5353 = vpop.f32.mrf.mxu0
        %v5354 = vadd.f32 %v5001, %v5353
        %v5355 = vpop.f32.mrf.mxu0
        %v5356 = vadd.f32 %v5003, %v5355
        %v5357 = vpop.f32.mrf.mxu0
        %v5358 = vadd.f32 %v5005, %v5357
        %v5359 = vpop.f32.mrf.mxu0
        %v5360 = vadd.f32 %v5007, %v5359
        %5361 = vmatprep.mubr.bf16.mxu0 %v1310
        %5362 = vmatmul.mubr.bf16.gmra.mxu0 %v1309
        %v5363 = vpop.f32.mrf.mxu0
        %v5364 = vadd.f32 %v5011, %v5363
        %v5365 = vpop.f32.mrf.mxu0
        %v5366 = vadd.f32 %v5013, %v5365
        %v5367 = vpop.f32.mrf.mxu0
        %v5368 = vadd.f32 %v5015, %v5367
        %v5369 = vpop.f32.mrf.mxu0
        %v5370 = vadd.f32 %v5017, %v5369
        %5371 = vmatprep.mubr.bf16.mxu0 %v1318
        %5372 = vmatmul.mubr.bf16.gmra.mxu0 %v1317
        %v5373 = vpop.f32.mrf.mxu0
        %v5374 = vadd.f32 %v5021, %v5373
        %v5375 = vpop.f32.mrf.mxu0
        %v5376 = vadd.f32 %v5023, %v5375
        %v5377 = vpop.f32.mrf.mxu0
        %v5378 = vadd.f32 %v5025, %v5377
        %v5379 = vpop.f32.mrf.mxu0
        %v5380 = vadd.f32 %v5027, %v5379
        %5381 = vmatprep.mubr.bf16.mxu0 %v1326
        %5382 = vmatmul.mubr.bf16.gmra.mxu0 %v1325
        %v5383 = vpop.f32.mrf.mxu0
        %v5384 = vadd.f32 %v5031, %v5383
        %v5385 = vpop.f32.mrf.mxu0
        %v5386 = vadd.f32 %v5033, %v5385
        %v5387 = vpop.f32.mrf.mxu0
        %v5388 = vadd.f32 %v5035, %v5387
        %v5389 = vpop.f32.mrf.mxu0
        %v5390 = vadd.f32 %v5037, %v5389
        %5391 = vmatprep.mubr.bf16.mxu0 %v1334
        %5392 = vmatmul.mubr.bf16.gmra.mxu0 %v1333
        %v5393 = vpop.f32.mrf.mxu0
        %v5394 = vadd.f32 %v5041, %v5393
        %v5395 = vpop.f32.mrf.mxu0
        %v5396 = vadd.f32 %v5043, %v5395
        %v5397 = vpop.f32.mrf.mxu0
        %v5398 = vadd.f32 %v5045, %v5397
        %v5399 = vpop.f32.mrf.mxu0
        %v5400 = vadd.f32 %v5047, %v5399
        %5401 = vmatprep.mubr.bf16.mxu0 %v1342
        %5402 = vmatmul.mubr.bf16.gmra.mxu0 %v1341
        %v5403 = vpop.f32.mrf.mxu0
        %v5404 = vadd.f32 %v5051, %v5403
        %v5405 = vpop.f32.mrf.mxu0
        %v5406 = vadd.f32 %v5053, %v5405
        %v5407 = vpop.f32.mrf.mxu0
        %v5408 = vadd.f32 %v5055, %v5407
        %v5409 = vpop.f32.mrf.mxu0
        %v5410 = vadd.f32 %v5057, %v5409
        %5411 = vmatprep.mubr.bf16.mxu0 %v1350
        %5412 = vmatmul.mubr.bf16.gmra.mxu0 %v1349
        %v5413 = vpop.f32.mrf.mxu0
        %v5414 = vadd.f32 %v5061, %v5413
        %v5415 = vpop.f32.mrf.mxu0
        %v5416 = vadd.f32 %v5063, %v5415
        %v5417 = vpop.f32.mrf.mxu0
        %v5418 = vadd.f32 %v5065, %v5417
        %v5419 = vpop.f32.mrf.mxu0
        %v5420 = vadd.f32 %v5067, %v5419
        %5421 = vmatprep.mubr.bf16.mxu0 %v1358
        %5422 = vmatmul.mubr.bf16.gmra.mxu0 %v1357
        %v5423 = vpop.f32.mrf.mxu0
        %v5424 = vadd.f32 %v5071, %v5423
        %v5425 = vpop.f32.mrf.mxu0
        %v5426 = vadd.f32 %v5073, %v5425
        %v5427 = vpop.f32.mrf.mxu0
        %v5428 = vadd.f32 %v5075, %v5427
        %v5429 = vpop.f32.mrf.mxu0
        %v5430 = vadd.f32 %v5077, %v5429
        %5431 = vmatprep.mubr.bf16.mxu0 %v1366
        %5432 = vmatmul.mubr.bf16.gmra.mxu0 %v1365
        %v5433 = vpop.f32.mrf.mxu0
        %v5434 = vadd.f32 %v5081, %v5433
        %v5435 = vpop.f32.mrf.mxu0
        %v5436 = vadd.f32 %v5083, %v5435
        %v5437 = vpop.f32.mrf.mxu0
        %v5438 = vadd.f32 %v5085, %v5437
        %v5439 = vpop.f32.mrf.mxu0
        %v5440 = vadd.f32 %v5087, %v5439
        %5441 = vmatprep.mubr.bf16.mxu0 %v1374
        %5442 = vmatmul.mubr.bf16.gmra.mxu0 %v1373
        %v5443 = vpop.f32.mrf.mxu0
        %v5444 = vadd.f32 %v5091, %v5443
        %v5445 = vpop.f32.mrf.mxu0
        %v5446 = vadd.f32 %v5093, %v5445
        %v5447 = vpop.f32.mrf.mxu0
        %v5448 = vadd.f32 %v5095, %v5447
        %v5449 = vpop.f32.mrf.mxu0
        %v5450 = vadd.f32 %v5097, %v5449
        %5451 = vmatprep.mubr.bf16.mxu0 %v1382
        %5452 = vmatmul.mubr.bf16.gmra.mxu0 %v1381
        %v5453 = vpop.f32.mrf.mxu0
        %v5454 = vadd.f32 %v5101, %v5453
        %v5455 = vpop.f32.mrf.mxu0
        %v5456 = vadd.f32 %v5103, %v5455
        %v5457 = vpop.f32.mrf.mxu0
        %v5458 = vadd.f32 %v5105, %v5457
        %v5459 = vpop.f32.mrf.mxu0
        %v5460 = vadd.f32 %v5107, %v5459
        %5461 = vmatprep.mubr.bf16.mxu0 %v1390
        %5462 = vmatmul.mubr.bf16.gmra.mxu0 %v1389
        %v5463 = vpop.f32.mrf.mxu0
        %v5464 = vadd.f32 %v5111, %v5463
        %v5465 = vpop.f32.mrf.mxu0
        %v5466 = vadd.f32 %v5113, %v5465
        %v5467 = vpop.f32.mrf.mxu0
        %v5468 = vadd.f32 %v5115, %v5467
        %v5469 = vpop.f32.mrf.mxu0
        %v5470 = vadd.f32 %v5117, %v5469
        %5471 = vmatprep.mubr.bf16.mxu0 %v1398
        %5472 = vmatmul.mubr.bf16.gmra.mxu0 %v1397
        %v5473 = vpop.f32.mrf.mxu0
        %v5474 = vadd.f32 %v5121, %v5473
        %v5475 = vpop.f32.mrf.mxu0
        %v5476 = vadd.f32 %v5123, %v5475
        %v5477 = vpop.f32.mrf.mxu0
        %v5478 = vadd.f32 %v5125, %v5477
        %v5479 = vpop.f32.mrf.mxu0
        %v5480 = vadd.f32 %v5127, %v5479
        %5481 = vmatprep.mubr.bf16.mxu0 %v1406
        %5482 = vmatmul.mubr.bf16.gmra.mxu0 %v1405
        %v5483 = vpop.f32.mrf.mxu0
        %v5484 = vadd.f32 %v5131, %v5483
        %v5485 = vpop.f32.mrf.mxu0
        %v5486 = vadd.f32 %v5133, %v5485
        %v5487 = vpop.f32.mrf.mxu0
        %v5488 = vadd.f32 %v5135, %v5487
        %v5489 = vpop.f32.mrf.mxu0
        %v5490 = vadd.f32 %v5137, %v5489
        %5491 = vmatprep.mubr.bf16.mxu0 %v1414
        %5492 = vmatmul.mubr.bf16.gmra.mxu0 %v1413
        %v5493 = vpop.f32.mrf.mxu0
        %v5494 = vadd.f32 %v5141, %v5493
        %v5495 = vpop.f32.mrf.mxu0
        %v5496 = vadd.f32 %v5143, %v5495
        %v5497 = vpop.f32.mrf.mxu0
        %v5498 = vadd.f32 %v5145, %v5497
        %v5499 = vpop.f32.mrf.mxu0
        %v5500 = vadd.f32 %v5147, %v5499
        %5501 = vmatprep.mubr.bf16.mxu0 %v1422
        %5502 = vmatmul.mubr.bf16.gmra.mxu0 %v1421
        %v5503 = vpop.f32.mrf.mxu0
        %v5504 = vadd.f32 %v5151, %v5503
        %v5505 = vpop.f32.mrf.mxu0
        %v5506 = vadd.f32 %v5153, %v5505
        %v5507 = vpop.f32.mrf.mxu0
        %v5508 = vadd.f32 %v5155, %v5507
        %v5509 = vpop.f32.mrf.mxu0
        %v5510 = vadd.f32 %v5157, %v5509
        %5511 = vmatprep.mubr.bf16.mxu0 %v1430
        %5512 = vmatmul.mubr.bf16.gmra.mxu0 %v1429
        %v5513 = vpop.f32.mrf.mxu0
        %v5514 = vadd.f32 %v5161, %v5513
        %v5515 = vpop.f32.mrf.mxu0
        %v5516 = vadd.f32 %v5163, %v5515
        %v5517 = vpop.f32.mrf.mxu0
        %v5518 = vadd.f32 %v5165, %v5517
        %v5519 = vpop.f32.mrf.mxu0
        %v5520 = vadd.f32 %v5167, %v5519
        %5521 = vmatprep.mubr.bf16.mxu0 %v1438
        %5522 = vmatmul.mubr.bf16.gmra.mxu0 %v1437
        %v5523 = vpop.f32.mrf.mxu0
        %v5524 = vadd.f32 %v5171, %v5523
        %v5525 = vpop.f32.mrf.mxu0
        %v5526 = vadd.f32 %v5173, %v5525
        %v5527 = vpop.f32.mrf.mxu0
        %v5528 = vadd.f32 %v5175, %v5527
        %v5529 = vpop.f32.mrf.mxu0
        %v5530 = vadd.f32 %v5177, %v5529
        %5531 = vmatprep.mubr.bf16.mxu0 %v1446
        %5532 = vmatmul.mubr.bf16.gmra.mxu0 %v1445
        %v5533 = vpop.f32.mrf.mxu0
        %v5534 = vadd.f32 %v5181, %v5533
        %v5535 = vpop.f32.mrf.mxu0
        %v5536 = vadd.f32 %v5183, %v5535
        %v5537 = vpop.f32.mrf.mxu0
        %v5538 = vadd.f32 %v5185, %v5537
        %v5539 = vpop.f32.mrf.mxu0
        %v5540 = vadd.f32 %v5187, %v5539
        %5541 = vmatprep.mubr.bf16.mxu0 %v1454
        %5542 = vmatmul.mubr.bf16.gmra.mxu0 %v1453
        %v5543 = vpop.f32.mrf.mxu0
        %v5544 = vadd.f32 %v5191, %v5543
        %v5545 = vpop.f32.mrf.mxu0
        %v5546 = vadd.f32 %v5193, %v5545
        %v5547 = vpop.f32.mrf.mxu0
        %v5548 = vadd.f32 %v5195, %v5547
        %v5549 = vpop.f32.mrf.mxu0
        %v5550 = vadd.f32 %v5197, %v5549
        %5551 = vmatprep.mubr.bf16.mxu0 %v1462
        %5552 = vmatmul.mubr.bf16.gmra.mxu0 %v1461
        %v5553 = vpop.f32.mrf.mxu0
        %v5554 = vadd.f32 %v5201, %v5553
        %v5555 = vpop.f32.mrf.mxu0
        %v5556 = vadd.f32 %v5203, %v5555
        %v5557 = vpop.f32.mrf.mxu0
        %v5558 = vadd.f32 %v5205, %v5557
        %v5559 = vpop.f32.mrf.mxu0
        %v5560 = vadd.f32 %v5207, %v5559
        %5561 = vmatprep.mubr.bf16.mxu0 %v1470
        %5562 = vmatmul.mubr.bf16.gmra.mxu0 %v1469
        %v5563 = vpop.f32.mrf.mxu0
        %v5564 = vadd.f32 %v5211, %v5563
        %v5565 = vpop.f32.mrf.mxu0
        %v5566 = vadd.f32 %v5213, %v5565
        %v5567 = vpop.f32.mrf.mxu0
        %v5568 = vadd.f32 %v5215, %v5567
        %v5569 = vpop.f32.mrf.mxu0
        %v5570 = vadd.f32 %v5217, %v5569
        %5571 = vmatprep.mubr.bf16.mxu0 %v1478
        %5572 = vmatmul.mubr.bf16.gmra.mxu0 %v1477
        %v5573 = vpop.f32.mrf.mxu0
        %v5574 = vadd.f32 %v5221, %v5573
        %v5575 = vpop.f32.mrf.mxu0
        %v5576 = vadd.f32 %v5223, %v5575
        %v5577 = vpop.f32.mrf.mxu0
        %v5578 = vadd.f32 %v5225, %v5577
        %v5579 = vpop.f32.mrf.mxu0
        %v5580 = vadd.f32 %v5227, %v5579
        %5581 = vmatprep.mubr.bf16.mxu0 %v1486
        %5582 = vmatmul.mubr.bf16.gmra.mxu0 %v1485
        %v5583 = vpop.f32.mrf.mxu0
        %v5584 = vadd.f32 %v5231, %v5583
        %v5585 = vpop.f32.mrf.mxu0
        %v5586 = vadd.f32 %v5233, %v5585
        %v5587 = vpop.f32.mrf.mxu0
        %v5588 = vadd.f32 %v5235, %v5587
        %v5589 = vpop.f32.mrf.mxu0
        %v5590 = vadd.f32 %v5237, %v5589
        %5591 = vdwg.mxu0
        %5592 = vmatprep.subr.bf16.mxu0 %v2734
        %5593 = vmatpush1.bf16.msra.mxu0 %v2733
        %5594 = vmatprep.subr.bf16.mxu0 %v2730
        %5595 = vmatpush1.bf16.msra.mxu0 %v2729
        %5596 = vmatprep.subr.bf16.mxu0 %v2726
        %5597 = vmatpush1.bf16.msra.mxu0 %v2725
        %5598 = vmatprep.subr.bf16.mxu0 %v2722
        %5599 = vmatpush1.bf16.msra.mxu0 %v2721
        %5600 = vmatprep.subr.bf16.mxu0 %v2718
        %5601 = vmatpush1.bf16.msra.mxu0 %v2717
        %5602 = vmatprep.subr.bf16.mxu0 %v2714
        %5603 = vmatpush1.bf16.msra.mxu0 %v2713
        %5604 = vmatprep.subr.bf16.mxu0 %v2710
        %5605 = vmatpush1.bf16.msra.mxu0 %v2709
        %5606 = vmatprep.subr.bf16.mxu0 %v2706
        %5607 = vmatpush1.bf16.msra.mxu0 %v2705
        %5608 = vmatprep.subr.bf16.mxu0 0
        %5609 = vmatpush2.bf16.msra.mxu0 0
        %5610 = vmatprep.subr.bf16.mxu0 %v3119
        %5611 = vmatpush2.bf16.msra.mxu0 %v3116
        %5612 = vmatprep.subr.bf16.mxu0 %v2758
        %5613 = vmatpush2.bf16.msra.mxu0 %v2757
        %5614 = vmatprep.subr.bf16.mxu0 %v2754
        %5615 = vmatpush2.bf16.msra.mxu0 %v2753
        %5616 = vmatprep.subr.bf16.mxu0 %v2750
        %5617 = vmatpush2.bf16.msra.mxu0 %v2749
        %5618 = vmatprep.subr.bf16.mxu0 %v2746
        %5619 = vmatpush2.bf16.msra.mxu0 %v2745
        %5620 = vmatprep.subr.bf16.mxu0 %v2742
        %5621 = vmatpush2.bf16.msra.mxu0 %v2741
        %5622 = vmatprep.subr.bf16.mxu0 %v2738
        %5623 = vmatpush2.bf16.msra.mxu0 %v2737
        %5624 = vmatprep.mubr.bf16.mxu0 %v3013
        %5625 = vmatmul.mubr.bf16.gmra.mxu0 %v1239
        %v5626 = vpop.f32.mrf.mxu0
        %v5627 = vadd.f32 %v5274, %v5626
        %v5628 = vpop.f32.mrf.mxu0
        %v5629 = vadd.f32 %v5276, %v5628
        %v5630 = vpop.f32.mrf.mxu0
        %v5631 = vadd.f32 %v5278, %v5630
        %v5632 = vpop.f32.mrf.mxu0
        %v5633 = vadd.f32 %v5280, %v5632
        %5634 = vmatprep.mubr.bf16.mxu0 %v3016
        %5635 = vmatmul.mubr.bf16.gmra.mxu0 %v1247
        %v5636 = vpop.f32.mrf.mxu0
        %v5637 = vadd.f32 %v5284, %v5636
        %v5638 = vpop.f32.mrf.mxu0
        %v5639 = vadd.f32 %v5286, %v5638
        %v5640 = vpop.f32.mrf.mxu0
        %v5641 = vadd.f32 %v5288, %v5640
        %v5642 = vpop.f32.mrf.mxu0
        %v5643 = vadd.f32 %v5290, %v5642
        %5644 = vmatprep.mubr.bf16.mxu0 %v3019
        %5645 = vmatmul.mubr.bf16.gmra.mxu0 %v1255
        %v5646 = vpop.f32.mrf.mxu0
        %v5647 = vadd.f32 %v5294, %v5646
        %v5648 = vpop.f32.mrf.mxu0
        %v5649 = vadd.f32 %v5296, %v5648
        %v5650 = vpop.f32.mrf.mxu0
        %v5651 = vadd.f32 %v5298, %v5650
        %v5652 = vpop.f32.mrf.mxu0
        %v5653 = vadd.f32 %v5300, %v5652
        %5654 = vmatprep.mubr.bf16.mxu0 %v3022
        %5655 = vmatmul.mubr.bf16.gmra.mxu0 %v1263
        %v5656 = vpop.f32.mrf.mxu0
        %v5657 = vadd.f32 %v5304, %v5656
        %v5658 = vpop.f32.mrf.mxu0
        %v5659 = vadd.f32 %v5306, %v5658
        %v5660 = vpop.f32.mrf.mxu0
        %v5661 = vadd.f32 %v5308, %v5660
        %v5662 = vpop.f32.mrf.mxu0
        %v5663 = vadd.f32 %v5310, %v5662
        %5664 = vmatprep.mubr.bf16.mxu0 %v3025
        %5665 = vmatmul.mubr.bf16.gmra.mxu0 %v1271
        %v5666 = vpop.f32.mrf.mxu0
        %v5667 = vadd.f32 %v5314, %v5666
        %v5668 = vpop.f32.mrf.mxu0
        %v5669 = vadd.f32 %v5316, %v5668
        %v5670 = vpop.f32.mrf.mxu0
        %v5671 = vadd.f32 %v5318, %v5670
        %v5672 = vpop.f32.mrf.mxu0
        %v5673 = vadd.f32 %v5320, %v5672
        %5674 = vmatprep.mubr.bf16.mxu0 %v3028
        %5675 = vmatmul.mubr.bf16.gmra.mxu0 %v1279
        %v5676 = vpop.f32.mrf.mxu0
        %v5677 = vadd.f32 %v5324, %v5676
        %v5678 = vpop.f32.mrf.mxu0
        %v5679 = vadd.f32 %v5326, %v5678
        %v5680 = vpop.f32.mrf.mxu0
        %v5681 = vadd.f32 %v5328, %v5680
        %v5682 = vpop.f32.mrf.mxu0
        %v5683 = vadd.f32 %v5330, %v5682
        %5684 = vmatprep.mubr.bf16.mxu0 %v3031
        %5685 = vmatmul.mubr.bf16.gmra.mxu0 %v1287
        %v5686 = vpop.f32.mrf.mxu0
        %v5687 = vadd.f32 %v5334, %v5686
        %v5688 = vpop.f32.mrf.mxu0
        %v5689 = vadd.f32 %v5336, %v5688
        %v5690 = vpop.f32.mrf.mxu0
        %v5691 = vadd.f32 %v5338, %v5690
        %v5692 = vpop.f32.mrf.mxu0
        %v5693 = vadd.f32 %v5340, %v5692
        %5694 = vmatprep.mubr.bf16.mxu0 %v3034
        %5695 = vmatmul.mubr.bf16.gmra.mxu0 %v1295
        %v5696 = vpop.f32.mrf.mxu0
        %v5697 = vadd.f32 %v5344, %v5696
        %v5698 = vpop.f32.mrf.mxu0
        %v5699 = vadd.f32 %v5346, %v5698
        %v5700 = vpop.f32.mrf.mxu0
        %v5701 = vadd.f32 %v5348, %v5700
        %v5702 = vpop.f32.mrf.mxu0
        %v5703 = vadd.f32 %v5350, %v5702
        %5704 = vmatprep.mubr.bf16.mxu0 %v3037
        %5705 = vmatmul.mubr.bf16.gmra.mxu0 %v1303
        %v5706 = vpop.f32.mrf.mxu0
        %v5707 = vadd.f32 %v5354, %v5706
        %v5708 = vpop.f32.mrf.mxu0
        %v5709 = vadd.f32 %v5356, %v5708
        %v5710 = vpop.f32.mrf.mxu0
        %v5711 = vadd.f32 %v5358, %v5710
        %v5712 = vpop.f32.mrf.mxu0
        %v5713 = vadd.f32 %v5360, %v5712
        %5714 = vmatprep.mubr.bf16.mxu0 %v3040
        %5715 = vmatmul.mubr.bf16.gmra.mxu0 %v1311
        %v5716 = vpop.f32.mrf.mxu0
        %v5717 = vadd.f32 %v5364, %v5716
        %v5718 = vpop.f32.mrf.mxu0
        %v5719 = vadd.f32 %v5366, %v5718
        %v5720 = vpop.f32.mrf.mxu0
        %v5721 = vadd.f32 %v5368, %v5720
        %v5722 = vpop.f32.mrf.mxu0
        %v5723 = vadd.f32 %v5370, %v5722
        %5724 = vmatprep.mubr.bf16.mxu0 %v3043
        %5725 = vmatmul.mubr.bf16.gmra.mxu0 %v1319
        %v5726 = vpop.f32.mrf.mxu0
        %v5727 = vadd.f32 %v5374, %v5726
        %v5728 = vpop.f32.mrf.mxu0
        %v5729 = vadd.f32 %v5376, %v5728
        %v5730 = vpop.f32.mrf.mxu0
        %v5731 = vadd.f32 %v5378, %v5730
        %v5732 = vpop.f32.mrf.mxu0
        %v5733 = vadd.f32 %v5380, %v5732
        %5734 = vmatprep.mubr.bf16.mxu0 %v3046
        %5735 = vmatmul.mubr.bf16.gmra.mxu0 %v1327
        %v5736 = vpop.f32.mrf.mxu0
        %v5737 = vadd.f32 %v5384, %v5736
        %v5738 = vpop.f32.mrf.mxu0
        %v5739 = vadd.f32 %v5386, %v5738
        %v5740 = vpop.f32.mrf.mxu0
        %v5741 = vadd.f32 %v5388, %v5740
        %v5742 = vpop.f32.mrf.mxu0
        %v5743 = vadd.f32 %v5390, %v5742
        %5744 = vmatprep.mubr.bf16.mxu0 %v3049
        %5745 = vmatmul.mubr.bf16.gmra.mxu0 %v1335
        %v5746 = vpop.f32.mrf.mxu0
        %v5747 = vadd.f32 %v5394, %v5746
        %v5748 = vpop.f32.mrf.mxu0
        %v5749 = vadd.f32 %v5396, %v5748
        %v5750 = vpop.f32.mrf.mxu0
        %v5751 = vadd.f32 %v5398, %v5750
        %v5752 = vpop.f32.mrf.mxu0
        %v5753 = vadd.f32 %v5400, %v5752
        %5754 = vmatprep.mubr.bf16.mxu0 %v3052
        %5755 = vmatmul.mubr.bf16.gmra.mxu0 %v1343
        %v5756 = vpop.f32.mrf.mxu0
        %v5757 = vadd.f32 %v5404, %v5756
        %v5758 = vpop.f32.mrf.mxu0
        %v5759 = vadd.f32 %v5406, %v5758
        %v5760 = vpop.f32.mrf.mxu0
        %v5761 = vadd.f32 %v5408, %v5760
        %v5762 = vpop.f32.mrf.mxu0
        %v5763 = vadd.f32 %v5410, %v5762
        %5764 = vmatprep.mubr.bf16.mxu0 %v3055
        %5765 = vmatmul.mubr.bf16.gmra.mxu0 %v1351
        %v5766 = vpop.f32.mrf.mxu0
        %v5767 = vadd.f32 %v5414, %v5766
        %v5768 = vpop.f32.mrf.mxu0
        %v5769 = vadd.f32 %v5416, %v5768
        %v5770 = vpop.f32.mrf.mxu0
        %v5771 = vadd.f32 %v5418, %v5770
        %v5772 = vpop.f32.mrf.mxu0
        %v5773 = vadd.f32 %v5420, %v5772
        %5774 = vmatprep.mubr.bf16.mxu0 %v3058
        %5775 = vmatmul.mubr.bf16.gmra.mxu0 %v1359
        %v5776 = vpop.f32.mrf.mxu0
        %v5777 = vadd.f32 %v5424, %v5776
        %v5778 = vpop.f32.mrf.mxu0
        %v5779 = vadd.f32 %v5426, %v5778
        %v5780 = vpop.f32.mrf.mxu0
        %v5781 = vadd.f32 %v5428, %v5780
        %v5782 = vpop.f32.mrf.mxu0
        %v5783 = vadd.f32 %v5430, %v5782
        %5784 = vmatprep.mubr.bf16.mxu0 %v3061
        %5785 = vmatmul.mubr.bf16.gmra.mxu0 %v1367
        %v5786 = vpop.f32.mrf.mxu0
        %v5787 = vadd.f32 %v5434, %v5786
        %v5788 = vpop.f32.mrf.mxu0
        %v5789 = vadd.f32 %v5436, %v5788
        %v5790 = vpop.f32.mrf.mxu0
        %v5791 = vadd.f32 %v5438, %v5790
        %v5792 = vpop.f32.mrf.mxu0
        %v5793 = vadd.f32 %v5440, %v5792
        %5794 = vmatprep.mubr.bf16.mxu0 %v3064
        %5795 = vmatmul.mubr.bf16.gmra.mxu0 %v1375
        %v5796 = vpop.f32.mrf.mxu0
        %v5797 = vadd.f32 %v5444, %v5796
        %v5798 = vpop.f32.mrf.mxu0
        %v5799 = vadd.f32 %v5446, %v5798
        %v5800 = vpop.f32.mrf.mxu0
        %v5801 = vadd.f32 %v5448, %v5800
        %v5802 = vpop.f32.mrf.mxu0
        %v5803 = vadd.f32 %v5450, %v5802
        %5804 = vmatprep.mubr.bf16.mxu0 %v3067
        %5805 = vmatmul.mubr.bf16.gmra.mxu0 %v1383
        %v5806 = vpop.f32.mrf.mxu0
        %v5807 = vadd.f32 %v5454, %v5806
        %v5808 = vpop.f32.mrf.mxu0
        %v5809 = vadd.f32 %v5456, %v5808
        %v5810 = vpop.f32.mrf.mxu0
        %v5811 = vadd.f32 %v5458, %v5810
        %v5812 = vpop.f32.mrf.mxu0
        %v5813 = vadd.f32 %v5460, %v5812
        %5814 = vmatprep.mubr.bf16.mxu0 %v3070
        %5815 = vmatmul.mubr.bf16.gmra.mxu0 %v1391
        %v5816 = vpop.f32.mrf.mxu0
        %v5817 = vadd.f32 %v5464, %v5816
        %v5818 = vpop.f32.mrf.mxu0
        %v5819 = vadd.f32 %v5466, %v5818
        %v5820 = vpop.f32.mrf.mxu0
        %v5821 = vadd.f32 %v5468, %v5820
        %v5822 = vpop.f32.mrf.mxu0
        %v5823 = vadd.f32 %v5470, %v5822
        %5824 = vmatprep.mubr.bf16.mxu0 %v3073
        %5825 = vmatmul.mubr.bf16.gmra.mxu0 %v1399
        %v5826 = vpop.f32.mrf.mxu0
        %v5827 = vadd.f32 %v5474, %v5826
        %v5828 = vpop.f32.mrf.mxu0
        %v5829 = vadd.f32 %v5476, %v5828
        %v5830 = vpop.f32.mrf.mxu0
        %v5831 = vadd.f32 %v5478, %v5830
        %v5832 = vpop.f32.mrf.mxu0
        %v5833 = vadd.f32 %v5480, %v5832
        %5834 = vmatprep.mubr.bf16.mxu0 %v3076
        %5835 = vmatmul.mubr.bf16.gmra.mxu0 %v1407
        %v5836 = vpop.f32.mrf.mxu0
        %v5837 = vadd.f32 %v5484, %v5836
        %v5838 = vpop.f32.mrf.mxu0
        %v5839 = vadd.f32 %v5486, %v5838
        %v5840 = vpop.f32.mrf.mxu0
        %v5841 = vadd.f32 %v5488, %v5840
        %v5842 = vpop.f32.mrf.mxu0
        %v5843 = vadd.f32 %v5490, %v5842
        %5844 = vmatprep.mubr.bf16.mxu0 %v3079
        %5845 = vmatmul.mubr.bf16.gmra.mxu0 %v1415
        %v5846 = vpop.f32.mrf.mxu0
        %v5847 = vadd.f32 %v5494, %v5846
        %v5848 = vpop.f32.mrf.mxu0
        %v5849 = vadd.f32 %v5496, %v5848
        %v5850 = vpop.f32.mrf.mxu0
        %v5851 = vadd.f32 %v5498, %v5850
        %v5852 = vpop.f32.mrf.mxu0
        %v5853 = vadd.f32 %v5500, %v5852
        %5854 = vmatprep.mubr.bf16.mxu0 %v3082
        %5855 = vmatmul.mubr.bf16.gmra.mxu0 %v1423
        %v5856 = vpop.f32.mrf.mxu0
        %v5857 = vadd.f32 %v5504, %v5856
        %v5858 = vpop.f32.mrf.mxu0
        %v5859 = vadd.f32 %v5506, %v5858
        %v5860 = vpop.f32.mrf.mxu0
        %v5861 = vadd.f32 %v5508, %v5860
        %v5862 = vpop.f32.mrf.mxu0
        %v5863 = vadd.f32 %v5510, %v5862
        %5864 = vmatprep.mubr.bf16.mxu0 %v3085
        %5865 = vmatmul.mubr.bf16.gmra.mxu0 %v1431
        %v5866 = vpop.f32.mrf.mxu0
        %v5867 = vadd.f32 %v5514, %v5866
        %v5868 = vpop.f32.mrf.mxu0
        %v5869 = vadd.f32 %v5516, %v5868
        %v5870 = vpop.f32.mrf.mxu0
        %v5871 = vadd.f32 %v5518, %v5870
        %v5872 = vpop.f32.mrf.mxu0
        %v5873 = vadd.f32 %v5520, %v5872
        %5874 = vmatprep.mubr.bf16.mxu0 %v3088
        %5875 = vmatmul.mubr.bf16.gmra.mxu0 %v1439
        %v5876 = vpop.f32.mrf.mxu0
        %v5877 = vadd.f32 %v5524, %v5876
        %v5878 = vpop.f32.mrf.mxu0
        %v5879 = vadd.f32 %v5526, %v5878
        %v5880 = vpop.f32.mrf.mxu0
        %v5881 = vadd.f32 %v5528, %v5880
        %v5882 = vpop.f32.mrf.mxu0
        %v5883 = vadd.f32 %v5530, %v5882
        %5884 = vmatprep.mubr.bf16.mxu0 %v3091
        %5885 = vmatmul.mubr.bf16.gmra.mxu0 %v1447
        %v5886 = vpop.f32.mrf.mxu0
        %v5887 = vadd.f32 %v5534, %v5886
        %v5888 = vpop.f32.mrf.mxu0
        %v5889 = vadd.f32 %v5536, %v5888
        %v5890 = vpop.f32.mrf.mxu0
        %v5891 = vadd.f32 %v5538, %v5890
        %v5892 = vpop.f32.mrf.mxu0
        %v5893 = vadd.f32 %v5540, %v5892
        %5894 = vmatprep.mubr.bf16.mxu0 %v3094
        %5895 = vmatmul.mubr.bf16.gmra.mxu0 %v1455
        %v5896 = vpop.f32.mrf.mxu0
        %v5897 = vadd.f32 %v5544, %v5896
        %v5898 = vpop.f32.mrf.mxu0
        %v5899 = vadd.f32 %v5546, %v5898
        %v5900 = vpop.f32.mrf.mxu0
        %v5901 = vadd.f32 %v5548, %v5900
        %v5902 = vpop.f32.mrf.mxu0
        %v5903 = vadd.f32 %v5550, %v5902
        %5904 = vmatprep.mubr.bf16.mxu0 %v3097
        %5905 = vmatmul.mubr.bf16.gmra.mxu0 %v1463
        %v5906 = vpop.f32.mrf.mxu0
        %v5907 = vadd.f32 %v5554, %v5906
        %v5908 = vpop.f32.mrf.mxu0
        %v5909 = vadd.f32 %v5556, %v5908
        %v5910 = vpop.f32.mrf.mxu0
        %v5911 = vadd.f32 %v5558, %v5910
        %v5912 = vpop.f32.mrf.mxu0
        %v5913 = vadd.f32 %v5560, %v5912
        %5914 = vmatprep.mubr.bf16.mxu0 %v3100
        %5915 = vmatmul.mubr.bf16.gmra.mxu0 %v1471
        %v5916 = vpop.f32.mrf.mxu0
        %v5917 = vadd.f32 %v5564, %v5916
        %v5918 = vpop.f32.mrf.mxu0
        %v5919 = vadd.f32 %v5566, %v5918
        %v5920 = vpop.f32.mrf.mxu0
        %v5921 = vadd.f32 %v5568, %v5920
        %v5922 = vpop.f32.mrf.mxu0
        %v5923 = vadd.f32 %v5570, %v5922
        %5924 = vmatprep.mubr.bf16.mxu0 %v3103
        %5925 = vmatmul.mubr.bf16.gmra.mxu0 %v1479
        %v5926 = vpop.f32.mrf.mxu0
        %v5927 = vadd.f32 %v5574, %v5926
        %v5928 = vpop.f32.mrf.mxu0
        %v5929 = vadd.f32 %v5576, %v5928
        %v5930 = vpop.f32.mrf.mxu0
        %v5931 = vadd.f32 %v5578, %v5930
        %v5932 = vpop.f32.mrf.mxu0
        %v5933 = vadd.f32 %v5580, %v5932
        %5934 = vmatprep.mubr.bf16.mxu0 %v3106
        %5935 = vmatmul.mubr.bf16.gmra.mxu0 %v1487
        %v5936 = vpop.f32.mrf.mxu0
        %v5937 = vadd.f32 %v5584, %v5936
        %v5938 = vpop.f32.mrf.mxu0
        %v5939 = vadd.f32 %v5586, %v5938
        %v5940 = vpop.f32.mrf.mxu0
        %v5941 = vadd.f32 %v5588, %v5940
        %v5942 = vpop.f32.mrf.mxu0
        %v5943 = vadd.f32 %v5590, %v5942
        %5944 = vdwg.mxu0
        %v5945 = vmax.f32 %v4215, 0.0
        %v5946 = vmax.f32 %v4217, 0.0
        %v5947 = vmax.f32 %v5627, 0.0
        %v5948 = vmax.f32 %v5629, 0.0
        %v5949 = vmax.f32 %v4219, 0.0
        %v5950 = vmax.f32 %v4221, 0.0
        %v5951 = vmax.f32 %v5631, 0.0
        %v5952 = vmax.f32 %v5633, 0.0
        %v5953 = vmax.f32 %v4225, 0.0
        %v5954 = vmax.f32 %v4227, 0.0
        %v5955 = vmax.f32 %v5637, 0.0
        %v5956 = vmax.f32 %v5639, 0.0
        %v5957 = vmax.f32 %v4229, 0.0
        %v5958 = vmax.f32 %v4231, 0.0
        %v5959 = vmax.f32 %v5641, 0.0
        %v5960 = vmax.f32 %v5643, 0.0
        %v5961 = vmax.f32 %v4235, 0.0
        %v5962 = vmax.f32 %v4237, 0.0
        %v5963 = vmax.f32 %v5647, 0.0
        %v5964 = vmax.f32 %v5649, 0.0
        %v5965 = vmax.f32 %v4239, 0.0
        %v5966 = vmax.f32 %v4241, 0.0
        %v5967 = vmax.f32 %v5651, 0.0
        %v5968 = vmax.f32 %v5653, 0.0
        %v5969 = vmax.f32 %v4245, 0.0
        %v5970 = vmax.f32 %v4247, 0.0
        %v5971 = vmax.f32 %v5657, 0.0
        %v5972 = vmax.f32 %v5659, 0.0
        %v5973 = vmax.f32 %v4249, 0.0
        %v5974 = vmax.f32 %v4251, 0.0
        %v5975 = vmax.f32 %v5661, 0.0
        %v5976 = vmax.f32 %v5663, 0.0
        %v5977 = vmax.f32 %v4255, 0.0
        %v5978 = vmax.f32 %v4257, 0.0
        %v5979 = vmax.f32 %v5667, 0.0
        %v5980 = vmax.f32 %v5669, 0.0
        %v5981 = vmax.f32 %v4259, 0.0
        %v5982 = vmax.f32 %v4261, 0.0
        %v5983 = vmax.f32 %v5671, 0.0
        %v5984 = vmax.f32 %v5673, 0.0
        %v5985 = vmax.f32 %v4265, 0.0
        %v5986 = vmax.f32 %v4267, 0.0
        %v5987 = vmax.f32 %v5677, 0.0
        %v5988 = vmax.f32 %v5679, 0.0
        %v5989 = vmax.f32 %v4269, 0.0
        %v5990 = vmax.f32 %v4271, 0.0
        %v5991 = vmax.f32 %v5681, 0.0
        %v5992 = vmax.f32 %v5683, 0.0
        %v5993 = vmax.f32 %v4275, 0.0
        %v5994 = vmax.f32 %v4277, 0.0
        %v5995 = vmax.f32 %v5687, 0.0
        %v5996 = vmax.f32 %v5689, 0.0
        %v5997 = vmax.f32 %v4279, 0.0
        %v5998 = vmax.f32 %v4281, 0.0
        %v5999 = vmax.f32 %v5691, 0.0
        %v6000 = vmax.f32 %v5693, 0.0
        %v6001 = vmax.f32 %v4285, 0.0
        %v6002 = vmax.f32 %v4287, 0.0
        %v6003 = vmax.f32 %v5697, 0.0
        %v6004 = vmax.f32 %v5699, 0.0
        %v6005 = vmax.f32 %v4289, 0.0
        %v6006 = vmax.f32 %v4291, 0.0
        %v6007 = vmax.f32 %v5701, 0.0
        %v6008 = vmax.f32 %v5703, 0.0
        %v6009 = vmax.f32 %v4295, 0.0
        %v6010 = vmax.f32 %v4297, 0.0
        %v6011 = vmax.f32 %v5707, 0.0
        %v6012 = vmax.f32 %v5709, 0.0
        %v6013 = vmax.f32 %v4299, 0.0
        %v6014 = vmax.f32 %v4301, 0.0
        %v6015 = vmax.f32 %v5711, 0.0
        %v6016 = vmax.f32 %v5713, 0.0
        %v6017 = vmax.f32 %v4305, 0.0
        %v6018 = vmax.f32 %v4307, 0.0
        %v6019 = vmax.f32 %v5717, 0.0
        %v6020 = vmax.f32 %v5719, 0.0
        %v6021 = vmax.f32 %v4309, 0.0
        %v6022 = vmax.f32 %v4311, 0.0
        %v6023 = vmax.f32 %v5721, 0.0
        %v6024 = vmax.f32 %v5723, 0.0
        %v6025 = vmax.f32 %v4315, 0.0
        %v6026 = vmax.f32 %v4317, 0.0
        %v6027 = vmax.f32 %v5727, 0.0
        %v6028 = vmax.f32 %v5729, 0.0
        %v6029 = vmax.f32 %v4319, 0.0
        %v6030 = vmax.f32 %v4321, 0.0
        %v6031 = vmax.f32 %v5731, 0.0
        %v6032 = vmax.f32 %v5733, 0.0
        %v6033 = vmax.f32 %v4325, 0.0
        %v6034 = vmax.f32 %v4327, 0.0
        %v6035 = vmax.f32 %v5737, 0.0
        %v6036 = vmax.f32 %v5739, 0.0
        %v6037 = vmax.f32 %v4329, 0.0
        %v6038 = vmax.f32 %v4331, 0.0
        %v6039 = vmax.f32 %v5741, 0.0
        %v6040 = vmax.f32 %v5743, 0.0
        %v6041 = vmax.f32 %v4335, 0.0
        %v6042 = vmax.f32 %v4337, 0.0
        %v6043 = vmax.f32 %v5747, 0.0
        %v6044 = vmax.f32 %v5749, 0.0
        %v6045 = vmax.f32 %v4339, 0.0
        %v6046 = vmax.f32 %v4341, 0.0
        %v6047 = vmax.f32 %v5751, 0.0
        %v6048 = vmax.f32 %v5753, 0.0
        %v6049 = vmax.f32 %v4345, 0.0
        %v6050 = vmax.f32 %v4347, 0.0
        %v6051 = vmax.f32 %v5757, 0.0
        %v6052 = vmax.f32 %v5759, 0.0
        %v6053 = vmax.f32 %v4349, 0.0
        %v6054 = vmax.f32 %v4351, 0.0
        %v6055 = vmax.f32 %v5761, 0.0
        %v6056 = vmax.f32 %v5763, 0.0
        %v6057 = vmax.f32 %v4355, 0.0
        %v6058 = vmax.f32 %v4357, 0.0
        %v6059 = vmax.f32 %v5767, 0.0
        %v6060 = vmax.f32 %v5769, 0.0
        %v6061 = vmax.f32 %v4359, 0.0
        %v6062 = vmax.f32 %v4361, 0.0
        %v6063 = vmax.f32 %v5771, 0.0
        %v6064 = vmax.f32 %v5773, 0.0
        %v6065 = vmax.f32 %v4365, 0.0
        %v6066 = vmax.f32 %v4367, 0.0
        %v6067 = vmax.f32 %v5777, 0.0
        %v6068 = vmax.f32 %v5779, 0.0
        %v6069 = vmax.f32 %v4369, 0.0
        %v6070 = vmax.f32 %v4371, 0.0
        %v6071 = vmax.f32 %v5781, 0.0
        %v6072 = vmax.f32 %v5783, 0.0
        %v6073 = vmax.f32 %v4375, 0.0
        %v6074 = vmax.f32 %v4377, 0.0
        %v6075 = vmax.f32 %v5787, 0.0
        %v6076 = vmax.f32 %v5789, 0.0
        %v6077 = vmax.f32 %v4379, 0.0
        %v6078 = vmax.f32 %v4381, 0.0
        %v6079 = vmax.f32 %v5791, 0.0
        %v6080 = vmax.f32 %v5793, 0.0
        %v6081 = vmax.f32 %v4385, 0.0
        %v6082 = vmax.f32 %v4387, 0.0
        %v6083 = vmax.f32 %v5797, 0.0
        %v6084 = vmax.f32 %v5799, 0.0
        %v6085 = vmax.f32 %v4389, 0.0
        %v6086 = vmax.f32 %v4391, 0.0
        %v6087 = vmax.f32 %v5801, 0.0
        %v6088 = vmax.f32 %v5803, 0.0
        %v6089 = vmax.f32 %v4395, 0.0
        %v6090 = vmax.f32 %v4397, 0.0
        %v6091 = vmax.f32 %v5807, 0.0
        %v6092 = vmax.f32 %v5809, 0.0
        %v6093 = vmax.f32 %v4399, 0.0
        %v6094 = vmax.f32 %v4401, 0.0
        %v6095 = vmax.f32 %v5811, 0.0
        %v6096 = vmax.f32 %v5813, 0.0
        %v6097 = vmax.f32 %v4405, 0.0
        %v6098 = vmax.f32 %v4407, 0.0
        %v6099 = vmax.f32 %v5817, 0.0
        %v6100 = vmax.f32 %v5819, 0.0
        %v6101 = vmax.f32 %v4409, 0.0
        %v6102 = vmax.f32 %v4411, 0.0
        %v6103 = vmax.f32 %v5821, 0.0
        %v6104 = vmax.f32 %v5823, 0.0
        %v6105 = vmax.f32 %v4415, 0.0
        %v6106 = vmax.f32 %v4417, 0.0
        %v6107 = vmax.f32 %v5827, 0.0
        %v6108 = vmax.f32 %v5829, 0.0
        %v6109 = vmax.f32 %v4419, 0.0
        %v6110 = vmax.f32 %v4421, 0.0
        %v6111 = vmax.f32 %v5831, 0.0
        %v6112 = vmax.f32 %v5833, 0.0
        %v6113 = vmax.f32 %v4425, 0.0
        %v6114 = vmax.f32 %v4427, 0.0
        %v6115 = vmax.f32 %v5837, 0.0
        %v6116 = vmax.f32 %v5839, 0.0
        %v6117 = vmax.f32 %v4429, 0.0
        %v6118 = vmax.f32 %v4431, 0.0
        %v6119 = vmax.f32 %v5841, 0.0
        %v6120 = vmax.f32 %v5843, 0.0
        %v6121 = vmax.f32 %v4435, 0.0
        %v6122 = vmax.f32 %v4437, 0.0
        %v6123 = vmax.f32 %v5847, 0.0
        %v6124 = vmax.f32 %v5849, 0.0
        %v6125 = vmax.f32 %v4439, 0.0
        %v6126 = vmax.f32 %v4441, 0.0
        %v6127 = vmax.f32 %v5851, 0.0
        %v6128 = vmax.f32 %v5853, 0.0
        %v6129 = vmax.f32 %v4445, 0.0
        %v6130 = vmax.f32 %v4447, 0.0
        %v6131 = vmax.f32 %v5857, 0.0
        %v6132 = vmax.f32 %v5859, 0.0
        %v6133 = vmax.f32 %v4449, 0.0
        %v6134 = vmax.f32 %v4451, 0.0
        %v6135 = vmax.f32 %v5861, 0.0
        %v6136 = vmax.f32 %v5863, 0.0
        %v6137 = vmax.f32 %v4455, 0.0
        %v6138 = vmax.f32 %v4457, 0.0
        %v6139 = vmax.f32 %v5867, 0.0
        %v6140 = vmax.f32 %v5869, 0.0
        %v6141 = vmax.f32 %v4459, 0.0
        %v6142 = vmax.f32 %v4461, 0.0
        %v6143 = vmax.f32 %v5871, 0.0
        %v6144 = vmax.f32 %v5873, 0.0
        %v6145 = vmax.f32 %v4465, 0.0
        %v6146 = vmax.f32 %v4467, 0.0
        %v6147 = vmax.f32 %v5877, 0.0
        %v6148 = vmax.f32 %v5879, 0.0
        %v6149 = vmax.f32 %v4469, 0.0
        %v6150 = vmax.f32 %v4471, 0.0
        %v6151 = vmax.f32 %v5881, 0.0
        %v6152 = vmax.f32 %v5883, 0.0
        %v6153 = vmax.f32 %v4475, 0.0
        %v6154 = vmax.f32 %v4477, 0.0
        %v6155 = vmax.f32 %v5887, 0.0
        %v6156 = vmax.f32 %v5889, 0.0
        %v6157 = vmax.f32 %v4479, 0.0
        %v6158 = vmax.f32 %v4481, 0.0
        %v6159 = vmax.f32 %v5891, 0.0
        %v6160 = vmax.f32 %v5893, 0.0
        %v6161 = vmax.f32 %v4485, 0.0
        %v6162 = vmax.f32 %v4487, 0.0
        %v6163 = vmax.f32 %v5897, 0.0
        %v6164 = vmax.f32 %v5899, 0.0
        %v6165 = vmax.f32 %v4489, 0.0
        %v6166 = vmax.f32 %v4491, 0.0
        %v6167 = vmax.f32 %v5901, 0.0
        %v6168 = vmax.f32 %v5903, 0.0
        %v6169 = vmax.f32 %v4495, 0.0
        %v6170 = vmax.f32 %v4497, 0.0
        %v6171 = vmax.f32 %v5907, 0.0
        %v6172 = vmax.f32 %v5909, 0.0
        %v6173 = vmax.f32 %v4499, 0.0
        %v6174 = vmax.f32 %v4501, 0.0
        %v6175 = vmax.f32 %v5911, 0.0
        %v6176 = vmax.f32 %v5913, 0.0
        %v6177 = vmax.f32 %v4505, 0.0
        %v6178 = vmax.f32 %v4507, 0.0
        %v6179 = vmax.f32 %v5917, 0.0
        %v6180 = vmax.f32 %v5919, 0.0
        %v6181 = vmax.f32 %v4509, 0.0
        %v6182 = vmax.f32 %v4511, 0.0
        %v6183 = vmax.f32 %v5921, 0.0
        %v6184 = vmax.f32 %v5923, 0.0
        %v6185 = vmax.f32 %v4515, 0.0
        %v6186 = vmax.f32 %v4517, 0.0
        %v6187 = vmax.f32 %v5927, 0.0
        %v6188 = vmax.f32 %v5929, 0.0
        %v6189 = vmax.f32 %v4519, 0.0
        %v6190 = vmax.f32 %v4521, 0.0
        %v6191 = vmax.f32 %v5931, 0.0
        %v6192 = vmax.f32 %v5933, 0.0
        %v6193 = vmax.f32 %v4525, 0.0
        %v6194 = vmax.f32 %v4527, 0.0
        %v6195 = vmax.f32 %v5937, 0.0
        %v6196 = vmax.f32 %v5939, 0.0
        %v6197 = vmax.f32 %v4529, 0.0
        %v6198 = vmax.f32 %v4531, 0.0
        %v6199 = vmax.f32 %v5941, 0.0
        %v6200 = vmax.f32 %v5943, 0.0
        %v6201 = vsel %vm657, 1, 0
        %v6202 = vsel %vm658, 1, 0
        %v6203 = vsel %vm659, 1, 0
        %v6204 = vsel %vm660, 1, 0
        %v6205 = vsel %vm661, 1, 0
        %v6206 = vsel %vm662, 1, 0
        %v6207 = vsel %vm663, 1, 0
        %v6208 = vsel %vm664, 1, 0
        %v6209 = vsel %vm665, 1, 0
        %v6210 = vsel %vm666, 1, 0
        %v6211 = vsel %vm667, 1, 0
        %v6212 = vsel %vm668, 1, 0
        %v6213 = vsel %vm669, 1, 0
        %v6214 = vsel %vm670, 1, 0
        %v6215 = vsel %vm671, 1, 0
        %v6216 = vsel %vm672, 1, 0
        %v6217 = vsel %vm673, 1, 0
        %v6218 = vsel %vm674, 1, 0
        %v6219 = vsel %vm675, 1, 0
        %v6220 = vsel %vm676, 1, 0
        %v6221 = vsel %vm677, 1, 0
        %v6222 = vsel %vm678, 1, 0
        %v6223 = vsel %vm679, 1, 0
        %v6224 = vsel %vm680, 1, 0
        %v6225 = vsel %vm681, 1, 0
        %v6226 = vsel %vm682, 1, 0
        %v6227 = vsel %vm683, 1, 0
        %v6228 = vsel %vm684, 1, 0
        %v6229 = vsel %vm685, 1, 0
        %v6230 = vsel %vm686, 1, 0
        %v6231 = vsel %vm687, 1, 0
        %v6232 = vsel %vm688, 1, 0
        %v6233 = vsel %vm689, 1, 0
        %v6234 = vsel %vm690, 1, 0
        %v6235 = vsel %vm691, 1, 0
        %v6236 = vsel %vm692, 1, 0
        %v6237 = vsel %vm693, 1, 0
        %v6238 = vsel %vm694, 1, 0
        %v6239 = vsel %vm695, 1, 0
        %v6240 = vsel %vm696, 1, 0
        %v6241 = vsel %vm697, 1, 0
        %v6242 = vsel %vm698, 1, 0
        %v6243 = vsel %vm699, 1, 0
        %v6244 = vsel %vm700, 1, 0
        %v6245 = vsel %vm701, 1, 0
        %v6246 = vsel %vm702, 1, 0
        %v6247 = vsel %vm703, 1, 0
        %v6248 = vsel %vm704, 1, 0
        %v6249 = vsel %vm705, 1, 0
        %v6250 = vsel %vm706, 1, 0
        %v6251 = vsel %vm707, 1, 0
        %v6252 = vsel %vm708, 1, 0
        %v6253 = vsel %vm709, 1, 0
        %v6254 = vsel %vm710, 1, 0
        %v6255 = vsel %vm711, 1, 0
        %v6256 = vsel %vm712, 1, 0
        %v6257 = vsel %vm713, 1, 0
        %v6258 = vsel %vm714, 1, 0
        %v6259 = vsel %vm715, 1, 0
        %v6260 = vsel %vm716, 1, 0
        %v6261 = vsel %vm717, 1, 0
        %v6262 = vsel %vm718, 1, 0
        %v6263 = vsel %vm719, 1, 0
        %v6264 = vsel %vm720, 1, 0
        %vm6265 = vcmp.eq.s32.totalorder %v6201, 1
        %vm6266 = vcmp.eq.s32.totalorder %v6202, 1
        %vm6267 = vcmp.eq.s32.totalorder %v6203, 1
        %vm6268 = vcmp.eq.s32.totalorder %v6204, 1
        %vm6269 = vcmp.eq.s32.totalorder %v6205, 1
        %vm6270 = vcmp.eq.s32.totalorder %v6206, 1
        %vm6271 = vcmp.eq.s32.totalorder %v6207, 1
        %vm6272 = vcmp.eq.s32.totalorder %v6208, 1
        %vm6273 = vcmp.eq.s32.totalorder %v6209, 1
        %vm6274 = vcmp.eq.s32.totalorder %v6210, 1
        %vm6275 = vcmp.eq.s32.totalorder %v6211, 1
        %vm6276 = vcmp.eq.s32.totalorder %v6212, 1
        %vm6277 = vcmp.eq.s32.totalorder %v6213, 1
        %vm6278 = vcmp.eq.s32.totalorder %v6214, 1
        %vm6279 = vcmp.eq.s32.totalorder %v6215, 1
        %vm6280 = vcmp.eq.s32.totalorder %v6216, 1
        %vm6281 = vcmp.eq.s32.totalorder %v6217, 1
        %vm6282 = vcmp.eq.s32.totalorder %v6218, 1
        %vm6283 = vcmp.eq.s32.totalorder %v6219, 1
        %vm6284 = vcmp.eq.s32.totalorder %v6220, 1
        %vm6285 = vcmp.eq.s32.totalorder %v6221, 1
        %vm6286 = vcmp.eq.s32.totalorder %v6222, 1
        %vm6287 = vcmp.eq.s32.totalorder %v6223, 1
        %vm6288 = vcmp.eq.s32.totalorder %v6224, 1
        %vm6289 = vcmp.eq.s32.totalorder %v6225, 1
        %vm6290 = vcmp.eq.s32.totalorder %v6226, 1
        %vm6291 = vcmp.eq.s32.totalorder %v6227, 1
        %vm6292 = vcmp.eq.s32.totalorder %v6228, 1
        %vm6293 = vcmp.eq.s32.totalorder %v6229, 1
        %vm6294 = vcmp.eq.s32.totalorder %v6230, 1
        %vm6295 = vcmp.eq.s32.totalorder %v6231, 1
        %vm6296 = vcmp.eq.s32.totalorder %v6232, 1
        %vm6297 = vcmp.eq.s32.totalorder %v6233, 1
        %vm6298 = vcmp.eq.s32.totalorder %v6234, 1
        %vm6299 = vcmp.eq.s32.totalorder %v6235, 1
        %vm6300 = vcmp.eq.s32.totalorder %v6236, 1
        %vm6301 = vcmp.eq.s32.totalorder %v6237, 1
        %vm6302 = vcmp.eq.s32.totalorder %v6238, 1
        %vm6303 = vcmp.eq.s32.totalorder %v6239, 1
        %vm6304 = vcmp.eq.s32.totalorder %v6240, 1
        %vm6305 = vcmp.eq.s32.totalorder %v6241, 1
        %vm6306 = vcmp.eq.s32.totalorder %v6242, 1
        %vm6307 = vcmp.eq.s32.totalorder %v6243, 1
        %vm6308 = vcmp.eq.s32.totalorder %v6244, 1
        %vm6309 = vcmp.eq.s32.totalorder %v6245, 1
        %vm6310 = vcmp.eq.s32.totalorder %v6246, 1
        %vm6311 = vcmp.eq.s32.totalorder %v6247, 1
        %vm6312 = vcmp.eq.s32.totalorder %v6248, 1
        %vm6313 = vcmp.eq.s32.totalorder %v6249, 1
        %vm6314 = vcmp.eq.s32.totalorder %v6250, 1
        %vm6315 = vcmp.eq.s32.totalorder %v6251, 1
        %vm6316 = vcmp.eq.s32.totalorder %v6252, 1
        %vm6317 = vcmp.eq.s32.totalorder %v6253, 1
        %vm6318 = vcmp.eq.s32.totalorder %v6254, 1
        %vm6319 = vcmp.eq.s32.totalorder %v6255, 1
        %vm6320 = vcmp.eq.s32.totalorder %v6256, 1
        %vm6321 = vcmp.eq.s32.totalorder %v6257, 1
        %vm6322 = vcmp.eq.s32.totalorder %v6258, 1
        %vm6323 = vcmp.eq.s32.totalorder %v6259, 1
        %vm6324 = vcmp.eq.s32.totalorder %v6260, 1
        %vm6325 = vcmp.eq.s32.totalorder %v6261, 1
        %vm6326 = vcmp.eq.s32.totalorder %v6262, 1
        %vm6327 = vcmp.eq.s32.totalorder %v6263, 1
        %vm6328 = vcmp.eq.s32.totalorder %v6264, 1
        %v6329 = vsel %vm6265, %v5945, 0.0
        %v6330 = vsel %vm6265, %v5946, 0.0
        %v6331 = vsel %vm6265, %v5947, 0.0
        %v6332 = vsel %vm6265, %v5948, 0.0
        %v6333 = vsel %vm6266, %v5949, 0.0
        %v6334 = vsel %vm6266, %v5950, 0.0
        %v6335 = vsel %vm6266, %v5951, 0.0
        %v6336 = vsel %vm6266, %v5952, 0.0
        %v6337 = vsel %vm6267, %v5953, 0.0
        %v6338 = vsel %vm6267, %v5954, 0.0
        %v6339 = vsel %vm6267, %v5955, 0.0
        %v6340 = vsel %vm6267, %v5956, 0.0
        %v6341 = vsel %vm6268, %v5957, 0.0
        %v6342 = vsel %vm6268, %v5958, 0.0
        %v6343 = vsel %vm6268, %v5959, 0.0
        %v6344 = vsel %vm6268, %v5960, 0.0
        %v6345 = vsel %vm6269, %v5961, 0.0
        %v6346 = vsel %vm6269, %v5962, 0.0
        %v6347 = vsel %vm6269, %v5963, 0.0
        %v6348 = vsel %vm6269, %v5964, 0.0
        %v6349 = vsel %vm6270, %v5965, 0.0
        %v6350 = vsel %vm6270, %v5966, 0.0
        %v6351 = vsel %vm6270, %v5967, 0.0
        %v6352 = vsel %vm6270, %v5968, 0.0
        %v6353 = vsel %vm6271, %v5969, 0.0
        %v6354 = vsel %vm6271, %v5970, 0.0
        %v6355 = vsel %vm6271, %v5971, 0.0
        %v6356 = vsel %vm6271, %v5972, 0.0
        %v6357 = vsel %vm6272, %v5973, 0.0
        %v6358 = vsel %vm6272, %v5974, 0.0
        %v6359 = vsel %vm6272, %v5975, 0.0
        %v6360 = vsel %vm6272, %v5976, 0.0
        %v6361 = vsel %vm6273, %v5977, 0.0
        %v6362 = vsel %vm6273, %v5978, 0.0
        %v6363 = vsel %vm6273, %v5979, 0.0
        %v6364 = vsel %vm6273, %v5980, 0.0
        %v6365 = vsel %vm6274, %v5981, 0.0
        %v6366 = vsel %vm6274, %v5982, 0.0
        %v6367 = vsel %vm6274, %v5983, 0.0
        %v6368 = vsel %vm6274, %v5984, 0.0
        %v6369 = vsel %vm6275, %v5985, 0.0
        %v6370 = vsel %vm6275, %v5986, 0.0
        %v6371 = vsel %vm6275, %v5987, 0.0
        %v6372 = vsel %vm6275, %v5988, 0.0
        %v6373 = vsel %vm6276, %v5989, 0.0
        %v6374 = vsel %vm6276, %v5990, 0.0
        %v6375 = vsel %vm6276, %v5991, 0.0
        %v6376 = vsel %vm6276, %v5992, 0.0
        %v6377 = vsel %vm6277, %v5993, 0.0
        %v6378 = vsel %vm6277, %v5994, 0.0
        %v6379 = vsel %vm6277, %v5995, 0.0
        %v6380 = vsel %vm6277, %v5996, 0.0
        %v6381 = vsel %vm6278, %v5997, 0.0
        %v6382 = vsel %vm6278, %v5998, 0.0
        %v6383 = vsel %vm6278, %v5999, 0.0
        %v6384 = vsel %vm6278, %v6000, 0.0
        %v6385 = vsel %vm6279, %v6001, 0.0
        %v6386 = vsel %vm6279, %v6002, 0.0
        %v6387 = vsel %vm6279, %v6003, 0.0
        %v6388 = vsel %vm6279, %v6004, 0.0
        %v6389 = vsel %vm6280, %v6005, 0.0
        %v6390 = vsel %vm6280, %v6006, 0.0
        %v6391 = vsel %vm6280, %v6007, 0.0
        %v6392 = vsel %vm6280, %v6008, 0.0
        %v6393 = vsel %vm6281, %v6009, 0.0
        %v6394 = vsel %vm6281, %v6010, 0.0
        %v6395 = vsel %vm6281, %v6011, 0.0
        %v6396 = vsel %vm6281, %v6012, 0.0
        %v6397 = vsel %vm6282, %v6013, 0.0
        %v6398 = vsel %vm6282, %v6014, 0.0
        %v6399 = vsel %vm6282, %v6015, 0.0
        %v6400 = vsel %vm6282, %v6016, 0.0
        %v6401 = vsel %vm6283, %v6017, 0.0
        %v6402 = vsel %vm6283, %v6018, 0.0
        %v6403 = vsel %vm6283, %v6019, 0.0
        %v6404 = vsel %vm6283, %v6020, 0.0
        %v6405 = vsel %vm6284, %v6021, 0.0
        %v6406 = vsel %vm6284, %v6022, 0.0
        %v6407 = vsel %vm6284, %v6023, 0.0
        %v6408 = vsel %vm6284, %v6024, 0.0
        %v6409 = vsel %vm6285, %v6025, 0.0
        %v6410 = vsel %vm6285, %v6026, 0.0
        %v6411 = vsel %vm6285, %v6027, 0.0
        %v6412 = vsel %vm6285, %v6028, 0.0
        %v6413 = vsel %vm6286, %v6029, 0.0
        %v6414 = vsel %vm6286, %v6030, 0.0
        %v6415 = vsel %vm6286, %v6031, 0.0
        %v6416 = vsel %vm6286, %v6032, 0.0
        %v6417 = vsel %vm6287, %v6033, 0.0
        %v6418 = vsel %vm6287, %v6034, 0.0
        %v6419 = vsel %vm6287, %v6035, 0.0
        %v6420 = vsel %vm6287, %v6036, 0.0
        %v6421 = vsel %vm6288, %v6037, 0.0
        %v6422 = vsel %vm6288, %v6038, 0.0
        %v6423 = vsel %vm6288, %v6039, 0.0
        %v6424 = vsel %vm6288, %v6040, 0.0
        %v6425 = vsel %vm6289, %v6041, 0.0
        %v6426 = vsel %vm6289, %v6042, 0.0
        %v6427 = vsel %vm6289, %v6043, 0.0
        %v6428 = vsel %vm6289, %v6044, 0.0
        %v6429 = vsel %vm6290, %v6045, 0.0
        %v6430 = vsel %vm6290, %v6046, 0.0
        %v6431 = vsel %vm6290, %v6047, 0.0
        %v6432 = vsel %vm6290, %v6048, 0.0
        %v6433 = vsel %vm6291, %v6049, 0.0
        %v6434 = vsel %vm6291, %v6050, 0.0
        %v6435 = vsel %vm6291, %v6051, 0.0
        %v6436 = vsel %vm6291, %v6052, 0.0
        %v6437 = vsel %vm6292, %v6053, 0.0
        %v6438 = vsel %vm6292, %v6054, 0.0
        %v6439 = vsel %vm6292, %v6055, 0.0
        %v6440 = vsel %vm6292, %v6056, 0.0
        %v6441 = vsel %vm6293, %v6057, 0.0
        %v6442 = vsel %vm6293, %v6058, 0.0
        %v6443 = vsel %vm6293, %v6059, 0.0
        %v6444 = vsel %vm6293, %v6060, 0.0
        %v6445 = vsel %vm6294, %v6061, 0.0
        %v6446 = vsel %vm6294, %v6062, 0.0
        %v6447 = vsel %vm6294, %v6063, 0.0
        %v6448 = vsel %vm6294, %v6064, 0.0
        %v6449 = vsel %vm6295, %v6065, 0.0
        %v6450 = vsel %vm6295, %v6066, 0.0
        %v6451 = vsel %vm6295, %v6067, 0.0
        %v6452 = vsel %vm6295, %v6068, 0.0
        %v6453 = vsel %vm6296, %v6069, 0.0
        %v6454 = vsel %vm6296, %v6070, 0.0
        %v6455 = vsel %vm6296, %v6071, 0.0
        %v6456 = vsel %vm6296, %v6072, 0.0
        %v6457 = vsel %vm6297, %v6073, 0.0
        %v6458 = vsel %vm6297, %v6074, 0.0
        %v6459 = vsel %vm6297, %v6075, 0.0
        %v6460 = vsel %vm6297, %v6076, 0.0
        %v6461 = vsel %vm6298, %v6077, 0.0
        %v6462 = vsel %vm6298, %v6078, 0.0
        %v6463 = vsel %vm6298, %v6079, 0.0
        %v6464 = vsel %vm6298, %v6080, 0.0
        %v6465 = vsel %vm6299, %v6081, 0.0
        %v6466 = vsel %vm6299, %v6082, 0.0
        %v6467 = vsel %vm6299, %v6083, 0.0
        %v6468 = vsel %vm6299, %v6084, 0.0
        %v6469 = vsel %vm6300, %v6085, 0.0
        %v6470 = vsel %vm6300, %v6086, 0.0
        %v6471 = vsel %vm6300, %v6087, 0.0
        %v6472 = vsel %vm6300, %v6088, 0.0
        %v6473 = vsel %vm6301, %v6089, 0.0
        %v6474 = vsel %vm6301, %v6090, 0.0
        %v6475 = vsel %vm6301, %v6091, 0.0
        %v6476 = vsel %vm6301, %v6092, 0.0
        %v6477 = vsel %vm6302, %v6093, 0.0
        %v6478 = vsel %vm6302, %v6094, 0.0
        %v6479 = vsel %vm6302, %v6095, 0.0
        %v6480 = vsel %vm6302, %v6096, 0.0
        %v6481 = vsel %vm6303, %v6097, 0.0
        %v6482 = vsel %vm6303, %v6098, 0.0
        %v6483 = vsel %vm6303, %v6099, 0.0
        %v6484 = vsel %vm6303, %v6100, 0.0
        %v6485 = vsel %vm6304, %v6101, 0.0
        %v6486 = vsel %vm6304, %v6102, 0.0
        %v6487 = vsel %vm6304, %v6103, 0.0
        %v6488 = vsel %vm6304, %v6104, 0.0
        %v6489 = vsel %vm6305, %v6105, 0.0
        %v6490 = vsel %vm6305, %v6106, 0.0
        %v6491 = vsel %vm6305, %v6107, 0.0
        %v6492 = vsel %vm6305, %v6108, 0.0
        %v6493 = vsel %vm6306, %v6109, 0.0
        %v6494 = vsel %vm6306, %v6110, 0.0
        %v6495 = vsel %vm6306, %v6111, 0.0
        %v6496 = vsel %vm6306, %v6112, 0.0
        %v6497 = vsel %vm6307, %v6113, 0.0
        %v6498 = vsel %vm6307, %v6114, 0.0
        %v6499 = vsel %vm6307, %v6115, 0.0
        %v6500 = vsel %vm6307, %v6116, 0.0
        %v6501 = vsel %vm6308, %v6117, 0.0
        %v6502 = vsel %vm6308, %v6118, 0.0
        %v6503 = vsel %vm6308, %v6119, 0.0
        %v6504 = vsel %vm6308, %v6120, 0.0
        %v6505 = vsel %vm6309, %v6121, 0.0
        %v6506 = vsel %vm6309, %v6122, 0.0
        %v6507 = vsel %vm6309, %v6123, 0.0
        %v6508 = vsel %vm6309, %v6124, 0.0
        %v6509 = vsel %vm6310, %v6125, 0.0
        %v6510 = vsel %vm6310, %v6126, 0.0
        %v6511 = vsel %vm6310, %v6127, 0.0
        %v6512 = vsel %vm6310, %v6128, 0.0
        %v6513 = vsel %vm6311, %v6129, 0.0
        %v6514 = vsel %vm6311, %v6130, 0.0
        %v6515 = vsel %vm6311, %v6131, 0.0
        %v6516 = vsel %vm6311, %v6132, 0.0
        %v6517 = vsel %vm6312, %v6133, 0.0
        %v6518 = vsel %vm6312, %v6134, 0.0
        %v6519 = vsel %vm6312, %v6135, 0.0
        %v6520 = vsel %vm6312, %v6136, 0.0
        %v6521 = vsel %vm6313, %v6137, 0.0
        %v6522 = vsel %vm6313, %v6138, 0.0
        %v6523 = vsel %vm6313, %v6139, 0.0
        %v6524 = vsel %vm6313, %v6140, 0.0
        %v6525 = vsel %vm6314, %v6141, 0.0
        %v6526 = vsel %vm6314, %v6142, 0.0
        %v6527 = vsel %vm6314, %v6143, 0.0
        %v6528 = vsel %vm6314, %v6144, 0.0
        %v6529 = vsel %vm6315, %v6145, 0.0
        %v6530 = vsel %vm6315, %v6146, 0.0
        %v6531 = vsel %vm6315, %v6147, 0.0
        %v6532 = vsel %vm6315, %v6148, 0.0
        %v6533 = vsel %vm6316, %v6149, 0.0
        %v6534 = vsel %vm6316, %v6150, 0.0
        %v6535 = vsel %vm6316, %v6151, 0.0
        %v6536 = vsel %vm6316, %v6152, 0.0
        %v6537 = vsel %vm6317, %v6153, 0.0
        %v6538 = vsel %vm6317, %v6154, 0.0
        %v6539 = vsel %vm6317, %v6155, 0.0
        %v6540 = vsel %vm6317, %v6156, 0.0
        %v6541 = vsel %vm6318, %v6157, 0.0
        %v6542 = vsel %vm6318, %v6158, 0.0
        %v6543 = vsel %vm6318, %v6159, 0.0
        %v6544 = vsel %vm6318, %v6160, 0.0
        %v6545 = vsel %vm6319, %v6161, 0.0
        %v6546 = vsel %vm6319, %v6162, 0.0
        %v6547 = vsel %vm6319, %v6163, 0.0
        %v6548 = vsel %vm6319, %v6164, 0.0
        %v6549 = vsel %vm6320, %v6165, 0.0
        %v6550 = vsel %vm6320, %v6166, 0.0
        %v6551 = vsel %vm6320, %v6167, 0.0
        %v6552 = vsel %vm6320, %v6168, 0.0
        %v6553 = vsel %vm6321, %v6169, 0.0
        %v6554 = vsel %vm6321, %v6170, 0.0
        %v6555 = vsel %vm6321, %v6171, 0.0
        %v6556 = vsel %vm6321, %v6172, 0.0
        %v6557 = vsel %vm6322, %v6173, 0.0
        %v6558 = vsel %vm6322, %v6174, 0.0
        %v6559 = vsel %vm6322, %v6175, 0.0
        %v6560 = vsel %vm6322, %v6176, 0.0
        %v6561 = vsel %vm6323, %v6177, 0.0
        %v6562 = vsel %vm6323, %v6178, 0.0
        %v6563 = vsel %vm6323, %v6179, 0.0
        %v6564 = vsel %vm6323, %v6180, 0.0
        %v6565 = vsel %vm6324, %v6181, 0.0
        %v6566 = vsel %vm6324, %v6182, 0.0
        %v6567 = vsel %vm6324, %v6183, 0.0
        %v6568 = vsel %vm6324, %v6184, 0.0
        %v6569 = vsel %vm6325, %v6185, 0.0
        %v6570 = vsel %vm6325, %v6186, 0.0
        %v6571 = vsel %vm6325, %v6187, 0.0
        %v6572 = vsel %vm6325, %v6188, 0.0
        %v6573 = vsel %vm6326, %v6189, 0.0
        %v6574 = vsel %vm6326, %v6190, 0.0
        %v6575 = vsel %vm6326, %v6191, 0.0
        %v6576 = vsel %vm6326, %v6192, 0.0
        %v6577 = vsel %vm6327, %v6193, 0.0
        %v6578 = vsel %vm6327, %v6194, 0.0
        %v6579 = vsel %vm6327, %v6195, 0.0
        %v6580 = vsel %vm6327, %v6196, 0.0
        %v6581 = vsel %vm6328, %v6197, 0.0
        %v6582 = vsel %vm6328, %v6198, 0.0
        %v6583 = vsel %vm6328, %v6199, 0.0
        %v6584 = vsel %vm6328, %v6200, 0.0
        %v6585 = vpack.c.bf16 %v6333, %v6329
        %v6586 = vpack.c.bf16 %v6334, %v6330
        %v6587 = vpack.c.bf16 %v6335, %v6331
        %v6588 = vpack.c.bf16 %v6336, %v6332
        %v6589 = vpack.c.bf16 %v6341, %v6337
        %v6590 = vpack.c.bf16 %v6342, %v6338
        %v6591 = vpack.c.bf16 %v6343, %v6339
        %v6592 = vpack.c.bf16 %v6344, %v6340
        %v6593 = vpack.c.bf16 %v6349, %v6345
        %v6594 = vpack.c.bf16 %v6350, %v6346
        %v6595 = vpack.c.bf16 %v6351, %v6347
        %v6596 = vpack.c.bf16 %v6352, %v6348
        %v6597 = vpack.c.bf16 %v6357, %v6353
        %v6598 = vpack.c.bf16 %v6358, %v6354
        %v6599 = vpack.c.bf16 %v6359, %v6355
        %v6600 = vpack.c.bf16 %v6360, %v6356
        %v6601 = vpack.c.bf16 %v6365, %v6361
        %v6602 = vpack.c.bf16 %v6366, %v6362
        %v6603 = vpack.c.bf16 %v6367, %v6363
        %v6604 = vpack.c.bf16 %v6368, %v6364
        %v6605 = vpack.c.bf16 %v6373, %v6369
        %v6606 = vpack.c.bf16 %v6374, %v6370
        %v6607 = vpack.c.bf16 %v6375, %v6371
        %v6608 = vpack.c.bf16 %v6376, %v6372
        %v6609 = vpack.c.bf16 %v6381, %v6377
        %v6610 = vpack.c.bf16 %v6382, %v6378
        %v6611 = vpack.c.bf16 %v6383, %v6379
        %v6612 = vpack.c.bf16 %v6384, %v6380
        %v6613 = vpack.c.bf16 %v6389, %v6385
        %v6614 = vpack.c.bf16 %v6390, %v6386
        %v6615 = vpack.c.bf16 %v6391, %v6387
        %v6616 = vpack.c.bf16 %v6392, %v6388
        %v6617 = vpack.c.bf16 %v6397, %v6393
        %v6618 = vpack.c.bf16 %v6398, %v6394
        %v6619 = vpack.c.bf16 %v6399, %v6395
        %v6620 = vpack.c.bf16 %v6400, %v6396
        %v6621 = vpack.c.bf16 %v6405, %v6401
        %v6622 = vpack.c.bf16 %v6406, %v6402
        %v6623 = vpack.c.bf16 %v6407, %v6403
        %v6624 = vpack.c.bf16 %v6408, %v6404
        %v6625 = vpack.c.bf16 %v6413, %v6409
        %v6626 = vpack.c.bf16 %v6414, %v6410
        %v6627 = vpack.c.bf16 %v6415, %v6411
        %v6628 = vpack.c.bf16 %v6416, %v6412
        %v6629 = vpack.c.bf16 %v6421, %v6417
        %v6630 = vpack.c.bf16 %v6422, %v6418
        %v6631 = vpack.c.bf16 %v6423, %v6419
        %v6632 = vpack.c.bf16 %v6424, %v6420
        %v6633 = vpack.c.bf16 %v6429, %v6425
        %v6634 = vpack.c.bf16 %v6430, %v6426
        %v6635 = vpack.c.bf16 %v6431, %v6427
        %v6636 = vpack.c.bf16 %v6432, %v6428
        %v6637 = vpack.c.bf16 %v6437, %v6433
        %v6638 = vpack.c.bf16 %v6438, %v6434
        %v6639 = vpack.c.bf16 %v6439, %v6435
        %v6640 = vpack.c.bf16 %v6440, %v6436
        %v6641 = vpack.c.bf16 %v6445, %v6441
        %v6642 = vpack.c.bf16 %v6446, %v6442
        %v6643 = vpack.c.bf16 %v6447, %v6443
        %v6644 = vpack.c.bf16 %v6448, %v6444
        %v6645 = vpack.c.bf16 %v6453, %v6449
        %v6646 = vpack.c.bf16 %v6454, %v6450
        %v6647 = vpack.c.bf16 %v6455, %v6451
        %v6648 = vpack.c.bf16 %v6456, %v6452
        %v6649 = vpack.c.bf16 %v6461, %v6457
        %v6650 = vpack.c.bf16 %v6462, %v6458
        %v6651 = vpack.c.bf16 %v6463, %v6459
        %v6652 = vpack.c.bf16 %v6464, %v6460
        %v6653 = vpack.c.bf16 %v6469, %v6465
        %v6654 = vpack.c.bf16 %v6470, %v6466
        %v6655 = vpack.c.bf16 %v6471, %v6467
        %v6656 = vpack.c.bf16 %v6472, %v6468
        %v6657 = vpack.c.bf16 %v6477, %v6473
        %v6658 = vpack.c.bf16 %v6478, %v6474
        %v6659 = vpack.c.bf16 %v6479, %v6475
        %v6660 = vpack.c.bf16 %v6480, %v6476
        %v6661 = vpack.c.bf16 %v6485, %v6481
        %v6662 = vpack.c.bf16 %v6486, %v6482
        %v6663 = vpack.c.bf16 %v6487, %v6483
        %v6664 = vpack.c.bf16 %v6488, %v6484
        %v6665 = vpack.c.bf16 %v6493, %v6489
        %v6666 = vpack.c.bf16 %v6494, %v6490
        %v6667 = vpack.c.bf16 %v6495, %v6491
        %v6668 = vpack.c.bf16 %v6496, %v6492
        %v6669 = vpack.c.bf16 %v6501, %v6497
        %v6670 = vpack.c.bf16 %v6502, %v6498
        %v6671 = vpack.c.bf16 %v6503, %v6499
        %v6672 = vpack.c.bf16 %v6504, %v6500
        %v6673 = vpack.c.bf16 %v6509, %v6505
        %v6674 = vpack.c.bf16 %v6510, %v6506
        %v6675 = vpack.c.bf16 %v6511, %v6507
        %v6676 = vpack.c.bf16 %v6512, %v6508
        %v6677 = vpack.c.bf16 %v6517, %v6513
        %v6678 = vpack.c.bf16 %v6518, %v6514
        %v6679 = vpack.c.bf16 %v6519, %v6515
        %v6680 = vpack.c.bf16 %v6520, %v6516
        %v6681 = vpack.c.bf16 %v6525, %v6521
        %v6682 = vpack.c.bf16 %v6526, %v6522
        %v6683 = vpack.c.bf16 %v6527, %v6523
        %v6684 = vpack.c.bf16 %v6528, %v6524
        %v6685 = vpack.c.bf16 %v6533, %v6529
        %v6686 = vpack.c.bf16 %v6534, %v6530
        %v6687 = vpack.c.bf16 %v6535, %v6531
        %v6688 = vpack.c.bf16 %v6536, %v6532
        %v6689 = vpack.c.bf16 %v6541, %v6537
        %v6690 = vpack.c.bf16 %v6542, %v6538
        %v6691 = vpack.c.bf16 %v6543, %v6539
        %v6692 = vpack.c.bf16 %v6544, %v6540
        %v6693 = vpack.c.bf16 %v6549, %v6545
        %v6694 = vpack.c.bf16 %v6550, %v6546
        %v6695 = vpack.c.bf16 %v6551, %v6547
        %v6696 = vpack.c.bf16 %v6552, %v6548
        %v6697 = vpack.c.bf16 %v6557, %v6553
        %v6698 = vpack.c.bf16 %v6558, %v6554
        %v6699 = vpack.c.bf16 %v6559, %v6555
        %v6700 = vpack.c.bf16 %v6560, %v6556
        %v6701 = vpack.c.bf16 %v6565, %v6561
        %v6702 = vpack.c.bf16 %v6566, %v6562
        %v6703 = vpack.c.bf16 %v6567, %v6563
        %v6704 = vpack.c.bf16 %v6568, %v6564
        %v6705 = vpack.c.bf16 %v6573, %v6569
        %v6706 = vpack.c.bf16 %v6574, %v6570
        %v6707 = vpack.c.bf16 %v6575, %v6571
        %v6708 = vpack.c.bf16 %v6576, %v6572
        %v6709 = vpack.c.bf16 %v6581, %v6577
        %v6710 = vpack.c.bf16 %v6582, %v6578
        %v6711 = vpack.c.bf16 %v6583, %v6579
        %v6712 = vpack.c.bf16 %v6584, %v6580
        %v6713 = vld [vmem:[#allocation13] sm:$0xf]
        %v6714 = vld [vmem:[#allocation13 + $0x4] sm:$0xf]
        %v6715 = vld [vmem:[#allocation13 + $0x8] sm:$0xf]
        %v6716 = vld [vmem:[#allocation13 + $0xc] sm:$0xf]
        %v6717 = vld [vmem:[#allocation13 + $0x10] sm:$0xf]
        %v6718 = vld [vmem:[#allocation13 + $0x14] sm:$0xf]
        %v6719 = vld [vmem:[#allocation13 + $0x18] sm:$0xf]
        %v6720 = vld [vmem:[#allocation13 + $0x1c] sm:$0xf]
        %v6721 = vld [vmem:[#allocation13 + $0x20] sm:$0xf]
        %v6722 = vld [vmem:[#allocation13 + $0x24] sm:$0xf]
        %v6723 = vld [vmem:[#allocation13 + $0x28] sm:$0xf]
        %v6724 = vld [vmem:[#allocation13 + $0x2c] sm:$0xf]
        %v6725 = vld [vmem:[#allocation13 + $0x30] sm:$0xf]
        %v6726 = vld [vmem:[#allocation13 + $0x34] sm:$0xf]
        %v6727 = vld [vmem:[#allocation13 + $0x38] sm:$0xf]
        %v6728 = vld [vmem:[#allocation13 + $0x3c] sm:$0xf]
        %v6729 = vld [vmem:[#allocation13 + $0x40] sm:$0xf]
        %v6730 = vld [vmem:[#allocation13 + $0x44] sm:$0xf]
        %v6731 = vld [vmem:[#allocation13 + $0x48] sm:$0xf]
        %v6732 = vld [vmem:[#allocation13 + $0x4c] sm:$0xf]
        %v6733 = vld [vmem:[#allocation13 + $0x50] sm:$0xf]
        %v6734 = vld [vmem:[#allocation13 + $0x54] sm:$0xf]
        %v6735 = vld [vmem:[#allocation13 + $0x58] sm:$0xf]
        %v6736 = vld [vmem:[#allocation13 + $0x5c] sm:$0xf]
        %v6737 = vld [vmem:[#allocation13 + $0x60] sm:$0xf]
        %v6738 = vld [vmem:[#allocation13 + $0x64] sm:$0xf]
        %v6739 = vld [vmem:[#allocation13 + $0x68] sm:$0xf]
        %v6740 = vld [vmem:[#allocation13 + $0x6c] sm:$0xf]
        %v6741 = vld [vmem:[#allocation13 + $0x70] sm:$0xf]
        %v6742 = vld [vmem:[#allocation13 + $0x74] sm:$0xf]
        %v6743 = vld [vmem:[#allocation13 + $0x78] sm:$0xf]
        %v6744 = vld [vmem:[#allocation13 + $0x7c] sm:$0xf]
        %v6745 = vld [vmem:[#allocation13 + $0x80] sm:$0xf]
        %v6746 = vld [vmem:[#allocation13 + $0x84] sm:$0xf]
        %v6747 = vld [vmem:[#allocation13 + $0x88] sm:$0xf]
        %v6748 = vld [vmem:[#allocation13 + $0x8c] sm:$0xf]
        %v6749 = vld [vmem:[#allocation13 + $0x90] sm:$0xf]
        %v6750 = vld [vmem:[#allocation13 + $0x94] sm:$0xf]
        %v6751 = vld [vmem:[#allocation13 + $0x98] sm:$0xf]
        %v6752 = vld [vmem:[#allocation13 + $0x9c] sm:$0xf]
        %v6753 = vld [vmem:[#allocation13 + $0xa0] sm:$0xf]
        %v6754 = vld [vmem:[#allocation13 + $0xa4] sm:$0xf]
        %v6755 = vld [vmem:[#allocation13 + $0xa8] sm:$0xf]
        %v6756 = vld [vmem:[#allocation13 + $0xac] sm:$0xf]
        %v6757 = vld [vmem:[#allocation13 + $0xb0] sm:$0xf]
        %v6758 = vld [vmem:[#allocation13 + $0xb4] sm:$0xf]
        %v6759 = vld [vmem:[#allocation13 + $0xb8] sm:$0xf]
        %v6760 = vld [vmem:[#allocation13 + $0xbc] sm:$0xf]
        %v6761 = vld [vmem:[#allocation13 + $0xc0] sm:$0xf]
        %v6762 = vld [vmem:[#allocation13 + $0xc4] sm:$0xf]
        %v6763 = vld [vmem:[#allocation13 + $0xc8] sm:$0xf]
        %v6764 = vld [vmem:[#allocation13 + $0xcc] sm:$0xf]
        %v6765 = vld [vmem:[#allocation13 + $0xd0] sm:$0xf]
        %v6766 = vld [vmem:[#allocation13 + $0xd4] sm:$0xf]
        %v6767 = vld [vmem:[#allocation13 + $0xd8] sm:$0xf]
        %v6768 = vld [vmem:[#allocation13 + $0xdc] sm:$0xf]
        %v6769 = vld [vmem:[#allocation13 + $0xe0] sm:$0xf]
        %v6770 = vld [vmem:[#allocation13 + $0xe4] sm:$0xf]
        %v6771 = vld [vmem:[#allocation13 + $0xe8] sm:$0xf]
        %v6772 = vld [vmem:[#allocation13 + $0xec] sm:$0xf]
        %v6773 = vld [vmem:[#allocation13 + $0xf0] sm:$0xf]
        %v6774 = vld [vmem:[#allocation13 + $0xf4] sm:$0xf]
        %v6775 = vld [vmem:[#allocation13 + $0xf8] sm:$0xf]
        %v6776 = vld [vmem:[#allocation13 + $0xfc] sm:$0xf]
        %v6777 = vld [vmem:[#allocation15] sm:$0x1]
        %v6779 = vlaneseq
        %v6780 = vshrl.u32 %v6779, 7
        %v6781 = vsub.s32 0, %v6780
        %v6782 = vrot.slane %v6777, %v6781
        %v6848 = vunpack.c.l.b16 %v6713
        %v6849 = vunpack.c.l.b16 %v6714
        %v6850 = vunpack.c.l.b16 %v6715
        %v6851 = vunpack.c.l.b16 %v6716
        %v6852 = vunpack.c.l.b16 %v6717
        %v6853 = vunpack.c.l.b16 %v6718
        %v6854 = vunpack.c.l.b16 %v6719
        %v6855 = vunpack.c.l.b16 %v6720
        %v6856 = vunpack.c.l.b16 %v6721
        %v6857 = vunpack.c.l.b16 %v6722
        %v6858 = vunpack.c.l.b16 %v6723
        %v6859 = vunpack.c.l.b16 %v6724
        %v6860 = vunpack.c.l.b16 %v6725
        %v6861 = vunpack.c.l.b16 %v6726
        %v6862 = vunpack.c.l.b16 %v6727
        %v6863 = vunpack.c.l.b16 %v6728
        %v6864 = vunpack.c.l.b16 %v6729
        %v6865 = vunpack.c.l.b16 %v6730
        %v6866 = vunpack.c.l.b16 %v6731
        %v6867 = vunpack.c.l.b16 %v6732
        %v6868 = vunpack.c.l.b16 %v6733
        %v6869 = vunpack.c.l.b16 %v6734
        %v6870 = vunpack.c.l.b16 %v6735
        %v6871 = vunpack.c.l.b16 %v6736
        %v6872 = vunpack.c.l.b16 %v6737
        %v6873 = vunpack.c.l.b16 %v6738
        %v6874 = vunpack.c.l.b16 %v6739
        %v6875 = vunpack.c.l.b16 %v6740
        %v6876 = vunpack.c.l.b16 %v6741
        %v6877 = vunpack.c.l.b16 %v6742
        %v6878 = vunpack.c.l.b16 %v6743
        %v6879 = vunpack.c.l.b16 %v6744
        %v6880 = vunpack.c.l.b16 %v6745
        %v6881 = vunpack.c.l.b16 %v6746
        %v6882 = vunpack.c.l.b16 %v6747
        %v6883 = vunpack.c.l.b16 %v6748
        %v6884 = vunpack.c.l.b16 %v6749
        %v6885 = vunpack.c.l.b16 %v6750
        %v6886 = vunpack.c.l.b16 %v6751
        %v6887 = vunpack.c.l.b16 %v6752
        %v6888 = vunpack.c.l.b16 %v6753
        %v6889 = vunpack.c.l.b16 %v6754
        %v6890 = vunpack.c.l.b16 %v6755
        %v6891 = vunpack.c.l.b16 %v6756
        %v6892 = vunpack.c.l.b16 %v6757
        %v6893 = vunpack.c.l.b16 %v6758
        %v6894 = vunpack.c.l.b16 %v6759
        %v6895 = vunpack.c.l.b16 %v6760
        %v6896 = vunpack.c.l.b16 %v6761
        %v6897 = vunpack.c.l.b16 %v6762
        %v6898 = vunpack.c.l.b16 %v6763
        %v6899 = vunpack.c.l.b16 %v6764
        %v6900 = vunpack.c.l.b16 %v6765
        %v6901 = vunpack.c.l.b16 %v6766
        %v6902 = vunpack.c.l.b16 %v6767
        %v6903 = vunpack.c.l.b16 %v6768
        %v6904 = vunpack.c.l.b16 %v6769
        %v6905 = vunpack.c.l.b16 %v6770
        %v6906 = vunpack.c.l.b16 %v6771
        %v6907 = vunpack.c.l.b16 %v6772
        %v6908 = vunpack.c.l.b16 %v6773
        %v6909 = vunpack.c.l.b16 %v6774
        %v6910 = vunpack.c.l.b16 %v6775
        %v6911 = vunpack.c.l.b16 %v6776
        %v6912 = vpack.c.b16 %v6849, %v6848
        %v6913 = vpack.c.b16 %v6851, %v6850
        %v6914 = vpack.c.b16 %v6853, %v6852
        %v6915 = vpack.c.b16 %v6855, %v6854
        %v6916 = vpack.c.b16 %v6857, %v6856
        %v6917 = vpack.c.b16 %v6859, %v6858
        %v6918 = vpack.c.b16 %v6861, %v6860
        %v6919 = vpack.c.b16 %v6863, %v6862
        %v6920 = vpack.c.b16 %v6865, %v6864
        %v6921 = vpack.c.b16 %v6867, %v6866
        %v6922 = vpack.c.b16 %v6869, %v6868
        %v6923 = vpack.c.b16 %v6871, %v6870
        %v6924 = vpack.c.b16 %v6873, %v6872
        %v6925 = vpack.c.b16 %v6875, %v6874
        %v6926 = vpack.c.b16 %v6877, %v6876
        %v6927 = vpack.c.b16 %v6879, %v6878
        %v6928 = vpack.c.b16 %v6881, %v6880
        %v6929 = vpack.c.b16 %v6883, %v6882
        %v6930 = vpack.c.b16 %v6885, %v6884
        %v6931 = vpack.c.b16 %v6887, %v6886
        %v6932 = vpack.c.b16 %v6889, %v6888
        %v6933 = vpack.c.b16 %v6891, %v6890
        %v6934 = vpack.c.b16 %v6893, %v6892
        %v6935 = vpack.c.b16 %v6895, %v6894
        %v6936 = vpack.c.b16 %v6897, %v6896
        %v6937 = vpack.c.b16 %v6899, %v6898
        %v6938 = vpack.c.b16 %v6901, %v6900
        %v6939 = vpack.c.b16 %v6903, %v6902
        %v6940 = vpack.c.b16 %v6905, %v6904
        %v6941 = vpack.c.b16 %v6907, %v6906
        %v6942 = vpack.c.b16 %v6909, %v6908
        %v6943 = vpack.c.b16 %v6911, %v6910
        %6976 = vmatprep.subr.bf16.mxu0 0
        %6977 = vmatpush1.bf16.msra.mxu0 %v6919
        %6978 = vmatprep.subr.bf16.mxu0 0
        %6979 = vmatpush1.bf16.msra.mxu0 %v6918
        %6980 = vmatprep.subr.bf16.mxu0 0
        %6981 = vmatpush1.bf16.msra.mxu0 %v6917
        %6982 = vmatprep.subr.bf16.mxu0 0
        %6983 = vmatpush1.bf16.msra.mxu0 %v6916
        %6984 = vmatprep.subr.bf16.mxu0 0
        %6985 = vmatpush1.bf16.msra.mxu0 %v6915
        %6986 = vmatprep.subr.bf16.mxu0 0
        %6987 = vmatpush1.bf16.msra.mxu0 %v6914
        %6988 = vmatprep.subr.bf16.mxu0 0
        %6989 = vmatpush1.bf16.msra.mxu0 %v6913
        %6990 = vmatprep.subr.bf16.mxu0 0
        %6991 = vmatpush1.bf16.msra.mxu0 %v6912
        %6992 = vmatprep.subr.bf16.mxu0 0
        %6993 = vmatpush2.bf16.msra.mxu0 %v6927
        %6994 = vmatprep.subr.bf16.mxu0 0
        %6995 = vmatpush2.bf16.msra.mxu0 %v6926
        %6996 = vmatprep.subr.bf16.mxu0 0
        %6997 = vmatpush2.bf16.msra.mxu0 %v6925
        %6998 = vmatprep.subr.bf16.mxu0 0
        %6999 = vmatpush2.bf16.msra.mxu0 %v6924
        %7000 = vmatprep.subr.bf16.mxu0 0
        %7001 = vmatpush2.bf16.msra.mxu0 %v6923
        %7002 = vmatprep.subr.bf16.mxu0 0
        %7003 = vmatpush2.bf16.msra.mxu0 %v6922
        %7004 = vmatprep.subr.bf16.mxu0 0
        %7005 = vmatpush2.bf16.msra.mxu0 %v6921
        %7006 = vmatprep.subr.bf16.mxu0 0
        %7007 = vmatpush2.bf16.msra.mxu0 %v6920
        %7008 = vmatprep.mubr.bf16.mxu0 %v6586
        %7009 = vmatmul.mubr.bf16.gmra.mxu0 %v6585
        %v7010 = vpop.f32.mrf.mxu0
        %v7011 = vadd.f32 %v6782, %v7010
        %v7012 = vpop.f32.mrf.mxu0
        %v7013 = vpop.f32.mrf.mxu0
        %v7014 = vadd.f32 %v6782, %v7013
        %v7015 = vpop.f32.mrf.mxu0
        %7016 = vmatprep.mubr.bf16.mxu0 %v6590
        %7017 = vmatmul.mubr.bf16.gmra.mxu0 %v6589
        %v7018 = vpop.f32.mrf.mxu0
        %v7019 = vadd.f32 %v6782, %v7018
        %v7020 = vpop.f32.mrf.mxu0
        %v7021 = vpop.f32.mrf.mxu0
        %v7022 = vadd.f32 %v6782, %v7021
        %v7023 = vpop.f32.mrf.mxu0
        %7024 = vmatprep.mubr.bf16.mxu0 %v6594
        %7025 = vmatmul.mubr.bf16.gmra.mxu0 %v6593
        %v7026 = vpop.f32.mrf.mxu0
        %v7027 = vadd.f32 %v6782, %v7026
        %v7028 = vpop.f32.mrf.mxu0
        %v7029 = vpop.f32.mrf.mxu0
        %v7030 = vadd.f32 %v6782, %v7029
        %v7031 = vpop.f32.mrf.mxu0
        %7032 = vmatprep.mubr.bf16.mxu0 %v6598
        %7033 = vmatmul.mubr.bf16.gmra.mxu0 %v6597
        %v7034 = vpop.f32.mrf.mxu0
        %v7035 = vadd.f32 %v6782, %v7034
        %v7036 = vpop.f32.mrf.mxu0
        %v7037 = vpop.f32.mrf.mxu0
        %v7038 = vadd.f32 %v6782, %v7037
        %v7039 = vpop.f32.mrf.mxu0
        %7040 = vmatprep.mubr.bf16.mxu0 %v6602
        %7041 = vmatmul.mubr.bf16.gmra.mxu0 %v6601
        %v7042 = vpop.f32.mrf.mxu0
        %v7043 = vadd.f32 %v6782, %v7042
        %v7044 = vpop.f32.mrf.mxu0
        %v7045 = vpop.f32.mrf.mxu0
        %v7046 = vadd.f32 %v6782, %v7045
        %v7047 = vpop.f32.mrf.mxu0
        %7048 = vmatprep.mubr.bf16.mxu0 %v6606
        %7049 = vmatmul.mubr.bf16.gmra.mxu0 %v6605
        %v7050 = vpop.f32.mrf.mxu0
        %v7051 = vadd.f32 %v6782, %v7050
        %v7052 = vpop.f32.mrf.mxu0
        %v7053 = vpop.f32.mrf.mxu0
        %v7054 = vadd.f32 %v6782, %v7053
        %v7055 = vpop.f32.mrf.mxu0
        %7056 = vmatprep.mubr.bf16.mxu0 %v6610
        %7057 = vmatmul.mubr.bf16.gmra.mxu0 %v6609
        %v7058 = vpop.f32.mrf.mxu0
        %v7059 = vadd.f32 %v6782, %v7058
        %v7060 = vpop.f32.mrf.mxu0
        %v7061 = vpop.f32.mrf.mxu0
        %v7062 = vadd.f32 %v6782, %v7061
        %v7063 = vpop.f32.mrf.mxu0
        %7064 = vmatprep.mubr.bf16.mxu0 %v6614
        %7065 = vmatmul.mubr.bf16.gmra.mxu0 %v6613
        %v7066 = vpop.f32.mrf.mxu0
        %v7067 = vadd.f32 %v6782, %v7066
        %v7068 = vpop.f32.mrf.mxu0
        %v7069 = vpop.f32.mrf.mxu0
        %v7070 = vadd.f32 %v6782, %v7069
        %v7071 = vpop.f32.mrf.mxu0
        %7072 = vmatprep.mubr.bf16.mxu0 %v6618
        %7073 = vmatmul.mubr.bf16.gmra.mxu0 %v6617
        %v7074 = vpop.f32.mrf.mxu0
        %v7075 = vadd.f32 %v6782, %v7074
        %v7076 = vpop.f32.mrf.mxu0
        %v7077 = vpop.f32.mrf.mxu0
        %v7078 = vadd.f32 %v6782, %v7077
        %v7079 = vpop.f32.mrf.mxu0
        %7080 = vmatprep.mubr.bf16.mxu0 %v6622
        %7081 = vmatmul.mubr.bf16.gmra.mxu0 %v6621
        %v7082 = vpop.f32.mrf.mxu0
        %v7083 = vadd.f32 %v6782, %v7082
        %v7084 = vpop.f32.mrf.mxu0
        %v7085 = vpop.f32.mrf.mxu0
        %v7086 = vadd.f32 %v6782, %v7085
        %v7087 = vpop.f32.mrf.mxu0
        %7088 = vmatprep.mubr.bf16.mxu0 %v6626
        %7089 = vmatmul.mubr.bf16.gmra.mxu0 %v6625
        %v7090 = vpop.f32.mrf.mxu0
        %v7091 = vadd.f32 %v6782, %v7090
        %v7092 = vpop.f32.mrf.mxu0
        %v7093 = vpop.f32.mrf.mxu0
        %v7094 = vadd.f32 %v6782, %v7093
        %v7095 = vpop.f32.mrf.mxu0
        %7096 = vmatprep.mubr.bf16.mxu0 %v6630
        %7097 = vmatmul.mubr.bf16.gmra.mxu0 %v6629
        %v7098 = vpop.f32.mrf.mxu0
        %v7099 = vadd.f32 %v6782, %v7098
        %v7100 = vpop.f32.mrf.mxu0
        %v7101 = vpop.f32.mrf.mxu0
        %v7102 = vadd.f32 %v6782, %v7101
        %v7103 = vpop.f32.mrf.mxu0
        %7104 = vmatprep.mubr.bf16.mxu0 %v6634
        %7105 = vmatmul.mubr.bf16.gmra.mxu0 %v6633
        %v7106 = vpop.f32.mrf.mxu0
        %v7107 = vadd.f32 %v6782, %v7106
        %v7108 = vpop.f32.mrf.mxu0
        %v7109 = vpop.f32.mrf.mxu0
        %v7110 = vadd.f32 %v6782, %v7109
        %v7111 = vpop.f32.mrf.mxu0
        %7112 = vmatprep.mubr.bf16.mxu0 %v6638
        %7113 = vmatmul.mubr.bf16.gmra.mxu0 %v6637
        %v7114 = vpop.f32.mrf.mxu0
        %v7115 = vadd.f32 %v6782, %v7114
        %v7116 = vpop.f32.mrf.mxu0
        %v7117 = vpop.f32.mrf.mxu0
        %v7118 = vadd.f32 %v6782, %v7117
        %v7119 = vpop.f32.mrf.mxu0
        %7120 = vmatprep.mubr.bf16.mxu0 %v6642
        %7121 = vmatmul.mubr.bf16.gmra.mxu0 %v6641
        %v7122 = vpop.f32.mrf.mxu0
        %v7123 = vadd.f32 %v6782, %v7122
        %v7124 = vpop.f32.mrf.mxu0
        %v7125 = vpop.f32.mrf.mxu0
        %v7126 = vadd.f32 %v6782, %v7125
        %v7127 = vpop.f32.mrf.mxu0
        %7128 = vmatprep.mubr.bf16.mxu0 %v6646
        %7129 = vmatmul.mubr.bf16.gmra.mxu0 %v6645
        %v7130 = vpop.f32.mrf.mxu0
        %v7131 = vadd.f32 %v6782, %v7130
        %v7132 = vpop.f32.mrf.mxu0
        %v7133 = vpop.f32.mrf.mxu0
        %v7134 = vadd.f32 %v6782, %v7133
        %v7135 = vpop.f32.mrf.mxu0
        %7136 = vmatprep.mubr.bf16.mxu0 %v6650
        %7137 = vmatmul.mubr.bf16.gmra.mxu0 %v6649
        %v7138 = vpop.f32.mrf.mxu0
        %v7139 = vadd.f32 %v6782, %v7138
        %v7140 = vpop.f32.mrf.mxu0
        %v7141 = vpop.f32.mrf.mxu0
        %v7142 = vadd.f32 %v6782, %v7141
        %v7143 = vpop.f32.mrf.mxu0
        %7144 = vmatprep.mubr.bf16.mxu0 %v6654
        %7145 = vmatmul.mubr.bf16.gmra.mxu0 %v6653
        %v7146 = vpop.f32.mrf.mxu0
        %v7147 = vadd.f32 %v6782, %v7146
        %v7148 = vpop.f32.mrf.mxu0
        %v7149 = vpop.f32.mrf.mxu0
        %v7150 = vadd.f32 %v6782, %v7149
        %v7151 = vpop.f32.mrf.mxu0
        %7152 = vmatprep.mubr.bf16.mxu0 %v6658
        %7153 = vmatmul.mubr.bf16.gmra.mxu0 %v6657
        %v7154 = vpop.f32.mrf.mxu0
        %v7155 = vadd.f32 %v6782, %v7154
        %v7156 = vpop.f32.mrf.mxu0
        %v7157 = vpop.f32.mrf.mxu0
        %v7158 = vadd.f32 %v6782, %v7157
        %v7159 = vpop.f32.mrf.mxu0
        %7160 = vmatprep.mubr.bf16.mxu0 %v6662
        %7161 = vmatmul.mubr.bf16.gmra.mxu0 %v6661
        %v7162 = vpop.f32.mrf.mxu0
        %v7163 = vadd.f32 %v6782, %v7162
        %v7164 = vpop.f32.mrf.mxu0
        %v7165 = vpop.f32.mrf.mxu0
        %v7166 = vadd.f32 %v6782, %v7165
        %v7167 = vpop.f32.mrf.mxu0
        %7168 = vmatprep.mubr.bf16.mxu0 %v6666
        %7169 = vmatmul.mubr.bf16.gmra.mxu0 %v6665
        %v7170 = vpop.f32.mrf.mxu0
        %v7171 = vadd.f32 %v6782, %v7170
        %v7172 = vpop.f32.mrf.mxu0
        %v7173 = vpop.f32.mrf.mxu0
        %v7174 = vadd.f32 %v6782, %v7173
        %v7175 = vpop.f32.mrf.mxu0
        %7176 = vmatprep.mubr.bf16.mxu0 %v6670
        %7177 = vmatmul.mubr.bf16.gmra.mxu0 %v6669
        %v7178 = vpop.f32.mrf.mxu0
        %v7179 = vadd.f32 %v6782, %v7178
        %v7180 = vpop.f32.mrf.mxu0
        %v7181 = vpop.f32.mrf.mxu0
        %v7182 = vadd.f32 %v6782, %v7181
        %v7183 = vpop.f32.mrf.mxu0
        %7184 = vmatprep.mubr.bf16.mxu0 %v6674
        %7185 = vmatmul.mubr.bf16.gmra.mxu0 %v6673
        %v7186 = vpop.f32.mrf.mxu0
        %v7187 = vadd.f32 %v6782, %v7186
        %v7188 = vpop.f32.mrf.mxu0
        %v7189 = vpop.f32.mrf.mxu0
        %v7190 = vadd.f32 %v6782, %v7189
        %v7191 = vpop.f32.mrf.mxu0
        %7192 = vmatprep.mubr.bf16.mxu0 %v6678
        %7193 = vmatmul.mubr.bf16.gmra.mxu0 %v6677
        %v7194 = vpop.f32.mrf.mxu0
        %v7195 = vadd.f32 %v6782, %v7194
        %v7196 = vpop.f32.mrf.mxu0
        %v7197 = vpop.f32.mrf.mxu0
        %v7198 = vadd.f32 %v6782, %v7197
        %v7199 = vpop.f32.mrf.mxu0
        %7200 = vmatprep.mubr.bf16.mxu0 %v6682
        %7201 = vmatmul.mubr.bf16.gmra.mxu0 %v6681
        %v7202 = vpop.f32.mrf.mxu0
        %v7203 = vadd.f32 %v6782, %v7202
        %v7204 = vpop.f32.mrf.mxu0
        %v7205 = vpop.f32.mrf.mxu0
        %v7206 = vadd.f32 %v6782, %v7205
        %v7207 = vpop.f32.mrf.mxu0
        %7208 = vmatprep.mubr.bf16.mxu0 %v6686
        %7209 = vmatmul.mubr.bf16.gmra.mxu0 %v6685
        %v7210 = vpop.f32.mrf.mxu0
        %v7211 = vadd.f32 %v6782, %v7210
        %v7212 = vpop.f32.mrf.mxu0
        %v7213 = vpop.f32.mrf.mxu0
        %v7214 = vadd.f32 %v6782, %v7213
        %v7215 = vpop.f32.mrf.mxu0
        %7216 = vmatprep.mubr.bf16.mxu0 %v6690
        %7217 = vmatmul.mubr.bf16.gmra.mxu0 %v6689
        %v7218 = vpop.f32.mrf.mxu0
        %v7219 = vadd.f32 %v6782, %v7218
        %v7220 = vpop.f32.mrf.mxu0
        %v7221 = vpop.f32.mrf.mxu0
        %v7222 = vadd.f32 %v6782, %v7221
        %v7223 = vpop.f32.mrf.mxu0
        %7224 = vmatprep.mubr.bf16.mxu0 %v6694
        %7225 = vmatmul.mubr.bf16.gmra.mxu0 %v6693
        %v7226 = vpop.f32.mrf.mxu0
        %v7227 = vadd.f32 %v6782, %v7226
        %v7228 = vpop.f32.mrf.mxu0
        %v7229 = vpop.f32.mrf.mxu0
        %v7230 = vadd.f32 %v6782, %v7229
        %v7231 = vpop.f32.mrf.mxu0
        %7232 = vmatprep.mubr.bf16.mxu0 %v6698
        %7233 = vmatmul.mubr.bf16.gmra.mxu0 %v6697
        %v7234 = vpop.f32.mrf.mxu0
        %v7235 = vadd.f32 %v6782, %v7234
        %v7236 = vpop.f32.mrf.mxu0
        %v7237 = vpop.f32.mrf.mxu0
        %v7238 = vadd.f32 %v6782, %v7237
        %v7239 = vpop.f32.mrf.mxu0
        %7240 = vmatprep.mubr.bf16.mxu0 %v6702
        %7241 = vmatmul.mubr.bf16.gmra.mxu0 %v6701
        %v7242 = vpop.f32.mrf.mxu0
        %v7243 = vadd.f32 %v6782, %v7242
        %v7244 = vpop.f32.mrf.mxu0
        %v7245 = vpop.f32.mrf.mxu0
        %v7246 = vadd.f32 %v6782, %v7245
        %v7247 = vpop.f32.mrf.mxu0
        %7248 = vmatprep.mubr.bf16.mxu0 %v6706
        %7249 = vmatmul.mubr.bf16.gmra.mxu0 %v6705
        %v7250 = vpop.f32.mrf.mxu0
        %v7251 = vadd.f32 %v6782, %v7250
        %v7252 = vpop.f32.mrf.mxu0
        %v7253 = vpop.f32.mrf.mxu0
        %v7254 = vadd.f32 %v6782, %v7253
        %v7255 = vpop.f32.mrf.mxu0
        %7256 = vmatprep.mubr.bf16.mxu0 %v6710
        %7257 = vmatmul.mubr.bf16.gmra.mxu0 %v6709
        %v7258 = vpop.f32.mrf.mxu0
        %v7259 = vadd.f32 %v6782, %v7258
        %v7260 = vpop.f32.mrf.mxu0
        %v7261 = vpop.f32.mrf.mxu0
        %v7262 = vadd.f32 %v6782, %v7261
        %v7263 = vpop.f32.mrf.mxu0
        %7264 = vdwg.mxu0
        %7265 = vmatprep.subr.bf16.mxu0 0
        %7266 = vmatpush1.bf16.msra.mxu0 %v6935
        %7267 = vmatprep.subr.bf16.mxu0 0
        %7268 = vmatpush1.bf16.msra.mxu0 %v6934
        %7269 = vmatprep.subr.bf16.mxu0 0
        %7270 = vmatpush1.bf16.msra.mxu0 %v6933
        %7271 = vmatprep.subr.bf16.mxu0 0
        %7272 = vmatpush1.bf16.msra.mxu0 %v6932
        %7273 = vmatprep.subr.bf16.mxu0 0
        %7274 = vmatpush1.bf16.msra.mxu0 %v6931
        %7275 = vmatprep.subr.bf16.mxu0 0
        %7276 = vmatpush1.bf16.msra.mxu0 %v6930
        %7277 = vmatprep.subr.bf16.mxu0 0
        %7278 = vmatpush1.bf16.msra.mxu0 %v6929
        %7279 = vmatprep.subr.bf16.mxu0 0
        %7280 = vmatpush1.bf16.msra.mxu0 %v6928
        %7281 = vmatprep.subr.bf16.mxu0 0
        %7282 = vmatpush2.bf16.msra.mxu0 %v6943
        %7283 = vmatprep.subr.bf16.mxu0 0
        %7284 = vmatpush2.bf16.msra.mxu0 %v6942
        %7285 = vmatprep.subr.bf16.mxu0 0
        %7286 = vmatpush2.bf16.msra.mxu0 %v6941
        %7287 = vmatprep.subr.bf16.mxu0 0
        %7288 = vmatpush2.bf16.msra.mxu0 %v6940
        %7289 = vmatprep.subr.bf16.mxu0 0
        %7290 = vmatpush2.bf16.msra.mxu0 %v6939
        %7291 = vmatprep.subr.bf16.mxu0 0
        %7292 = vmatpush2.bf16.msra.mxu0 %v6938
        %7293 = vmatprep.subr.bf16.mxu0 0
        %7294 = vmatpush2.bf16.msra.mxu0 %v6937
        %7295 = vmatprep.subr.bf16.mxu0 0
        %7296 = vmatpush2.bf16.msra.mxu0 %v6936
        %7297 = vmatprep.mubr.bf16.mxu0 %v6588
        %7298 = vmatmul.mubr.bf16.gmra.mxu0 %v6587
        %v7299 = vpop.f32.mrf.mxu0
        %v7300 = vadd.f32 %v7011, %v7299
        %v7301 = vpop.f32.mrf.mxu0
        %v7302 = vpop.f32.mrf.mxu0
        %v7303 = vadd.f32 %v7014, %v7302
        %v7304 = vpop.f32.mrf.mxu0
        %7305 = vmatprep.mubr.bf16.mxu0 %v6592
        %7306 = vmatmul.mubr.bf16.gmra.mxu0 %v6591
        %v7307 = vpop.f32.mrf.mxu0
        %v7308 = vadd.f32 %v7019, %v7307
        %v7309 = vpop.f32.mrf.mxu0
        %v7310 = vpop.f32.mrf.mxu0
        %v7311 = vadd.f32 %v7022, %v7310
        %v7312 = vpop.f32.mrf.mxu0
        %7313 = vmatprep.mubr.bf16.mxu0 %v6596
        %7314 = vmatmul.mubr.bf16.gmra.mxu0 %v6595
        %v7315 = vpop.f32.mrf.mxu0
        %v7316 = vadd.f32 %v7027, %v7315
        %v7317 = vpop.f32.mrf.mxu0
        %v7318 = vpop.f32.mrf.mxu0
        %v7319 = vadd.f32 %v7030, %v7318
        %v7320 = vpop.f32.mrf.mxu0
        %7321 = vmatprep.mubr.bf16.mxu0 %v6600
        %7322 = vmatmul.mubr.bf16.gmra.mxu0 %v6599
        %v7323 = vpop.f32.mrf.mxu0
        %v7324 = vadd.f32 %v7035, %v7323
        %v7325 = vpop.f32.mrf.mxu0
        %v7326 = vpop.f32.mrf.mxu0
        %v7327 = vadd.f32 %v7038, %v7326
        %v7328 = vpop.f32.mrf.mxu0
        %7329 = vmatprep.mubr.bf16.mxu0 %v6604
        %7330 = vmatmul.mubr.bf16.gmra.mxu0 %v6603
        %v7331 = vpop.f32.mrf.mxu0
        %v7332 = vadd.f32 %v7043, %v7331
        %v7333 = vpop.f32.mrf.mxu0
        %v7334 = vpop.f32.mrf.mxu0
        %v7335 = vadd.f32 %v7046, %v7334
        %v7336 = vpop.f32.mrf.mxu0
        %7337 = vmatprep.mubr.bf16.mxu0 %v6608
        %7338 = vmatmul.mubr.bf16.gmra.mxu0 %v6607
        %v7339 = vpop.f32.mrf.mxu0
        %v7340 = vadd.f32 %v7051, %v7339
        %v7341 = vpop.f32.mrf.mxu0
        %v7342 = vpop.f32.mrf.mxu0
        %v7343 = vadd.f32 %v7054, %v7342
        %v7344 = vpop.f32.mrf.mxu0
        %7345 = vmatprep.mubr.bf16.mxu0 %v6612
        %7346 = vmatmul.mubr.bf16.gmra.mxu0 %v6611
        %v7347 = vpop.f32.mrf.mxu0
        %v7348 = vadd.f32 %v7059, %v7347
        %v7349 = vpop.f32.mrf.mxu0
        %v7350 = vpop.f32.mrf.mxu0
        %v7351 = vadd.f32 %v7062, %v7350
        %v7352 = vpop.f32.mrf.mxu0
        %7353 = vmatprep.mubr.bf16.mxu0 %v6616
        %7354 = vmatmul.mubr.bf16.gmra.mxu0 %v6615
        %v7355 = vpop.f32.mrf.mxu0
        %v7356 = vadd.f32 %v7067, %v7355
        %v7357 = vpop.f32.mrf.mxu0
        %v7358 = vpop.f32.mrf.mxu0
        %v7359 = vadd.f32 %v7070, %v7358
        %v7360 = vpop.f32.mrf.mxu0
        %7361 = vmatprep.mubr.bf16.mxu0 %v6620
        %7362 = vmatmul.mubr.bf16.gmra.mxu0 %v6619
        %v7363 = vpop.f32.mrf.mxu0
        %v7364 = vadd.f32 %v7075, %v7363
        %v7365 = vpop.f32.mrf.mxu0
        %v7366 = vpop.f32.mrf.mxu0
        %v7367 = vadd.f32 %v7078, %v7366
        %v7368 = vpop.f32.mrf.mxu0
        %7369 = vmatprep.mubr.bf16.mxu0 %v6624
        %7370 = vmatmul.mubr.bf16.gmra.mxu0 %v6623
        %v7371 = vpop.f32.mrf.mxu0
        %v7372 = vadd.f32 %v7083, %v7371
        %v7373 = vpop.f32.mrf.mxu0
        %v7374 = vpop.f32.mrf.mxu0
        %v7375 = vadd.f32 %v7086, %v7374
        %v7376 = vpop.f32.mrf.mxu0
        %7377 = vmatprep.mubr.bf16.mxu0 %v6628
        %7378 = vmatmul.mubr.bf16.gmra.mxu0 %v6627
        %v7379 = vpop.f32.mrf.mxu0
        %v7380 = vadd.f32 %v7091, %v7379
        %v7381 = vpop.f32.mrf.mxu0
        %v7382 = vpop.f32.mrf.mxu0
        %v7383 = vadd.f32 %v7094, %v7382
        %v7384 = vpop.f32.mrf.mxu0
        %7385 = vmatprep.mubr.bf16.mxu0 %v6632
        %7386 = vmatmul.mubr.bf16.gmra.mxu0 %v6631
        %v7387 = vpop.f32.mrf.mxu0
        %v7388 = vadd.f32 %v7099, %v7387
        %v7389 = vpop.f32.mrf.mxu0
        %v7390 = vpop.f32.mrf.mxu0
        %v7391 = vadd.f32 %v7102, %v7390
        %v7392 = vpop.f32.mrf.mxu0
        %7393 = vmatprep.mubr.bf16.mxu0 %v6636
        %7394 = vmatmul.mubr.bf16.gmra.mxu0 %v6635
        %v7395 = vpop.f32.mrf.mxu0
        %v7396 = vadd.f32 %v7107, %v7395
        %v7397 = vpop.f32.mrf.mxu0
        %v7398 = vpop.f32.mrf.mxu0
        %v7399 = vadd.f32 %v7110, %v7398
        %v7400 = vpop.f32.mrf.mxu0
        %7401 = vmatprep.mubr.bf16.mxu0 %v6640
        %7402 = vmatmul.mubr.bf16.gmra.mxu0 %v6639
        %v7403 = vpop.f32.mrf.mxu0
        %v7404 = vadd.f32 %v7115, %v7403
        %v7405 = vpop.f32.mrf.mxu0
        %v7406 = vpop.f32.mrf.mxu0
        %v7407 = vadd.f32 %v7118, %v7406
        %v7408 = vpop.f32.mrf.mxu0
        %7409 = vmatprep.mubr.bf16.mxu0 %v6644
        %7410 = vmatmul.mubr.bf16.gmra.mxu0 %v6643
        %v7411 = vpop.f32.mrf.mxu0
        %v7412 = vadd.f32 %v7123, %v7411
        %v7413 = vpop.f32.mrf.mxu0
        %v7414 = vpop.f32.mrf.mxu0
        %v7415 = vadd.f32 %v7126, %v7414
        %v7416 = vpop.f32.mrf.mxu0
        %7417 = vmatprep.mubr.bf16.mxu0 %v6648
        %7418 = vmatmul.mubr.bf16.gmra.mxu0 %v6647
        %v7419 = vpop.f32.mrf.mxu0
        %v7420 = vadd.f32 %v7131, %v7419
        %v7421 = vpop.f32.mrf.mxu0
        %v7422 = vpop.f32.mrf.mxu0
        %v7423 = vadd.f32 %v7134, %v7422
        %v7424 = vpop.f32.mrf.mxu0
        %7425 = vmatprep.mubr.bf16.mxu0 %v6652
        %7426 = vmatmul.mubr.bf16.gmra.mxu0 %v6651
        %v7427 = vpop.f32.mrf.mxu0
        %v7428 = vadd.f32 %v7139, %v7427
        %v7429 = vpop.f32.mrf.mxu0
        %v7430 = vpop.f32.mrf.mxu0
        %v7431 = vadd.f32 %v7142, %v7430
        %v7432 = vpop.f32.mrf.mxu0
        %7433 = vmatprep.mubr.bf16.mxu0 %v6656
        %7434 = vmatmul.mubr.bf16.gmra.mxu0 %v6655
        %v7435 = vpop.f32.mrf.mxu0
        %v7436 = vadd.f32 %v7147, %v7435
        %v7437 = vpop.f32.mrf.mxu0
        %v7438 = vpop.f32.mrf.mxu0
        %v7439 = vadd.f32 %v7150, %v7438
        %v7440 = vpop.f32.mrf.mxu0
        %7441 = vmatprep.mubr.bf16.mxu0 %v6660
        %7442 = vmatmul.mubr.bf16.gmra.mxu0 %v6659
        %v7443 = vpop.f32.mrf.mxu0
        %v7444 = vadd.f32 %v7155, %v7443
        %v7445 = vpop.f32.mrf.mxu0
        %v7446 = vpop.f32.mrf.mxu0
        %v7447 = vadd.f32 %v7158, %v7446
        %v7448 = vpop.f32.mrf.mxu0
        %7449 = vmatprep.mubr.bf16.mxu0 %v6664
        %7450 = vmatmul.mubr.bf16.gmra.mxu0 %v6663
        %v7451 = vpop.f32.mrf.mxu0
        %v7452 = vadd.f32 %v7163, %v7451
        %v7453 = vpop.f32.mrf.mxu0
        %v7454 = vpop.f32.mrf.mxu0
        %v7455 = vadd.f32 %v7166, %v7454
        %v7456 = vpop.f32.mrf.mxu0
        %7457 = vmatprep.mubr.bf16.mxu0 %v6668
        %7458 = vmatmul.mubr.bf16.gmra.mxu0 %v6667
        %v7459 = vpop.f32.mrf.mxu0
        %v7460 = vadd.f32 %v7171, %v7459
        %v7461 = vpop.f32.mrf.mxu0
        %v7462 = vpop.f32.mrf.mxu0
        %v7463 = vadd.f32 %v7174, %v7462
        %v7464 = vpop.f32.mrf.mxu0
        %7465 = vmatprep.mubr.bf16.mxu0 %v6672
        %7466 = vmatmul.mubr.bf16.gmra.mxu0 %v6671
        %v7467 = vpop.f32.mrf.mxu0
        %v7468 = vadd.f32 %v7179, %v7467
        %v7469 = vpop.f32.mrf.mxu0
        %v7470 = vpop.f32.mrf.mxu0
        %v7471 = vadd.f32 %v7182, %v7470
        %v7472 = vpop.f32.mrf.mxu0
        %7473 = vmatprep.mubr.bf16.mxu0 %v6676
        %7474 = vmatmul.mubr.bf16.gmra.mxu0 %v6675
        %v7475 = vpop.f32.mrf.mxu0
        %v7476 = vadd.f32 %v7187, %v7475
        %v7477 = vpop.f32.mrf.mxu0
        %v7478 = vpop.f32.mrf.mxu0
        %v7479 = vadd.f32 %v7190, %v7478
        %v7480 = vpop.f32.mrf.mxu0
        %7481 = vmatprep.mubr.bf16.mxu0 %v6680
        %7482 = vmatmul.mubr.bf16.gmra.mxu0 %v6679
        %v7483 = vpop.f32.mrf.mxu0
        %v7484 = vadd.f32 %v7195, %v7483
        %v7485 = vpop.f32.mrf.mxu0
        %v7486 = vpop.f32.mrf.mxu0
        %v7487 = vadd.f32 %v7198, %v7486
        %v7488 = vpop.f32.mrf.mxu0
        %7489 = vmatprep.mubr.bf16.mxu0 %v6684
        %7490 = vmatmul.mubr.bf16.gmra.mxu0 %v6683
        %v7491 = vpop.f32.mrf.mxu0
        %v7492 = vadd.f32 %v7203, %v7491
        %v7493 = vpop.f32.mrf.mxu0
        %v7494 = vpop.f32.mrf.mxu0
        %v7495 = vadd.f32 %v7206, %v7494
        %v7496 = vpop.f32.mrf.mxu0
        %7497 = vmatprep.mubr.bf16.mxu0 %v6688
        %7498 = vmatmul.mubr.bf16.gmra.mxu0 %v6687
        %v7499 = vpop.f32.mrf.mxu0
        %v7500 = vadd.f32 %v7211, %v7499
        %v7501 = vpop.f32.mrf.mxu0
        %v7502 = vpop.f32.mrf.mxu0
        %v7503 = vadd.f32 %v7214, %v7502
        %v7504 = vpop.f32.mrf.mxu0
        %7505 = vmatprep.mubr.bf16.mxu0 %v6692
        %7506 = vmatmul.mubr.bf16.gmra.mxu0 %v6691
        %v7507 = vpop.f32.mrf.mxu0
        %v7508 = vadd.f32 %v7219, %v7507
        %v7509 = vpop.f32.mrf.mxu0
        %v7510 = vpop.f32.mrf.mxu0
        %v7511 = vadd.f32 %v7222, %v7510
        %v7512 = vpop.f32.mrf.mxu0
        %7513 = vmatprep.mubr.bf16.mxu0 %v6696
        %7514 = vmatmul.mubr.bf16.gmra.mxu0 %v6695
        %v7515 = vpop.f32.mrf.mxu0
        %v7516 = vadd.f32 %v7227, %v7515
        %v7517 = vpop.f32.mrf.mxu0
        %v7518 = vpop.f32.mrf.mxu0
        %v7519 = vadd.f32 %v7230, %v7518
        %v7520 = vpop.f32.mrf.mxu0
        %7521 = vmatprep.mubr.bf16.mxu0 %v6700
        %7522 = vmatmul.mubr.bf16.gmra.mxu0 %v6699
        %v7523 = vpop.f32.mrf.mxu0
        %v7524 = vadd.f32 %v7235, %v7523
        %v7525 = vpop.f32.mrf.mxu0
        %v7526 = vpop.f32.mrf.mxu0
        %v7527 = vadd.f32 %v7238, %v7526
        %v7528 = vpop.f32.mrf.mxu0
        %7529 = vmatprep.mubr.bf16.mxu0 %v6704
        %7530 = vmatmul.mubr.bf16.gmra.mxu0 %v6703
        %v7531 = vpop.f32.mrf.mxu0
        %v7532 = vadd.f32 %v7243, %v7531
        %v7533 = vpop.f32.mrf.mxu0
        %v7534 = vpop.f32.mrf.mxu0
        %v7535 = vadd.f32 %v7246, %v7534
        %v7536 = vpop.f32.mrf.mxu0
        %7537 = vmatprep.mubr.bf16.mxu0 %v6708
        %7538 = vmatmul.mubr.bf16.gmra.mxu0 %v6707
        %v7539 = vpop.f32.mrf.mxu0
        %v7540 = vadd.f32 %v7251, %v7539
        %v7541 = vpop.f32.mrf.mxu0
        %v7542 = vpop.f32.mrf.mxu0
        %v7543 = vadd.f32 %v7254, %v7542
        %v7544 = vpop.f32.mrf.mxu0
        %7545 = vmatprep.mubr.bf16.mxu0 %v6712
        %7546 = vmatmul.mubr.bf16.gmra.mxu0 %v6711
        %v7547 = vpop.f32.mrf.mxu0
        %v7548 = vadd.f32 %v7259, %v7547
        %v7549 = vpop.f32.mrf.mxu0
        %v7550 = vpop.f32.mrf.mxu0
        %v7551 = vadd.f32 %v7262, %v7550
        %v7552 = vpop.f32.mrf.mxu0
        %7553 = vdwg.mxu0
        %v7554 = vtanh.pop %v7300
        %v7555 = vtanh.pop %v7303
        %v7556 = vtanh.pop %v7308
        %v7557 = vtanh.pop %v7311
        %v7558 = vtanh.pop %v7316
        %v7559 = vtanh.pop %v7319
        %v7560 = vtanh.pop %v7324
        %v7561 = vtanh.pop %v7327
        %v7562 = vtanh.pop %v7332
        %v7563 = vtanh.pop %v7335
        %v7564 = vtanh.pop %v7340
        %v7565 = vtanh.pop %v7343
        %v7566 = vtanh.pop %v7348
        %v7567 = vtanh.pop %v7351
        %v7568 = vtanh.pop %v7356
        %v7569 = vtanh.pop %v7359
        %v7570 = vtanh.pop %v7364
        %v7571 = vtanh.pop %v7367
        %v7572 = vtanh.pop %v7372
        %v7573 = vtanh.pop %v7375
        %v7574 = vtanh.pop %v7380
        %v7575 = vtanh.pop %v7383
        %v7576 = vtanh.pop %v7388
        %v7577 = vtanh.pop %v7391
        %v7578 = vtanh.pop %v7396
        %v7579 = vtanh.pop %v7399
        %v7580 = vtanh.pop %v7404
        %v7581 = vtanh.pop %v7407
        %v7582 = vtanh.pop %v7412
        %v7583 = vtanh.pop %v7415
        %v7584 = vtanh.pop %v7420
        %v7585 = vtanh.pop %v7423
        %v7586 = vtanh.pop %v7428
        %v7587 = vtanh.pop %v7431
        %v7588 = vtanh.pop %v7436
        %v7589 = vtanh.pop %v7439
        %v7590 = vtanh.pop %v7444
        %v7591 = vtanh.pop %v7447
        %v7592 = vtanh.pop %v7452
        %v7593 = vtanh.pop %v7455
        %v7594 = vtanh.pop %v7460
        %v7595 = vtanh.pop %v7463
        %v7596 = vtanh.pop %v7468
        %v7597 = vtanh.pop %v7471
        %v7598 = vtanh.pop %v7476
        %v7599 = vtanh.pop %v7479
        %v7600 = vtanh.pop %v7484
        %v7601 = vtanh.pop %v7487
        %v7602 = vtanh.pop %v7492
        %v7603 = vtanh.pop %v7495
        %v7604 = vtanh.pop %v7500
        %v7605 = vtanh.pop %v7503
        %v7606 = vtanh.pop %v7508
        %v7607 = vtanh.pop %v7511
        %v7608 = vtanh.pop %v7516
        %v7609 = vtanh.pop %v7519
        %v7610 = vtanh.pop %v7524
        %v7611 = vtanh.pop %v7527
        %v7612 = vtanh.pop %v7532
        %v7613 = vtanh.pop %v7535
        %v7614 = vtanh.pop %v7540
        %v7615 = vtanh.pop %v7543
        %v7616 = vtanh.pop %v7548
        %v7617 = vtanh.pop %v7551
        %v7618 = vld [vmem:[#allocation16] sm:$0x1]
        %v7620 = vlaneseq
        %v7621 = vshrl.u32 %v7620, 7
        %v7622 = vsub.s32 0, %v7621
        %v7623 = vrot.slane %v7618, %v7622
        %v7625 = vmul.f32 %v7554, %v7623
        %v7626 = vmul.f32 %v7555, %v7623
        %v7627 = vmul.f32 %v7556, %v7623
        %v7628 = vmul.f32 %v7557, %v7623
        %v7629 = vmul.f32 %v7558, %v7623
        %v7630 = vmul.f32 %v7559, %v7623
        %v7631 = vmul.f32 %v7560, %v7623
        %v7632 = vmul.f32 %v7561, %v7623
        %v7633 = vmul.f32 %v7562, %v7623
        %v7634 = vmul.f32 %v7563, %v7623
        %v7635 = vmul.f32 %v7564, %v7623
        %v7636 = vmul.f32 %v7565, %v7623
        %v7637 = vmul.f32 %v7566, %v7623
        %v7638 = vmul.f32 %v7567, %v7623
        %v7639 = vmul.f32 %v7568, %v7623
        %v7640 = vmul.f32 %v7569, %v7623
        %v7641 = vmul.f32 %v7570, %v7623
        %v7642 = vmul.f32 %v7571, %v7623
        %v7643 = vmul.f32 %v7572, %v7623
        %v7644 = vmul.f32 %v7573, %v7623
        %v7645 = vmul.f32 %v7574, %v7623
        %v7646 = vmul.f32 %v7575, %v7623
        %v7647 = vmul.f32 %v7576, %v7623
        %v7648 = vmul.f32 %v7577, %v7623
        %v7649 = vmul.f32 %v7578, %v7623
        %v7650 = vmul.f32 %v7579, %v7623
        %v7651 = vmul.f32 %v7580, %v7623
        %v7652 = vmul.f32 %v7581, %v7623
        %v7653 = vmul.f32 %v7582, %v7623
        %v7654 = vmul.f32 %v7583, %v7623
        %v7655 = vmul.f32 %v7584, %v7623
        %v7656 = vmul.f32 %v7585, %v7623
        %v7657 = vmul.f32 %v7586, %v7623
        %v7658 = vmul.f32 %v7587, %v7623
        %v7659 = vmul.f32 %v7588, %v7623
        %v7660 = vmul.f32 %v7589, %v7623
        %v7661 = vmul.f32 %v7590, %v7623
        %v7662 = vmul.f32 %v7591, %v7623
        %v7663 = vmul.f32 %v7592, %v7623
        %v7664 = vmul.f32 %v7593, %v7623
        %v7665 = vmul.f32 %v7594, %v7623
        %v7666 = vmul.f32 %v7595, %v7623
        %v7667 = vmul.f32 %v7596, %v7623
        %v7668 = vmul.f32 %v7597, %v7623
        %v7669 = vmul.f32 %v7598, %v7623
        %v7670 = vmul.f32 %v7599, %v7623
        %v7671 = vmul.f32 %v7600, %v7623
        %v7672 = vmul.f32 %v7601, %v7623
        %v7673 = vmul.f32 %v7602, %v7623
        %v7674 = vmul.f32 %v7603, %v7623
        %v7675 = vmul.f32 %v7604, %v7623
        %v7676 = vmul.f32 %v7605, %v7623
        %v7677 = vmul.f32 %v7606, %v7623
        %v7678 = vmul.f32 %v7607, %v7623
        %v7679 = vmul.f32 %v7608, %v7623
        %v7680 = vmul.f32 %v7609, %v7623
        %v7681 = vmul.f32 %v7610, %v7623
        %v7682 = vmul.f32 %v7611, %v7623
        %v7683 = vmul.f32 %v7612, %v7623
        %v7684 = vmul.f32 %v7613, %v7623
        %v7685 = vmul.f32 %v7614, %v7623
        %v7686 = vmul.f32 %v7615, %v7623
        %v7687 = vmul.f32 %v7616, %v7623
        %v7688 = vmul.f32 %v7617, %v7623
        %7689 = vadd.xlane.f32.xlu0 %v7625
        %v7690 = vpop.xlane.xlu0 %7689
        %7691 = vadd.xlane.f32.xlu0 %v7626
        %v7692 = vpop.xlane.xlu0 %7691
        %7693 = vadd.xlane.f32.xlu0 %v7627
        %v7694 = vpop.xlane.xlu0 %7693
        %7695 = vadd.xlane.f32.xlu0 %v7628
        %v7696 = vpop.xlane.xlu0 %7695
        %7697 = vadd.xlane.f32.xlu0 %v7629
        %v7698 = vpop.xlane.xlu0 %7697
        %7699 = vadd.xlane.f32.xlu0 %v7630
        %v7700 = vpop.xlane.xlu0 %7699
        %7701 = vadd.xlane.f32.xlu0 %v7631
        %v7702 = vpop.xlane.xlu0 %7701
        %7703 = vadd.xlane.f32.xlu0 %v7632
        %v7704 = vpop.xlane.xlu0 %7703
        %7705 = vadd.xlane.f32.xlu0 %v7633
        %v7706 = vpop.xlane.xlu0 %7705
        %7707 = vadd.xlane.f32.xlu0 %v7634
        %v7708 = vpop.xlane.xlu0 %7707
        %7709 = vadd.xlane.f32.xlu0 %v7635
        %v7710 = vpop.xlane.xlu0 %7709
        %7711 = vadd.xlane.f32.xlu0 %v7636
        %v7712 = vpop.xlane.xlu0 %7711
        %7713 = vadd.xlane.f32.xlu0 %v7637
        %v7714 = vpop.xlane.xlu0 %7713
        %7715 = vadd.xlane.f32.xlu0 %v7638
        %v7716 = vpop.xlane.xlu0 %7715
        %7717 = vadd.xlane.f32.xlu0 %v7639
        %v7718 = vpop.xlane.xlu0 %7717
        %7719 = vadd.xlane.f32.xlu0 %v7640
        %v7720 = vpop.xlane.xlu0 %7719
        %7721 = vadd.xlane.f32.xlu0 %v7641
        %v7722 = vpop.xlane.xlu0 %7721
        %7723 = vadd.xlane.f32.xlu0 %v7642
        %v7724 = vpop.xlane.xlu0 %7723
        %7725 = vadd.xlane.f32.xlu0 %v7643
        %v7726 = vpop.xlane.xlu0 %7725
        %7727 = vadd.xlane.f32.xlu0 %v7644
        %v7728 = vpop.xlane.xlu0 %7727
        %7729 = vadd.xlane.f32.xlu0 %v7645
        %v7730 = vpop.xlane.xlu0 %7729
        %7731 = vadd.xlane.f32.xlu0 %v7646
        %v7732 = vpop.xlane.xlu0 %7731
        %7733 = vadd.xlane.f32.xlu0 %v7647
        %v7734 = vpop.xlane.xlu0 %7733
        %7735 = vadd.xlane.f32.xlu0 %v7648
        %v7736 = vpop.xlane.xlu0 %7735
        %7737 = vadd.xlane.f32.xlu0 %v7649
        %v7738 = vpop.xlane.xlu0 %7737
        %7739 = vadd.xlane.f32.xlu0 %v7650
        %v7740 = vpop.xlane.xlu0 %7739
        %7741 = vadd.xlane.f32.xlu0 %v7651
        %v7742 = vpop.xlane.xlu0 %7741
        %7743 = vadd.xlane.f32.xlu0 %v7652
        %v7744 = vpop.xlane.xlu0 %7743
        %7745 = vadd.xlane.f32.xlu0 %v7653
        %v7746 = vpop.xlane.xlu0 %7745
        %7747 = vadd.xlane.f32.xlu0 %v7654
        %v7748 = vpop.xlane.xlu0 %7747
        %7749 = vadd.xlane.f32.xlu0 %v7655
        %v7750 = vpop.xlane.xlu0 %7749
        %7751 = vadd.xlane.f32.xlu0 %v7656
        %v7752 = vpop.xlane.xlu0 %7751
        %7753 = vadd.xlane.f32.xlu0 %v7657
        %v7754 = vpop.xlane.xlu0 %7753
        %7755 = vadd.xlane.f32.xlu0 %v7658
        %v7756 = vpop.xlane.xlu0 %7755
        %7757 = vadd.xlane.f32.xlu0 %v7659
        %v7758 = vpop.xlane.xlu0 %7757
        %7759 = vadd.xlane.f32.xlu0 %v7660
        %v7760 = vpop.xlane.xlu0 %7759
        %7761 = vadd.xlane.f32.xlu0 %v7661
        %v7762 = vpop.xlane.xlu0 %7761
        %7763 = vadd.xlane.f32.xlu0 %v7662
        %v7764 = vpop.xlane.xlu0 %7763
        %7765 = vadd.xlane.f32.xlu0 %v7663
        %v7766 = vpop.xlane.xlu0 %7765
        %7767 = vadd.xlane.f32.xlu0 %v7664
        %v7768 = vpop.xlane.xlu0 %7767
        %7769 = vadd.xlane.f32.xlu0 %v7665
        %v7770 = vpop.xlane.xlu0 %7769
        %7771 = vadd.xlane.f32.xlu0 %v7666
        %v7772 = vpop.xlane.xlu0 %7771
        %7773 = vadd.xlane.f32.xlu0 %v7667
        %v7774 = vpop.xlane.xlu0 %7773
        %7775 = vadd.xlane.f32.xlu0 %v7668
        %v7776 = vpop.xlane.xlu0 %7775
        %7777 = vadd.xlane.f32.xlu0 %v7669
        %v7778 = vpop.xlane.xlu0 %7777
        %7779 = vadd.xlane.f32.xlu0 %v7670
        %v7780 = vpop.xlane.xlu0 %7779
        %7781 = vadd.xlane.f32.xlu0 %v7671
        %v7782 = vpop.xlane.xlu0 %7781
        %7783 = vadd.xlane.f32.xlu0 %v7672
        %v7784 = vpop.xlane.xlu0 %7783
        %7785 = vadd.xlane.f32.xlu0 %v7673
        %v7786 = vpop.xlane.xlu0 %7785
        %7787 = vadd.xlane.f32.xlu0 %v7674
        %v7788 = vpop.xlane.xlu0 %7787
        %7789 = vadd.xlane.f32.xlu0 %v7675
        %v7790 = vpop.xlane.xlu0 %7789
        %7791 = vadd.xlane.f32.xlu0 %v7676
        %v7792 = vpop.xlane.xlu0 %7791
        %7793 = vadd.xlane.f32.xlu0 %v7677
        %v7794 = vpop.xlane.xlu0 %7793
        %7795 = vadd.xlane.f32.xlu0 %v7678
        %v7796 = vpop.xlane.xlu0 %7795
        %7797 = vadd.xlane.f32.xlu0 %v7679
        %v7798 = vpop.xlane.xlu0 %7797
        %7799 = vadd.xlane.f32.xlu0 %v7680
        %v7800 = vpop.xlane.xlu0 %7799
        %7801 = vadd.xlane.f32.xlu0 %v7681
        %v7802 = vpop.xlane.xlu0 %7801
        %7803 = vadd.xlane.f32.xlu0 %v7682
        %v7804 = vpop.xlane.xlu0 %7803
        %7805 = vadd.xlane.f32.xlu0 %v7683
        %v7806 = vpop.xlane.xlu0 %7805
        %7807 = vadd.xlane.f32.xlu0 %v7684
        %v7808 = vpop.xlane.xlu0 %7807
        %7809 = vadd.xlane.f32.xlu0 %v7685
        %v7810 = vpop.xlane.xlu0 %7809
        %7811 = vadd.xlane.f32.xlu0 %v7686
        %v7812 = vpop.xlane.xlu0 %7811
        %7813 = vadd.xlane.f32.xlu0 %v7687
        %v7814 = vpop.xlane.xlu0 %7813
        %7815 = vadd.xlane.f32.xlu0 %v7688
        %v7816 = vpop.xlane.xlu0 %7815
        %v7817 = vld [vmem:[#allocation7] sm:$0x1]
        %v7819 = vlaneseq
        %v7820 = vshrl.u32 %v7819, 7
        %v7821 = vsub.s32 0, %v7820
        %v7822 = vrot.slane %v7817, %v7821
        %v7824 = vadd.f32 %v7690, %v7822
        %v7825 = vadd.f32 %v7692, %v7822
        %v7826 = vadd.f32 %v7694, %v7822
        %v7827 = vadd.f32 %v7696, %v7822
        %v7828 = vadd.f32 %v7698, %v7822
        %v7829 = vadd.f32 %v7700, %v7822
        %v7830 = vadd.f32 %v7702, %v7822
        %v7831 = vadd.f32 %v7704, %v7822
        %v7832 = vadd.f32 %v7706, %v7822
        %v7833 = vadd.f32 %v7708, %v7822
        %v7834 = vadd.f32 %v7710, %v7822
        %v7835 = vadd.f32 %v7712, %v7822
        %v7836 = vadd.f32 %v7714, %v7822
        %v7837 = vadd.f32 %v7716, %v7822
        %v7838 = vadd.f32 %v7718, %v7822
        %v7839 = vadd.f32 %v7720, %v7822
        %v7840 = vadd.f32 %v7722, %v7822
        %v7841 = vadd.f32 %v7724, %v7822
        %v7842 = vadd.f32 %v7726, %v7822
        %v7843 = vadd.f32 %v7728, %v7822
        %v7844 = vadd.f32 %v7730, %v7822
        %v7845 = vadd.f32 %v7732, %v7822
        %v7846 = vadd.f32 %v7734, %v7822
        %v7847 = vadd.f32 %v7736, %v7822
        %v7848 = vadd.f32 %v7738, %v7822
        %v7849 = vadd.f32 %v7740, %v7822
        %v7850 = vadd.f32 %v7742, %v7822
        %v7851 = vadd.f32 %v7744, %v7822
        %v7852 = vadd.f32 %v7746, %v7822
        %v7853 = vadd.f32 %v7748, %v7822
        %v7854 = vadd.f32 %v7750, %v7822
        %v7855 = vadd.f32 %v7752, %v7822
        %v7856 = vadd.f32 %v7754, %v7822
        %v7857 = vadd.f32 %v7756, %v7822
        %v7858 = vadd.f32 %v7758, %v7822
        %v7859 = vadd.f32 %v7760, %v7822
        %v7860 = vadd.f32 %v7762, %v7822
        %v7861 = vadd.f32 %v7764, %v7822
        %v7862 = vadd.f32 %v7766, %v7822
        %v7863 = vadd.f32 %v7768, %v7822
        %v7864 = vadd.f32 %v7770, %v7822
        %v7865 = vadd.f32 %v7772, %v7822
        %v7866 = vadd.f32 %v7774, %v7822
        %v7867 = vadd.f32 %v7776, %v7822
        %v7868 = vadd.f32 %v7778, %v7822
        %v7869 = vadd.f32 %v7780, %v7822
        %v7870 = vadd.f32 %v7782, %v7822
        %v7871 = vadd.f32 %v7784, %v7822
        %v7872 = vadd.f32 %v7786, %v7822
        %v7873 = vadd.f32 %v7788, %v7822
        %v7874 = vadd.f32 %v7790, %v7822
        %v7875 = vadd.f32 %v7792, %v7822
        %v7876 = vadd.f32 %v7794, %v7822
        %v7877 = vadd.f32 %v7796, %v7822
        %v7878 = vadd.f32 %v7798, %v7822
        %v7879 = vadd.f32 %v7800, %v7822
        %v7880 = vadd.f32 %v7802, %v7822
        %v7881 = vadd.f32 %v7804, %v7822
        %v7882 = vadd.f32 %v7806, %v7822
        %v7883 = vadd.f32 %v7808, %v7822
        %v7884 = vadd.f32 %v7810, %v7822
        %v7885 = vadd.f32 %v7812, %v7822
        %v7886 = vadd.f32 %v7814, %v7822
        %v7887 = vadd.f32 %v7816, %v7822
        %v7888 = vsel %vm657, %v7824, -1e+30
        %v7889 = vsel %vm658, %v7825, -1e+30
        %v7890 = vsel %vm659, %v7826, -1e+30
        %v7891 = vsel %vm660, %v7827, -1e+30
        %v7892 = vsel %vm661, %v7828, -1e+30
        %v7893 = vsel %vm662, %v7829, -1e+30
        %v7894 = vsel %vm663, %v7830, -1e+30
        %v7895 = vsel %vm664, %v7831, -1e+30
        %v7896 = vsel %vm665, %v7832, -1e+30
        %v7897 = vsel %vm666, %v7833, -1e+30
        %v7898 = vsel %vm667, %v7834, -1e+30
        %v7899 = vsel %vm668, %v7835, -1e+30
        %v7900 = vsel %vm669, %v7836, -1e+30
        %v7901 = vsel %vm670, %v7837, -1e+30
        %v7902 = vsel %vm671, %v7838, -1e+30
        %v7903 = vsel %vm672, %v7839, -1e+30
        %v7904 = vsel %vm673, %v7840, -1e+30
        %v7905 = vsel %vm674, %v7841, -1e+30
        %v7906 = vsel %vm675, %v7842, -1e+30
        %v7907 = vsel %vm676, %v7843, -1e+30
        %v7908 = vsel %vm677, %v7844, -1e+30
        %v7909 = vsel %vm678, %v7845, -1e+30
        %v7910 = vsel %vm679, %v7846, -1e+30
        %v7911 = vsel %vm680, %v7847, -1e+30
        %v7912 = vsel %vm681, %v7848, -1e+30
        %v7913 = vsel %vm682, %v7849, -1e+30
        %v7914 = vsel %vm683, %v7850, -1e+30
        %v7915 = vsel %vm684, %v7851, -1e+30
        %v7916 = vsel %vm685, %v7852, -1e+30
        %v7917 = vsel %vm686, %v7853, -1e+30
        %v7918 = vsel %vm687, %v7854, -1e+30
        %v7919 = vsel %vm688, %v7855, -1e+30
        %v7920 = vsel %vm689, %v7856, -1e+30
        %v7921 = vsel %vm690, %v7857, -1e+30
        %v7922 = vsel %vm691, %v7858, -1e+30
        %v7923 = vsel %vm692, %v7859, -1e+30
        %v7924 = vsel %vm693, %v7860, -1e+30
        %v7925 = vsel %vm694, %v7861, -1e+30
        %v7926 = vsel %vm695, %v7862, -1e+30
        %v7927 = vsel %vm696, %v7863, -1e+30
        %v7928 = vsel %vm697, %v7864, -1e+30
        %v7929 = vsel %vm698, %v7865, -1e+30
        %v7930 = vsel %vm699, %v7866, -1e+30
        %v7931 = vsel %vm700, %v7867, -1e+30
        %v7932 = vsel %vm701, %v7868, -1e+30
        %v7933 = vsel %vm702, %v7869, -1e+30
        %v7934 = vsel %vm703, %v7870, -1e+30
        %v7935 = vsel %vm704, %v7871, -1e+30
        %v7936 = vsel %vm705, %v7872, -1e+30
        %v7937 = vsel %vm706, %v7873, -1e+30
        %v7938 = vsel %vm707, %v7874, -1e+30
        %v7939 = vsel %vm708, %v7875, -1e+30
        %v7940 = vsel %vm709, %v7876, -1e+30
        %v7941 = vsel %vm710, %v7877, -1e+30
        %v7942 = vsel %vm711, %v7878, -1e+30
        %v7943 = vsel %vm712, %v7879, -1e+30
        %v7944 = vsel %vm713, %v7880, -1e+30
        %v7945 = vsel %vm714, %v7881, -1e+30
        %v7946 = vsel %vm715, %v7882, -1e+30
        %v7947 = vsel %vm716, %v7883, -1e+30
        %v7948 = vsel %vm717, %v7884, -1e+30
        %v7949 = vsel %vm718, %v7885, -1e+30
        %v7950 = vsel %vm719, %v7886, -1e+30
        %v7951 = vsel %vm720, %v7887, -1e+30
        %vm7952 = vcmask 7168
        %7953 = vst.msk [vmem:[%s470] sm:$0xff] %vm7952, %v7888
        %7954 = vst.msk [vmem:[%s470 + $0x8] sm:$0xff] %vm7952, %v7889
        %7955 = vst.msk [vmem:[%s470 + $0x10] sm:$0xff] %vm7952, %v7890
        %7956 = vst.msk [vmem:[%s470 + $0x18] sm:$0xff] %vm7952, %v7891
        %7957 = vst.msk [vmem:[%s470 + $0x20] sm:$0xff] %vm7952, %v7892
        %7958 = vst.msk [vmem:[%s470 + $0x28] sm:$0xff] %vm7952, %v7893
        %7959 = vst.msk [vmem:[%s470 + $0x30] sm:$0xff] %vm7952, %v7894
        %7960 = vst.msk [vmem:[%s470 + $0x38] sm:$0xff] %vm7952, %v7895
        %7961 = vst.msk [vmem:[%s470 + $0x40] sm:$0xff] %vm7952, %v7896
        %7962 = vst.msk [vmem:[%s470 + $0x48] sm:$0xff] %vm7952, %v7897
        %7963 = vst.msk [vmem:[%s470 + $0x50] sm:$0xff] %vm7952, %v7898
        %7964 = vst.msk [vmem:[%s470 + $0x58] sm:$0xff] %vm7952, %v7899
        %7965 = vst.msk [vmem:[%s470 + $0x60] sm:$0xff] %vm7952, %v7900
        %7966 = vst.msk [vmem:[%s470 + $0x68] sm:$0xff] %vm7952, %v7901
        %7967 = vst.msk [vmem:[%s470 + $0x70] sm:$0xff] %vm7952, %v7902
        %7968 = vst.msk [vmem:[%s470 + $0x78] sm:$0xff] %vm7952, %v7903
        %7969 = vst.msk [vmem:[%s470 + $0x80] sm:$0xff] %vm7952, %v7904
        %7970 = vst.msk [vmem:[%s470 + $0x88] sm:$0xff] %vm7952, %v7905
        %7971 = vst.msk [vmem:[%s470 + $0x90] sm:$0xff] %vm7952, %v7906
        %7972 = vst.msk [vmem:[%s470 + $0x98] sm:$0xff] %vm7952, %v7907
        %7973 = vst.msk [vmem:[%s470 + $0xa0] sm:$0xff] %vm7952, %v7908
        %7974 = vst.msk [vmem:[%s470 + $0xa8] sm:$0xff] %vm7952, %v7909
        %7975 = vst.msk [vmem:[%s470 + $0xb0] sm:$0xff] %vm7952, %v7910
        %7976 = vst.msk [vmem:[%s470 + $0xb8] sm:$0xff] %vm7952, %v7911
        %7977 = vst.msk [vmem:[%s470 + $0xc0] sm:$0xff] %vm7952, %v7912
        %7978 = vst.msk [vmem:[%s470 + $0xc8] sm:$0xff] %vm7952, %v7913
        %7979 = vst.msk [vmem:[%s470 + $0xd0] sm:$0xff] %vm7952, %v7914
        %7980 = vst.msk [vmem:[%s470 + $0xd8] sm:$0xff] %vm7952, %v7915
        %7981 = vst.msk [vmem:[%s470 + $0xe0] sm:$0xff] %vm7952, %v7916
        %7982 = vst.msk [vmem:[%s470 + $0xe8] sm:$0xff] %vm7952, %v7917
        %7983 = vst.msk [vmem:[%s470 + $0xf0] sm:$0xff] %vm7952, %v7918
        %7984 = vst.msk [vmem:[%s470 + $0xf8] sm:$0xff] %vm7952, %v7919
        %7985 = vst.msk [vmem:[%s470 + $0x100] sm:$0xff] %vm7952, %v7920
        %7986 = vst.msk [vmem:[%s470 + $0x108] sm:$0xff] %vm7952, %v7921
        %7987 = vst.msk [vmem:[%s470 + $0x110] sm:$0xff] %vm7952, %v7922
        %7988 = vst.msk [vmem:[%s470 + $0x118] sm:$0xff] %vm7952, %v7923
        %7989 = vst.msk [vmem:[%s470 + $0x120] sm:$0xff] %vm7952, %v7924
        %7990 = vst.msk [vmem:[%s470 + $0x128] sm:$0xff] %vm7952, %v7925
        %7991 = vst.msk [vmem:[%s470 + $0x130] sm:$0xff] %vm7952, %v7926
        %7992 = vst.msk [vmem:[%s470 + $0x138] sm:$0xff] %vm7952, %v7927
        %7993 = vst.msk [vmem:[%s470 + $0x140] sm:$0xff] %vm7952, %v7928
        %7994 = vst.msk [vmem:[%s470 + $0x148] sm:$0xff] %vm7952, %v7929
        %7995 = vst.msk [vmem:[%s470 + $0x150] sm:$0xff] %vm7952, %v7930
        %7996 = vst.msk [vmem:[%s470 + $0x158] sm:$0xff] %vm7952, %v7931
        %7997 = vst.msk [vmem:[%s470 + $0x160] sm:$0xff] %vm7952, %v7932
        %7998 = vst.msk [vmem:[%s470 + $0x168] sm:$0xff] %vm7952, %v7933
        %7999 = vst.msk [vmem:[%s470 + $0x170] sm:$0xff] %vm7952, %v7934
        %8000 = vst.msk [vmem:[%s470 + $0x178] sm:$0xff] %vm7952, %v7935
        %8001 = vst.msk [vmem:[%s470 + $0x180] sm:$0xff] %vm7952, %v7936
        %8002 = vst.msk [vmem:[%s470 + $0x188] sm:$0xff] %vm7952, %v7937
        %8003 = vst.msk [vmem:[%s470 + $0x190] sm:$0xff] %vm7952, %v7938
        %8004 = vst.msk [vmem:[%s470 + $0x198] sm:$0xff] %vm7952, %v7939
        %8005 = vst.msk [vmem:[%s470 + $0x1a0] sm:$0xff] %vm7952, %v7940
        %8006 = vst.msk [vmem:[%s470 + $0x1a8] sm:$0xff] %vm7952, %v7941
        %8007 = vst.msk [vmem:[%s470 + $0x1b0] sm:$0xff] %vm7952, %v7942
        %8008 = vst.msk [vmem:[%s470 + $0x1b8] sm:$0xff] %vm7952, %v7943
        %8009 = vst.msk [vmem:[%s470 + $0x1c0] sm:$0xff] %vm7952, %v7944
        %8010 = vst.msk [vmem:[%s470 + $0x1c8] sm:$0xff] %vm7952, %v7945
        %8011 = vst.msk [vmem:[%s470 + $0x1d0] sm:$0xff] %vm7952, %v7946
        %8012 = vst.msk [vmem:[%s470 + $0x1d8] sm:$0xff] %vm7952, %v7947
        %8013 = vst.msk [vmem:[%s470 + $0x1e0] sm:$0xff] %vm7952, %v7948
        %8014 = vst.msk [vmem:[%s470 + $0x1e8] sm:$0xff] %vm7952, %v7949
        %8015 = vst.msk [vmem:[%s470 + $0x1f0] sm:$0xff] %vm7952, %v7950
        %8016 = vst.msk [vmem:[%s470 + $0x1f8] sm:$0xff] %vm7952, %v7951
        %v8017 = vld [vmem:[#allocation2] sm:$0x1]
        %v8018 = vsel %vm7952, %v7888, -inf
        %v8019 = vsel %vm7952, %v7889, -inf
        %v8020 = vsel %vm7952, %v7890, -inf
        %v8021 = vsel %vm7952, %v7891, -inf
        %v8022 = vsel %vm7952, %v7892, -inf
        %v8023 = vmax.f32 %v8018, %v8022
        %v8024 = vsel %vm7952, %v7893, -inf
        %v8025 = vmax.f32 %v8019, %v8024
        %v8026 = vsel %vm7952, %v7894, -inf
        %v8027 = vmax.f32 %v8020, %v8026
        %v8028 = vsel %vm7952, %v7895, -inf
        %v8029 = vmax.f32 %v8021, %v8028
        %v8030 = vsel %vm7952, %v7896, -inf
        %v8031 = vmax.f32 %v8023, %v8030
        %v8032 = vsel %vm7952, %v7897, -inf
        %v8033 = vmax.f32 %v8025, %v8032
        %v8034 = vsel %vm7952, %v7898, -inf
        %v8035 = vmax.f32 %v8027, %v8034
        %v8036 = vsel %vm7952, %v7899, -inf
        %v8037 = vmax.f32 %v8029, %v8036
        %v8038 = vsel %vm7952, %v7900, -inf
        %v8039 = vmax.f32 %v8031, %v8038
        %v8040 = vsel %vm7952, %v7901, -inf
        %v8041 = vmax.f32 %v8033, %v8040
        %v8042 = vsel %vm7952, %v7902, -inf
        %v8043 = vmax.f32 %v8035, %v8042
        %v8044 = vsel %vm7952, %v7903, -inf
        %v8045 = vmax.f32 %v8037, %v8044
        %v8046 = vsel %vm7952, %v7904, -inf
        %v8047 = vmax.f32 %v8039, %v8046
        %v8048 = vsel %vm7952, %v7905, -inf
        %v8049 = vmax.f32 %v8041, %v8048
        %v8050 = vsel %vm7952, %v7906, -inf
        %v8051 = vmax.f32 %v8043, %v8050
        %v8052 = vsel %vm7952, %v7907, -inf
        %v8053 = vmax.f32 %v8045, %v8052
        %v8054 = vsel %vm7952, %v7908, -inf
        %v8055 = vmax.f32 %v8047, %v8054
        %v8056 = vsel %vm7952, %v7909, -inf
        %v8057 = vmax.f32 %v8049, %v8056
        %v8058 = vsel %vm7952, %v7910, -inf
        %v8059 = vmax.f32 %v8051, %v8058
        %v8060 = vsel %vm7952, %v7911, -inf
        %v8061 = vmax.f32 %v8053, %v8060
        %v8062 = vsel %vm7952, %v7912, -inf
        %v8063 = vmax.f32 %v8055, %v8062
        %v8064 = vsel %vm7952, %v7913, -inf
        %v8065 = vmax.f32 %v8057, %v8064
        %v8066 = vsel %vm7952, %v7914, -inf
        %v8067 = vmax.f32 %v8059, %v8066
        %v8068 = vsel %vm7952, %v7915, -inf
        %v8069 = vmax.f32 %v8061, %v8068
        %v8070 = vsel %vm7952, %v7916, -inf
        %v8071 = vmax.f32 %v8063, %v8070
        %v8072 = vsel %vm7952, %v7917, -inf
        %v8073 = vmax.f32 %v8065, %v8072
        %v8074 = vsel %vm7952, %v7918, -inf
        %v8075 = vmax.f32 %v8067, %v8074
        %v8076 = vsel %vm7952, %v7919, -inf
        %v8077 = vmax.f32 %v8069, %v8076
        %v8078 = vsel %vm7952, %v7920, -inf
        %v8079 = vmax.f32 %v8071, %v8078
        %v8080 = vsel %vm7952, %v7921, -inf
        %v8081 = vmax.f32 %v8073, %v8080
        %v8082 = vsel %vm7952, %v7922, -inf
        %v8083 = vmax.f32 %v8075, %v8082
        %v8084 = vsel %vm7952, %v7923, -inf
        %v8085 = vmax.f32 %v8077, %v8084
        %v8086 = vsel %vm7952, %v7924, -inf
        %v8087 = vmax.f32 %v8079, %v8086
        %v8088 = vsel %vm7952, %v7925, -inf
        %v8089 = vmax.f32 %v8081, %v8088
        %v8090 = vsel %vm7952, %v7926, -inf
        %v8091 = vmax.f32 %v8083, %v8090
        %v8092 = vsel %vm7952, %v7927, -inf
        %v8093 = vmax.f32 %v8085, %v8092
        %v8094 = vsel %vm7952, %v7928, -inf
        %v8095 = vmax.f32 %v8087, %v8094
        %v8096 = vsel %vm7952, %v7929, -inf
        %v8097 = vmax.f32 %v8089, %v8096
        %v8098 = vsel %vm7952, %v7930, -inf
        %v8099 = vmax.f32 %v8091, %v8098
        %v8100 = vsel %vm7952, %v7931, -inf
        %v8101 = vmax.f32 %v8093, %v8100
        %v8102 = vsel %vm7952, %v7932, -inf
        %v8103 = vmax.f32 %v8095, %v8102
        %v8104 = vsel %vm7952, %v7933, -inf
        %v8105 = vmax.f32 %v8097, %v8104
        %v8106 = vsel %vm7952, %v7934, -inf
        %v8107 = vmax.f32 %v8099, %v8106
        %v8108 = vsel %vm7952, %v7935, -inf
        %v8109 = vmax.f32 %v8101, %v8108
        %v8110 = vsel %vm7952, %v7936, -inf
        %v8111 = vmax.f32 %v8103, %v8110
        %v8112 = vsel %vm7952, %v7937, -inf
        %v8113 = vmax.f32 %v8105, %v8112
        %v8114 = vsel %vm7952, %v7938, -inf
        %v8115 = vmax.f32 %v8107, %v8114
        %v8116 = vsel %vm7952, %v7939, -inf
        %v8117 = vmax.f32 %v8109, %v8116
        %v8118 = vsel %vm7952, %v7940, -inf
        %v8119 = vmax.f32 %v8111, %v8118
        %v8120 = vsel %vm7952, %v7941, -inf
        %v8121 = vmax.f32 %v8113, %v8120
        %v8122 = vsel %vm7952, %v7942, -inf
        %v8123 = vmax.f32 %v8115, %v8122
        %v8124 = vsel %vm7952, %v7943, -inf
        %v8125 = vmax.f32 %v8117, %v8124
        %v8126 = vsel %vm7952, %v7944, -inf
        %v8127 = vmax.f32 %v8119, %v8126
        %v8128 = vsel %vm7952, %v7945, -inf
        %v8129 = vmax.f32 %v8121, %v8128
        %v8130 = vsel %vm7952, %v7946, -inf
        %v8131 = vmax.f32 %v8123, %v8130
        %v8132 = vsel %vm7952, %v7947, -inf
        %v8133 = vmax.f32 %v8125, %v8132
        %v8134 = vsel %vm7952, %v7948, -inf
        %v8135 = vmax.f32 %v8127, %v8134
        %v8136 = vsel %vm7952, %v7949, -inf
        %v8137 = vmax.f32 %v8129, %v8136
        %v8138 = vsel %vm7952, %v7950, -inf
        %v8139 = vmax.f32 %v8131, %v8138
        %v8140 = vsel %vm7952, %v7951, -inf
        %v8141 = vmax.f32 %v8133, %v8140
        %v8142 = vmax.f32 %v8135, %v8137
        %v8143 = vmax.f32 %v8139, %v8141
        %v8144 = vmax.f32 %v8142, %v8143
        %v8145 = vrot.slane %v8144, 4
        %v8146 = vmax.f32 %v8144, %v8145
        %v8147 = vrot.slane %v8146, 2
        %v8148 = vmax.f32 %v8146, %v8147
        %v8149 = vrot.slane %v8148, 1
        %v8150 = vmax.f32 %v8148, %v8149
        %v8151 = vmax.f32 %v8017, %v8150
        %v8152 = vsub.f32 %v8017, %v8151
        %v8153 = vmul.f32 %v8152, 1.442695
        %v8154 = vpow.pop %v8153
        %v8156 = vlaneseq
        %v8157 = vshrl.u32 %v8156, 7
        %v8158 = vsub.s32 0, %v8157
        %v8159 = vrot.slane %v8151, %v8158
        %v8161 = vsub.f32 %v7888, %v8159
        %v8162 = vsub.f32 %v7889, %v8159
        %v8163 = vsub.f32 %v7890, %v8159
        %v8164 = vsub.f32 %v7891, %v8159
        %v8165 = vsub.f32 %v7892, %v8159
        %v8166 = vsub.f32 %v7893, %v8159
        %v8167 = vsub.f32 %v7894, %v8159
        %v8168 = vsub.f32 %v7895, %v8159
        %v8169 = vsub.f32 %v7896, %v8159
        %v8170 = vsub.f32 %v7897, %v8159
        %v8171 = vsub.f32 %v7898, %v8159
        %v8172 = vsub.f32 %v7899, %v8159
        %v8173 = vsub.f32 %v7900, %v8159
        %v8174 = vsub.f32 %v7901, %v8159
        %v8175 = vsub.f32 %v7902, %v8159
        %v8176 = vsub.f32 %v7903, %v8159
        %v8177 = vsub.f32 %v7904, %v8159
        %v8178 = vsub.f32 %v7905, %v8159
        %v8179 = vsub.f32 %v7906, %v8159
        %v8180 = vsub.f32 %v7907, %v8159
        %v8181 = vsub.f32 %v7908, %v8159
        %v8182 = vsub.f32 %v7909, %v8159
        %v8183 = vsub.f32 %v7910, %v8159
        %v8184 = vsub.f32 %v7911, %v8159
        %v8185 = vsub.f32 %v7912, %v8159
        %v8186 = vsub.f32 %v7913, %v8159
        %v8187 = vsub.f32 %v7914, %v8159
        %v8188 = vsub.f32 %v7915, %v8159
        %v8189 = vsub.f32 %v7916, %v8159
        %v8190 = vsub.f32 %v7917, %v8159
        %v8191 = vsub.f32 %v7918, %v8159
        %v8192 = vsub.f32 %v7919, %v8159
        %v8193 = vsub.f32 %v7920, %v8159
        %v8194 = vsub.f32 %v7921, %v8159
        %v8195 = vsub.f32 %v7922, %v8159
        %v8196 = vsub.f32 %v7923, %v8159
        %v8197 = vsub.f32 %v7924, %v8159
        %v8198 = vsub.f32 %v7925, %v8159
        %v8199 = vsub.f32 %v7926, %v8159
        %v8200 = vsub.f32 %v7927, %v8159
        %v8201 = vsub.f32 %v7928, %v8159
        %v8202 = vsub.f32 %v7929, %v8159
        %v8203 = vsub.f32 %v7930, %v8159
        %v8204 = vsub.f32 %v7931, %v8159
        %v8205 = vsub.f32 %v7932, %v8159
        %v8206 = vsub.f32 %v7933, %v8159
        %v8207 = vsub.f32 %v7934, %v8159
        %v8208 = vsub.f32 %v7935, %v8159
        %v8209 = vsub.f32 %v7936, %v8159
        %v8210 = vsub.f32 %v7937, %v8159
        %v8211 = vsub.f32 %v7938, %v8159
        %v8212 = vsub.f32 %v7939, %v8159
        %v8213 = vsub.f32 %v7940, %v8159
        %v8214 = vsub.f32 %v7941, %v8159
        %v8215 = vsub.f32 %v7942, %v8159
        %v8216 = vsub.f32 %v7943, %v8159
        %v8217 = vsub.f32 %v7944, %v8159
        %v8218 = vsub.f32 %v7945, %v8159
        %v8219 = vsub.f32 %v7946, %v8159
        %v8220 = vsub.f32 %v7947, %v8159
        %v8221 = vsub.f32 %v7948, %v8159
        %v8222 = vsub.f32 %v7949, %v8159
        %v8223 = vsub.f32 %v7950, %v8159
        %v8224 = vsub.f32 %v7951, %v8159
        %v8225 = vmul.f32 %v8161, 1.442695
        %v8226 = vpow.pop %v8225
        %v8227 = vmul.f32 %v8162, 1.442695
        %v8228 = vpow.pop %v8227
        %v8229 = vmul.f32 %v8163, 1.442695
        %v8230 = vpow.pop %v8229
        %v8231 = vmul.f32 %v8164, 1.442695
        %v8232 = vpow.pop %v8231
        %v8233 = vmul.f32 %v8165, 1.442695
        %v8234 = vpow.pop %v8233
        %v8235 = vmul.f32 %v8166, 1.442695
        %v8236 = vpow.pop %v8235
        %v8237 = vmul.f32 %v8167, 1.442695
        %v8238 = vpow.pop %v8237
        %v8239 = vmul.f32 %v8168, 1.442695
        %v8240 = vpow.pop %v8239
        %v8241 = vmul.f32 %v8169, 1.442695
        %v8242 = vpow.pop %v8241
        %v8243 = vmul.f32 %v8170, 1.442695
        %v8244 = vpow.pop %v8243
        %v8245 = vmul.f32 %v8171, 1.442695
        %v8246 = vpow.pop %v8245
        %v8247 = vmul.f32 %v8172, 1.442695
        %v8248 = vpow.pop %v8247
        %v8249 = vmul.f32 %v8173, 1.442695
        %v8250 = vpow.pop %v8249
        %v8251 = vmul.f32 %v8174, 1.442695
        %v8252 = vpow.pop %v8251
        %v8253 = vmul.f32 %v8175, 1.442695
        %v8254 = vpow.pop %v8253
        %v8255 = vmul.f32 %v8176, 1.442695
        %v8256 = vpow.pop %v8255
        %v8257 = vmul.f32 %v8177, 1.442695
        %v8258 = vpow.pop %v8257
        %v8259 = vmul.f32 %v8178, 1.442695
        %v8260 = vpow.pop %v8259
        %v8261 = vmul.f32 %v8179, 1.442695
        %v8262 = vpow.pop %v8261
        %v8263 = vmul.f32 %v8180, 1.442695
        %v8264 = vpow.pop %v8263
        %v8265 = vmul.f32 %v8181, 1.442695
        %v8266 = vpow.pop %v8265
        %v8267 = vmul.f32 %v8182, 1.442695
        %v8268 = vpow.pop %v8267
        %v8269 = vmul.f32 %v8183, 1.442695
        %v8270 = vpow.pop %v8269
        %v8271 = vmul.f32 %v8184, 1.442695
        %v8272 = vpow.pop %v8271
        %v8273 = vmul.f32 %v8185, 1.442695
        %v8274 = vpow.pop %v8273
        %v8275 = vmul.f32 %v8186, 1.442695
        %v8276 = vpow.pop %v8275
        %v8277 = vmul.f32 %v8187, 1.442695
        %v8278 = vpow.pop %v8277
        %v8279 = vmul.f32 %v8188, 1.442695
        %v8280 = vpow.pop %v8279
        %v8281 = vmul.f32 %v8189, 1.442695
        %v8282 = vpow.pop %v8281
        %v8283 = vmul.f32 %v8190, 1.442695
        %v8284 = vpow.pop %v8283
        %v8285 = vmul.f32 %v8191, 1.442695
        %v8286 = vpow.pop %v8285
        %v8287 = vmul.f32 %v8192, 1.442695
        %v8288 = vpow.pop %v8287
        %v8289 = vmul.f32 %v8193, 1.442695
        %v8290 = vpow.pop %v8289
        %v8291 = vmul.f32 %v8194, 1.442695
        %v8292 = vpow.pop %v8291
        %v8293 = vmul.f32 %v8195, 1.442695
        %v8294 = vpow.pop %v8293
        %v8295 = vmul.f32 %v8196, 1.442695
        %v8296 = vpow.pop %v8295
        %v8297 = vmul.f32 %v8197, 1.442695
        %v8298 = vpow.pop %v8297
        %v8299 = vmul.f32 %v8198, 1.442695
        %v8300 = vpow.pop %v8299
        %v8301 = vmul.f32 %v8199, 1.442695
        %v8302 = vpow.pop %v8301
        %v8303 = vmul.f32 %v8200, 1.442695
        %v8304 = vpow.pop %v8303
        %v8305 = vmul.f32 %v8201, 1.442695
        %v8306 = vpow.pop %v8305
        %v8307 = vmul.f32 %v8202, 1.442695
        %v8308 = vpow.pop %v8307
        %v8309 = vmul.f32 %v8203, 1.442695
        %v8310 = vpow.pop %v8309
        %v8311 = vmul.f32 %v8204, 1.442695
        %v8312 = vpow.pop %v8311
        %v8313 = vmul.f32 %v8205, 1.442695
        %v8314 = vpow.pop %v8313
        %v8315 = vmul.f32 %v8206, 1.442695
        %v8316 = vpow.pop %v8315
        %v8317 = vmul.f32 %v8207, 1.442695
        %v8318 = vpow.pop %v8317
        %v8319 = vmul.f32 %v8208, 1.442695
        %v8320 = vpow.pop %v8319
        %v8321 = vmul.f32 %v8209, 1.442695
        %v8322 = vpow.pop %v8321
        %v8323 = vmul.f32 %v8210, 1.442695
        %v8324 = vpow.pop %v8323
        %v8325 = vmul.f32 %v8211, 1.442695
        %v8326 = vpow.pop %v8325
        %v8327 = vmul.f32 %v8212, 1.442695
        %v8328 = vpow.pop %v8327
        %v8329 = vmul.f32 %v8213, 1.442695
        %v8330 = vpow.pop %v8329
        %v8331 = vmul.f32 %v8214, 1.442695
        %v8332 = vpow.pop %v8331
        %v8333 = vmul.f32 %v8215, 1.442695
        %v8334 = vpow.pop %v8333
        %v8335 = vmul.f32 %v8216, 1.442695
        %v8336 = vpow.pop %v8335
        %v8337 = vmul.f32 %v8217, 1.442695
        %v8338 = vpow.pop %v8337
        %v8339 = vmul.f32 %v8218, 1.442695
        %v8340 = vpow.pop %v8339
        %v8341 = vmul.f32 %v8219, 1.442695
        %v8342 = vpow.pop %v8341
        %v8343 = vmul.f32 %v8220, 1.442695
        %v8344 = vpow.pop %v8343
        %v8345 = vmul.f32 %v8221, 1.442695
        %v8346 = vpow.pop %v8345
        %v8347 = vmul.f32 %v8222, 1.442695
        %v8348 = vpow.pop %v8347
        %v8349 = vmul.f32 %v8223, 1.442695
        %v8350 = vpow.pop %v8349
        %v8351 = vmul.f32 %v8224, 1.442695
        %v8352 = vpow.pop %v8351
        %v8353 = vld [vmem:[#allocation3] sm:$0x1]
        %v8354 = vmul.f32 %v8154, %v8353
        %v8355 = vsel %vm7952, %v8226, 0.0
        %v8356 = vsel %vm7952, %v8228, 0.0
        %v8357 = vadd.f32 %v8355, %v8356
        %v8358 = vsel %vm7952, %v8230, 0.0
        %v8359 = vadd.f32 %v8357, %v8358
        %v8360 = vsel %vm7952, %v8232, 0.0
        %v8361 = vadd.f32 %v8359, %v8360
        %v8362 = vsel %vm7952, %v8234, 0.0
        %v8363 = vadd.f32 %v8361, %v8362
        %v8364 = vsel %vm7952, %v8236, 0.0
        %v8365 = vadd.f32 %v8363, %v8364
        %v8366 = vsel %vm7952, %v8238, 0.0
        %v8367 = vadd.f32 %v8365, %v8366
        %v8368 = vsel %vm7952, %v8240, 0.0
        %v8369 = vadd.f32 %v8367, %v8368
        %v8370 = vsel %vm7952, %v8242, 0.0
        %v8371 = vadd.f32 %v8369, %v8370
        %v8372 = vsel %vm7952, %v8244, 0.0
        %v8373 = vadd.f32 %v8371, %v8372
        %v8374 = vsel %vm7952, %v8246, 0.0
        %v8375 = vadd.f32 %v8373, %v8374
        %v8376 = vsel %vm7952, %v8248, 0.0
        %v8377 = vadd.f32 %v8375, %v8376
        %v8378 = vsel %vm7952, %v8250, 0.0
        %v8379 = vadd.f32 %v8377, %v8378
        %v8380 = vsel %vm7952, %v8252, 0.0
        %v8381 = vadd.f32 %v8379, %v8380
        %v8382 = vsel %vm7952, %v8254, 0.0
        %v8383 = vadd.f32 %v8381, %v8382
        %v8384 = vsel %vm7952, %v8256, 0.0
        %v8385 = vadd.f32 %v8383, %v8384
        %v8386 = vsel %vm7952, %v8258, 0.0
        %v8387 = vadd.f32 %v8385, %v8386
        %v8388 = vsel %vm7952, %v8260, 0.0
        %v8389 = vadd.f32 %v8387, %v8388
        %v8390 = vsel %vm7952, %v8262, 0.0
        %v8391 = vadd.f32 %v8389, %v8390
        %v8392 = vsel %vm7952, %v8264, 0.0
        %v8393 = vadd.f32 %v8391, %v8392
        %v8394 = vsel %vm7952, %v8266, 0.0
        %v8395 = vadd.f32 %v8393, %v8394
        %v8396 = vsel %vm7952, %v8268, 0.0
        %v8397 = vadd.f32 %v8395, %v8396
        %v8398 = vsel %vm7952, %v8270, 0.0
        %v8399 = vadd.f32 %v8397, %v8398
        %v8400 = vsel %vm7952, %v8272, 0.0
        %v8401 = vadd.f32 %v8399, %v8400
        %v8402 = vsel %vm7952, %v8274, 0.0
        %v8403 = vadd.f32 %v8401, %v8402
        %v8404 = vsel %vm7952, %v8276, 0.0
        %v8405 = vadd.f32 %v8403, %v8404
        %v8406 = vsel %vm7952, %v8278, 0.0
        %v8407 = vadd.f32 %v8405, %v8406
        %v8408 = vsel %vm7952, %v8280, 0.0
        %v8409 = vadd.f32 %v8407, %v8408
        %v8410 = vsel %vm7952, %v8282, 0.0
        %v8411 = vadd.f32 %v8409, %v8410
        %v8412 = vsel %vm7952, %v8284, 0.0
        %v8413 = vadd.f32 %v8411, %v8412
        %v8414 = vsel %vm7952, %v8286, 0.0
        %v8415 = vadd.f32 %v8413, %v8414
        %v8416 = vsel %vm7952, %v8288, 0.0
        %v8417 = vadd.f32 %v8415, %v8416
        %v8418 = vsel %vm7952, %v8290, 0.0
        %v8419 = vadd.f32 %v8417, %v8418
        %v8420 = vsel %vm7952, %v8292, 0.0
        %v8421 = vadd.f32 %v8419, %v8420
        %v8422 = vsel %vm7952, %v8294, 0.0
        %v8423 = vadd.f32 %v8421, %v8422
        %v8424 = vsel %vm7952, %v8296, 0.0
        %v8425 = vadd.f32 %v8423, %v8424
        %v8426 = vsel %vm7952, %v8298, 0.0
        %v8427 = vadd.f32 %v8425, %v8426
        %v8428 = vsel %vm7952, %v8300, 0.0
        %v8429 = vadd.f32 %v8427, %v8428
        %v8430 = vsel %vm7952, %v8302, 0.0
        %v8431 = vadd.f32 %v8429, %v8430
        %v8432 = vsel %vm7952, %v8304, 0.0
        %v8433 = vadd.f32 %v8431, %v8432
        %v8434 = vsel %vm7952, %v8306, 0.0
        %v8435 = vadd.f32 %v8433, %v8434
        %v8436 = vsel %vm7952, %v8308, 0.0
        %v8437 = vadd.f32 %v8435, %v8436
        %v8438 = vsel %vm7952, %v8310, 0.0
        %v8439 = vadd.f32 %v8437, %v8438
        %v8440 = vsel %vm7952, %v8312, 0.0
        %v8441 = vadd.f32 %v8439, %v8440
        %v8442 = vsel %vm7952, %v8314, 0.0
        %v8443 = vadd.f32 %v8441, %v8442
        %v8444 = vsel %vm7952, %v8316, 0.0
        %v8445 = vadd.f32 %v8443, %v8444
        %v8446 = vsel %vm7952, %v8318, 0.0
        %v8447 = vadd.f32 %v8445, %v8446
        %v8448 = vsel %vm7952, %v8320, 0.0
        %v8449 = vadd.f32 %v8447, %v8448
        %v8450 = vsel %vm7952, %v8322, 0.0
        %v8451 = vadd.f32 %v8449, %v8450
        %v8452 = vsel %vm7952, %v8324, 0.0
        %v8453 = vadd.f32 %v8451, %v8452
        %v8454 = vsel %vm7952, %v8326, 0.0
        %v8455 = vadd.f32 %v8453, %v8454
        %v8456 = vsel %vm7952, %v8328, 0.0
        %v8457 = vadd.f32 %v8455, %v8456
        %v8458 = vsel %vm7952, %v8330, 0.0
        %v8459 = vadd.f32 %v8457, %v8458
        %v8460 = vsel %vm7952, %v8332, 0.0
        %v8461 = vadd.f32 %v8459, %v8460
        %v8462 = vsel %vm7952, %v8334, 0.0
        %v8463 = vadd.f32 %v8461, %v8462
        %v8464 = vsel %vm7952, %v8336, 0.0
        %v8465 = vadd.f32 %v8463, %v8464
        %v8466 = vsel %vm7952, %v8338, 0.0
        %v8467 = vadd.f32 %v8465, %v8466
        %v8468 = vsel %vm7952, %v8340, 0.0
        %v8469 = vadd.f32 %v8467, %v8468
        %v8470 = vsel %vm7952, %v8342, 0.0
        %v8471 = vadd.f32 %v8469, %v8470
        %v8472 = vsel %vm7952, %v8344, 0.0
        %v8473 = vadd.f32 %v8471, %v8472
        %v8474 = vsel %vm7952, %v8346, 0.0
        %v8475 = vadd.f32 %v8473, %v8474
        %v8476 = vsel %vm7952, %v8348, 0.0
        %v8477 = vadd.f32 %v8475, %v8476
        %v8478 = vsel %vm7952, %v8350, 0.0
        %v8479 = vadd.f32 %v8477, %v8478
        %v8480 = vsel %vm7952, %v8352, 0.0
        %v8481 = vadd.f32 %v8479, %v8480
        %v8482 = vrot.slane %v8481, 4
        %v8483 = vadd.f32 %v8481, %v8482
        %v8484 = vrot.slane %v8483, 2
        %v8485 = vadd.f32 %v8483, %v8484
        %v8486 = vrot.slane %v8485, 1
        %v8487 = vadd.f32 %v8485, %v8486
        %v8488 = vadd.f32 %v8354, %v8487
        %vm8489 = vcmask 0
        %8490 = vst.msk [vmem:[#allocation3] sm:$0x1] %vm8489, %v8488
        %v8491 = vld [vmem:[#allocation4] sm:$0xf]
        %8493 = vset.pattern.permute.xlu0 0
        %8494 = vperm.xlu0 %8493, %v8154
        %v8495 = vpop.permute.xlu0 %8494
        %v8497 = vlaneseq
        %v8498 = vshrl.u32 %v8497, 7
        %v8499 = vsub.s32 0, %v8498
        %v8500 = vrot.slane %v8495, %v8499
        %v8501 = vmul.f32 %v8500, %v8491
        %8503 = vset.pattern.permute.xlu0 0
        %8504 = vperm.xlu0 %8503, %v8226
        %v8505 = vpop.permute.xlu0 %8504
        %8508 = vset.pattern.permute.xlu0 0
        %8509 = vperm.xlu0 %8508, %v8228
        %v8510 = vpop.permute.xlu0 %8509
        %8513 = vset.pattern.permute.xlu0 0
        %8514 = vperm.xlu0 %8513, %v8230
        %v8515 = vpop.permute.xlu0 %8514
        %8518 = vset.pattern.permute.xlu0 0
        %8519 = vperm.xlu0 %8518, %v8232
        %v8520 = vpop.permute.xlu0 %8519
        %8523 = vset.pattern.permute.xlu0 0
        %8524 = vperm.xlu0 %8523, %v8234
        %v8525 = vpop.permute.xlu0 %8524
        %8528 = vset.pattern.permute.xlu0 0
        %8529 = vperm.xlu0 %8528, %v8236
        %v8530 = vpop.permute.xlu0 %8529
        %8533 = vset.pattern.permute.xlu0 0
        %8534 = vperm.xlu0 %8533, %v8238
        %v8535 = vpop.permute.xlu0 %8534
        %8538 = vset.pattern.permute.xlu0 0
        %8539 = vperm.xlu0 %8538, %v8240
        %v8540 = vpop.permute.xlu0 %8539
        %8543 = vset.pattern.permute.xlu0 0
        %8544 = vperm.xlu0 %8543, %v8242
        %v8545 = vpop.permute.xlu0 %8544
        %8548 = vset.pattern.permute.xlu0 0
        %8549 = vperm.xlu0 %8548, %v8244
        %v8550 = vpop.permute.xlu0 %8549
        %8553 = vset.pattern.permute.xlu0 0
        %8554 = vperm.xlu0 %8553, %v8246
        %v8555 = vpop.permute.xlu0 %8554
        %8558 = vset.pattern.permute.xlu0 0
        %8559 = vperm.xlu0 %8558, %v8248
        %v8560 = vpop.permute.xlu0 %8559
        %8563 = vset.pattern.permute.xlu0 0
        %8564 = vperm.xlu0 %8563, %v8250
        %v8565 = vpop.permute.xlu0 %8564
        %8568 = vset.pattern.permute.xlu0 0
        %8569 = vperm.xlu0 %8568, %v8252
        %v8570 = vpop.permute.xlu0 %8569
        %8573 = vset.pattern.permute.xlu0 0
        %8574 = vperm.xlu0 %8573, %v8254
        %v8575 = vpop.permute.xlu0 %8574
        %8578 = vset.pattern.permute.xlu0 0
        %8579 = vperm.xlu0 %8578, %v8256
        %v8580 = vpop.permute.xlu0 %8579
        %8583 = vset.pattern.permute.xlu0 0
        %8584 = vperm.xlu0 %8583, %v8258
        %v8585 = vpop.permute.xlu0 %8584
        %8588 = vset.pattern.permute.xlu0 0
        %8589 = vperm.xlu0 %8588, %v8260
        %v8590 = vpop.permute.xlu0 %8589
        %8593 = vset.pattern.permute.xlu0 0
        %8594 = vperm.xlu0 %8593, %v8262
        %v8595 = vpop.permute.xlu0 %8594
        %8598 = vset.pattern.permute.xlu0 0
        %8599 = vperm.xlu0 %8598, %v8264
        %v8600 = vpop.permute.xlu0 %8599
        %8603 = vset.pattern.permute.xlu0 0
        %8604 = vperm.xlu0 %8603, %v8266
        %v8605 = vpop.permute.xlu0 %8604
        %8608 = vset.pattern.permute.xlu0 0
        %8609 = vperm.xlu0 %8608, %v8268
        %v8610 = vpop.permute.xlu0 %8609
        %8613 = vset.pattern.permute.xlu0 0
        %8614 = vperm.xlu0 %8613, %v8270
        %v8615 = vpop.permute.xlu0 %8614
        %8618 = vset.pattern.permute.xlu0 0
        %8619 = vperm.xlu0 %8618, %v8272
        %v8620 = vpop.permute.xlu0 %8619
        %8623 = vset.pattern.permute.xlu0 0
        %8624 = vperm.xlu0 %8623, %v8274
        %v8625 = vpop.permute.xlu0 %8624
        %8628 = vset.pattern.permute.xlu0 0
        %8629 = vperm.xlu0 %8628, %v8276
        %v8630 = vpop.permute.xlu0 %8629
        %8633 = vset.pattern.permute.xlu0 0
        %8634 = vperm.xlu0 %8633, %v8278
        %v8635 = vpop.permute.xlu0 %8634
        %8638 = vset.pattern.permute.xlu0 0
        %8639 = vperm.xlu0 %8638, %v8280
        %v8640 = vpop.permute.xlu0 %8639
        %8643 = vset.pattern.permute.xlu0 0
        %8644 = vperm.xlu0 %8643, %v8282
        %v8645 = vpop.permute.xlu0 %8644
        %8648 = vset.pattern.permute.xlu0 0
        %8649 = vperm.xlu0 %8648, %v8284
        %v8650 = vpop.permute.xlu0 %8649
        %8653 = vset.pattern.permute.xlu0 0
        %8654 = vperm.xlu0 %8653, %v8286
        %v8655 = vpop.permute.xlu0 %8654
        %8658 = vset.pattern.permute.xlu0 0
        %8659 = vperm.xlu0 %8658, %v8288
        %v8660 = vpop.permute.xlu0 %8659
        %8663 = vset.pattern.permute.xlu0 0
        %8664 = vperm.xlu0 %8663, %v8290
        %v8665 = vpop.permute.xlu0 %8664
        %8668 = vset.pattern.permute.xlu0 0
        %8669 = vperm.xlu0 %8668, %v8292
        %v8670 = vpop.permute.xlu0 %8669
        %8673 = vset.pattern.permute.xlu0 0
        %8674 = vperm.xlu0 %8673, %v8294
        %v8675 = vpop.permute.xlu0 %8674
        %8678 = vset.pattern.permute.xlu0 0
        %8679 = vperm.xlu0 %8678, %v8296
        %v8680 = vpop.permute.xlu0 %8679
        %8683 = vset.pattern.permute.xlu0 0
        %8684 = vperm.xlu0 %8683, %v8298
        %v8685 = vpop.permute.xlu0 %8684
        %8688 = vset.pattern.permute.xlu0 0
        %8689 = vperm.xlu0 %8688, %v8300
        %v8690 = vpop.permute.xlu0 %8689
        %8693 = vset.pattern.permute.xlu0 0
        %8694 = vperm.xlu0 %8693, %v8302
        %v8695 = vpop.permute.xlu0 %8694
        %8698 = vset.pattern.permute.xlu0 0
        %8699 = vperm.xlu0 %8698, %v8304
        %v8700 = vpop.permute.xlu0 %8699
        %8703 = vset.pattern.permute.xlu0 0
        %8704 = vperm.xlu0 %8703, %v8306
        %v8705 = vpop.permute.xlu0 %8704
        %8708 = vset.pattern.permute.xlu0 0
        %8709 = vperm.xlu0 %8708, %v8308
        %v8710 = vpop.permute.xlu0 %8709
        %8713 = vset.pattern.permute.xlu0 0
        %8714 = vperm.xlu0 %8713, %v8310
        %v8715 = vpop.permute.xlu0 %8714
        %8718 = vset.pattern.permute.xlu0 0
        %8719 = vperm.xlu0 %8718, %v8312
        %v8720 = vpop.permute.xlu0 %8719
        %8723 = vset.pattern.permute.xlu0 0
        %8724 = vperm.xlu0 %8723, %v8314
        %v8725 = vpop.permute.xlu0 %8724
        %8728 = vset.pattern.permute.xlu0 0
        %8729 = vperm.xlu0 %8728, %v8316
        %v8730 = vpop.permute.xlu0 %8729
        %8733 = vset.pattern.permute.xlu0 0
        %8734 = vperm.xlu0 %8733, %v8318
        %v8735 = vpop.permute.xlu0 %8734
        %8738 = vset.pattern.permute.xlu0 0
        %8739 = vperm.xlu0 %8738, %v8320
        %v8740 = vpop.permute.xlu0 %8739
        %8743 = vset.pattern.permute.xlu0 0
        %8744 = vperm.xlu0 %8743, %v8322
        %v8745 = vpop.permute.xlu0 %8744
        %8748 = vset.pattern.permute.xlu0 0
        %8749 = vperm.xlu0 %8748, %v8324
        %v8750 = vpop.permute.xlu0 %8749
        %8753 = vset.pattern.permute.xlu0 0
        %8754 = vperm.xlu0 %8753, %v8326
        %v8755 = vpop.permute.xlu0 %8754
        %8758 = vset.pattern.permute.xlu0 0
        %8759 = vperm.xlu0 %8758, %v8328
        %v8760 = vpop.permute.xlu0 %8759
        %8763 = vset.pattern.permute.xlu0 0
        %8764 = vperm.xlu0 %8763, %v8330
        %v8765 = vpop.permute.xlu0 %8764
        %8768 = vset.pattern.permute.xlu0 0
        %8769 = vperm.xlu0 %8768, %v8332
        %v8770 = vpop.permute.xlu0 %8769
        %8773 = vset.pattern.permute.xlu0 0
        %8774 = vperm.xlu0 %8773, %v8334
        %v8775 = vpop.permute.xlu0 %8774
        %8778 = vset.pattern.permute.xlu0 0
        %8779 = vperm.xlu0 %8778, %v8336
        %v8780 = vpop.permute.xlu0 %8779
        %8783 = vset.pattern.permute.xlu0 0
        %8784 = vperm.xlu0 %8783, %v8338
        %v8785 = vpop.permute.xlu0 %8784
        %8788 = vset.pattern.permute.xlu0 0
        %8789 = vperm.xlu0 %8788, %v8340
        %v8790 = vpop.permute.xlu0 %8789
        %8793 = vset.pattern.permute.xlu0 0
        %8794 = vperm.xlu0 %8793, %v8342
        %v8795 = vpop.permute.xlu0 %8794
        %8798 = vset.pattern.permute.xlu0 0
        %8799 = vperm.xlu0 %8798, %v8344
        %v8800 = vpop.permute.xlu0 %8799
        %8803 = vset.pattern.permute.xlu0 0
        %8804 = vperm.xlu0 %8803, %v8346
        %v8805 = vpop.permute.xlu0 %8804
        %8808 = vset.pattern.permute.xlu0 0
        %8809 = vperm.xlu0 %8808, %v8348
        %v8810 = vpop.permute.xlu0 %8809
        %8813 = vset.pattern.permute.xlu0 0
        %8814 = vperm.xlu0 %8813, %v8350
        %v8815 = vpop.permute.xlu0 %8814
        %8818 = vset.pattern.permute.xlu0 0
        %8819 = vperm.xlu0 %8818, %v8352
        %v8820 = vpop.permute.xlu0 %8819
        %v8822 = vmul.f32 %v8505, %v6329
        %v8823 = vmul.f32 %v8505, %v6330
        %v8824 = vmul.f32 %v8505, %v6331
        %v8825 = vmul.f32 %v8505, %v6332
        %v8826 = vmul.f32 %v8510, %v6333
        %v8827 = vmul.f32 %v8510, %v6334
        %v8828 = vmul.f32 %v8510, %v6335
        %v8829 = vmul.f32 %v8510, %v6336
        %v8830 = vmul.f32 %v8515, %v6337
        %v8831 = vmul.f32 %v8515, %v6338
        %v8832 = vmul.f32 %v8515, %v6339
        %v8833 = vmul.f32 %v8515, %v6340
        %v8834 = vmul.f32 %v8520, %v6341
        %v8835 = vmul.f32 %v8520, %v6342
        %v8836 = vmul.f32 %v8520, %v6343
        %v8837 = vmul.f32 %v8520, %v6344
        %v8838 = vmul.f32 %v8525, %v6345
        %v8839 = vmul.f32 %v8525, %v6346
        %v8840 = vmul.f32 %v8525, %v6347
        %v8841 = vmul.f32 %v8525, %v6348
        %v8842 = vmul.f32 %v8530, %v6349
        %v8843 = vmul.f32 %v8530, %v6350
        %v8844 = vmul.f32 %v8530, %v6351
        %v8845 = vmul.f32 %v8530, %v6352
        %v8846 = vmul.f32 %v8535, %v6353
        %v8847 = vmul.f32 %v8535, %v6354
        %v8848 = vmul.f32 %v8535, %v6355
        %v8849 = vmul.f32 %v8535, %v6356
        %v8850 = vmul.f32 %v8540, %v6357
        %v8851 = vmul.f32 %v8540, %v6358
        %v8852 = vmul.f32 %v8540, %v6359
        %v8853 = vmul.f32 %v8540, %v6360
        %v8854 = vmul.f32 %v8545, %v6361
        %v8855 = vmul.f32 %v8545, %v6362
        %v8856 = vmul.f32 %v8545, %v6363
        %v8857 = vmul.f32 %v8545, %v6364
        %v8858 = vmul.f32 %v8550, %v6365
        %v8859 = vmul.f32 %v8550, %v6366
        %v8860 = vmul.f32 %v8550, %v6367
        %v8861 = vmul.f32 %v8550, %v6368
        %v8862 = vmul.f32 %v8555, %v6369
        %v8863 = vmul.f32 %v8555, %v6370
        %v8864 = vmul.f32 %v8555, %v6371
        %v8865 = vmul.f32 %v8555, %v6372
        %v8866 = vmul.f32 %v8560, %v6373
        %v8867 = vmul.f32 %v8560, %v6374
        %v8868 = vmul.f32 %v8560, %v6375
        %v8869 = vmul.f32 %v8560, %v6376
        %v8870 = vmul.f32 %v8565, %v6377
        %v8871 = vmul.f32 %v8565, %v6378
        %v8872 = vmul.f32 %v8565, %v6379
        %v8873 = vmul.f32 %v8565, %v6380
        %v8874 = vmul.f32 %v8570, %v6381
        %v8875 = vmul.f32 %v8570, %v6382
        %v8876 = vmul.f32 %v8570, %v6383
        %v8877 = vmul.f32 %v8570, %v6384
        %v8878 = vmul.f32 %v8575, %v6385
        %v8879 = vmul.f32 %v8575, %v6386
        %v8880 = vmul.f32 %v8575, %v6387
        %v8881 = vmul.f32 %v8575, %v6388
        %v8882 = vmul.f32 %v8580, %v6389
        %v8883 = vmul.f32 %v8580, %v6390
        %v8884 = vmul.f32 %v8580, %v6391
        %v8885 = vmul.f32 %v8580, %v6392
        %v8886 = vmul.f32 %v8585, %v6393
        %v8887 = vmul.f32 %v8585, %v6394
        %v8888 = vmul.f32 %v8585, %v6395
        %v8889 = vmul.f32 %v8585, %v6396
        %v8890 = vmul.f32 %v8590, %v6397
        %v8891 = vmul.f32 %v8590, %v6398
        %v8892 = vmul.f32 %v8590, %v6399
        %v8893 = vmul.f32 %v8590, %v6400
        %v8894 = vmul.f32 %v8595, %v6401
        %v8895 = vmul.f32 %v8595, %v6402
        %v8896 = vmul.f32 %v8595, %v6403
        %v8897 = vmul.f32 %v8595, %v6404
        %v8898 = vmul.f32 %v8600, %v6405
        %v8899 = vmul.f32 %v8600, %v6406
        %v8900 = vmul.f32 %v8600, %v6407
        %v8901 = vmul.f32 %v8600, %v6408
        %v8902 = vmul.f32 %v8605, %v6409
        %v8903 = vmul.f32 %v8605, %v6410
        %v8904 = vmul.f32 %v8605, %v6411
        %v8905 = vmul.f32 %v8605, %v6412
        %v8906 = vmul.f32 %v8610, %v6413
        %v8907 = vmul.f32 %v8610, %v6414
        %v8908 = vmul.f32 %v8610, %v6415
        %v8909 = vmul.f32 %v8610, %v6416
        %v8910 = vmul.f32 %v8615, %v6417
        %v8911 = vmul.f32 %v8615, %v6418
        %v8912 = vmul.f32 %v8615, %v6419
        %v8913 = vmul.f32 %v8615, %v6420
        %v8914 = vmul.f32 %v8620, %v6421
        %v8915 = vmul.f32 %v8620, %v6422
        %v8916 = vmul.f32 %v8620, %v6423
        %v8917 = vmul.f32 %v8620, %v6424
        %v8918 = vmul.f32 %v8625, %v6425
        %v8919 = vmul.f32 %v8625, %v6426
        %v8920 = vmul.f32 %v8625, %v6427
        %v8921 = vmul.f32 %v8625, %v6428
        %v8922 = vmul.f32 %v8630, %v6429
        %v8923 = vmul.f32 %v8630, %v6430
        %v8924 = vmul.f32 %v8630, %v6431
        %v8925 = vmul.f32 %v8630, %v6432
        %v8926 = vmul.f32 %v8635, %v6433
        %v8927 = vmul.f32 %v8635, %v6434
        %v8928 = vmul.f32 %v8635, %v6435
        %v8929 = vmul.f32 %v8635, %v6436
        %v8930 = vmul.f32 %v8640, %v6437
        %v8931 = vmul.f32 %v8640, %v6438
        %v8932 = vmul.f32 %v8640, %v6439
        %v8933 = vmul.f32 %v8640, %v6440
        %v8934 = vmul.f32 %v8645, %v6441
        %v8935 = vmul.f32 %v8645, %v6442
        %v8936 = vmul.f32 %v8645, %v6443
        %v8937 = vmul.f32 %v8645, %v6444
        %v8938 = vmul.f32 %v8650, %v6445
        %v8939 = vmul.f32 %v8650, %v6446
        %v8940 = vmul.f32 %v8650, %v6447
        %v8941 = vmul.f32 %v8650, %v6448
        %v8942 = vmul.f32 %v8655, %v6449
        %v8943 = vmul.f32 %v8655, %v6450
        %v8944 = vmul.f32 %v8655, %v6451
        %v8945 = vmul.f32 %v8655, %v6452
        %v8946 = vmul.f32 %v8660, %v6453
        %v8947 = vmul.f32 %v8660, %v6454
        %v8948 = vmul.f32 %v8660, %v6455
        %v8949 = vmul.f32 %v8660, %v6456
        %v8950 = vmul.f32 %v8665, %v6457
        %v8951 = vmul.f32 %v8665, %v6458
        %v8952 = vmul.f32 %v8665, %v6459
        %v8953 = vmul.f32 %v8665, %v6460
        %v8954 = vmul.f32 %v8670, %v6461
        %v8955 = vmul.f32 %v8670, %v6462
        %v8956 = vmul.f32 %v8670, %v6463
        %v8957 = vmul.f32 %v8670, %v6464
        %v8958 = vmul.f32 %v8675, %v6465
        %v8959 = vmul.f32 %v8675, %v6466
        %v8960 = vmul.f32 %v8675, %v6467
        %v8961 = vmul.f32 %v8675, %v6468
        %v8962 = vmul.f32 %v8680, %v6469
        %v8963 = vmul.f32 %v8680, %v6470
        %v8964 = vmul.f32 %v8680, %v6471
        %v8965 = vmul.f32 %v8680, %v6472
        %v8966 = vmul.f32 %v8685, %v6473
        %v8967 = vmul.f32 %v8685, %v6474
        %v8968 = vmul.f32 %v8685, %v6475
        %v8969 = vmul.f32 %v8685, %v6476
        %v8970 = vmul.f32 %v8690, %v6477
        %v8971 = vmul.f32 %v8690, %v6478
        %v8972 = vmul.f32 %v8690, %v6479
        %v8973 = vmul.f32 %v8690, %v6480
        %v8974 = vmul.f32 %v8695, %v6481
        %v8975 = vmul.f32 %v8695, %v6482
        %v8976 = vmul.f32 %v8695, %v6483
        %v8977 = vmul.f32 %v8695, %v6484
        %v8978 = vmul.f32 %v8700, %v6485
        %v8979 = vmul.f32 %v8700, %v6486
        %v8980 = vmul.f32 %v8700, %v6487
        %v8981 = vmul.f32 %v8700, %v6488
        %v8982 = vmul.f32 %v8705, %v6489
        %v8983 = vmul.f32 %v8705, %v6490
        %v8984 = vmul.f32 %v8705, %v6491
        %v8985 = vmul.f32 %v8705, %v6492
        %v8986 = vmul.f32 %v8710, %v6493
        %v8987 = vmul.f32 %v8710, %v6494
        %v8988 = vmul.f32 %v8710, %v6495
        %v8989 = vmul.f32 %v8710, %v6496
        %v8990 = vmul.f32 %v8715, %v6497
        %v8991 = vmul.f32 %v8715, %v6498
        %v8992 = vmul.f32 %v8715, %v6499
        %v8993 = vmul.f32 %v8715, %v6500
        %v8994 = vmul.f32 %v8720, %v6501
        %v8995 = vmul.f32 %v8720, %v6502
        %v8996 = vmul.f32 %v8720, %v6503
        %v8997 = vmul.f32 %v8720, %v6504
        %v8998 = vmul.f32 %v8725, %v6505
        %v8999 = vmul.f32 %v8725, %v6506
        %v9000 = vmul.f32 %v8725, %v6507
        %v9001 = vmul.f32 %v8725, %v6508
        %v9002 = vmul.f32 %v8730, %v6509
        %v9003 = vmul.f32 %v8730, %v6510
        %v9004 = vmul.f32 %v8730, %v6511
        %v9005 = vmul.f32 %v8730, %v6512
        %v9006 = vmul.f32 %v8735, %v6513
        %v9007 = vmul.f32 %v8735, %v6514
        %v9008 = vmul.f32 %v8735, %v6515
        %v9009 = vmul.f32 %v8735, %v6516
        %v9010 = vmul.f32 %v8740, %v6517
        %v9011 = vmul.f32 %v8740, %v6518
        %v9012 = vmul.f32 %v8740, %v6519
        %v9013 = vmul.f32 %v8740, %v6520
        %v9014 = vmul.f32 %v8745, %v6521
        %v9015 = vmul.f32 %v8745, %v6522
        %v9016 = vmul.f32 %v8745, %v6523
        %v9017 = vmul.f32 %v8745, %v6524
        %v9018 = vmul.f32 %v8750, %v6525
        %v9019 = vmul.f32 %v8750, %v6526
        %v9020 = vmul.f32 %v8750, %v6527
        %v9021 = vmul.f32 %v8750, %v6528
        %v9022 = vmul.f32 %v8755, %v6529
        %v9023 = vmul.f32 %v8755, %v6530
        %v9024 = vmul.f32 %v8755, %v6531
        %v9025 = vmul.f32 %v8755, %v6532
        %v9026 = vmul.f32 %v8760, %v6533
        %v9027 = vmul.f32 %v8760, %v6534
        %v9028 = vmul.f32 %v8760, %v6535
        %v9029 = vmul.f32 %v8760, %v6536
        %v9030 = vmul.f32 %v8765, %v6537
        %v9031 = vmul.f32 %v8765, %v6538
        %v9032 = vmul.f32 %v8765, %v6539
        %v9033 = vmul.f32 %v8765, %v6540
        %v9034 = vmul.f32 %v8770, %v6541
        %v9035 = vmul.f32 %v8770, %v6542
        %v9036 = vmul.f32 %v8770, %v6543
        %v9037 = vmul.f32 %v8770, %v6544
        %v9038 = vmul.f32 %v8775, %v6545
        %v9039 = vmul.f32 %v8775, %v6546
        %v9040 = vmul.f32 %v8775, %v6547
        %v9041 = vmul.f32 %v8775, %v6548
        %v9042 = vmul.f32 %v8780, %v6549
        %v9043 = vmul.f32 %v8780, %v6550
        %v9044 = vmul.f32 %v8780, %v6551
        %v9045 = vmul.f32 %v8780, %v6552
        %v9046 = vmul.f32 %v8785, %v6553
        %v9047 = vmul.f32 %v8785, %v6554
        %v9048 = vmul.f32 %v8785, %v6555
        %v9049 = vmul.f32 %v8785, %v6556
        %v9050 = vmul.f32 %v8790, %v6557
        %v9051 = vmul.f32 %v8790, %v6558
        %v9052 = vmul.f32 %v8790, %v6559
        %v9053 = vmul.f32 %v8790, %v6560
        %v9054 = vmul.f32 %v8795, %v6561
        %v9055 = vmul.f32 %v8795, %v6562
        %v9056 = vmul.f32 %v8795, %v6563
        %v9057 = vmul.f32 %v8795, %v6564
        %v9058 = vmul.f32 %v8800, %v6565
        %v9059 = vmul.f32 %v8800, %v6566
        %v9060 = vmul.f32 %v8800, %v6567
        %v9061 = vmul.f32 %v8800, %v6568
        %v9062 = vmul.f32 %v8805, %v6569
        %v9063 = vmul.f32 %v8805, %v6570
        %v9064 = vmul.f32 %v8805, %v6571
        %v9065 = vmul.f32 %v8805, %v6572
        %v9066 = vmul.f32 %v8810, %v6573
        %v9067 = vmul.f32 %v8810, %v6574
        %v9068 = vmul.f32 %v8810, %v6575
        %v9069 = vmul.f32 %v8810, %v6576
        %v9070 = vmul.f32 %v8815, %v6577
        %v9071 = vmul.f32 %v8815, %v6578
        %v9072 = vmul.f32 %v8815, %v6579
        %v9073 = vmul.f32 %v8815, %v6580
        %v9074 = vmul.f32 %v8820, %v6581
        %v9075 = vmul.f32 %v8820, %v6582
        %v9076 = vmul.f32 %v8820, %v6583
        %v9077 = vmul.f32 %v8820, %v6584
        %v9078 = vadd.f32 %v8822, %v8826
        %v9079 = vadd.f32 %v9078, %v8830
        %v9080 = vadd.f32 %v9079, %v8834
        %v9081 = vadd.f32 %v9080, %v8838
        %v9082 = vadd.f32 %v9081, %v8842
        %v9083 = vadd.f32 %v9082, %v8846
        %v9084 = vadd.f32 %v9083, %v8850
        %v9085 = vadd.f32 %v9084, %v8854
        %v9086 = vadd.f32 %v9085, %v8858
        %v9087 = vadd.f32 %v9086, %v8862
        %v9088 = vadd.f32 %v9087, %v8866
        %v9089 = vadd.f32 %v9088, %v8870
        %v9090 = vadd.f32 %v9089, %v8874
        %v9091 = vadd.f32 %v9090, %v8878
        %v9092 = vadd.f32 %v9091, %v8882
        %v9093 = vadd.f32 %v9092, %v8886
        %v9094 = vadd.f32 %v9093, %v8890
        %v9095 = vadd.f32 %v9094, %v8894
        %v9096 = vadd.f32 %v9095, %v8898
        %v9097 = vadd.f32 %v9096, %v8902
        %v9098 = vadd.f32 %v9097, %v8906
        %v9099 = vadd.f32 %v9098, %v8910
        %v9100 = vadd.f32 %v9099, %v8914
        %v9101 = vadd.f32 %v9100, %v8918
        %v9102 = vadd.f32 %v9101, %v8922
        %v9103 = vadd.f32 %v9102, %v8926
        %v9104 = vadd.f32 %v9103, %v8930
        %v9105 = vadd.f32 %v9104, %v8934
        %v9106 = vadd.f32 %v9105, %v8938
        %v9107 = vadd.f32 %v9106, %v8942
        %v9108 = vadd.f32 %v9107, %v8946
        %v9109 = vadd.f32 %v9108, %v8950
        %v9110 = vadd.f32 %v9109, %v8954
        %v9111 = vadd.f32 %v9110, %v8958
        %v9112 = vadd.f32 %v9111, %v8962
        %v9113 = vadd.f32 %v9112, %v8966
        %v9114 = vadd.f32 %v9113, %v8970
        %v9115 = vadd.f32 %v9114, %v8974
        %v9116 = vadd.f32 %v9115, %v8978
        %v9117 = vadd.f32 %v9116, %v8982
        %v9118 = vadd.f32 %v9117, %v8986
        %v9119 = vadd.f32 %v9118, %v8990
        %v9120 = vadd.f32 %v9119, %v8994
        %v9121 = vadd.f32 %v9120, %v8998
        %v9122 = vadd.f32 %v9121, %v9002
        %v9123 = vadd.f32 %v9122, %v9006
        %v9124 = vadd.f32 %v9123, %v9010
        %v9125 = vadd.f32 %v9124, %v9014
        %v9126 = vadd.f32 %v9125, %v9018
        %v9127 = vadd.f32 %v9126, %v9022
        %v9128 = vadd.f32 %v9127, %v9026
        %v9129 = vadd.f32 %v9128, %v9030
        %v9130 = vadd.f32 %v9129, %v9034
        %v9131 = vadd.f32 %v9130, %v9038
        %v9132 = vadd.f32 %v9131, %v9042
        %v9133 = vadd.f32 %v9132, %v9046
        %v9134 = vadd.f32 %v9133, %v9050
        %v9135 = vadd.f32 %v9134, %v9054
        %v9136 = vadd.f32 %v9135, %v9058
        %v9137 = vadd.f32 %v9136, %v9062
        %v9138 = vadd.f32 %v9137, %v9066
        %v9139 = vadd.f32 %v9138, %v9070
        %v9140 = vadd.f32 %v9139, %v9074
        %v9141 = vrot.slane %v9140, 4
        %v9142 = vadd.f32 %v9140, %v9141
        %v9143 = vrot.slane %v9142, 2
        %v9144 = vadd.f32 %v9142, %v9143
        %v9145 = vrot.slane %v9144, 1
        %v9146 = vadd.f32 %v9144, %v9145
        %v9147 = vadd.f32 %v8823, %v8827
        %v9148 = vadd.f32 %v9147, %v8831
        %v9149 = vadd.f32 %v9148, %v8835
        %v9150 = vadd.f32 %v9149, %v8839
        %v9151 = vadd.f32 %v9150, %v8843
        %v9152 = vadd.f32 %v9151, %v8847
        %v9153 = vadd.f32 %v9152, %v8851
        %v9154 = vadd.f32 %v9153, %v8855
        %v9155 = vadd.f32 %v9154, %v8859
        %v9156 = vadd.f32 %v9155, %v8863
        %v9157 = vadd.f32 %v9156, %v8867
        %v9158 = vadd.f32 %v9157, %v8871
        %v9159 = vadd.f32 %v9158, %v8875
        %v9160 = vadd.f32 %v9159, %v8879
        %v9161 = vadd.f32 %v9160, %v8883
        %v9162 = vadd.f32 %v9161, %v8887
        %v9163 = vadd.f32 %v9162, %v8891
        %v9164 = vadd.f32 %v9163, %v8895
        %v9165 = vadd.f32 %v9164, %v8899
        %v9166 = vadd.f32 %v9165, %v8903
        %v9167 = vadd.f32 %v9166, %v8907
        %v9168 = vadd.f32 %v9167, %v8911
        %v9169 = vadd.f32 %v9168, %v8915
        %v9170 = vadd.f32 %v9169, %v8919
        %v9171 = vadd.f32 %v9170, %v8923
        %v9172 = vadd.f32 %v9171, %v8927
        %v9173 = vadd.f32 %v9172, %v8931
        %v9174 = vadd.f32 %v9173, %v8935
        %v9175 = vadd.f32 %v9174, %v8939
        %v9176 = vadd.f32 %v9175, %v8943
        %v9177 = vadd.f32 %v9176, %v8947
        %v9178 = vadd.f32 %v9177, %v8951
        %v9179 = vadd.f32 %v9178, %v8955
        %v9180 = vadd.f32 %v9179, %v8959
        %v9181 = vadd.f32 %v9180, %v8963
        %v9182 = vadd.f32 %v9181, %v8967
        %v9183 = vadd.f32 %v9182, %v8971
        %v9184 = vadd.f32 %v9183, %v8975
        %v9185 = vadd.f32 %v9184, %v8979
        %v9186 = vadd.f32 %v9185, %v8983
        %v9187 = vadd.f32 %v9186, %v8987
        %v9188 = vadd.f32 %v9187, %v8991
        %v9189 = vadd.f32 %v9188, %v8995
        %v9190 = vadd.f32 %v9189, %v8999
        %v9191 = vadd.f32 %v9190, %v9003
        %v9192 = vadd.f32 %v9191, %v9007
        %v9193 = vadd.f32 %v9192, %v9011
        %v9194 = vadd.f32 %v9193, %v9015
        %v9195 = vadd.f32 %v9194, %v9019
        %v9196 = vadd.f32 %v9195, %v9023
        %v9197 = vadd.f32 %v9196, %v9027
        %v9198 = vadd.f32 %v9197, %v9031
        %v9199 = vadd.f32 %v9198, %v9035
        %v9200 = vadd.f32 %v9199, %v9039
        %v9201 = vadd.f32 %v9200, %v9043
        %v9202 = vadd.f32 %v9201, %v9047
        %v9203 = vadd.f32 %v9202, %v9051
        %v9204 = vadd.f32 %v9203, %v9055
        %v9205 = vadd.f32 %v9204, %v9059
        %v9206 = vadd.f32 %v9205, %v9063
        %v9207 = vadd.f32 %v9206, %v9067
        %v9208 = vadd.f32 %v9207, %v9071
        %v9209 = vadd.f32 %v9208, %v9075
        %v9210 = vrot.slane %v9209, 4
        %v9211 = vadd.f32 %v9209, %v9210
        %v9212 = vrot.slane %v9211, 2
        %v9213 = vadd.f32 %v9211, %v9212
        %v9214 = vrot.slane %v9213, 1
        %v9215 = vadd.f32 %v9213, %v9214
        %v9216 = vadd.f32 %v8824, %v8828
        %v9217 = vadd.f32 %v9216, %v8832
        %v9218 = vadd.f32 %v9217, %v8836
        %v9219 = vadd.f32 %v9218, %v8840
        %v9220 = vadd.f32 %v9219, %v8844
        %v9221 = vadd.f32 %v9220, %v8848
        %v9222 = vadd.f32 %v9221, %v8852
        %v9223 = vadd.f32 %v9222, %v8856
        %v9224 = vadd.f32 %v9223, %v8860
        %v9225 = vadd.f32 %v9224, %v8864
        %v9226 = vadd.f32 %v9225, %v8868
        %v9227 = vadd.f32 %v9226, %v8872
        %v9228 = vadd.f32 %v9227, %v8876
        %v9229 = vadd.f32 %v9228, %v8880
        %v9230 = vadd.f32 %v9229, %v8884
        %v9231 = vadd.f32 %v9230, %v8888
        %v9232 = vadd.f32 %v9231, %v8892
        %v9233 = vadd.f32 %v9232, %v8896
        %v9234 = vadd.f32 %v9233, %v8900
        %v9235 = vadd.f32 %v9234, %v8904
        %v9236 = vadd.f32 %v9235, %v8908
        %v9237 = vadd.f32 %v9236, %v8912
        %v9238 = vadd.f32 %v9237, %v8916
        %v9239 = vadd.f32 %v9238, %v8920
        %v9240 = vadd.f32 %v9239, %v8924
        %v9241 = vadd.f32 %v9240, %v8928
        %v9242 = vadd.f32 %v9241, %v8932
        %v9243 = vadd.f32 %v9242, %v8936
        %v9244 = vadd.f32 %v9243, %v8940
        %v9245 = vadd.f32 %v9244, %v8944
        %v9246 = vadd.f32 %v9245, %v8948
        %v9247 = vadd.f32 %v9246, %v8952
        %v9248 = vadd.f32 %v9247, %v8956
        %v9249 = vadd.f32 %v9248, %v8960
        %v9250 = vadd.f32 %v9249, %v8964
        %v9251 = vadd.f32 %v9250, %v8968
        %v9252 = vadd.f32 %v9251, %v8972
        %v9253 = vadd.f32 %v9252, %v8976
        %v9254 = vadd.f32 %v9253, %v8980
        %v9255 = vadd.f32 %v9254, %v8984
        %v9256 = vadd.f32 %v9255, %v8988
        %v9257 = vadd.f32 %v9256, %v8992
        %v9258 = vadd.f32 %v9257, %v8996
        %v9259 = vadd.f32 %v9258, %v9000
        %v9260 = vadd.f32 %v9259, %v9004
        %v9261 = vadd.f32 %v9260, %v9008
        %v9262 = vadd.f32 %v9261, %v9012
        %v9263 = vadd.f32 %v9262, %v9016
        %v9264 = vadd.f32 %v9263, %v9020
        %v9265 = vadd.f32 %v9264, %v9024
        %v9266 = vadd.f32 %v9265, %v9028
        %v9267 = vadd.f32 %v9266, %v9032
        %v9268 = vadd.f32 %v9267, %v9036
        %v9269 = vadd.f32 %v9268, %v9040
        %v9270 = vadd.f32 %v9269, %v9044
        %v9271 = vadd.f32 %v9270, %v9048
        %v9272 = vadd.f32 %v9271, %v9052
        %v9273 = vadd.f32 %v9272, %v9056
        %v9274 = vadd.f32 %v9273, %v9060
        %v9275 = vadd.f32 %v9274, %v9064
        %v9276 = vadd.f32 %v9275, %v9068
        %v9277 = vadd.f32 %v9276, %v9072
        %v9278 = vadd.f32 %v9277, %v9076
        %v9279 = vrot.slane %v9278, 4
        %v9280 = vadd.f32 %v9278, %v9279
        %v9281 = vrot.slane %v9280, 2
        %v9282 = vadd.f32 %v9280, %v9281
        %v9283 = vrot.slane %v9282, 1
        %v9284 = vadd.f32 %v9282, %v9283
        %v9285 = vadd.f32 %v8825, %v8829
        %v9286 = vadd.f32 %v9285, %v8833
        %v9287 = vadd.f32 %v9286, %v8837
        %v9288 = vadd.f32 %v9287, %v8841
        %v9289 = vadd.f32 %v9288, %v8845
        %v9290 = vadd.f32 %v9289, %v8849
        %v9291 = vadd.f32 %v9290, %v8853
        %v9292 = vadd.f32 %v9291, %v8857
        %v9293 = vadd.f32 %v9292, %v8861
        %v9294 = vadd.f32 %v9293, %v8865
        %v9295 = vadd.f32 %v9294, %v8869
        %v9296 = vadd.f32 %v9295, %v8873
        %v9297 = vadd.f32 %v9296, %v8877
        %v9298 = vadd.f32 %v9297, %v8881
        %v9299 = vadd.f32 %v9298, %v8885
        %v9300 = vadd.f32 %v9299, %v8889
        %v9301 = vadd.f32 %v9300, %v8893
        %v9302 = vadd.f32 %v9301, %v8897
        %v9303 = vadd.f32 %v9302, %v8901
        %v9304 = vadd.f32 %v9303, %v8905
        %v9305 = vadd.f32 %v9304, %v8909
        %v9306 = vadd.f32 %v9305, %v8913
        %v9307 = vadd.f32 %v9306, %v8917
        %v9308 = vadd.f32 %v9307, %v8921
        %v9309 = vadd.f32 %v9308, %v8925
        %v9310 = vadd.f32 %v9309, %v8929
        %v9311 = vadd.f32 %v9310, %v8933
        %v9312 = vadd.f32 %v9311, %v8937
        %v9313 = vadd.f32 %v9312, %v8941
        %v9314 = vadd.f32 %v9313, %v8945
        %v9315 = vadd.f32 %v9314, %v8949
        %v9316 = vadd.f32 %v9315, %v8953
        %v9317 = vadd.f32 %v9316, %v8957
        %v9318 = vadd.f32 %v9317, %v8961
        %v9319 = vadd.f32 %v9318, %v8965
        %v9320 = vadd.f32 %v9319, %v8969
        %v9321 = vadd.f32 %v9320, %v8973
        %v9322 = vadd.f32 %v9321, %v8977
        %v9323 = vadd.f32 %v9322, %v8981
        %v9324 = vadd.f32 %v9323, %v8985
        %v9325 = vadd.f32 %v9324, %v8989
        %v9326 = vadd.f32 %v9325, %v8993
        %v9327 = vadd.f32 %v9326, %v8997
        %v9328 = vadd.f32 %v9327, %v9001
        %v9329 = vadd.f32 %v9328, %v9005
        %v9330 = vadd.f32 %v9329, %v9009
        %v9331 = vadd.f32 %v9330, %v9013
        %v9332 = vadd.f32 %v9331, %v9017
        %v9333 = vadd.f32 %v9332, %v9021
        %v9334 = vadd.f32 %v9333, %v9025
        %v9335 = vadd.f32 %v9334, %v9029
        %v9336 = vadd.f32 %v9335, %v9033
        %v9337 = vadd.f32 %v9336, %v9037
        %v9338 = vadd.f32 %v9337, %v9041
        %v9339 = vadd.f32 %v9338, %v9045
        %v9340 = vadd.f32 %v9339, %v9049
        %v9341 = vadd.f32 %v9340, %v9053
        %v9342 = vadd.f32 %v9341, %v9057
        %v9343 = vadd.f32 %v9342, %v9061
        %v9344 = vadd.f32 %v9343, %v9065
        %v9345 = vadd.f32 %v9344, %v9069
        %v9346 = vadd.f32 %v9345, %v9073
        %v9347 = vadd.f32 %v9346, %v9077
        %v9348 = vrot.slane %v9347, 4
        %v9349 = vadd.f32 %v9347, %v9348
        %v9350 = vrot.slane %v9349, 2
        %v9351 = vadd.f32 %v9349, %v9350
        %v9352 = vrot.slane %v9351, 1
        %v9353 = vadd.f32 %v9351, %v9352
        %v9358 = vcombine.low %v9146, %v9215
        %v9359 = vcombine.low %v9284, %v9353
        %v9361 = vunpack.c.l.s4 1966171168
        %v9362 = vunpack.c.0.s8 %v9361
        %v9363 = vlaneseq
        %v9364 = vshrl.u32 %v9363, 7
        %v9365 = vsub.s32 %v9362, %v9364
        %v9366 = vrot.slane %v9358, %v9365
        %v9368 = vunpack.c.l.s4 1966171168
        %v9369 = vunpack.c.0.s8 %v9368
        %v9370 = vlaneseq
        %v9371 = vshrl.u32 %v9370, 7
        %v9372 = vsub.s32 %v9369, %v9371
        %v9373 = vrot.slane %v9359, %v9372
        %v9374 = vcombine.low %v9366, %v9373
        %v9376 = vunpack.c.l.s4 1966171168
        %v9377 = vunpack.c.0.s8 %v9376
        %v9378 = vlaneseq
        %v9379 = vshrl.u32 %v9378, 7
        %v9380 = vsub.s32 %v9377, %v9379
        %v9381 = vrot.slane %v9374, %v9380
        %v9383 = vadd.f32 %v8501, %v9381
        %v9384 = vlaneseq
        %vm9385 = vcmp.ge.s32.totalorder %v9384, 0
        %vm9386 = vcmp.lt.s32.totalorder %v9384, 512
        %vm9387 = vmand %vm9385, %vm9386
        %9388 = vst.msk [vmem:[#allocation4] sm:$0xf] %vm9387, %v9383
        %9389 = vst.msk [vmem:[#allocation2] sm:$0x1] %vm8489, %v8151
        // Predicated region
        $region77: #{mil_attention_forward.1} parent=47 // pred_check
          %p9390 = pneg %p511
        $region78: #{mil_attention_forward.1} parent=47 // pred_check_branch
          %9392 = sbr.rel (%p9390) target = $region80
        $region79: #{mil_attention_forward.1} parent=47 // pred_region
          %v9393 = vld [vmem:[#allocation2] sm:$0x1]
          %9394 = vst.msk [vmem:[%s502] sm:$0x1] %vm8489, %v9393
          %v9395 = vld [vmem:[#allocation3] sm:$0x1]
          %9396 = vst.msk [vmem:[%s505] sm:$0x1] %vm8489, %v9395
          %v9397 = vld [vmem:[#allocation4] sm:$0xf]
          %9398 = vst.msk [vmem:[%s509] sm:$0xf] %vm9387, %v9397
        $region80: #{mil_attention_forward.1} parent=47 // pred_fallthru
          _
        %s9399 = sand.u32 %s208, 1
        %s9400 = sand.u32 %s208, 1
        %s9401 = smul.addr %s9400, 512
        %s9402 = scalar_lea.vmem [#allocation18], %s9401
        %p9403 = scmp.lt.s32.totalorder %s36, 1
        %s9404 = scalar_select %p9403, %s36, 1
        %s9405 = scalar_lea.vmem %s9, %s9404
        %p9406 = scmp.lt.s32.totalorder %s36, 1
        %s9407 = scalar_select %p9406, %s36, 1
        %s9408 = scalar_lea.vmem %s10, %s9407
        %p9409 = scmp.lt.s32.totalorder %s36, 1
        %s9410 = scalar_select %p9409, %s36, 1
        %s9411 = smul.addr %s9410, 4
        %s9412 = scalar_lea.vmem %s11, %s9411
        // Predicated region
        $region81: #{mil_attention_forward.1} parent=47 // pred_check
          %p9413 = pneg %p218
        $region82: #{mil_attention_forward.1} parent=47 // pred_check_branch
          %9415 = sbr.rel (%p9413) target = $region84
        $region83: #{mil_attention_forward.1} parent=47 // pred_region
          %s9416 = sadd.s32 %s36, %s37
          %s9417 = smul.u32 64, %s9416
          %s9418 = ssub.s32 75, %s9417
          %p9419 = scmp.lt.s32.totalorder %s9418, 64
          %s9420 = scalar_select %p9419, %s9418, 64
          %s9421 = smul.u32 128, %s9420
          %p9422 = scmp.ne.s32.totalorder 0, %s9421
          %s9423 = smul.addr %s9417, 8
          %s9424 = scalar_lea.vmem %s8, %s9423
          // Predicated region
          $region85: #{mil_attention_forward.1} parent=83 // pred_check
            %p9425 = pneg %p9422
          $region86: #{mil_attention_forward.1} parent=83 // pred_check_branch
            %9427 = sbr.rel (%p9425) target = $region88
          $region87: #{mil_attention_forward.1} parent=83 // pred_region
            // Predicated region
            $region89: #{mil_attention_forward.1} parent=87 // pred_check
              _
            $region90: #{mil_attention_forward.1} parent=87 // pred_check_branch
              %9429 = sbr.rel (0) target = $region92
            $region91: #{mil_attention_forward.1} parent=87 // pred_region
              // Predicated region
              $region111: #{mil_attention_forward.1} parent=91 // pred_check
                _
              $region112: #{mil_attention_forward.1} parent=91 // pred_check_branch
                %9605 = sbr.rel (0) target = $region114
              $region113: #{mil_attention_forward.1} parent=91 // pred_region
                %s9606 = sshrl.u32 %s9420, 6
                // While loop
                $region115: #{mil_attention_forward.1} parent=113 // loop_pre_header
                  _
                $region116: #{mil_attention_forward.1} parent=113 // loop_header
                  %s9608 = sphi 0, %s9610
                  %p9609 = scmp.ge.s32.totalorder %s9608, %s9606
                  %s9613 = sphi 0, %s9746
                  %s9614 = sphi %s9402, %s9749
                  %s9615 = sphi %s9424, %s9750
                $region117: #{mil_attention_forward.1} parent=113 // loop_header_branch
                  %9612 = sbr.rel (%p9609) target = $region121
                $region118: #{mil_attention_forward.1} parent=113 // loop_body
                  %v9616 = vld [vmem:[%s9614] sm:$0xff]
                  %9617 = vst [vmem:[%s9615] sm:$0xff] %v9616
                  %v9618 = vld [vmem:[%s9614 + $0x8] sm:$0xff]
                  %9619 = vst [vmem:[%s9615 + $0x8] sm:$0xff] %v9618
                  %v9620 = vld [vmem:[%s9614 + $0x10] sm:$0xff]
                  %9621 = vst [vmem:[%s9615 + $0x10] sm:$0xff] %v9620
                  %v9622 = vld [vmem:[%s9614 + $0x18] sm:$0xff]
                  %9623 = vst [vmem:[%s9615 + $0x18] sm:$0xff] %v9622
                  %v9624 = vld [vmem:[%s9614 + $0x20] sm:$0xff]
                  %9625 = vst [vmem:[%s9615 + $0x20] sm:$0xff] %v9624
                  %v9626 = vld [vmem:[%s9614 + $0x28] sm:$0xff]
                  %9627 = vst [vmem:[%s9615 + $0x28] sm:$0xff] %v9626
                  %v9628 = vld [vmem:[%s9614 + $0x30] sm:$0xff]
                  %9629 = vst [vmem:[%s9615 + $0x30] sm:$0xff] %v9628
                  %v9630 = vld [vmem:[%s9614 + $0x38] sm:$0xff]
                  %9631 = vst [vmem:[%s9615 + $0x38] sm:$0xff] %v9630
                  %v9632 = vld [vmem:[%s9614 + $0x40] sm:$0xff]
                  %9633 = vst [vmem:[%s9615 + $0x40] sm:$0xff] %v9632
                  %v9634 = vld [vmem:[%s9614 + $0x48] sm:$0xff]
                  %9635 = vst [vmem:[%s9615 + $0x48] sm:$0xff] %v9634
                  %v9636 = vld [vmem:[%s9614 + $0x50] sm:$0xff]
                  %9637 = vst [vmem:[%s9615 + $0x50] sm:$0xff] %v9636
                  %v9638 = vld [vmem:[%s9614 + $0x58] sm:$0xff]
                  %9639 = vst [vmem:[%s9615 + $0x58] sm:$0xff] %v9638
                  %v9640 = vld [vmem:[%s9614 + $0x60] sm:$0xff]
                  %9641 = vst [vmem:[%s9615 + $0x60] sm:$0xff] %v9640
                  %v9642 = vld [vmem:[%s9614 + $0x68] sm:$0xff]
                  %9643 = vst [vmem:[%s9615 + $0x68] sm:$0xff] %v9642
                  %v9644 = vld [vmem:[%s9614 + $0x70] sm:$0xff]
                  %9645 = vst [vmem:[%s9615 + $0x70] sm:$0xff] %v9644
                  %v9646 = vld [vmem:[%s9614 + $0x78] sm:$0xff]
                  %9647 = vst [vmem:[%s9615 + $0x78] sm:$0xff] %v9646
                  %v9648 = vld [vmem:[%s9614 + $0x80] sm:$0xff]
                  %9649 = vst [vmem:[%s9615 + $0x80] sm:$0xff] %v9648
                  %v9650 = vld [vmem:[%s9614 + $0x88] sm:$0xff]
                  %9651 = vst [vmem:[%s9615 + $0x88] sm:$0xff] %v9650
                  %v9652 = vld [vmem:[%s9614 + $0x90] sm:$0xff]
                  %9653 = vst [vmem:[%s9615 + $0x90] sm:$0xff] %v9652
                  %v9654 = vld [vmem:[%s9614 + $0x98] sm:$0xff]
                  %9655 = vst [vmem:[%s9615 + $0x98] sm:$0xff] %v9654
                  %v9656 = vld [vmem:[%s9614 + $0xa0] sm:$0xff]
                  %9657 = vst [vmem:[%s9615 + $0xa0] sm:$0xff] %v9656
                  %v9658 = vld [vmem:[%s9614 + $0xa8] sm:$0xff]
                  %9659 = vst [vmem:[%s9615 + $0xa8] sm:$0xff] %v9658
                  %v9660 = vld [vmem:[%s9614 + $0xb0] sm:$0xff]
                  %9661 = vst [vmem:[%s9615 + $0xb0] sm:$0xff] %v9660
                  %v9662 = vld [vmem:[%s9614 + $0xb8] sm:$0xff]
                  %9663 = vst [vmem:[%s9615 + $0xb8] sm:$0xff] %v9662
                  %v9664 = vld [vmem:[%s9614 + $0xc0] sm:$0xff]
                  %9665 = vst [vmem:[%s9615 + $0xc0] sm:$0xff] %v9664
                  %v9666 = vld [vmem:[%s9614 + $0xc8] sm:$0xff]
                  %9667 = vst [vmem:[%s9615 + $0xc8] sm:$0xff] %v9666
                  %v9668 = vld [vmem:[%s9614 + $0xd0] sm:$0xff]
                  %9669 = vst [vmem:[%s9615 + $0xd0] sm:$0xff] %v9668
                  %v9670 = vld [vmem:[%s9614 + $0xd8] sm:$0xff]
                  %9671 = vst [vmem:[%s9615 + $0xd8] sm:$0xff] %v9670
                  %v9672 = vld [vmem:[%s9614 + $0xe0] sm:$0xff]
                  %9673 = vst [vmem:[%s9615 + $0xe0] sm:$0xff] %v9672
                  %v9674 = vld [vmem:[%s9614 + $0xe8] sm:$0xff]
                  %9675 = vst [vmem:[%s9615 + $0xe8] sm:$0xff] %v9674
                  %v9676 = vld [vmem:[%s9614 + $0xf0] sm:$0xff]
                  %9677 = vst [vmem:[%s9615 + $0xf0] sm:$0xff] %v9676
                  %v9678 = vld [vmem:[%s9614 + $0xf8] sm:$0xff]
                  %9679 = vst [vmem:[%s9615 + $0xf8] sm:$0xff] %v9678
                  %v9680 = vld [vmem:[%s9614 + $0x100] sm:$0xff]
                  %9681 = vst [vmem:[%s9615 + $0x100] sm:$0xff] %v9680
                  %v9682 = vld [vmem:[%s9614 + $0x108] sm:$0xff]
                  %9683 = vst [vmem:[%s9615 + $0x108] sm:$0xff] %v9682
                  %v9684 = vld [vmem:[%s9614 + $0x110] sm:$0xff]
                  %9685 = vst [vmem:[%s9615 + $0x110] sm:$0xff] %v9684
                  %v9686 = vld [vmem:[%s9614 + $0x118] sm:$0xff]
                  %9687 = vst [vmem:[%s9615 + $0x118] sm:$0xff] %v9686
                  %v9688 = vld [vmem:[%s9614 + $0x120] sm:$0xff]
                  %9689 = vst [vmem:[%s9615 + $0x120] sm:$0xff] %v9688
                  %v9690 = vld [vmem:[%s9614 + $0x128] sm:$0xff]
                  %9691 = vst [vmem:[%s9615 + $0x128] sm:$0xff] %v9690
                  %v9692 = vld [vmem:[%s9614 + $0x130] sm:$0xff]
                  %9693 = vst [vmem:[%s9615 + $0x130] sm:$0xff] %v9692
                  %v9694 = vld [vmem:[%s9614 + $0x138] sm:$0xff]
                  %9695 = vst [vmem:[%s9615 + $0x138] sm:$0xff] %v9694
                  %v9696 = vld [vmem:[%s9614 + $0x140] sm:$0xff]
                  %9697 = vst [vmem:[%s9615 + $0x140] sm:$0xff] %v9696
                  %v9698 = vld [vmem:[%s9614 + $0x148] sm:$0xff]
                  %9699 = vst [vmem:[%s9615 + $0x148] sm:$0xff] %v9698
                  %v9700 = vld [vmem:[%s9614 + $0x150] sm:$0xff]
                  %9701 = vst [vmem:[%s9615 + $0x150] sm:$0xff] %v9700
                  %v9702 = vld [vmem:[%s9614 + $0x158] sm:$0xff]
                  %9703 = vst [vmem:[%s9615 + $0x158] sm:$0xff] %v9702
                  %v9704 = vld [vmem:[%s9614 + $0x160] sm:$0xff]
                  %9705 = vst [vmem:[%s9615 + $0x160] sm:$0xff] %v9704
                  %v9706 = vld [vmem:[%s9614 + $0x168] sm:$0xff]
                  %9707 = vst [vmem:[%s9615 + $0x168] sm:$0xff] %v9706
                  %v9708 = vld [vmem:[%s9614 + $0x170] sm:$0xff]
                  %9709 = vst [vmem:[%s9615 + $0x170] sm:$0xff] %v9708
                  %v9710 = vld [vmem:[%s9614 + $0x178] sm:$0xff]
                  %9711 = vst [vmem:[%s9615 + $0x178] sm:$0xff] %v9710
                  %v9712 = vld [vmem:[%s9614 + $0x180] sm:$0xff]
                  %9713 = vst [vmem:[%s9615 + $0x180] sm:$0xff] %v9712
                  %v9714 = vld [vmem:[%s9614 + $0x188] sm:$0xff]
                  %9715 = vst [vmem:[%s9615 + $0x188] sm:$0xff] %v9714
                  %v9716 = vld [vmem:[%s9614 + $0x190] sm:$0xff]
                  %9717 = vst [vmem:[%s9615 + $0x190] sm:$0xff] %v9716
                  %v9718 = vld [vmem:[%s9614 + $0x198] sm:$0xff]
                  %9719 = vst [vmem:[%s9615 + $0x198] sm:$0xff] %v9718
                  %v9720 = vld [vmem:[%s9614 + $0x1a0] sm:$0xff]
                  %9721 = vst [vmem:[%s9615 + $0x1a0] sm:$0xff] %v9720
                  %v9722 = vld [vmem:[%s9614 + $0x1a8] sm:$0xff]
                  %9723 = vst [vmem:[%s9615 + $0x1a8] sm:$0xff] %v9722
                  %v9724 = vld [vmem:[%s9614 + $0x1b0] sm:$0xff]
                  %9725 = vst [vmem:[%s9615 + $0x1b0] sm:$0xff] %v9724
                  %v9726 = vld [vmem:[%s9614 + $0x1b8] sm:$0xff]
                  %9727 = vst [vmem:[%s9615 + $0x1b8] sm:$0xff] %v9726
                  %v9728 = vld [vmem:[%s9614 + $0x1c0] sm:$0xff]
                  %9729 = vst [vmem:[%s9615 + $0x1c0] sm:$0xff] %v9728
                  %v9730 = vld [vmem:[%s9614 + $0x1c8] sm:$0xff]
                  %9731 = vst [vmem:[%s9615 + $0x1c8] sm:$0xff] %v9730
                  %v9732 = vld [vmem:[%s9614 + $0x1d0] sm:$0xff]
                  %9733 = vst [vmem:[%s9615 + $0x1d0] sm:$0xff] %v9732
                  %v9734 = vld [vmem:[%s9614 + $0x1d8] sm:$0xff]
                  %9735 = vst [vmem:[%s9615 + $0x1d8] sm:$0xff] %v9734
                  %v9736 = vld [vmem:[%s9614 + $0x1e0] sm:$0xff]
                  %9737 = vst [vmem:[%s9615 + $0x1e0] sm:$0xff] %v9736
                  %v9738 = vld [vmem:[%s9614 + $0x1e8] sm:$0xff]
                  %9739 = vst [vmem:[%s9615 + $0x1e8] sm:$0xff] %v9738
                  %v9740 = vld [vmem:[%s9614 + $0x1f0] sm:$0xff]
                  %9741 = vst [vmem:[%s9615 + $0x1f0] sm:$0xff] %v9740
                  %v9742 = vld [vmem:[%s9614 + $0x1f8] sm:$0xff]
                  %9743 = vst [vmem:[%s9615 + $0x1f8] sm:$0xff] %v9742
                  %s9744 = sadd.s32 1, %s9613
                  %p9745 = scmp.ge.s32.totalorder %s9744, %s9606
                  %s9746 = scalar_select %p9745, 0, %s9744
                  %s9747 = smul.u32 %s9746, 512
                  %s9748 = smul.u32 %s9746, 512
                  %s9749 = scalar_lea.vmem %s9402, %s9747 [#allocation18]
                  %s9750 = scalar_lea.vmem %s9424, %s9748
                $region119: #{mil_attention_forward.1} parent=113 // loop_footer
                  %s9610 = sadd.s32 %s9608, 1
                $region120: #{mil_attention_forward.1} parent=113 // loop_footer_branch
                  %9607 = sbr.rel target = $region116
                $region121: #{mil_attention_forward.1} parent=113 // loop_exit
                  _
                %s9751 = sshrl.u32 %s9420, 6
                %s9752 = sand.u32 %s9420, 63
                %s9753 = smul.u32 %s9751, 64
                %s9754 = smul.u32 8, %s9753
                %s9755 = scalar_lea.vmem %s9402, %s9754 [#allocation18]
                %s9756 = smul.u32 8, %s9753
                %s9757 = scalar_lea.vmem %s9424, %s9756
                // While loop
                $region122: #{mil_attention_forward.1} parent=113 // loop_pre_header
                  _
                $region123: #{mil_attention_forward.1} parent=113 // loop_header
                  %s9759 = sphi 0, %s9761
                  %p9760 = scmp.ge.s32.totalorder %s9759, %s9752
                  %s9764 = sphi 0, %s9771
                  %s9765 = sphi %s9755, %s9774
                  %s9766 = sphi %s9757, %s9775
                $region124: #{mil_attention_forward.1} parent=113 // loop_header_branch
                  %9763 = sbr.rel (%p9760) target = $region128
                $region125: #{mil_attention_forward.1} parent=113 // loop_body
                  %v9767 = vld [vmem:[%s9765] sm:$0xff]
                  %9768 = vst [vmem:[%s9766] sm:$0xff] %v9767
                  %s9769 = sadd.s32 1, %s9764
                  %p9770 = scmp.ge.s32.totalorder %s9769, %s9752
                  %s9771 = scalar_select %p9770, 0, %s9769
                  %s9772 = smul.u32 %s9771, 8
                  %s9773 = smul.u32 %s9771, 8
                  %s9774 = scalar_lea.vmem %s9755, %s9772 [#allocation18]
                  %s9775 = scalar_lea.vmem %s9757, %s9773
                $region126: #{mil_attention_forward.1} parent=113 // loop_footer
                  %s9761 = sadd.s32 %s9759, 1
                $region127: #{mil_attention_forward.1} parent=113 // loop_footer_branch
                  %9758 = sbr.rel target = $region123
                $region128: #{mil_attention_forward.1} parent=113 // loop_exit
                  _
              $region114: #{mil_attention_forward.1} parent=91 // pred_fallthru
                _
              // Predicated region
              $region129: #{mil_attention_forward.1} parent=91 // pred_check
                _
              $region130: #{mil_attention_forward.1} parent=91 // pred_check_branch
                %9777 = sbr.rel target = $region132
              $region131: #{mil_attention_forward.1} parent=91 // pred_region
                _
              $region132: #{mil_attention_forward.1} parent=91 // pred_fallthru
                _
            $region92: #{mil_attention_forward.1} parent=87 // pred_fallthru
              _
            // Predicated region
            $region93: #{mil_attention_forward.1} parent=87 // pred_check
              _
            $region94: #{mil_attention_forward.1} parent=87 // pred_check_branch
              %9431 = sbr.rel target = $region96
            $region95: #{mil_attention_forward.1} parent=87 // pred_region
              %s9433 = ssub.s32 256, 1
              %s9434 = sshrl.u32 %s9420, 6
              // While loop
              $region97: #{mil_attention_forward.1} parent=95 // loop_pre_header
                _
              $region98: #{mil_attention_forward.1} parent=95 // loop_header
                %s9436 = sphi 0, %s9438
                %p9437 = scmp.ge.s32.totalorder %s9436, %s9434
                %s9441 = sphi 0, %s9574
                %s9442 = sphi %s9402, %s9577
                %s9443 = sphi %s9424, %s9578
              $region99: #{mil_attention_forward.1} parent=95 // loop_header_branch
                %9440 = sbr.rel (%p9437) target = $region103
              $region100: #{mil_attention_forward.1} parent=95 // loop_body
                %v9444 = vld [vmem:[%s9442] sm:%s9433]
                %9445 = vst [vmem:[%s9443] sm:%s9433] %v9444
                %v9446 = vld [vmem:[%s9442 + $0x8] sm:%s9433]
                %9447 = vst [vmem:[%s9443 + $0x8] sm:%s9433] %v9446
                %v9448 = vld [vmem:[%s9442 + $0x10] sm:%s9433]
                %9449 = vst [vmem:[%s9443 + $0x10] sm:%s9433] %v9448
                %v9450 = vld [vmem:[%s9442 + $0x18] sm:%s9433]
                %9451 = vst [vmem:[%s9443 + $0x18] sm:%s9433] %v9450
                %v9452 = vld [vmem:[%s9442 + $0x20] sm:%s9433]
                %9453 = vst [vmem:[%s9443 + $0x20] sm:%s9433] %v9452
                %v9454 = vld [vmem:[%s9442 + $0x28] sm:%s9433]
                %9455 = vst [vmem:[%s9443 + $0x28] sm:%s9433] %v9454
                %v9456 = vld [vmem:[%s9442 + $0x30] sm:%s9433]
                %9457 = vst [vmem:[%s9443 + $0x30] sm:%s9433] %v9456
                %v9458 = vld [vmem:[%s9442 + $0x38] sm:%s9433]
                %9459 = vst [vmem:[%s9443 + $0x38] sm:%s9433] %v9458
                %v9460 = vld [vmem:[%s9442 + $0x40] sm:%s9433]
                %9461 = vst [vmem:[%s9443 + $0x40] sm:%s9433] %v9460
                %v9462 = vld [vmem:[%s9442 + $0x48] sm:%s9433]
                %9463 = vst [vmem:[%s9443 + $0x48] sm:%s9433] %v9462
                %v9464 = vld [vmem:[%s9442 + $0x50] sm:%s9433]
                %9465 = vst [vmem:[%s9443 + $0x50] sm:%s9433] %v9464
                %v9466 = vld [vmem:[%s9442 + $0x58] sm:%s9433]
                %9467 = vst [vmem:[%s9443 + $0x58] sm:%s9433] %v9466
                %v9468 = vld [vmem:[%s9442 + $0x60] sm:%s9433]
                %9469 = vst [vmem:[%s9443 + $0x60] sm:%s9433] %v9468
                %v9470 = vld [vmem:[%s9442 + $0x68] sm:%s9433]
                %9471 = vst [vmem:[%s9443 + $0x68] sm:%s9433] %v9470
                %v9472 = vld [vmem:[%s9442 + $0x70] sm:%s9433]
                %9473 = vst [vmem:[%s9443 + $0x70] sm:%s9433] %v9472
                %v9474 = vld [vmem:[%s9442 + $0x78] sm:%s9433]
                %9475 = vst [vmem:[%s9443 + $0x78] sm:%s9433] %v9474
                %v9476 = vld [vmem:[%s9442 + $0x80] sm:%s9433]
                %9477 = vst [vmem:[%s9443 + $0x80] sm:%s9433] %v9476
                %v9478 = vld [vmem:[%s9442 + $0x88] sm:%s9433]
                %9479 = vst [vmem:[%s9443 + $0x88] sm:%s9433] %v9478
                %v9480 = vld [vmem:[%s9442 + $0x90] sm:%s9433]
                %9481 = vst [vmem:[%s9443 + $0x90] sm:%s9433] %v9480
                %v9482 = vld [vmem:[%s9442 + $0x98] sm:%s9433]
                %9483 = vst [vmem:[%s9443 + $0x98] sm:%s9433] %v9482
                %v9484 = vld [vmem:[%s9442 + $0xa0] sm:%s9433]
                %9485 = vst [vmem:[%s9443 + $0xa0] sm:%s9433] %v9484
                %v9486 = vld [vmem:[%s9442 + $0xa8] sm:%s9433]
                %9487 = vst [vmem:[%s9443 + $0xa8] sm:%s9433] %v9486
                %v9488 = vld [vmem:[%s9442 + $0xb0] sm:%s9433]
                %9489 = vst [vmem:[%s9443 + $0xb0] sm:%s9433] %v9488
                %v9490 = vld [vmem:[%s9442 + $0xb8] sm:%s9433]
                %9491 = vst [vmem:[%s9443 + $0xb8] sm:%s9433] %v9490
                %v9492 = vld [vmem:[%s9442 + $0xc0] sm:%s9433]
                %9493 = vst [vmem:[%s9443 + $0xc0] sm:%s9433] %v9492
                %v9494 = vld [vmem:[%s9442 + $0xc8] sm:%s9433]
                %9495 = vst [vmem:[%s9443 + $0xc8] sm:%s9433] %v9494
                %v9496 = vld [vmem:[%s9442 + $0xd0] sm:%s9433]
                %9497 = vst [vmem:[%s9443 + $0xd0] sm:%s9433] %v9496
                %v9498 = vld [vmem:[%s9442 + $0xd8] sm:%s9433]
                %9499 = vst [vmem:[%s9443 + $0xd8] sm:%s9433] %v9498
                %v9500 = vld [vmem:[%s9442 + $0xe0] sm:%s9433]
                %9501 = vst [vmem:[%s9443 + $0xe0] sm:%s9433] %v9500
                %v9502 = vld [vmem:[%s9442 + $0xe8] sm:%s9433]
                %9503 = vst [vmem:[%s9443 + $0xe8] sm:%s9433] %v9502
                %v9504 = vld [vmem:[%s9442 + $0xf0] sm:%s9433]
                %9505 = vst [vmem:[%s9443 + $0xf0] sm:%s9433] %v9504
                %v9506 = vld [vmem:[%s9442 + $0xf8] sm:%s9433]
                %9507 = vst [vmem:[%s9443 + $0xf8] sm:%s9433] %v9506
                %v9508 = vld [vmem:[%s9442 + $0x100] sm:%s9433]
                %9509 = vst [vmem:[%s9443 + $0x100] sm:%s9433] %v9508
                %v9510 = vld [vmem:[%s9442 + $0x108] sm:%s9433]
                %9511 = vst [vmem:[%s9443 + $0x108] sm:%s9433] %v9510
                %v9512 = vld [vmem:[%s9442 + $0x110] sm:%s9433]
                %9513 = vst [vmem:[%s9443 + $0x110] sm:%s9433] %v9512
                %v9514 = vld [vmem:[%s9442 + $0x118] sm:%s9433]
                %9515 = vst [vmem:[%s9443 + $0x118] sm:%s9433] %v9514
                %v9516 = vld [vmem:[%s9442 + $0x120] sm:%s9433]
                %9517 = vst [vmem:[%s9443 + $0x120] sm:%s9433] %v9516
                %v9518 = vld [vmem:[%s9442 + $0x128] sm:%s9433]
                %9519 = vst [vmem:[%s9443 + $0x128] sm:%s9433] %v9518
                %v9520 = vld [vmem:[%s9442 + $0x130] sm:%s9433]
                %9521 = vst [vmem:[%s9443 + $0x130] sm:%s9433] %v9520
                %v9522 = vld [vmem:[%s9442 + $0x138] sm:%s9433]
                %9523 = vst [vmem:[%s9443 + $0x138] sm:%s9433] %v9522
                %v9524 = vld [vmem:[%s9442 + $0x140] sm:%s9433]
                %9525 = vst [vmem:[%s9443 + $0x140] sm:%s9433] %v9524
                %v9526 = vld [vmem:[%s9442 + $0x148] sm:%s9433]
                %9527 = vst [vmem:[%s9443 + $0x148] sm:%s9433] %v9526
                %v9528 = vld [vmem:[%s9442 + $0x150] sm:%s9433]
                %9529 = vst [vmem:[%s9443 + $0x150] sm:%s9433] %v9528
                %v9530 = vld [vmem:[%s9442 + $0x158] sm:%s9433]
                %9531 = vst [vmem:[%s9443 + $0x158] sm:%s9433] %v9530
                %v9532 = vld [vmem:[%s9442 + $0x160] sm:%s9433]
                %9533 = vst [vmem:[%s9443 + $0x160] sm:%s9433] %v9532
                %v9534 = vld [vmem:[%s9442 + $0x168] sm:%s9433]
                %9535 = vst [vmem:[%s9443 + $0x168] sm:%s9433] %v9534
                %v9536 = vld [vmem:[%s9442 + $0x170] sm:%s9433]
                %9537 = vst [vmem:[%s9443 + $0x170] sm:%s9433] %v9536
                %v9538 = vld [vmem:[%s9442 + $0x178] sm:%s9433]
                %9539 = vst [vmem:[%s9443 + $0x178] sm:%s9433] %v9538
                %v9540 = vld [vmem:[%s9442 + $0x180] sm:%s9433]
                %9541 = vst [vmem:[%s9443 + $0x180] sm:%s9433] %v9540
                %v9542 = vld [vmem:[%s9442 + $0x188] sm:%s9433]
                %9543 = vst [vmem:[%s9443 + $0x188] sm:%s9433] %v9542
                %v9544 = vld [vmem:[%s9442 + $0x190] sm:%s9433]
                %9545 = vst [vmem:[%s9443 + $0x190] sm:%s9433] %v9544
                %v9546 = vld [vmem:[%s9442 + $0x198] sm:%s9433]
                %9547 = vst [vmem:[%s9443 + $0x198] sm:%s9433] %v9546
                %v9548 = vld [vmem:[%s9442 + $0x1a0] sm:%s9433]
                %9549 = vst [vmem:[%s9443 + $0x1a0] sm:%s9433] %v9548
                %v9550 = vld [vmem:[%s9442 + $0x1a8] sm:%s9433]
                %9551 = vst [vmem:[%s9443 + $0x1a8] sm:%s9433] %v9550
                %v9552 = vld [vmem:[%s9442 + $0x1b0] sm:%s9433]
                %9553 = vst [vmem:[%s9443 + $0x1b0] sm:%s9433] %v9552
                %v9554 = vld [vmem:[%s9442 + $0x1b8] sm:%s9433]
                %9555 = vst [vmem:[%s9443 + $0x1b8] sm:%s9433] %v9554
                %v9556 = vld [vmem:[%s9442 + $0x1c0] sm:%s9433]
                %9557 = vst [vmem:[%s9443 + $0x1c0] sm:%s9433] %v9556
                %v9558 = vld [vmem:[%s9442 + $0x1c8] sm:%s9433]
                %9559 = vst [vmem:[%s9443 + $0x1c8] sm:%s9433] %v9558
                %v9560 = vld [vmem:[%s9442 + $0x1d0] sm:%s9433]
                %9561 = vst [vmem:[%s9443 + $0x1d0] sm:%s9433] %v9560
                %v9562 = vld [vmem:[%s9442 + $0x1d8] sm:%s9433]
                %9563 = vst [vmem:[%s9443 + $0x1d8] sm:%s9433] %v9562
                %v9564 = vld [vmem:[%s9442 + $0x1e0] sm:%s9433]
                %9565 = vst [vmem:[%s9443 + $0x1e0] sm:%s9433] %v9564
                %v9566 = vld [vmem:[%s9442 + $0x1e8] sm:%s9433]
                %9567 = vst [vmem:[%s9443 + $0x1e8] sm:%s9433] %v9566
                %v9568 = vld [vmem:[%s9442 + $0x1f0] sm:%s9433]
                %9569 = vst [vmem:[%s9443 + $0x1f0] sm:%s9433] %v9568
                %v9570 = vld [vmem:[%s9442 + $0x1f8] sm:%s9433]
                %9571 = vst [vmem:[%s9443 + $0x1f8] sm:%s9433] %v9570
                %s9572 = sadd.s32 1, %s9441
                %p9573 = scmp.ge.s32.totalorder %s9572, %s9434
                %s9574 = scalar_select %p9573, 0, %s9572
                %s9575 = smul.u32 %s9574, 512
                %s9576 = smul.u32 %s9574, 512
                %s9577 = scalar_lea.vmem %s9402, %s9575 [#allocation18]
                %s9578 = scalar_lea.vmem %s9424, %s9576
              $region101: #{mil_attention_forward.1} parent=95 // loop_footer
                %s9438 = sadd.s32 %s9436, 1
              $region102: #{mil_attention_forward.1} parent=95 // loop_footer_branch
                %9435 = sbr.rel target = $region98
              $region103: #{mil_attention_forward.1} parent=95 // loop_exit
                _
              %s9579 = sshrl.u32 %s9420, 6
              %s9580 = sand.u32 %s9420, 63
              %s9581 = smul.u32 %s9579, 64
              %s9582 = smul.u32 8, %s9581
              %s9583 = scalar_lea.vmem %s9402, %s9582 [#allocation18]
              %s9584 = smul.u32 8, %s9581
              %s9585 = scalar_lea.vmem %s9424, %s9584
              // While loop
              $region104: #{mil_attention_forward.1} parent=95 // loop_pre_header
                _
              $region105: #{mil_attention_forward.1} parent=95 // loop_header
                %s9587 = sphi 0, %s9589
                %p9588 = scmp.ge.s32.totalorder %s9587, %s9580
                %s9592 = sphi 0, %s9599
                %s9593 = sphi %s9583, %s9602
                %s9594 = sphi %s9585, %s9603
              $region106: #{mil_attention_forward.1} parent=95 // loop_header_branch
                %9591 = sbr.rel (%p9588) target = $region110
              $region107: #{mil_attention_forward.1} parent=95 // loop_body
                %v9595 = vld [vmem:[%s9593] sm:%s9433]
                %9596 = vst [vmem:[%s9594] sm:%s9433] %v9595
                %s9597 = sadd.s32 1, %s9592
                %p9598 = scmp.ge.s32.totalorder %s9597, %s9580
                %s9599 = scalar_select %p9598, 0, %s9597
                %s9600 = smul.u32 %s9599, 8
                %s9601 = smul.u32 %s9599, 8
                %s9602 = scalar_lea.vmem %s9583, %s9600 [#allocation18]
                %s9603 = scalar_lea.vmem %s9585, %s9601
              $region108: #{mil_attention_forward.1} parent=95 // loop_footer
                %s9589 = sadd.s32 %s9587, 1
              $region109: #{mil_attention_forward.1} parent=95 // loop_footer_branch
                %9586 = sbr.rel target = $region105
              $region110: #{mil_attention_forward.1} parent=95 // loop_exit
                _
            $region96: #{mil_attention_forward.1} parent=87 // pred_fallthru
              _
          $region88: #{mil_attention_forward.1} parent=83 // pred_fallthru
            _
          %9778 = vnop
        $region84: #{mil_attention_forward.1} parent=47 // pred_fallthru
          _
        // Predicated region
        $region133: #{mil_attention_forward.1} parent=47 // pred_check
          %p9779 = pneg %p244
        $region134: #{mil_attention_forward.1} parent=47 // pred_check_branch
          %9781 = sbr.rel (%p9779) target = $region136
        $region135: #{mil_attention_forward.1} parent=47 // pred_region
          _
        $region136: #{mil_attention_forward.1} parent=47 // pred_fallthru
          _
        // Predicated region
        $region137: #{mil_attention_forward.1} parent=47 // pred_check
          %p9782 = pneg %p270
        $region138: #{mil_attention_forward.1} parent=47 // pred_check_branch
          %9784 = sbr.rel (%p9782) target = $region140
        $region139: #{mil_attention_forward.1} parent=47 // pred_region
          _
        $region140: #{mil_attention_forward.1} parent=47 // pred_fallthru
          _
        // Predicated region
        $region141: #{mil_attention_forward.1} parent=47 // pred_check
          %p9785 = pneg %p296
        $region142: #{mil_attention_forward.1} parent=47 // pred_check_branch
          %9787 = sbr.rel (%p9785) target = $region144
        $region143: #{mil_attention_forward.1} parent=47 // pred_region
          _
        $region144: #{mil_attention_forward.1} parent=47 // pred_fallthru
          _
      $region48: #{mil_attention_forward.1} parent=5 // pred_fallthru
        _
      %p9788 = scmp.le.s32.totalorder 2, %s27
      // Predicated region
      $region145: #{mil_attention_forward.1} parent=5 // pred_check
        %p9789 = pneg %p9788
      $region146: #{mil_attention_forward.1} parent=5 // pred_check_branch
        %9791 = sbr.rel (%p9789) target = $region148
      $region147: #{mil_attention_forward.1} parent=5 // pred_region
        %s9792 = ssub.s32 %s27, 2
        // Predicated region
        $region149: #{mil_attention_forward.1} parent=147 // pred_check
          %p9793 = pneg %p224
        $region150: #{mil_attention_forward.1} parent=147 // pred_check_branch
          %9795 = sbr.rel (%p9793) target = $region152
        $region151: #{mil_attention_forward.1} parent=147 // pred_region
          %s9796 = sand.u32 %s209, 1
          %s9797 = sand.u32 %s209, 1
          %s9798 = smul.addr %s9797, 512
          %s9799 = scalar_lea.vmem [#allocation18], %s9798
        $region152: #{mil_attention_forward.1} parent=147 // pred_fallthru
          _
        // Predicated region
        $region153: #{mil_attention_forward.1} parent=147 // pred_check
          %p9800 = pneg %p250
        $region154: #{mil_attention_forward.1} parent=147 // pred_check_branch
          %9802 = sbr.rel (%p9800) target = $region156
        $region155: #{mil_attention_forward.1} parent=147 // pred_region
          %p9803 = scmp.lt.s32.totalorder %s38, 1
          %s9804 = scalar_select %p9803, %s38, 1
          %s9805 = scalar_lea.vmem %s9, %s9804
        $region156: #{mil_attention_forward.1} parent=147 // pred_fallthru
          _
        // Predicated region
        $region157: #{mil_attention_forward.1} parent=147 // pred_check
          %p9806 = pneg %p276
        $region158: #{mil_attention_forward.1} parent=147 // pred_check_branch
          %9808 = sbr.rel (%p9806) target = $region160
        $region159: #{mil_attention_forward.1} parent=147 // pred_region
          %p9809 = scmp.lt.s32.totalorder %s38, 1
          %s9810 = scalar_select %p9809, %s38, 1
          %s9811 = scalar_lea.vmem %s10, %s9810
        $region160: #{mil_attention_forward.1} parent=147 // pred_fallthru
          _
        // Predicated region
        $region161: #{mil_attention_forward.1} parent=147 // pred_check
          %p9812 = pneg %p302
        $region162: #{mil_attention_forward.1} parent=147 // pred_check_branch
          %9814 = sbr.rel (%p9812) target = $region164
        $region163: #{mil_attention_forward.1} parent=147 // pred_region
          %p9815 = scmp.lt.s32.totalorder %s38, 1
          %s9816 = scalar_select %p9815, %s38, 1
          %s9817 = smul.addr %s9816, 4
          %s9818 = scalar_lea.vmem %s11, %s9817
        $region164: #{mil_attention_forward.1} parent=147 // pred_fallthru
          _
      $region148: #{mil_attention_forward.1} parent=5 // pred_fallthru
        _
    $region6: #{mil_attention_forward.1} parent=1 // loop_footer
      %s31 = sadd.s32 1, %s27
    $region7: #{mil_attention_forward.1} parent=1 // loop_footer_branch
      %26 = sbr.rel target = $region3
    $region8: #{mil_attention_forward.1} parent=1 // loop_exit
      _
    %9819 = vsyncpa [#allocation9], 1
    %s9820 = scalar_lea.sflag [#allocation9], 1
    %9821 = vsyncpa %s9820, 1
    %9822 = vsyncpa [#allocation11], 1
    %9823 = vsyncpa [#allocation14], 1
    %9824 = vsyncpa [#allocation17], 1

</llo_original>
